<compile_context>
chip_gen: v7x
topology: tpu7x:2x2x1
jax: 0.10.0
libtpu: 0.0.40
codegen_flags: <defaults>
</compile_context>

<pallas_src>
import jax
import jax.numpy as jnp
from jax.experimental import pallas as pl
from jax.experimental.pallas import tpu as pltpu

LANE = 128
SUBLANE = 8
VMEM_LIMIT = 48 * 1024 * 1024  # explicit scoped-VMEM cap (< v7x 64 MiB physical)


def _round_up(x, m):
    return (x + m - 1) // m * m


def _largest_divisor(n, max_t, mult):
    """Largest d <= max_t with d % mult == 0 and n % d == 0; else n (full dim)."""
    if n <= max_t:
        return n
    d = (max_t // mult) * mult
    while d >= mult:
        if n % d == 0:
            return d
        d -= mult
    return n


def _pad_last(x, target):
    pad = target - x.shape[-1]
    if pad == 0:
        return x
    return jnp.pad(x, [(0, 0)] * (x.ndim - 1) + [(0, pad)])


def _pad_gate_cols(w, hp):
    """Pad each of the 4 gate blocks (i|f|g|o) along the last axis to hp."""
    gates = jnp.split(w, 4, axis=-1)
    return jnp.concatenate([_pad_last(g, hp) for g in gates], axis=-1)


def _pad_rows(w, rp):
    pad = rp - w.shape[0]
    if pad == 0:
        return w
    return jnp.pad(w, [(0, pad)] + [(0, 0)] * (w.ndim - 1))


# ---------------- fused 3-layer LSTM (embedding chunk -> hidden chunk) ----------------
def _lstm3_kernel(emb_ref, wih0_ref, b0_ref, whh0_ref,
                  wih1_ref, whh1_ref, b1_ref,
                  wih2_ref, whh2_ref, b2_ref,
                  hid_ref,
                  h0_s, c0_s, h1_s, c1_s, h2_s, c2_s):
    Bc, Tc, _ = emb_ref.shape
    Hp = h0_s.shape[-1]

    # Fresh zero state at time-chunk 0 of every (independent) batch block.
    @pl.when(pl.program_id(1) == 0)
    def _():
        for s in (h0_s, c0_s, h1_s, c1_s, h2_s, c2_s):
            s[...] = jnp.zeros_like(s)

    def cell(gates, c):
        # PyTorch gate order i | f | g | o; Hp % 128 == 0 -> lane-aligned slices.
        i = jax.nn.sigmoid(gates[:, 0 * Hp:1 * Hp])
        f = jax.nn.sigmoid(gates[:, 1 * Hp:2 * Hp])
        g = jnp.tanh(gates[:, 2 * Hp:3 * Hp])
        o = jax.nn.sigmoid(gates[:, 3 * Hp:4 * Hp])
        c_new = f * c + i * g
        return o * jnp.tanh(c_new), c_new

    def input_gates(x_bf16, w_ref, b_ref):
        """Whole-chunk input gates: one fat (Bc*Tc, K) @ (K, 4Hp) bf16 MXU matmul
        plus one hoisted bias broadcast -- entirely off the serial critical path."""
        g = jnp.dot(x_bf16.reshape(Bc * Tc, -1), w_ref[...],
                    preferred_element_type=jnp.float32) + b_ref[...]
        return g.reshape(Bc, Tc, 4 * Hp)

    def recurrence(gx, h_s, c_s, whh_bf16):
        """Serial Tc-step recurrence; only h @ W_hh stays on the critical path.
        Per-step h stays in registers; no per-step masked sublane stores."""
        h = h_s[...]
        c = c_s[...]
        hs = []
        # TODO(synk): switch to lax.fori_loop(..., unroll=4..8) with a scratch
        #   chunk buffer if Tc grows beyond ~64 (vreg pressure / compile time).
        for t in range(Tc):
            gates = gx[:, t, :] + jnp.dot(h.astype(jnp.bfloat16), whh_bf16,
                                          preferred_element_type=jnp.float32)
            h, c = cell(gates, c)
            hs.append(h)
        h_s[...] = h          # persist recurrent state across time chunks
        c_s[...] = c
        return jnp.stack(hs, axis=1)              # (Bc, Tc, Hp) f32, single value

    # Layer 0: embedding chunk -> batched gates -> recurrence.
    gx0 = input_gates(emb_ref[...], wih0_ref, b0_ref)
    h0c = recurrence(gx0, h0_s, c0_s, whh0_ref[...])
    # Layers 1 / 2: chunk-batched input gates (M = Bc*Tc), then recurrence.
    gx1 = input_gates(h0c.astype(jnp.bfloat16), wih1_ref, b1_ref)
    h1c = recurrence(gx1, h1_s, c1_s, whh1_ref[...])
    gx2 = input_gates(h1c.astype(jnp.bfloat16), wih2_ref, b2_ref)
    h2c = recurrence(gx2, h2_s, c2_s, whh2_ref[...])

    # One unmasked, lane-dense (Bc, Tc, Hp) bf16 store, already batch-major.
    hid_ref[...] = h2c.astype(jnp.bfloat16)


def lstm3_hidden(emb, layers, *, t_chunk=None, b_chunk=None):
    """emb: (B, T, Ep) bf16 -> final-layer hidden states (B, T, Hp) bf16."""
    B, T, Ep = emb.shape
    l0, l1, l2 = layers
    Hp, G4 = l0["w_hh"].shape
    Tc = t_chunk if t_chunk is not None else _largest_divisor(T, 64, SUBLANE)
    Bc = b_chunk if b_chunk is not None else (B // 2 if (B > 1 and B % 2 == 0) else B)
    assert T % Tc == 0 and (Tc % SUBLANE == 0 or Tc == T), (T, Tc)
    assert B % Bc == 0, (B, Bc)

    # Constant-index weight/bias blocks never change across the grid: single
    # pipeline buffer halves their VMEM residency.
    def wspec(shape):
        return pl.BlockSpec(shape, lambda b, c: (0, 0),
                            pipeline_mode=pl.Buffered(1))

    return pl.pallas_call(
        _lstm3_kernel,
        out_shape=jax.ShapeDtypeStruct((B, T, Hp), jnp.bfloat16),
        grid_spec=pltpu.PrefetchScalarGridSpec(
            num_scalar_prefetch=0,
            grid=(B // Bc, T // Tc),
            in_specs=[
                pl.BlockSpec((Bc, Tc, Ep), lambda b, c: (b, c, 0)),  # emb chunk
                wspec((Ep, G4)),     # W_ih0
                wspec((1, G4)),      # b0 (= b_ih0 + b_hh0)
                wspec((Hp, G4)),     # W_hh0
                wspec((Hp, G4)),     # W_ih1
                wspec((Hp, G4)),     # W_hh1
                wspec((1, G4)),      # b1
                wspec((Hp, G4)),     # W_ih2
                wspec((Hp, G4)),     # W_hh2
                wspec((1, G4)),      # b2
            ],
            out_specs=pl.BlockSpec((Bc, Tc, Hp), lambda b, c: (b, c, 0)),
            scratch_shapes=[pltpu.VMEM((Bc, Hp), jnp.float32)] * 6,  # h/c x 3 layers
        ),
        compiler_params=pltpu.CompilerParams(
            # Independent batch blocks -> "parallel" (uses v7x's 2nd TensorCore);
            # time recurrence is serial -> "arbitrary".
            dimension_semantics=("parallel", "arbitrary"),
            vmem_limit_bytes=VMEM_LIMIT),
    )(emb, l0["w_ih"], l0["b"], l0["w_hh"],
      l1["w_ih"], l1["w_hh"], l1["b"],
      l2["w_ih"], l2["w_hh"], l2["b"])


# ------------------------- vocab projection head (tiled) -------------------------
def _vocab_head_kernel(h_ref, w_ref, b_ref, o_ref):
    o_ref[...] = (jnp.dot(h_ref[...], w_ref[...],
                          preferred_element_type=jnp.float32) + b_ref[...])


def vocab_head(h2d, w_out, b_out):
    """(M, Hp) bf16 @ (Hp, Vp) bf16 + (1, Vp) f32 -> (M, Vp) f32, tiled over (M, Vp)."""
    M, Hp = h2d.shape
    Vp = w_out.shape[1]
    tm = _largest_divisor(M, 512, SUBLANE)
    tn = _largest_divisor(Vp, 512, LANE)
    # TODO(synk): also tile the K (Hp) axis for very large hidden sizes.
    return pl.pallas_call(
        _vocab_head_kernel,
        out_shape=jax.ShapeDtypeStruct((M, Vp), jnp.float32),
        grid=(M // tm, Vp // tn),
        in_specs=[
            pl.BlockSpec((tm, Hp), lambda i, j: (i, 0)),
            pl.BlockSpec((Hp, tn), lambda i, j: (0, j)),
            pl.BlockSpec((1, tn), lambda i, j: (0, j)),
        ],
        out_specs=pl.BlockSpec((tm, tn), lambda i, j: (i, j)),
        compiler_params=pltpu.CompilerParams(
            dimension_semantics=("parallel", "parallel"),
            vmem_limit_bytes=VMEM_LIMIT),
    )(h2d, w_out, b_out)


# ----------------------------------- parameters -----------------------------------
def init_params(key, vocab_size, embed_size, hidden_size, num_layers=3):
    """Deterministic stand-in params, pre-padded per-gate to 128 lanes.
    Matmul weights are bf16 (MXU-native); biases stay f32 (added post-matmul)."""
    assert num_layers == 3  # the PyTorch module hardcodes num_layers = 3
    H, E, V = hidden_size, embed_size, vocab_size
    Hp, Ep, Vp = _round_up(H, LANE), _round_up(E, LANE), _round_up(V, LANE)

    keys = jax.random.split(key, 3 + 4 * num_layers)
    k = 1.0 / jnp.sqrt(jnp.float32(H))

    def unif(kk, shape):
        return jax.random.uniform(kk, shape, minval=-k, maxval=k, dtype=jnp.float32)

    emb = jax.random.normal(keys[0], (V, E), dtype=jnp.float32)

    layers = []
    ki = 3
    for l in range(num_layers):
        in_dim = E if l == 0 else H
        w_ih = unif(keys[ki + 0], (in_dim, 4 * H))
        w_hh = unif(keys[ki + 1], (H, 4 * H))
        b_ih = unif(keys[ki + 2], (4 * H,))
        b_hh = unif(keys[ki + 3], (4 * H,))
        ki += 4
        in_p = Ep if l == 0 else Hp
        layers.append({
            "w_ih": _pad_rows(_pad_gate_cols(w_ih, Hp), in_p).astype(jnp.bfloat16),
            "w_hh": _pad_rows(_pad_gate_cols(w_hh, Hp), Hp).astype(jnp.bfloat16),
            "b": _pad_gate_cols(b_ih + b_hh, Hp)[None, :],       # (1, 4Hp) f32
        })

    w_out = unif(keys[1], (H, V))
    b_out = unif(keys[2], (V,))

    return {
        "embedding": _pad_last(emb, Ep).astype(jnp.bfloat16),            # (V, Ep)
        "lstm": layers,
        "w_out": _pad_rows(_pad_last(w_out, Vp), Hp).astype(jnp.bfloat16),  # (Hp, Vp)
        "b_out": _pad_last(b_out, Vp)[None, :],                          # (1, Vp) f32
    }


# ------------------------------------ forward -------------------------------------
def lstm_lm_forward(params, tokens, *, t_chunk=None, b_chunk=None):
    """tokens: (B, T) int32 -> logits (B, T, vocab) f32 (batch_first)."""
    B, T = tokens.shape
    vocab = params["embedding"].shape[0]
    # Embedding gather stays in XLA glue (stand-in for the external embedder).
    emb = jnp.take(params["embedding"], tokens, axis=0)              # (B, T, Ep) bf16
    hidden = lstm3_hidden(emb, params["lstm"],
                          t_chunk=t_chunk, b_chunk=b_chunk)          # (B, T, Hp) bf16
    logits_p = vocab_head(hidden.reshape(B * T, hidden.shape[-1]),
                          params["w_out"], params["b_out"])          # (B*T, Vp) f32
    return logits_p.reshape(B, T, -1)[:, :, :vocab]                  # (B, T, V)


if __name__ == "__main__":
    B, T = 2, 16           # batch, window size
    E, H = 32, 32          # embedding size, rnn_size
    V = 64                 # vocab_size
    NUM_LAYERS = 3

    key = jax.random.PRNGKey(0)
    pkey, tkey = jax.random.split(key)
    params = init_params(pkey, V, E, H, NUM_LAYERS)
    tokens = jax.random.randint(tkey, (B, T), 0, V, dtype=jnp.int32)

    fwd = jax.jit(lstm_lm_forward)
    logits = fwd(params, tokens)
    jax.block_until_ready(logits)

    assert logits.shape == (B, T, V), logits.shape
    assert logits.dtype == jnp.float32
    assert bool(jnp.all(jnp.isfinite(logits)))
    print("KERNEL_OK")
</pallas_src>

<mosaic_0001>
module attributes {stable_mosaic.version = 11 : i64} {
  func.func @_vocab_head_kernel(%arg0: i32, %arg1: i32, %arg2: memref<32x128xbf16, #tpu.memory_space<vmem>>, %arg3: memref<128x128xbf16, #tpu.memory_space<vmem>>, %arg4: memref<1x128xf32, #tpu.memory_space<vmem>>, %arg5: memref<32x128xf32, #tpu.memory_space<vmem>>) attributes {dimension_semantics = [#tpu.dimension_semantics<parallel>, #tpu.dimension_semantics<parallel>], iteration_bounds = array<i64: 1, 1>, scalar_prefetch = 0 : i64, scratch_operands = 0 : i64, tpu.core_type = #tpu.core_type<tc>, window_params = [{transform_indices = @transform_0, window_bounds = array<i64: 32, 128>}, {transform_indices = @transform_1, window_bounds = array<i64: 128, 128>}, {transform_indices = @transform_2, window_bounds = array<i64: 1, 128>}, {transform_indices = @transform_3, window_bounds = array<i64: 32, 128>}]} {
    %c0 = arith.constant 0 : index
    %c0_0 = arith.constant 0 : index
    %0 = vector.load %arg2[%c0, %c0_0] : memref<32x128xbf16, #tpu.memory_space<vmem>>, vector<32x128xbf16>
    %c0_1 = arith.constant 0 : index
    %c0_2 = arith.constant 0 : index
    %1 = vector.load %arg3[%c0_1, %c0_2] : memref<128x128xbf16, #tpu.memory_space<vmem>>, vector<128x128xbf16>
    %cst = arith.constant dense<0.000000e+00> : vector<32x128xf32>
    %2 = tpu.matmul %0, %1, %cst {dimension_numbers = #tpu.dot_dimension_numbers<[1], [0], [0], [1], [0, 0, 1, 1], [], []>} : vector<32x128xbf16>, vector<128x128xbf16>, vector<32x128xf32> -> vector<32x128xf32>
    %c0_3 = arith.constant 0 : index
    %c0_4 = arith.constant 0 : index
    %3 = vector.load %arg4[%c0_3, %c0_4] : memref<1x128xf32, #tpu.memory_space<vmem>>, vector<1x128xf32>
    %4 = vector.broadcast %3 : vector<1x128xf32> to vector<32x128xf32>
    %5 = arith.addf %2, %4 : vector<32x128xf32>
    %c0_5 = arith.constant 0 : index
    %c0_6 = arith.constant 0 : index
    %6 = vector.load %arg5[%c0_5, %c0_6] : memref<32x128xf32, #tpu.memory_space<vmem>>, vector<32x128xf32>
    tpu.vector_store %arg5[%c0_5, %c0_6], %5 {strides = array<i32>} : memref<32x128xf32, #tpu.memory_space<vmem>>, vector<32x128xf32>,
    return
  }
  func.func @transform_0(%arg0: i32, %arg1: i32) -> (i32, i32) {
    %c0_i32 = arith.constant 0 : i32
    %c0_i32_0 = arith.constant 0 : i32
    return %arg0, %c0_i32 : i32, i32
  }
  func.func @transform_1(%arg0: i32, %arg1: i32) -> (i32, i32) {
    %c0_i32 = arith.constant 0 : i32
    %c0_i32_0 = arith.constant 0 : i32
    return %c0_i32, %arg1 : i32, i32
  }
  func.func @transform_2(%arg0: i32, %arg1: i32) -> (i32, i32) {
    %c0_i32 = arith.constant 0 : i32
    %c0_i32_0 = arith.constant 0 : i32
    return %c0_i32, %arg1 : i32, i32
  }
  func.func @transform_3(%arg0: i32, %arg1: i32) -> (i32, i32) {
    %c0_i32 = arith.constant 0 : i32
    return %arg0, %arg1 : i32, i32
  }
}

module attributes {stable_mosaic.version = 11 : i64} {
  func.func @_lstm3_kernel(%arg0: i32, %arg1: i32, %arg2: memref<1x16x128xbf16, #tpu.memory_space<vmem>>, %arg3: memref<128x512xbf16, #tpu.memory_space<vmem>>, %arg4: memref<1x512xf32, #tpu.memory_space<vmem>>, %arg5: memref<128x512xbf16, #tpu.memory_space<vmem>>, %arg6: memref<128x512xbf16, #tpu.memory_space<vmem>>, %arg7: memref<128x512xbf16, #tpu.memory_space<vmem>>, %arg8: memref<1x512xf32, #tpu.memory_space<vmem>>, %arg9: memref<128x512xbf16, #tpu.memory_space<vmem>>, %arg10: memref<128x512xbf16, #tpu.memory_space<vmem>>, %arg11: memref<1x512xf32, #tpu.memory_space<vmem>>, %arg12: memref<1x16x128xbf16, #tpu.memory_space<vmem>>, %arg13: memref<1x128xf32, #tpu.memory_space<vmem>>, %arg14: memref<1x128xf32, #tpu.memory_space<vmem>>, %arg15: memref<1x128xf32, #tpu.memory_space<vmem>>, %arg16: memref<1x128xf32, #tpu.memory_space<vmem>>, %arg17: memref<1x128xf32, #tpu.memory_space<vmem>>, %arg18: memref<1x128xf32, #tpu.memory_space<vmem>>) attributes {dimension_semantics = [#tpu.dimension_semantics<parallel>, #tpu.dimension_semantics<arbitrary>], iteration_bounds = array<i64: 2, 1>, scalar_prefetch = 0 : i64, scratch_operands = 6 : i64, tpu.core_type = #tpu.core_type<tc>, window_params = [{transform_indices = @transform_0, window_bounds = array<i64: 1, 16, 128>}, {pipeline_mode = #tpu.pipeline_mode<synchronous>, transform_indices = @transform_1, window_bounds = array<i64: 128, 512>}, {pipeline_mode = #tpu.pipeline_mode<synchronous>, transform_indices = @transform_2, window_bounds = array<i64: 1, 512>}, {pipeline_mode = #tpu.pipeline_mode<synchronous>, transform_indices = @transform_3, window_bounds = array<i64: 128, 512>}, {pipeline_mode = #tpu.pipeline_mode<synchronous>, transform_indices = @transform_4, window_bounds = array<i64: 128, 512>}, {pipeline_mode = #tpu.pipeline_mode<synchronous>, transform_indices = @transform_5, window_bounds = array<i64: 128, 512>}, {pipeline_mode = #tpu.pipeline_mode<synchronous>, transform_indices = @transform_6, window_bounds = array<i64: 1, 512>}, {pipeline_mode = #tpu.pipeline_mode<synchronous>, transform_indices = @transform_7, window_bounds = array<i64: 128, 512>}, {pipeline_mode = #tpu.pipeline_mode<synchronous>, transform_indices = @transform_8, window_bounds = array<i64: 128, 512>}, {pipeline_mode = #tpu.pipeline_mode<synchronous>, transform_indices = @transform_9, window_bounds = array<i64: 1, 512>}, {transform_indices = @transform_10, window_bounds = array<i64: 1, 16, 128>}]} {
    %c0_i32 = arith.constant 0 : i32
    %0 = arith.cmpi eq, %arg1, %c0_i32 : i32
    %1 = arith.extui %0 : i1 to i32
    %c0_i32_0 = arith.constant 0 : i32
    %2 = arith.cmpi ne, %1, %c0_i32_0 : i32
    scf.if %2 {
      %cst_242 = arith.constant 0.000000e+00 : f32
      %1535 = vector.broadcast %cst_242 : f32 to vector<1x128xf32>
      %c0_243 = arith.constant 0 : index
      %c0_244 = arith.constant 0 : index
      %1536 = vector.load %arg13[%c0_243, %c0_244] : memref<1x128xf32, #tpu.memory_space<vmem>>, vector<1x128xf32>
      tpu.vector_store %arg13[%c0_243, %c0_244], %1535 {strides = array<i32>} : memref<1x128xf32, #tpu.memory_space<vmem>>, vector<1x128xf32>,
      %cst_245 = arith.constant 0.000000e+00 : f32
      %1537 = vector.broadcast %cst_245 : f32 to vector<1x128xf32>
      %c0_246 = arith.constant 0 : index
      %c0_247 = arith.constant 0 : index
      %1538 = vector.load %arg14[%c0_246, %c0_247] : memref<1x128xf32, #tpu.memory_space<vmem>>, vector<1x128xf32>
      tpu.vector_store %arg14[%c0_246, %c0_247], %1537 {strides = array<i32>} : memref<1x128xf32, #tpu.memory_space<vmem>>, vector<1x128xf32>,
      %cst_248 = arith.constant 0.000000e+00 : f32
      %1539 = vector.broadcast %cst_248 : f32 to vector<1x128xf32>
      %c0_249 = arith.constant 0 : index
      %c0_250 = arith.constant 0 : index
      %1540 = vector.load %arg15[%c0_249, %c0_250] : memref<1x128xf32, #tpu.memory_space<vmem>>, vector<1x128xf32>
      tpu.vector_store %arg15[%c0_249, %c0_250], %1539 {strides = array<i32>} : memref<1x128xf32, #tpu.memory_space<vmem>>, vector<1x128xf32>,
      %cst_251 = arith.constant 0.000000e+00 : f32
      %1541 = vector.broadcast %cst_251 : f32 to vector<1x128xf32>
      %c0_252 = arith.constant 0 : index
      %c0_253 = arith.constant 0 : index
      %1542 = vector.load %arg16[%c0_252, %c0_253] : memref<1x128xf32, #tpu.memory_space<vmem>>, vector<1x128xf32>
      tpu.vector_store %arg16[%c0_252, %c0_253], %1541 {strides = array<i32>} : memref<1x128xf32, #tpu.memory_space<vmem>>, vector<1x128xf32>,
      %cst_254 = arith.constant 0.000000e+00 : f32
      %1543 = vector.broadcast %cst_254 : f32 to vector<1x128xf32>
      %c0_255 = arith.constant 0 : index
      %c0_256 = arith.constant 0 : index
      %1544 = vector.load %arg17[%c0_255, %c0_256] : memref<1x128xf32, #tpu.memory_space<vmem>>, vector<1x128xf32>
      tpu.vector_store %arg17[%c0_255, %c0_256], %1543 {strides = array<i32>} : memref<1x128xf32, #tpu.memory_space<vmem>>, vector<1x128xf32>,
      %cst_257 = arith.constant 0.000000e+00 : f32
      %1545 = vector.broadcast %cst_257 : f32 to vector<1x128xf32>
      %c0_258 = arith.constant 0 : index
      %c0_259 = arith.constant 0 : index
      %1546 = vector.load %arg18[%c0_258, %c0_259] : memref<1x128xf32, #tpu.memory_space<vmem>>, vector<1x128xf32>
      tpu.vector_store %arg18[%c0_258, %c0_259], %1545 {strides = array<i32>} : memref<1x128xf32, #tpu.memory_space<vmem>>, vector<1x128xf32>,
    } else {
    }
    %c0 = arith.constant 0 : index
    %c0_1 = arith.constant 0 : index
    %c0_2 = arith.constant 0 : index
    %3 = vector.load %arg2[%c0, %c0_1, %c0_2] : memref<1x16x128xbf16, #tpu.memory_space<vmem>>, vector<1x16x128xbf16>
    %4 = vector.shape_cast %3 : vector<1x16x128xbf16> to vector<16x128xbf16>
    %c0_3 = arith.constant 0 : index
    %c0_4 = arith.constant 0 : index
    %5 = vector.load %arg3[%c0_3, %c0_4] : memref<128x512xbf16, #tpu.memory_space<vmem>>, vector<128x512xbf16>
    %cst = arith.constant dense<0.000000e+00> : vector<16x512xf32>
    %6 = tpu.matmul %4, %5, %cst {dimension_numbers = #tpu.dot_dimension_numbers<[1], [0], [0], [1], [0, 0, 1, 1], [], []>} : vector<16x128xbf16>, vector<128x512xbf16>, vector<16x512xf32> -> vector<16x512xf32>
    %c0_5 = arith.constant 0 : index
    %c0_6 = arith.constant 0 : index
    %7 = vector.load %arg4[%c0_5, %c0_6] : memref<1x512xf32, #tpu.memory_space<vmem>>, vector<1x512xf32>
    %8 = vector.broadcast %7 : vector<1x512xf32> to vector<16x512xf32>
    %9 = arith.addf %6, %8 : vector<16x512xf32>
    %10 = vector.shape_cast %9 : vector<16x512xf32> to vector<1x16x512xf32>
    %c0_7 = arith.constant 0 : index
    %c0_8 = arith.constant 0 : index
    %11 = vector.load %arg5[%c0_7, %c0_8] : memref<128x512xbf16, #tpu.memory_space<vmem>>, vector<128x512xbf16>
    %c0_9 = arith.constant 0 : index
    %c0_10 = arith.constant 0 : index
    %12 = vector.load %arg13[%c0_9, %c0_10] : memref<1x128xf32, #tpu.memory_space<vmem>>, vector<1x128xf32>
    %c0_11 = arith.constant 0 : index
    %c0_12 = arith.constant 0 : index
    %13 = vector.load %arg14[%c0_11, %c0_12] : memref<1x128xf32, #tpu.memory_space<vmem>>, vector<1x128xf32>
    %14 = vector.extract_strided_slice %10 {offsets = [0, 0, 0], sizes = [1, 1, 512], strides = [1, 1, 1]} : vector<1x16x512xf32> to vector<1x1x512xf32>
    %15 = vector.shape_cast %14 : vector<1x1x512xf32> to vector<1x512xf32>
    %16 = arith.truncf %12 : vector<1x128xf32> to vector<1x128xbf16>
    %cst_13 = arith.constant dense<0.000000e+00> : vector<1x512xf32>
    %17 = tpu.matmul %16, %11, %cst_13 {dimension_numbers = #tpu.dot_dimension_numbers<[1], [0], [0], [1], [0, 0, 1, 1], [], []>} : vector<1x128xbf16>, vector<128x512xbf16>, vector<1x512xf32> -> vector<1x512xf32>
    %18 = arith.addf %15, %17 : vector<1x512xf32>
    %19 = vector.extract_strided_slice %18 {offsets = [0, 0], sizes = [1, 128], strides = [1, 1]} : vector<1x512xf32> to vector<1x128xf32>
    %20 = arith.negf %19 : vector<1x128xf32>
    %21 = math.exp %20 : vector<1x128xf32>
    %cst_14 = arith.constant 1.000000e+00 : f32
    %22 = vector.broadcast %cst_14 : f32 to vector<1x128xf32>
    %23 = arith.addf %22, %21 : vector<1x128xf32>
    %24 = arith.divf %22, %23 : vector<1x128xf32>
    %25 = vector.extract_strided_slice %18 {offsets = [0, 128], sizes = [1, 128], strides = [1, 1]} : vector<1x512xf32> to vector<1x128xf32>
    %26 = arith.negf %25 : vector<1x128xf32>
    %27 = math.exp %26 : vector<1x128xf32>
    %cst_15 = arith.constant 1.000000e+00 : f32
    %28 = vector.broadcast %cst_15 : f32 to vector<1x128xf32>
    %29 = arith.addf %28, %27 : vector<1x128xf32>
    %30 = arith.divf %28, %29 : vector<1x128xf32>
    %31 = vector.extract_strided_slice %18 {offsets = [0, 256], sizes = [1, 128], strides = [1, 1]} : vector<1x512xf32> to vector<1x128xf32>
    %32 = math.tanh %31 : vector<1x128xf32>
    %33 = vector.extract_strided_slice %18 {offsets = [0, 384], sizes = [1, 128], strides = [1, 1]} : vector<1x512xf32> to vector<1x128xf32>
    %34 = arith.negf %33 : vector<1x128xf32>
    %35 = math.exp %34 : vector<1x128xf32>
    %cst_16 = arith.constant 1.000000e+00 : f32
    %36 = vector.broadcast %cst_16 : f32 to vector<1x128xf32>
    %37 = arith.addf %36, %35 : vector<1x128xf32>
    %38 = arith.divf %36, %37 : vector<1x128xf32>
    %39 = arith.mulf %30, %13 : vector<1x128xf32>
    %40 = arith.mulf %24, %32 : vector<1x128xf32>
    %41 = arith.addf %39, %40 : vector<1x128xf32>
    %42 = math.tanh %41 : vector<1x128xf32>
    %43 = arith.mulf %38, %42 : vector<1x128xf32>
    %44 = vector.extract_strided_slice %10 {offsets = [0, 1, 0], sizes = [1, 1, 512], strides = [1, 1, 1]} : vector<1x16x512xf32> to vector<1x1x512xf32>
    %45 = vector.shape_cast %44 : vector<1x1x512xf32> to vector<1x512xf32>
    %46 = arith.truncf %43 : vector<1x128xf32> to vector<1x128xbf16>
    %cst_17 = arith.constant dense<0.000000e+00> : vector<1x512xf32>
    %47 = tpu.matmul %46, %11, %cst_17 {dimension_numbers = #tpu.dot_dimension_numbers<[1], [0], [0], [1], [0, 0, 1, 1], [], []>} : vector<1x128xbf16>, vector<128x512xbf16>, vector<1x512xf32> -> vector<1x512xf32>
    %48 = arith.addf %45, %47 : vector<1x512xf32>
    %49 = vector.extract_strided_slice %48 {offsets = [0, 0], sizes = [1, 128], strides = [1, 1]} : vector<1x512xf32> to vector<1x128xf32>
    %50 = arith.negf %49 : vector<1x128xf32>
    %51 = math.exp %50 : vector<1x128xf32>
    %cst_18 = arith.constant 1.000000e+00 : f32
    %52 = vector.broadcast %cst_18 : f32 to vector<1x128xf32>
    %53 = arith.addf %52, %51 : vector<1x128xf32>
    %54 = arith.divf %52, %53 : vector<1x128xf32>
    %55 = vector.extract_strided_slice %48 {offsets = [0, 128], sizes = [1, 128], strides = [1, 1]} : vector<1x512xf32> to vector<1x128xf32>
    %56 = arith.negf %55 : vector<1x128xf32>
    %57 = math.exp %56 : vector<1x128xf32>
    %cst_19 = arith.constant 1.000000e+00 : f32
    %58 = vector.broadcast %cst_19 : f32 to vector<1x128xf32>
    %59 = arith.addf %58, %57 : vector<1x128xf32>
    %60 = arith.divf %58, %59 : vector<1x128xf32>
    %61 = vector.extract_strided_slice %48 {offsets = [0, 256], sizes = [1, 128], strides = [1, 1]} : vector<1x512xf32> to vector<1x128xf32>
    %62 = math.tanh %61 : vector<1x128xf32>
    %63 = vector.extract_strided_slice %48 {offsets = [0, 384], sizes = [1, 128], strides = [1, 1]} : vector<1x512xf32> to vector<1x128xf32>
    %64 = arith.negf %63 : vector<1x128xf32>
    %65 = math.exp %64 : vector<1x128xf32>
    %cst_20 = arith.constant 1.000000e+00 : f32
    %66 = vector.broadcast %cst_20 : f32 to vector<1x128xf32>
    %67 = arith.addf %66, %65 : vector<1x128xf32>
    %68 = arith.divf %66, %67 : vector<1x128xf32>
    %69 = arith.mulf %60, %41 : vector<1x128xf32>
    %70 = arith.mulf %54, %62 : vector<1x128xf32>
    %71 = arith.addf %69, %70 : vector<1x128xf32>
    %72 = math.tanh %71 : vector<1x128xf32>
    %73 = arith.mulf %68, %72 : vector<1x128xf32>
    %74 = vector.extract_strided_slice %10 {offsets = [0, 2, 0], sizes = [1, 1, 512], strides = [1, 1, 1]} : vector<1x16x512xf32> to vector<1x1x512xf32>
    %75 = vector.shape_cast %74 : vector<1x1x512xf32> to vector<1x512xf32>
    %76 = arith.truncf %73 : vector<1x128xf32> to vector<1x128xbf16>
    %cst_21 = arith.constant dense<0.000000e+00> : vector<1x512xf32>
    %77 = tpu.matmul %76, %11, %cst_21 {dimension_numbers = #tpu.dot_dimension_numbers<[1], [0], [0], [1], [0, 0, 1, 1], [], []>} : vector<1x128xbf16>, vector<128x512xbf16>, vector<1x512xf32> -> vector<1x512xf32>
    %78 = arith.addf %75, %77 : vector<1x512xf32>
    %79 = vector.extract_strided_slice %78 {offsets = [0, 0], sizes = [1, 128], strides = [1, 1]} : vector<1x512xf32> to vector<1x128xf32>
    %80 = arith.negf %79 : vector<1x128xf32>
    %81 = math.exp %80 : vector<1x128xf32>
    %cst_22 = arith.constant 1.000000e+00 : f32
    %82 = vector.broadcast %cst_22 : f32 to vector<1x128xf32>
    %83 = arith.addf %82, %81 : vector<1x128xf32>
    %84 = arith.divf %82, %83 : vector<1x128xf32>
    %85 = vector.extract_strided_slice %78 {offsets = [0, 128], sizes = [1, 128], strides = [1, 1]} : vector<1x512xf32> to vector<1x128xf32>
    %86 = arith.negf %85 : vector<1x128xf32>
    %87 = math.exp %86 : vector<1x128xf32>
    %cst_23 = arith.constant 1.000000e+00 : f32
    %88 = vector.broadcast %cst_23 : f32 to vector<1x128xf32>
    %89 = arith.addf %88, %87 : vector<1x128xf32>
    %90 = arith.divf %88, %89 : vector<1x128xf32>
    %91 = vector.extract_strided_slice %78 {offsets = [0, 256], sizes = [1, 128], strides = [1, 1]} : vector<1x512xf32> to vector<1x128xf32>
    %92 = math.tanh %91 : vector<1x128xf32>
    %93 = vector.extract_strided_slice %78 {offsets = [0, 384], sizes = [1, 128], strides = [1, 1]} : vector<1x512xf32> to vector<1x128xf32>
    %94 = arith.negf %93 : vector<1x128xf32>
    %95 = math.exp %94 : vector<1x128xf32>
    %cst_24 = arith.constant 1.000000e+00 : f32
    %96 = vector.broadcast %cst_24 : f32 to vector<1x128xf32>
    %97 = arith.addf %96, %95 : vector<1x128xf32>
    %98 = arith.divf %96, %97 : vector<1x128xf32>
    %99 = arith.mulf %90, %71 : vector<1x128xf32>
    %100 = arith.mulf %84, %92 : vector<1x128xf32>
    %101 = arith.addf %99, %100 : vector<1x128xf32>
    %102 = math.tanh %101 : vector<1x128xf32>
    %103 = arith.mulf %98, %102 : vector<1x128xf32>
    %104 = vector.extract_strided_slice %10 {offsets = [0, 3, 0], sizes = [1, 1, 512], strides = [1, 1, 1]} : vector<1x16x512xf32> to vector<1x1x512xf32>
    %105 = vector.shape_cast %104 : vector<1x1x512xf32> to vector<1x512xf32>
    %106 = arith.truncf %103 : vector<1x128xf32> to vector<1x128xbf16>
    %cst_25 = arith.constant dense<0.000000e+00> : vector<1x512xf32>
    %107 = tpu.matmul %106, %11, %cst_25 {dimension_numbers = #tpu.dot_dimension_numbers<[1], [0], [0], [1], [0, 0, 1, 1], [], []>} : vector<1x128xbf16>, vector<128x512xbf16>, vector<1x512xf32> -> vector<1x512xf32>
    %108 = arith.addf %105, %107 : vector<1x512xf32>
    %109 = vector.extract_strided_slice %108 {offsets = [0, 0], sizes = [1, 128], strides = [1, 1]} : vector<1x512xf32> to vector<1x128xf32>
    %110 = arith.negf %109 : vector<1x128xf32>
    %111 = math.exp %110 : vector<1x128xf32>
    %cst_26 = arith.constant 1.000000e+00 : f32
    %112 = vector.broadcast %cst_26 : f32 to vector<1x128xf32>
    %113 = arith.addf %112, %111 : vector<1x128xf32>
    %114 = arith.divf %112, %113 : vector<1x128xf32>
    %115 = vector.extract_strided_slice %108 {offsets = [0, 128], sizes = [1, 128], strides = [1, 1]} : vector<1x512xf32> to vector<1x128xf32>
    %116 = arith.negf %115 : vector<1x128xf32>
    %117 = math.exp %116 : vector<1x128xf32>
    %cst_27 = arith.constant 1.000000e+00 : f32
    %118 = vector.broadcast %cst_27 : f32 to vector<1x128xf32>
    %119 = arith.addf %118, %117 : vector<1x128xf32>
    %120 = arith.divf %118, %119 : vector<1x128xf32>
    %121 = vector.extract_strided_slice %108 {offsets = [0, 256], sizes = [1, 128], strides = [1, 1]} : vector<1x512xf32> to vector<1x128xf32>
    %122 = math.tanh %121 : vector<1x128xf32>
    %123 = vector.extract_strided_slice %108 {offsets = [0, 384], sizes = [1, 128], strides = [1, 1]} : vector<1x512xf32> to vector<1x128xf32>
    %124 = arith.negf %123 : vector<1x128xf32>
    %125 = math.exp %124 : vector<1x128xf32>
    %cst_28 = arith.constant 1.000000e+00 : f32
    %126 = vector.broadcast %cst_28 : f32 to vector<1x128xf32>
    %127 = arith.addf %126, %125 : vector<1x128xf32>
    %128 = arith.divf %126, %127 : vector<1x128xf32>
    %129 = arith.mulf %120, %101 : vector<1x128xf32>
    %130 = arith.mulf %114, %122 : vector<1x128xf32>
    %131 = arith.addf %129, %130 : vector<1x128xf32>
    %132 = math.tanh %131 : vector<1x128xf32>
    %133 = arith.mulf %128, %132 : vector<1x128xf32>
    %134 = vector.extract_strided_slice %10 {offsets = [0, 4, 0], sizes = [1, 1, 512], strides = [1, 1, 1]} : vector<1x16x512xf32> to vector<1x1x512xf32>
    %135 = vector.shape_cast %134 : vector<1x1x512xf32> to vector<1x512xf32>
    %136 = arith.truncf %133 : vector<1x128xf32> to vector<1x128xbf16>
    %cst_29 = arith.constant dense<0.000000e+00> : vector<1x512xf32>
    %137 = tpu.matmul %136, %11, %cst_29 {dimension_numbers = #tpu.dot_dimension_numbers<[1], [0], [0], [1], [0, 0, 1, 1], [], []>} : vector<1x128xbf16>, vector<128x512xbf16>, vector<1x512xf32> -> vector<1x512xf32>
    %138 = arith.addf %135, %137 : vector<1x512xf32>
    %139 = vector.extract_strided_slice %138 {offsets = [0, 0], sizes = [1, 128], strides = [1, 1]} : vector<1x512xf32> to vector<1x128xf32>
    %140 = arith.negf %139 : vector<1x128xf32>
    %141 = math.exp %140 : vector<1x128xf32>
    %cst_30 = arith.constant 1.000000e+00 : f32
    %142 = vector.broadcast %cst_30 : f32 to vector<1x128xf32>
    %143 = arith.addf %142, %141 : vector<1x128xf32>
    %144 = arith.divf %142, %143 : vector<1x128xf32>
    %145 = vector.extract_strided_slice %138 {offsets = [0, 128], sizes = [1, 128], strides = [1, 1]} : vector<1x512xf32> to vector<1x128xf32>
    %146 = arith.negf %145 : vector<1x128xf32>
    %147 = math.exp %146 : vector<1x128xf32>
    %cst_31 = arith.constant 1.000000e+00 : f32
    %148 = vector.broadcast %cst_31 : f32 to vector<1x128xf32>
    %149 = arith.addf %148, %147 : vector<1x128xf32>
    %150 = arith.divf %148, %149 : vector<1x128xf32>
    %151 = vector.extract_strided_slice %138 {offsets = [0, 256], sizes = [1, 128], strides = [1, 1]} : vector<1x512xf32> to vector<1x128xf32>
    %152 = math.tanh %151 : vector<1x128xf32>
    %153 = vector.extract_strided_slice %138 {offsets = [0, 384], sizes = [1, 128], strides = [1, 1]} : vector<1x512xf32> to vector<1x128xf32>
    %154 = arith.negf %153 : vector<1x128xf32>
    %155 = math.exp %154 : vector<1x128xf32>
    %cst_32 = arith.constant 1.000000e+00 : f32
    %156 = vector.broadcast %cst_32 : f32 to vector<1x128xf32>
    %157 = arith.addf %156, %155 : vector<1x128xf32>
    %158 = arith.divf %156, %157 : vector<1x128xf32>
    %159 = arith.mulf %150, %131 : vector<1x128xf32>
    %160 = arith.mulf %144, %152 : vector<1x128xf32>
    %161 = arith.addf %159, %160 : vector<1x128xf32>
    %162 = math.tanh %161 : vector<1x128xf32>
    %163 = arith.mulf %158, %162 : vector<1x128xf32>
    %164 = vector.extract_strided_slice %10 {offsets = [0, 5, 0], sizes = [1, 1, 512], strides = [1, 1, 1]} : vector<1x16x512xf32> to vector<1x1x512xf32>
    %165 = vector.shape_cast %164 : vector<1x1x512xf32> to vector<1x512xf32>
    %166 = arith.truncf %163 : vector<1x128xf32> to vector<1x128xbf16>
    %cst_33 = arith.constant dense<0.000000e+00> : vector<1x512xf32>
    %167 = tpu.matmul %166, %11, %cst_33 {dimension_numbers = #tpu.dot_dimension_numbers<[1], [0], [0], [1], [0, 0, 1, 1], [], []>} : vector<1x128xbf16>, vector<128x512xbf16>, vector<1x512xf32> -> vector<1x512xf32>
    %168 = arith.addf %165, %167 : vector<1x512xf32>
    %169 = vector.extract_strided_slice %168 {offsets = [0, 0], sizes = [1, 128], strides = [1, 1]} : vector<1x512xf32> to vector<1x128xf32>
    %170 = arith.negf %169 : vector<1x128xf32>
    %171 = math.exp %170 : vector<1x128xf32>
    %cst_34 = arith.constant 1.000000e+00 : f32
    %172 = vector.broadcast %cst_34 : f32 to vector<1x128xf32>
    %173 = arith.addf %172, %171 : vector<1x128xf32>
    %174 = arith.divf %172, %173 : vector<1x128xf32>
    %175 = vector.extract_strided_slice %168 {offsets = [0, 128], sizes = [1, 128], strides = [1, 1]} : vector<1x512xf32> to vector<1x128xf32>
    %176 = arith.negf %175 : vector<1x128xf32>
    %177 = math.exp %176 : vector<1x128xf32>
    %cst_35 = arith.constant 1.000000e+00 : f32
    %178 = vector.broadcast %cst_35 : f32 to vector<1x128xf32>
    %179 = arith.addf %178, %177 : vector<1x128xf32>
    %180 = arith.divf %178, %179 : vector<1x128xf32>
    %181 = vector.extract_strided_slice %168 {offsets = [0, 256], sizes = [1, 128], strides = [1, 1]} : vector<1x512xf32> to vector<1x128xf32>
    %182 = math.tanh %181 : vector<1x128xf32>
    %183 = vector.extract_strided_slice %168 {offsets = [0, 384], sizes = [1, 128], strides = [1, 1]} : vector<1x512xf32> to vector<1x128xf32>
    %184 = arith.negf %183 : vector<1x128xf32>
    %185 = math.exp %184 : vector<1x128xf32>
    %cst_36 = arith.constant 1.000000e+00 : f32
    %186 = vector.broadcast %cst_36 : f32 to vector<1x128xf32>
    %187 = arith.addf %186, %185 : vector<1x128xf32>
    %188 = arith.divf %186, %187 : vector<1x128xf32>
    %189 = arith.mulf %180, %161 : vector<1x128xf32>
    %190 = arith.mulf %174, %182 : vector<1x128xf32>
    %191 = arith.addf %189, %190 : vector<1x128xf32>
    %192 = math.tanh %191 : vector<1x128xf32>
    %193 = arith.mulf %188, %192 : vector<1x128xf32>
    %194 = vector.extract_strided_slice %10 {offsets = [0, 6, 0], sizes = [1, 1, 512], strides = [1, 1, 1]} : vector<1x16x512xf32> to vector<1x1x512xf32>
    %195 = vector.shape_cast %194 : vector<1x1x512xf32> to vector<1x512xf32>
    %196 = arith.truncf %193 : vector<1x128xf32> to vector<1x128xbf16>
    %cst_37 = arith.constant dense<0.000000e+00> : vector<1x512xf32>
    %197 = tpu.matmul %196, %11, %cst_37 {dimension_numbers = #tpu.dot_dimension_numbers<[1], [0], [0], [1], [0, 0, 1, 1], [], []>} : vector<1x128xbf16>, vector<128x512xbf16>, vector<1x512xf32> -> vector<1x512xf32>
    %198 = arith.addf %195, %197 : vector<1x512xf32>
    %199 = vector.extract_strided_slice %198 {offsets = [0, 0], sizes = [1, 128], strides = [1, 1]} : vector<1x512xf32> to vector<1x128xf32>
    %200 = arith.negf %199 : vector<1x128xf32>
    %201 = math.exp %200 : vector<1x128xf32>
    %cst_38 = arith.constant 1.000000e+00 : f32
    %202 = vector.broadcast %cst_38 : f32 to vector<1x128xf32>
    %203 = arith.addf %202, %201 : vector<1x128xf32>
    %204 = arith.divf %202, %203 : vector<1x128xf32>
    %205 = vector.extract_strided_slice %198 {offsets = [0, 128], sizes = [1, 128], strides = [1, 1]} : vector<1x512xf32> to vector<1x128xf32>
    %206 = arith.negf %205 : vector<1x128xf32>
    %207 = math.exp %206 : vector<1x128xf32>
    %cst_39 = arith.constant 1.000000e+00 : f32
    %208 = vector.broadcast %cst_39 : f32 to vector<1x128xf32>
    %209 = arith.addf %208, %207 : vector<1x128xf32>
    %210 = arith.divf %208, %209 : vector<1x128xf32>
    %211 = vector.extract_strided_slice %198 {offsets = [0, 256], sizes = [1, 128], strides = [1, 1]} : vector<1x512xf32> to vector<1x128xf32>
    %212 = math.tanh %211 : vector<1x128xf32>
    %213 = vector.extract_strided_slice %198 {offsets = [0, 384], sizes = [1, 128], strides = [1, 1]} : vector<1x512xf32> to vector<1x128xf32>
    %214 = arith.negf %213 : vector<1x128xf32>
    %215 = math.exp %214 : vector<1x128xf32>
    %cst_40 = arith.constant 1.000000e+00 : f32
    %216 = vector.broadcast %cst_40 : f32 to vector<1x128xf32>
    %217 = arith.addf %216, %215 : vector<1x128xf32>
    %218 = arith.divf %216, %217 : vector<1x128xf32>
    %219 = arith.mulf %210, %191 : vector<1x128xf32>
    %220 = arith.mulf %204, %212 : vector<1x128xf32>
    %221 = arith.addf %219, %220 : vector<1x128xf32>
    %222 = math.tanh %221 : vector<1x128xf32>
    %223 = arith.mulf %218, %222 : vector<1x128xf32>
    %224 = vector.extract_strided_slice %10 {offsets = [0, 7, 0], sizes = [1, 1, 512], strides = [1, 1, 1]} : vector<1x16x512xf32> to vector<1x1x512xf32>
    %225 = vector.shape_cast %224 : vector<1x1x512xf32> to vector<1x512xf32>
    %226 = arith.truncf %223 : vector<1x128xf32> to vector<1x128xbf16>
    %cst_41 = arith.constant dense<0.000000e+00> : vector<1x512xf32>
    %227 = tpu.matmul %226, %11, %cst_41 {dimension_numbers = #tpu.dot_dimension_numbers<[1], [0], [0], [1], [0, 0, 1, 1], [], []>} : vector<1x128xbf16>, vector<128x512xbf16>, vector<1x512xf32> -> vector<1x512xf32>
    %228 = arith.addf %225, %227 : vector<1x512xf32>
    %229 = vector.extract_strided_slice %228 {offsets = [0, 0], sizes = [1, 128], strides = [1, 1]} : vector<1x512xf32> to vector<1x128xf32>
    %230 = arith.negf %229 : vector<1x128xf32>
    %231 = math.exp %230 : vector<1x128xf32>
    %cst_42 = arith.constant 1.000000e+00 : f32
    %232 = vector.broadcast %cst_42 : f32 to vector<1x128xf32>
    %233 = arith.addf %232, %231 : vector<1x128xf32>
    %234 = arith.divf %232, %233 : vector<1x128xf32>
    %235 = vector.extract_strided_slice %228 {offsets = [0, 128], sizes = [1, 128], strides = [1, 1]} : vector<1x512xf32> to vector<1x128xf32>
    %236 = arith.negf %235 : vector<1x128xf32>
    %237 = math.exp %236 : vector<1x128xf32>
    %cst_43 = arith.constant 1.000000e+00 : f32
    %238 = vector.broadcast %cst_43 : f32 to vector<1x128xf32>
    %239 = arith.addf %238, %237 : vector<1x128xf32>
    %240 = arith.divf %238, %239 : vector<1x128xf32>
    %241 = vector.extract_strided_slice %228 {offsets = [0, 256], sizes = [1, 128], strides = [1, 1]} : vector<1x512xf32> to vector<1x128xf32>
    %242 = math.tanh %241 : vector<1x128xf32>
    %243 = vector.extract_strided_slice %228 {offsets = [0, 384], sizes = [1, 128], strides = [1, 1]} : vector<1x512xf32> to vector<1x128xf32>
    %244 = arith.negf %243 : vector<1x128xf32>
    %245 = math.exp %244 : vector<1x128xf32>
    %cst_44 = arith.constant 1.000000e+00 : f32
    %246 = vector.broadcast %cst_44 : f32 to vector<1x128xf32>
    %247 = arith.addf %246, %245 : vector<1x128xf32>
    %248 = arith.divf %246, %247 : vector<1x128xf32>
    %249 = arith.mulf %240, %221 : vector<1x128xf32>
    %250 = arith.mulf %234, %242 : vector<1x128xf32>
    %251 = arith.addf %249, %250 : vector<1x128xf32>
    %252 = math.tanh %251 : vector<1x128xf32>
    %253 = arith.mulf %248, %252 : vector<1x128xf32>
    %254 = vector.extract_strided_slice %10 {offsets = [0, 8, 0], sizes = [1, 1, 512], strides = [1, 1, 1]} : vector<1x16x512xf32> to vector<1x1x512xf32>
    %255 = vector.shape_cast %254 : vector<1x1x512xf32> to vector<1x512xf32>
    %256 = arith.truncf %253 : vector<1x128xf32> to vector<1x128xbf16>
    %cst_45 = arith.constant dense<0.000000e+00> : vector<1x512xf32>
    %257 = tpu.matmul %256, %11, %cst_45 {dimension_numbers = #tpu.dot_dimension_numbers<[1], [0], [0], [1], [0, 0, 1, 1], [], []>} : vector<1x128xbf16>, vector<128x512xbf16>, vector<1x512xf32> -> vector<1x512xf32>
    %258 = arith.addf %255, %257 : vector<1x512xf32>
    %259 = vector.extract_strided_slice %258 {offsets = [0, 0], sizes = [1, 128], strides = [1, 1]} : vector<1x512xf32> to vector<1x128xf32>
    %260 = arith.negf %259 : vector<1x128xf32>
    %261 = math.exp %260 : vector<1x128xf32>
    %cst_46 = arith.constant 1.000000e+00 : f32
    %262 = vector.broadcast %cst_46 : f32 to vector<1x128xf32>
    %263 = arith.addf %262, %261 : vector<1x128xf32>
    %264 = arith.divf %262, %263 : vector<1x128xf32>
    %265 = vector.extract_strided_slice %258 {offsets = [0, 128], sizes = [1, 128], strides = [1, 1]} : vector<1x512xf32> to vector<1x128xf32>
    %266 = arith.negf %265 : vector<1x128xf32>
    %267 = math.exp %266 : vector<1x128xf32>
    %cst_47 = arith.constant 1.000000e+00 : f32
    %268 = vector.broadcast %cst_47 : f32 to vector<1x128xf32>
    %269 = arith.addf %268, %267 : vector<1x128xf32>
    %270 = arith.divf %268, %269 : vector<1x128xf32>
    %271 = vector.extract_strided_slice %258 {offsets = [0, 256], sizes = [1, 128], strides = [1, 1]} : vector<1x512xf32> to vector<1x128xf32>
    %272 = math.tanh %271 : vector<1x128xf32>
    %273 = vector.extract_strided_slice %258 {offsets = [0, 384], sizes = [1, 128], strides = [1, 1]} : vector<1x512xf32> to vector<1x128xf32>
    %274 = arith.negf %273 : vector<1x128xf32>
    %275 = math.exp %274 : vector<1x128xf32>
    %cst_48 = arith.constant 1.000000e+00 : f32
    %276 = vector.broadcast %cst_48 : f32 to vector<1x128xf32>
    %277 = arith.addf %276, %275 : vector<1x128xf32>
    %278 = arith.divf %276, %277 : vector<1x128xf32>
    %279 = arith.mulf %270, %251 : vector<1x128xf32>
    %280 = arith.mulf %264, %272 : vector<1x128xf32>
    %281 = arith.addf %279, %280 : vector<1x128xf32>
    %282 = math.tanh %281 : vector<1x128xf32>
    %283 = arith.mulf %278, %282 : vector<1x128xf32>
    %284 = vector.extract_strided_slice %10 {offsets = [0, 9, 0], sizes = [1, 1, 512], strides = [1, 1, 1]} : vector<1x16x512xf32> to vector<1x1x512xf32>
    %285 = vector.shape_cast %284 : vector<1x1x512xf32> to vector<1x512xf32>
    %286 = arith.truncf %283 : vector<1x128xf32> to vector<1x128xbf16>
    %cst_49 = arith.constant dense<0.000000e+00> : vector<1x512xf32>
    %287 = tpu.matmul %286, %11, %cst_49 {dimension_numbers = #tpu.dot_dimension_numbers<[1], [0], [0], [1], [0, 0, 1, 1], [], []>} : vector<1x128xbf16>, vector<128x512xbf16>, vector<1x512xf32> -> vector<1x512xf32>
    %288 = arith.addf %285, %287 : vector<1x512xf32>
    %289 = vector.extract_strided_slice %288 {offsets = [0, 0], sizes = [1, 128], strides = [1, 1]} : vector<1x512xf32> to vector<1x128xf32>
    %290 = arith.negf %289 : vector<1x128xf32>
    %291 = math.exp %290 : vector<1x128xf32>
    %cst_50 = arith.constant 1.000000e+00 : f32
    %292 = vector.broadcast %cst_50 : f32 to vector<1x128xf32>
    %293 = arith.addf %292, %291 : vector<1x128xf32>
    %294 = arith.divf %292, %293 : vector<1x128xf32>
    %295 = vector.extract_strided_slice %288 {offsets = [0, 128], sizes = [1, 128], strides = [1, 1]} : vector<1x512xf32> to vector<1x128xf32>
    %296 = arith.negf %295 : vector<1x128xf32>
    %297 = math.exp %296 : vector<1x128xf32>
    %cst_51 = arith.constant 1.000000e+00 : f32
    %298 = vector.broadcast %cst_51 : f32 to vector<1x128xf32>
    %299 = arith.addf %298, %297 : vector<1x128xf32>
    %300 = arith.divf %298, %299 : vector<1x128xf32>
    %301 = vector.extract_strided_slice %288 {offsets = [0, 256], sizes = [1, 128], strides = [1, 1]} : vector<1x512xf32> to vector<1x128xf32>
    %302 = math.tanh %301 : vector<1x128xf32>
    %303 = vector.extract_strided_slice %288 {offsets = [0, 384], sizes = [1, 128], strides = [1, 1]} : vector<1x512xf32> to vector<1x128xf32>
    %304 = arith.negf %303 : vector<1x128xf32>
    %305 = math.exp %304 : vector<1x128xf32>
    %cst_52 = arith.constant 1.000000e+00 : f32
    %306 = vector.broadcast %cst_52 : f32 to vector<1x128xf32>
    %307 = arith.addf %306, %305 : vector<1x128xf32>
    %308 = arith.divf %306, %307 : vector<1x128xf32>
    %309 = arith.mulf %300, %281 : vector<1x128xf32>
    %310 = arith.mulf %294, %302 : vector<1x128xf32>
    %311 = arith.addf %309, %310 : vector<1x128xf32>
    %312 = math.tanh %311 : vector<1x128xf32>
    %313 = arith.mulf %308, %312 : vector<1x128xf32>
    %314 = vector.extract_strided_slice %10 {offsets = [0, 10, 0], sizes = [1, 1, 512], strides = [1, 1, 1]} : vector<1x16x512xf32> to vector<1x1x512xf32>
    %315 = vector.shape_cast %314 : vector<1x1x512xf32> to vector<1x512xf32>
    %316 = arith.truncf %313 : vector<1x128xf32> to vector<1x128xbf16>
    %cst_53 = arith.constant dense<0.000000e+00> : vector<1x512xf32>
    %317 = tpu.matmul %316, %11, %cst_53 {dimension_numbers = #tpu.dot_dimension_numbers<[1], [0], [0], [1], [0, 0, 1, 1], [], []>} : vector<1x128xbf16>, vector<128x512xbf16>, vector<1x512xf32> -> vector<1x512xf32>
    %318 = arith.addf %315, %317 : vector<1x512xf32>
    %319 = vector.extract_strided_slice %318 {offsets = [0, 0], sizes = [1, 128], strides = [1, 1]} : vector<1x512xf32> to vector<1x128xf32>
    %320 = arith.negf %319 : vector<1x128xf32>
    %321 = math.exp %320 : vector<1x128xf32>
    %cst_54 = arith.constant 1.000000e+00 : f32
    %322 = vector.broadcast %cst_54 : f32 to vector<1x128xf32>
    %323 = arith.addf %322, %321 : vector<1x128xf32>
    %324 = arith.divf %322, %323 : vector<1x128xf32>
    %325 = vector.extract_strided_slice %318 {offsets = [0, 128], sizes = [1, 128], strides = [1, 1]} : vector<1x512xf32> to vector<1x128xf32>
    %326 = arith.negf %325 : vector<1x128xf32>
    %327 = math.exp %326 : vector<1x128xf32>
    %cst_55 = arith.constant 1.000000e+00 : f32
    %328 = vector.broadcast %cst_55 : f32 to vector<1x128xf32>
    %329 = arith.addf %328, %327 : vector<1x128xf32>
    %330 = arith.divf %328, %329 : vector<1x128xf32>
    %331 = vector.extract_strided_slice %318 {offsets = [0, 256], sizes = [1, 128], strides = [1, 1]} : vector<1x512xf32> to vector<1x128xf32>
    %332 = math.tanh %331 : vector<1x128xf32>
    %333 = vector.extract_strided_slice %318 {offsets = [0, 384], sizes = [1, 128], strides = [1, 1]} : vector<1x512xf32> to vector<1x128xf32>
    %334 = arith.negf %333 : vector<1x128xf32>
    %335 = math.exp %334 : vector<1x128xf32>
    %cst_56 = arith.constant 1.000000e+00 : f32
    %336 = vector.broadcast %cst_56 : f32 to vector<1x128xf32>
    %337 = arith.addf %336, %335 : vector<1x128xf32>
    %338 = arith.divf %336, %337 : vector<1x128xf32>
    %339 = arith.mulf %330, %311 : vector<1x128xf32>
    %340 = arith.mulf %324, %332 : vector<1x128xf32>
    %341 = arith.addf %339, %340 : vector<1x128xf32>
    %342 = math.tanh %341 : vector<1x128xf32>
    %343 = arith.mulf %338, %342 : vector<1x128xf32>
    %344 = vector.extract_strided_slice %10 {offsets = [0, 11, 0], sizes = [1, 1, 512], strides = [1, 1, 1]} : vector<1x16x512xf32> to vector<1x1x512xf32>
    %345 = vector.shape_cast %344 : vector<1x1x512xf32> to vector<1x512xf32>
    %346 = arith.truncf %343 : vector<1x128xf32> to vector<1x128xbf16>
    %cst_57 = arith.constant dense<0.000000e+00> : vector<1x512xf32>
    %347 = tpu.matmul %346, %11, %cst_57 {dimension_numbers = #tpu.dot_dimension_numbers<[1], [0], [0], [1], [0, 0, 1, 1], [], []>} : vector<1x128xbf16>, vector<128x512xbf16>, vector<1x512xf32> -> vector<1x512xf32>
    %348 = arith.addf %345, %347 : vector<1x512xf32>
    %349 = vector.extract_strided_slice %348 {offsets = [0, 0], sizes = [1, 128], strides = [1, 1]} : vector<1x512xf32> to vector<1x128xf32>
    %350 = arith.negf %349 : vector<1x128xf32>
    %351 = math.exp %350 : vector<1x128xf32>
    %cst_58 = arith.constant 1.000000e+00 : f32
    %352 = vector.broadcast %cst_58 : f32 to vector<1x128xf32>
    %353 = arith.addf %352, %351 : vector<1x128xf32>
    %354 = arith.divf %352, %353 : vector<1x128xf32>
    %355 = vector.extract_strided_slice %348 {offsets = [0, 128], sizes = [1, 128], strides = [1, 1]} : vector<1x512xf32> to vector<1x128xf32>
    %356 = arith.negf %355 : vector<1x128xf32>
    %357 = math.exp %356 : vector<1x128xf32>
    %cst_59 = arith.constant 1.000000e+00 : f32
    %358 = vector.broadcast %cst_59 : f32 to vector<1x128xf32>
    %359 = arith.addf %358, %357 : vector<1x128xf32>
    %360 = arith.divf %358, %359 : vector<1x128xf32>
    %361 = vector.extract_strided_slice %348 {offsets = [0, 256], sizes = [1, 128], strides = [1, 1]} : vector<1x512xf32> to vector<1x128xf32>
    %362 = math.tanh %361 : vector<1x128xf32>
    %363 = vector.extract_strided_slice %348 {offsets = [0, 384], sizes = [1, 128], strides = [1, 1]} : vector<1x512xf32> to vector<1x128xf32>
    %364 = arith.negf %363 : vector<1x128xf32>
    %365 = math.exp %364 : vector<1x128xf32>
    %cst_60 = arith.constant 1.000000e+00 : f32
    %366 = vector.broadcast %cst_60 : f32 to vector<1x128xf32>
    %367 = arith.addf %366, %365 : vector<1x128xf32>
    %368 = arith.divf %366, %367 : vector<1x128xf32>
    %369 = arith.mulf %360, %341 : vector<1x128xf32>
    %370 = arith.mulf %354, %362 : vector<1x128xf32>
    %371 = arith.addf %369, %370 : vector<1x128xf32>
    %372 = math.tanh %371 : vector<1x128xf32>
    %373 = arith.mulf %368, %372 : vector<1x128xf32>
    %374 = vector.extract_strided_slice %10 {offsets = [0, 12, 0], sizes = [1, 1, 512], strides = [1, 1, 1]} : vector<1x16x512xf32> to vector<1x1x512xf32>
    %375 = vector.shape_cast %374 : vector<1x1x512xf32> to vector<1x512xf32>
    %376 = arith.truncf %373 : vector<1x128xf32> to vector<1x128xbf16>
    %cst_61 = arith.constant dense<0.000000e+00> : vector<1x512xf32>
    %377 = tpu.matmul %376, %11, %cst_61 {dimension_numbers = #tpu.dot_dimension_numbers<[1], [0], [0], [1], [0, 0, 1, 1], [], []>} : vector<1x128xbf16>, vector<128x512xbf16>, vector<1x512xf32> -> vector<1x512xf32>
    %378 = arith.addf %375, %377 : vector<1x512xf32>
    %379 = vector.extract_strided_slice %378 {offsets = [0, 0], sizes = [1, 128], strides = [1, 1]} : vector<1x512xf32> to vector<1x128xf32>
    %380 = arith.negf %379 : vector<1x128xf32>
    %381 = math.exp %380 : vector<1x128xf32>
    %cst_62 = arith.constant 1.000000e+00 : f32
    %382 = vector.broadcast %cst_62 : f32 to vector<1x128xf32>
    %383 = arith.addf %382, %381 : vector<1x128xf32>
    %384 = arith.divf %382, %383 : vector<1x128xf32>
    %385 = vector.extract_strided_slice %378 {offsets = [0, 128], sizes = [1, 128], strides = [1, 1]} : vector<1x512xf32> to vector<1x128xf32>
    %386 = arith.negf %385 : vector<1x128xf32>
    %387 = math.exp %386 : vector<1x128xf32>
    %cst_63 = arith.constant 1.000000e+00 : f32
    %388 = vector.broadcast %cst_63 : f32 to vector<1x128xf32>
    %389 = arith.addf %388, %387 : vector<1x128xf32>
    %390 = arith.divf %388, %389 : vector<1x128xf32>
    %391 = vector.extract_strided_slice %378 {offsets = [0, 256], sizes = [1, 128], strides = [1, 1]} : vector<1x512xf32> to vector<1x128xf32>
    %392 = math.tanh %391 : vector<1x128xf32>
    %393 = vector.extract_strided_slice %378 {offsets = [0, 384], sizes = [1, 128], strides = [1, 1]} : vector<1x512xf32> to vector<1x128xf32>
    %394 = arith.negf %393 : vector<1x128xf32>
    %395 = math.exp %394 : vector<1x128xf32>
    %cst_64 = arith.constant 1.000000e+00 : f32
    %396 = vector.broadcast %cst_64 : f32 to vector<1x128xf32>
    %397 = arith.addf %396, %395 : vector<1x128xf32>
    %398 = arith.divf %396, %397 : vector<1x128xf32>
    %399 = arith.mulf %390, %371 : vector<1x128xf32>
    %400 = arith.mulf %384, %392 : vector<1x128xf32>
    %401 = arith.addf %399, %400 : vector<1x128xf32>
    %402 = math.tanh %401 : vector<1x128xf32>
    %403 = arith.mulf %398, %402 : vector<1x128xf32>
    %404 = vector.extract_strided_slice %10 {offsets = [0, 13, 0], sizes = [1, 1, 512], strides = [1, 1, 1]} : vector<1x16x512xf32> to vector<1x1x512xf32>
    %405 = vector.shape_cast %404 : vector<1x1x512xf32> to vector<1x512xf32>
    %406 = arith.truncf %403 : vector<1x128xf32> to vector<1x128xbf16>
    %cst_65 = arith.constant dense<0.000000e+00> : vector<1x512xf32>
    %407 = tpu.matmul %406, %11, %cst_65 {dimension_numbers = #tpu.dot_dimension_numbers<[1], [0], [0], [1], [0, 0, 1, 1], [], []>} : vector<1x128xbf16>, vector<128x512xbf16>, vector<1x512xf32> -> vector<1x512xf32>
    %408 = arith.addf %405, %407 : vector<1x512xf32>
    %409 = vector.extract_strided_slice %408 {offsets = [0, 0], sizes = [1, 128], strides = [1, 1]} : vector<1x512xf32> to vector<1x128xf32>
    %410 = arith.negf %409 : vector<1x128xf32>
    %411 = math.exp %410 : vector<1x128xf32>
    %cst_66 = arith.constant 1.000000e+00 : f32
    %412 = vector.broadcast %cst_66 : f32 to vector<1x128xf32>
    %413 = arith.addf %412, %411 : vector<1x128xf32>
    %414 = arith.divf %412, %413 : vector<1x128xf32>
    %415 = vector.extract_strided_slice %408 {offsets = [0, 128], sizes = [1, 128], strides = [1, 1]} : vector<1x512xf32> to vector<1x128xf32>
    %416 = arith.negf %415 : vector<1x128xf32>
    %417 = math.exp %416 : vector<1x128xf32>
    %cst_67 = arith.constant 1.000000e+00 : f32
    %418 = vector.broadcast %cst_67 : f32 to vector<1x128xf32>
    %419 = arith.addf %418, %417 : vector<1x128xf32>
    %420 = arith.divf %418, %419 : vector<1x128xf32>
    %421 = vector.extract_strided_slice %408 {offsets = [0, 256], sizes = [1, 128], strides = [1, 1]} : vector<1x512xf32> to vector<1x128xf32>
    %422 = math.tanh %421 : vector<1x128xf32>
    %423 = vector.extract_strided_slice %408 {offsets = [0, 384], sizes = [1, 128], strides = [1, 1]} : vector<1x512xf32> to vector<1x128xf32>
    %424 = arith.negf %423 : vector<1x128xf32>
    %425 = math.exp %424 : vector<1x128xf32>
    %cst_68 = arith.constant 1.000000e+00 : f32
    %426 = vector.broadcast %cst_68 : f32 to vector<1x128xf32>
    %427 = arith.addf %426, %425 : vector<1x128xf32>
    %428 = arith.divf %426, %427 : vector<1x128xf32>
    %429 = arith.mulf %420, %401 : vector<1x128xf32>
    %430 = arith.mulf %414, %422 : vector<1x128xf32>
    %431 = arith.addf %429, %430 : vector<1x128xf32>
    %432 = math.tanh %431 : vector<1x128xf32>
    %433 = arith.mulf %428, %432 : vector<1x128xf32>
    %434 = vector.extract_strided_slice %10 {offsets = [0, 14, 0], sizes = [1, 1, 512], strides = [1, 1, 1]} : vector<1x16x512xf32> to vector<1x1x512xf32>
    %435 = vector.shape_cast %434 : vector<1x1x512xf32> to vector<1x512xf32>
    %436 = arith.truncf %433 : vector<1x128xf32> to vector<1x128xbf16>
    %cst_69 = arith.constant dense<0.000000e+00> : vector<1x512xf32>
    %437 = tpu.matmul %436, %11, %cst_69 {dimension_numbers = #tpu.dot_dimension_numbers<[1], [0], [0], [1], [0, 0, 1, 1], [], []>} : vector<1x128xbf16>, vector<128x512xbf16>, vector<1x512xf32> -> vector<1x512xf32>
    %438 = arith.addf %435, %437 : vector<1x512xf32>
    %439 = vector.extract_strided_slice %438 {offsets = [0, 0], sizes = [1, 128], strides = [1, 1]} : vector<1x512xf32> to vector<1x128xf32>
    %440 = arith.negf %439 : vector<1x128xf32>
    %441 = math.exp %440 : vector<1x128xf32>
    %cst_70 = arith.constant 1.000000e+00 : f32
    %442 = vector.broadcast %cst_70 : f32 to vector<1x128xf32>
    %443 = arith.addf %442, %441 : vector<1x128xf32>
    %444 = arith.divf %442, %443 : vector<1x128xf32>
    %445 = vector.extract_strided_slice %438 {offsets = [0, 128], sizes = [1, 128], strides = [1, 1]} : vector<1x512xf32> to vector<1x128xf32>
    %446 = arith.negf %445 : vector<1x128xf32>
    %447 = math.exp %446 : vector<1x128xf32>
    %cst_71 = arith.constant 1.000000e+00 : f32
    %448 = vector.broadcast %cst_71 : f32 to vector<1x128xf32>
    %449 = arith.addf %448, %447 : vector<1x128xf32>
    %450 = arith.divf %448, %449 : vector<1x128xf32>
    %451 = vector.extract_strided_slice %438 {offsets = [0, 256], sizes = [1, 128], strides = [1, 1]} : vector<1x512xf32> to vector<1x128xf32>
    %452 = math.tanh %451 : vector<1x128xf32>
    %453 = vector.extract_strided_slice %438 {offsets = [0, 384], sizes = [1, 128], strides = [1, 1]} : vector<1x512xf32> to vector<1x128xf32>
    %454 = arith.negf %453 : vector<1x128xf32>
    %455 = math.exp %454 : vector<1x128xf32>
    %cst_72 = arith.constant 1.000000e+00 : f32
    %456 = vector.broadcast %cst_72 : f32 to vector<1x128xf32>
    %457 = arith.addf %456, %455 : vector<1x128xf32>
    %458 = arith.divf %456, %457 : vector<1x128xf32>
    %459 = arith.mulf %450, %431 : vector<1x128xf32>
    %460 = arith.mulf %444, %452 : vector<1x128xf32>
    %461 = arith.addf %459, %460 : vector<1x128xf32>
    %462 = math.tanh %461 : vector<1x128xf32>
    %463 = arith.mulf %458, %462 : vector<1x128xf32>
    %464 = vector.extract_strided_slice %10 {offsets = [0, 15, 0], sizes = [1, 1, 512], strides = [1, 1, 1]} : vector<1x16x512xf32> to vector<1x1x512xf32>
    %465 = vector.shape_cast %464 : vector<1x1x512xf32> to vector<1x512xf32>
    %466 = arith.truncf %463 : vector<1x128xf32> to vector<1x128xbf16>
    %cst_73 = arith.constant dense<0.000000e+00> : vector<1x512xf32>
    %467 = tpu.matmul %466, %11, %cst_73 {dimension_numbers = #tpu.dot_dimension_numbers<[1], [0], [0], [1], [0, 0, 1, 1], [], []>} : vector<1x128xbf16>, vector<128x512xbf16>, vector<1x512xf32> -> vector<1x512xf32>
    %468 = arith.addf %465, %467 : vector<1x512xf32>
    %469 = vector.extract_strided_slice %468 {offsets = [0, 0], sizes = [1, 128], strides = [1, 1]} : vector<1x512xf32> to vector<1x128xf32>
    %470 = arith.negf %469 : vector<1x128xf32>
    %471 = math.exp %470 : vector<1x128xf32>
    %cst_74 = arith.constant 1.000000e+00 : f32
    %472 = vector.broadcast %cst_74 : f32 to vector<1x128xf32>
    %473 = arith.addf %472, %471 : vector<1x128xf32>
    %474 = arith.divf %472, %473 : vector<1x128xf32>
    %475 = vector.extract_strided_slice %468 {offsets = [0, 128], sizes = [1, 128], strides = [1, 1]} : vector<1x512xf32> to vector<1x128xf32>
    %476 = arith.negf %475 : vector<1x128xf32>
    %477 = math.exp %476 : vector<1x128xf32>
    %cst_75 = arith.constant 1.000000e+00 : f32
    %478 = vector.broadcast %cst_75 : f32 to vector<1x128xf32>
    %479 = arith.addf %478, %477 : vector<1x128xf32>
    %480 = arith.divf %478, %479 : vector<1x128xf32>
    %481 = vector.extract_strided_slice %468 {offsets = [0, 256], sizes = [1, 128], strides = [1, 1]} : vector<1x512xf32> to vector<1x128xf32>
    %482 = math.tanh %481 : vector<1x128xf32>
    %483 = vector.extract_strided_slice %468 {offsets = [0, 384], sizes = [1, 128], strides = [1, 1]} : vector<1x512xf32> to vector<1x128xf32>
    %484 = arith.negf %483 : vector<1x128xf32>
    %485 = math.exp %484 : vector<1x128xf32>
    %cst_76 = arith.constant 1.000000e+00 : f32
    %486 = vector.broadcast %cst_76 : f32 to vector<1x128xf32>
    %487 = arith.addf %486, %485 : vector<1x128xf32>
    %488 = arith.divf %486, %487 : vector<1x128xf32>
    %489 = arith.mulf %480, %461 : vector<1x128xf32>
    %490 = arith.mulf %474, %482 : vector<1x128xf32>
    %491 = arith.addf %489, %490 : vector<1x128xf32>
    %492 = math.tanh %491 : vector<1x128xf32>
    %493 = arith.mulf %488, %492 : vector<1x128xf32>
    %c0_77 = arith.constant 0 : index
    %c0_78 = arith.constant 0 : index
    %494 = vector.load %arg13[%c0_77, %c0_78] : memref<1x128xf32, #tpu.memory_space<vmem>>, vector<1x128xf32>
    tpu.vector_store %arg13[%c0_77, %c0_78], %493 {strides = array<i32>} : memref<1x128xf32, #tpu.memory_space<vmem>>, vector<1x128xf32>,
    %c0_79 = arith.constant 0 : index
    %c0_80 = arith.constant 0 : index
    %495 = vector.load %arg14[%c0_79, %c0_80] : memref<1x128xf32, #tpu.memory_space<vmem>>, vector<1x128xf32>
    tpu.vector_store %arg14[%c0_79, %c0_80], %491 {strides = array<i32>} : memref<1x128xf32, #tpu.memory_space<vmem>>, vector<1x128xf32>,
    %496 = vector.shape_cast %43 : vector<1x128xf32> to vector<1x1x128xf32>
    %497 = vector.shape_cast %73 : vector<1x128xf32> to vector<1x1x128xf32>
    %498 = vector.shape_cast %103 : vector<1x128xf32> to vector<1x1x128xf32>
    %499 = vector.shape_cast %133 : vector<1x128xf32> to vector<1x1x128xf32>
    %500 = vector.shape_cast %163 : vector<1x128xf32> to vector<1x1x128xf32>
    %501 = vector.shape_cast %193 : vector<1x128xf32> to vector<1x1x128xf32>
    %502 = vector.shape_cast %223 : vector<1x128xf32> to vector<1x1x128xf32>
    %503 = vector.shape_cast %253 : vector<1x128xf32> to vector<1x1x128xf32>
    %504 = vector.shape_cast %283 : vector<1x128xf32> to vector<1x1x128xf32>
    %505 = vector.shape_cast %313 : vector<1x128xf32> to vector<1x1x128xf32>
    %506 = vector.shape_cast %343 : vector<1x128xf32> to vector<1x1x128xf32>
    %507 = vector.shape_cast %373 : vector<1x128xf32> to vector<1x1x128xf32>
    %508 = vector.shape_cast %403 : vector<1x128xf32> to vector<1x1x128xf32>
    %509 = vector.shape_cast %433 : vector<1x128xf32> to vector<1x1x128xf32>
    %510 = vector.shape_cast %463 : vector<1x128xf32> to vector<1x1x128xf32>
    %511 = vector.shape_cast %493 : vector<1x128xf32> to vector<1x1x128xf32>
    %512 = tpu.concatenate %496, %497, %498, %499, %500, %501, %502, %503, %504, %505, %506, %507, %508, %509, %510, %511 in 1 : vector<1x1x128xf32>, vector<1x1x128xf32>, vector<1x1x128xf32>, vector<1x1x128xf32>, vector<1x1x128xf32>, vector<1x1x128xf32>, vector<1x1x128xf32>, vector<1x1x128xf32>, vector<1x1x128xf32>, vector<1x1x128xf32>, vector<1x1x128xf32>, vector<1x1x128xf32>, vector<1x1x128xf32>, vector<1x1x128xf32>, vector<1x1x128xf32>, vector<1x1x128xf32> -> vector<1x16x128xf32>
    %513 = arith.truncf %512 : vector<1x16x128xf32> to vector<1x16x128xbf16>
    %514 = vector.shape_cast %513 : vector<1x16x128xbf16> to vector<16x128xbf16>
    %c0_81 = arith.constant 0 : index
    %c0_82 = arith.constant 0 : index
    %515 = vector.load %arg6[%c0_81, %c0_82] : memref<128x512xbf16, #tpu.memory_space<vmem>>, vector<128x512xbf16>
    %cst_83 = arith.constant dense<0.000000e+00> : vector<16x512xf32>
    %516 = tpu.matmul %514, %515, %cst_83 {dimension_numbers = #tpu.dot_dimension_numbers<[1], [0], [0], [1], [0, 0, 1, 1], [], []>} : vector<16x128xbf16>, vector<128x512xbf16>, vector<16x512xf32> -> vector<16x512xf32>
    %c0_84 = arith.constant 0 : index
    %c0_85 = arith.constant 0 : index
    %517 = vector.load %arg8[%c0_84, %c0_85] : memref<1x512xf32, #tpu.memory_space<vmem>>, vector<1x512xf32>
    %518 = vector.broadcast %517 : vector<1x512xf32> to vector<16x512xf32>
    %519 = arith.addf %516, %518 : vector<16x512xf32>
    %520 = vector.shape_cast %519 : vector<16x512xf32> to vector<1x16x512xf32>
    %c0_86 = arith.constant 0 : index
    %c0_87 = arith.constant 0 : index
    %521 = vector.load %arg7[%c0_86, %c0_87] : memref<128x512xbf16, #tpu.memory_space<vmem>>, vector<128x512xbf16>
    %c0_88 = arith.constant 0 : index
    %c0_89 = arith.constant 0 : index
    %522 = vector.load %arg15[%c0_88, %c0_89] : memref<1x128xf32, #tpu.memory_space<vmem>>, vector<1x128xf32>
    %c0_90 = arith.constant 0 : index
    %c0_91 = arith.constant 0 : index
    %523 = vector.load %arg16[%c0_90, %c0_91] : memref<1x128xf32, #tpu.memory_space<vmem>>, vector<1x128xf32>
    %524 = vector.extract_strided_slice %520 {offsets = [0, 0, 0], sizes = [1, 1, 512], strides = [1, 1, 1]} : vector<1x16x512xf32> to vector<1x1x512xf32>
    %525 = vector.shape_cast %524 : vector<1x1x512xf32> to vector<1x512xf32>
    %526 = arith.truncf %522 : vector<1x128xf32> to vector<1x128xbf16>
    %cst_92 = arith.constant dense<0.000000e+00> : vector<1x512xf32>
    %527 = tpu.matmul %526, %521, %cst_92 {dimension_numbers = #tpu.dot_dimension_numbers<[1], [0], [0], [1], [0, 0, 1, 1], [], []>} : vector<1x128xbf16>, vector<128x512xbf16>, vector<1x512xf32> -> vector<1x512xf32>
    %528 = arith.addf %525, %527 : vector<1x512xf32>
    %529 = vector.extract_strided_slice %528 {offsets = [0, 0], sizes = [1, 128], strides = [1, 1]} : vector<1x512xf32> to vector<1x128xf32>
    %530 = arith.negf %529 : vector<1x128xf32>
    %531 = math.exp %530 : vector<1x128xf32>
    %cst_93 = arith.constant 1.000000e+00 : f32
    %532 = vector.broadcast %cst_93 : f32 to vector<1x128xf32>
    %533 = arith.addf %532, %531 : vector<1x128xf32>
    %534 = arith.divf %532, %533 : vector<1x128xf32>
    %535 = vector.extract_strided_slice %528 {offsets = [0, 128], sizes = [1, 128], strides = [1, 1]} : vector<1x512xf32> to vector<1x128xf32>
    %536 = arith.negf %535 : vector<1x128xf32>
    %537 = math.exp %536 : vector<1x128xf32>
    %cst_94 = arith.constant 1.000000e+00 : f32
    %538 = vector.broadcast %cst_94 : f32 to vector<1x128xf32>
    %539 = arith.addf %538, %537 : vector<1x128xf32>
    %540 = arith.divf %538, %539 : vector<1x128xf32>
    %541 = vector.extract_strided_slice %528 {offsets = [0, 256], sizes = [1, 128], strides = [1, 1]} : vector<1x512xf32> to vector<1x128xf32>
    %542 = math.tanh %541 : vector<1x128xf32>
    %543 = vector.extract_strided_slice %528 {offsets = [0, 384], sizes = [1, 128], strides = [1, 1]} : vector<1x512xf32> to vector<1x128xf32>
    %544 = arith.negf %543 : vector<1x128xf32>
    %545 = math.exp %544 : vector<1x128xf32>
    %cst_95 = arith.constant 1.000000e+00 : f32
    %546 = vector.broadcast %cst_95 : f32 to vector<1x128xf32>
    %547 = arith.addf %546, %545 : vector<1x128xf32>
    %548 = arith.divf %546, %547 : vector<1x128xf32>
    %549 = arith.mulf %540, %523 : vector<1x128xf32>
    %550 = arith.mulf %534, %542 : vector<1x128xf32>
    %551 = arith.addf %549, %550 : vector<1x128xf32>
    %552 = math.tanh %551 : vector<1x128xf32>
    %553 = arith.mulf %548, %552 : vector<1x128xf32>
    %554 = vector.extract_strided_slice %520 {offsets = [0, 1, 0], sizes = [1, 1, 512], strides = [1, 1, 1]} : vector<1x16x512xf32> to vector<1x1x512xf32>
    %555 = vector.shape_cast %554 : vector<1x1x512xf32> to vector<1x512xf32>
    %556 = arith.truncf %553 : vector<1x128xf32> to vector<1x128xbf16>
    %cst_96 = arith.constant dense<0.000000e+00> : vector<1x512xf32>
    %557 = tpu.matmul %556, %521, %cst_96 {dimension_numbers = #tpu.dot_dimension_numbers<[1], [0], [0], [1], [0, 0, 1, 1], [], []>} : vector<1x128xbf16>, vector<128x512xbf16>, vector<1x512xf32> -> vector<1x512xf32>
    %558 = arith.addf %555, %557 : vector<1x512xf32>
    %559 = vector.extract_strided_slice %558 {offsets = [0, 0], sizes = [1, 128], strides = [1, 1]} : vector<1x512xf32> to vector<1x128xf32>
    %560 = arith.negf %559 : vector<1x128xf32>
    %561 = math.exp %560 : vector<1x128xf32>
    %cst_97 = arith.constant 1.000000e+00 : f32
    %562 = vector.broadcast %cst_97 : f32 to vector<1x128xf32>
    %563 = arith.addf %562, %561 : vector<1x128xf32>
    %564 = arith.divf %562, %563 : vector<1x128xf32>
    %565 = vector.extract_strided_slice %558 {offsets = [0, 128], sizes = [1, 128], strides = [1, 1]} : vector<1x512xf32> to vector<1x128xf32>
    %566 = arith.negf %565 : vector<1x128xf32>
    %567 = math.exp %566 : vector<1x128xf32>
    %cst_98 = arith.constant 1.000000e+00 : f32
    %568 = vector.broadcast %cst_98 : f32 to vector<1x128xf32>
    %569 = arith.addf %568, %567 : vector<1x128xf32>
    %570 = arith.divf %568, %569 : vector<1x128xf32>
    %571 = vector.extract_strided_slice %558 {offsets = [0, 256], sizes = [1, 128], strides = [1, 1]} : vector<1x512xf32> to vector<1x128xf32>
    %572 = math.tanh %571 : vector<1x128xf32>
    %573 = vector.extract_strided_slice %558 {offsets = [0, 384], sizes = [1, 128], strides = [1, 1]} : vector<1x512xf32> to vector<1x128xf32>
    %574 = arith.negf %573 : vector<1x128xf32>
    %575 = math.exp %574 : vector<1x128xf32>
    %cst_99 = arith.constant 1.000000e+00 : f32
    %576 = vector.broadcast %cst_99 : f32 to vector<1x128xf32>
    %577 = arith.addf %576, %575 : vector<1x128xf32>
    %578 = arith.divf %576, %577 : vector<1x128xf32>
    %579 = arith.mulf %570, %551 : vector<1x128xf32>
    %580 = arith.mulf %564, %572 : vector<1x128xf32>
    %581 = arith.addf %579, %580 : vector<1x128xf32>
    %582 = math.tanh %581 : vector<1x128xf32>
    %583 = arith.mulf %578, %582 : vector<1x128xf32>
    %584 = vector.extract_strided_slice %520 {offsets = [0, 2, 0], sizes = [1, 1, 512], strides = [1, 1, 1]} : vector<1x16x512xf32> to vector<1x1x512xf32>
    %585 = vector.shape_cast %584 : vector<1x1x512xf32> to vector<1x512xf32>
    %586 = arith.truncf %583 : vector<1x128xf32> to vector<1x128xbf16>
    %cst_100 = arith.constant dense<0.000000e+00> : vector<1x512xf32>
    %587 = tpu.matmul %586, %521, %cst_100 {dimension_numbers = #tpu.dot_dimension_numbers<[1], [0], [0], [1], [0, 0, 1, 1], [], []>} : vector<1x128xbf16>, vector<128x512xbf16>, vector<1x512xf32> -> vector<1x512xf32>
    %588 = arith.addf %585, %587 : vector<1x512xf32>
    %589 = vector.extract_strided_slice %588 {offsets = [0, 0], sizes = [1, 128], strides = [1, 1]} : vector<1x512xf32> to vector<1x128xf32>
    %590 = arith.negf %589 : vector<1x128xf32>
    %591 = math.exp %590 : vector<1x128xf32>
    %cst_101 = arith.constant 1.000000e+00 : f32
    %592 = vector.broadcast %cst_101 : f32 to vector<1x128xf32>
    %593 = arith.addf %592, %591 : vector<1x128xf32>
    %594 = arith.divf %592, %593 : vector<1x128xf32>
    %595 = vector.extract_strided_slice %588 {offsets = [0, 128], sizes = [1, 128], strides = [1, 1]} : vector<1x512xf32> to vector<1x128xf32>
    %596 = arith.negf %595 : vector<1x128xf32>
    %597 = math.exp %596 : vector<1x128xf32>
    %cst_102 = arith.constant 1.000000e+00 : f32
    %598 = vector.broadcast %cst_102 : f32 to vector<1x128xf32>
    %599 = arith.addf %598, %597 : vector<1x128xf32>
    %600 = arith.divf %598, %599 : vector<1x128xf32>
    %601 = vector.extract_strided_slice %588 {offsets = [0, 256], sizes = [1, 128], strides = [1, 1]} : vector<1x512xf32> to vector<1x128xf32>
    %602 = math.tanh %601 : vector<1x128xf32>
    %603 = vector.extract_strided_slice %588 {offsets = [0, 384], sizes = [1, 128], strides = [1, 1]} : vector<1x512xf32> to vector<1x128xf32>
    %604 = arith.negf %603 : vector<1x128xf32>
    %605 = math.exp %604 : vector<1x128xf32>
    %cst_103 = arith.constant 1.000000e+00 : f32
    %606 = vector.broadcast %cst_103 : f32 to vector<1x128xf32>
    %607 = arith.addf %606, %605 : vector<1x128xf32>
    %608 = arith.divf %606, %607 : vector<1x128xf32>
    %609 = arith.mulf %600, %581 : vector<1x128xf32>
    %610 = arith.mulf %594, %602 : vector<1x128xf32>
    %611 = arith.addf %609, %610 : vector<1x128xf32>
    %612 = math.tanh %611 : vector<1x128xf32>
    %613 = arith.mulf %608, %612 : vector<1x128xf32>
    %614 = vector.extract_strided_slice %520 {offsets = [0, 3, 0], sizes = [1, 1, 512], strides = [1, 1, 1]} : vector<1x16x512xf32> to vector<1x1x512xf32>
    %615 = vector.shape_cast %614 : vector<1x1x512xf32> to vector<1x512xf32>
    %616 = arith.truncf %613 : vector<1x128xf32> to vector<1x128xbf16>
    %cst_104 = arith.constant dense<0.000000e+00> : vector<1x512xf32>
    %617 = tpu.matmul %616, %521, %cst_104 {dimension_numbers = #tpu.dot_dimension_numbers<[1], [0], [0], [1], [0, 0, 1, 1], [], []>} : vector<1x128xbf16>, vector<128x512xbf16>, vector<1x512xf32> -> vector<1x512xf32>
    %618 = arith.addf %615, %617 : vector<1x512xf32>
    %619 = vector.extract_strided_slice %618 {offsets = [0, 0], sizes = [1, 128], strides = [1, 1]} : vector<1x512xf32> to vector<1x128xf32>
    %620 = arith.negf %619 : vector<1x128xf32>
    %621 = math.exp %620 : vector<1x128xf32>
    %cst_105 = arith.constant 1.000000e+00 : f32
    %622 = vector.broadcast %cst_105 : f32 to vector<1x128xf32>
    %623 = arith.addf %622, %621 : vector<1x128xf32>
    %624 = arith.divf %622, %623 : vector<1x128xf32>
    %625 = vector.extract_strided_slice %618 {offsets = [0, 128], sizes = [1, 128], strides = [1, 1]} : vector<1x512xf32> to vector<1x128xf32>
    %626 = arith.negf %625 : vector<1x128xf32>
    %627 = math.exp %626 : vector<1x128xf32>
    %cst_106 = arith.constant 1.000000e+00 : f32
    %628 = vector.broadcast %cst_106 : f32 to vector<1x128xf32>
    %629 = arith.addf %628, %627 : vector<1x128xf32>
    %630 = arith.divf %628, %629 : vector<1x128xf32>
    %631 = vector.extract_strided_slice %618 {offsets = [0, 256], sizes = [1, 128], strides = [1, 1]} : vector<1x512xf32> to vector<1x128xf32>
    %632 = math.tanh %631 : vector<1x128xf32>
    %633 = vector.extract_strided_slice %618 {offsets = [0, 384], sizes = [1, 128], strides = [1, 1]} : vector<1x512xf32> to vector<1x128xf32>
    %634 = arith.negf %633 : vector<1x128xf32>
    %635 = math.exp %634 : vector<1x128xf32>
    %cst_107 = arith.constant 1.000000e+00 : f32
    %636 = vector.broadcast %cst_107 : f32 to vector<1x128xf32>
    %637 = arith.addf %636, %635 : vector<1x128xf32>
    %638 = arith.divf %636, %637 : vector<1x128xf32>
    %639 = arith.mulf %630, %611 : vector<1x128xf32>
    %640 = arith.mulf %624, %632 : vector<1x128xf32>
    %641 = arith.addf %639, %640 : vector<1x128xf32>
    %642 = math.tanh %641 : vector<1x128xf32>
    %643 = arith.mulf %638, %642 : vector<1x128xf32>
    %644 = vector.extract_strided_slice %520 {offsets = [0, 4, 0], sizes = [1, 1, 512], strides = [1, 1, 1]} : vector<1x16x512xf32> to vector<1x1x512xf32>
    %645 = vector.shape_cast %644 : vector<1x1x512xf32> to vector<1x512xf32>
    %646 = arith.truncf %643 : vector<1x128xf32> to vector<1x128xbf16>
    %cst_108 = arith.constant dense<0.000000e+00> : vector<1x512xf32>
    %647 = tpu.matmul %646, %521, %cst_108 {dimension_numbers = #tpu.dot_dimension_numbers<[1], [0], [0], [1], [0, 0, 1, 1], [], []>} : vector<1x128xbf16>, vector<128x512xbf16>, vector<1x512xf32> -> vector<1x512xf32>
    %648 = arith.addf %645, %647 : vector<1x512xf32>
    %649 = vector.extract_strided_slice %648 {offsets = [0, 0], sizes = [1, 128], strides = [1, 1]} : vector<1x512xf32> to vector<1x128xf32>
    %650 = arith.negf %649 : vector<1x128xf32>
    %651 = math.exp %650 : vector<1x128xf32>
    %cst_109 = arith.constant 1.000000e+00 : f32
    %652 = vector.broadcast %cst_109 : f32 to vector<1x128xf32>
    %653 = arith.addf %652, %651 : vector<1x128xf32>
    %654 = arith.divf %652, %653 : vector<1x128xf32>
    %655 = vector.extract_strided_slice %648 {offsets = [0, 128], sizes = [1, 128], strides = [1, 1]} : vector<1x512xf32> to vector<1x128xf32>
    %656 = arith.negf %655 : vector<1x128xf32>
    %657 = math.exp %656 : vector<1x128xf32>
    %cst_110 = arith.constant 1.000000e+00 : f32
    %658 = vector.broadcast %cst_110 : f32 to vector<1x128xf32>
    %659 = arith.addf %658, %657 : vector<1x128xf32>
    %660 = arith.divf %658, %659 : vector<1x128xf32>
    %661 = vector.extract_strided_slice %648 {offsets = [0, 256], sizes = [1, 128], strides = [1, 1]} : vector<1x512xf32> to vector<1x128xf32>
    %662 = math.tanh %661 : vector<1x128xf32>
    %663 = vector.extract_strided_slice %648 {offsets = [0, 384], sizes = [1, 128], strides = [1, 1]} : vector<1x512xf32> to vector<1x128xf32>
    %664 = arith.negf %663 : vector<1x128xf32>
    %665 = math.exp %664 : vector<1x128xf32>
    %cst_111 = arith.constant 1.000000e+00 : f32
    %666 = vector.broadcast %cst_111 : f32 to vector<1x128xf32>
    %667 = arith.addf %666, %665 : vector<1x128xf32>
    %668 = arith.divf %666, %667 : vector<1x128xf32>
    %669 = arith.mulf %660, %641 : vector<1x128xf32>
    %670 = arith.mulf %654, %662 : vector<1x128xf32>
    %671 = arith.addf %669, %670 : vector<1x128xf32>
    %672 = math.tanh %671 : vector<1x128xf32>
    %673 = arith.mulf %668, %672 : vector<1x128xf32>
    %674 = vector.extract_strided_slice %520 {offsets = [0, 5, 0], sizes = [1, 1, 512], strides = [1, 1, 1]} : vector<1x16x512xf32> to vector<1x1x512xf32>
    %675 = vector.shape_cast %674 : vector<1x1x512xf32> to vector<1x512xf32>
    %676 = arith.truncf %673 : vector<1x128xf32> to vector<1x128xbf16>
    %cst_112 = arith.constant dense<0.000000e+00> : vector<1x512xf32>
    %677 = tpu.matmul %676, %521, %cst_112 {dimension_numbers = #tpu.dot_dimension_numbers<[1], [0], [0], [1], [0, 0, 1, 1], [], []>} : vector<1x128xbf16>, vector<128x512xbf16>, vector<1x512xf32> -> vector<1x512xf32>
    %678 = arith.addf %675, %677 : vector<1x512xf32>
    %679 = vector.extract_strided_slice %678 {offsets = [0, 0], sizes = [1, 128], strides = [1, 1]} : vector<1x512xf32> to vector<1x128xf32>
    %680 = arith.negf %679 : vector<1x128xf32>
    %681 = math.exp %680 : vector<1x128xf32>
    %cst_113 = arith.constant 1.000000e+00 : f32
    %682 = vector.broadcast %cst_113 : f32 to vector<1x128xf32>
    %683 = arith.addf %682, %681 : vector<1x128xf32>
    %684 = arith.divf %682, %683 : vector<1x128xf32>
    %685 = vector.extract_strided_slice %678 {offsets = [0, 128], sizes = [1, 128], strides = [1, 1]} : vector<1x512xf32> to vector<1x128xf32>
    %686 = arith.negf %685 : vector<1x128xf32>
    %687 = math.exp %686 : vector<1x128xf32>
    %cst_114 = arith.constant 1.000000e+00 : f32
    %688 = vector.broadcast %cst_114 : f32 to vector<1x128xf32>
    %689 = arith.addf %688, %687 : vector<1x128xf32>
    %690 = arith.divf %688, %689 : vector<1x128xf32>
    %691 = vector.extract_strided_slice %678 {offsets = [0, 256], sizes = [1, 128], strides = [1, 1]} : vector<1x512xf32> to vector<1x128xf32>
    %692 = math.tanh %691 : vector<1x128xf32>
    %693 = vector.extract_strided_slice %678 {offsets = [0, 384], sizes = [1, 128], strides = [1, 1]} : vector<1x512xf32> to vector<1x128xf32>
    %694 = arith.negf %693 : vector<1x128xf32>
    %695 = math.exp %694 : vector<1x128xf32>
    %cst_115 = arith.constant 1.000000e+00 : f32
    %696 = vector.broadcast %cst_115 : f32 to vector<1x128xf32>
    %697 = arith.addf %696, %695 : vector<1x128xf32>
    %698 = arith.divf %696, %697 : vector<1x128xf32>
    %699 = arith.mulf %690, %671 : vector<1x128xf32>
    %700 = arith.mulf %684, %692 : vector<1x128xf32>
    %701 = arith.addf %699, %700 : vector<1x128xf32>
    %702 = math.tanh %701 : vector<1x128xf32>
    %703 = arith.mulf %698, %702 : vector<1x128xf32>
    %704 = vector.extract_strided_slice %520 {offsets = [0, 6, 0], sizes = [1, 1, 512], strides = [1, 1, 1]} : vector<1x16x512xf32> to vector<1x1x512xf32>
    %705 = vector.shape_cast %704 : vector<1x1x512xf32> to vector<1x512xf32>
    %706 = arith.truncf %703 : vector<1x128xf32> to vector<1x128xbf16>
    %cst_116 = arith.constant dense<0.000000e+00> : vector<1x512xf32>
    %707 = tpu.matmul %706, %521, %cst_116 {dimension_numbers = #tpu.dot_dimension_numbers<[1], [0], [0], [1], [0, 0, 1, 1], [], []>} : vector<1x128xbf16>, vector<128x512xbf16>, vector<1x512xf32> -> vector<1x512xf32>
    %708 = arith.addf %705, %707 : vector<1x512xf32>
    %709 = vector.extract_strided_slice %708 {offsets = [0, 0], sizes = [1, 128], strides = [1, 1]} : vector<1x512xf32> to vector<1x128xf32>
    %710 = arith.negf %709 : vector<1x128xf32>
    %711 = math.exp %710 : vector<1x128xf32>
    %cst_117 = arith.constant 1.000000e+00 : f32
    %712 = vector.broadcast %cst_117 : f32 to vector<1x128xf32>
    %713 = arith.addf %712, %711 : vector<1x128xf32>
    %714 = arith.divf %712, %713 : vector<1x128xf32>
    %715 = vector.extract_strided_slice %708 {offsets = [0, 128], sizes = [1, 128], strides = [1, 1]} : vector<1x512xf32> to vector<1x128xf32>
    %716 = arith.negf %715 : vector<1x128xf32>
    %717 = math.exp %716 : vector<1x128xf32>
    %cst_118 = arith.constant 1.000000e+00 : f32
    %718 = vector.broadcast %cst_118 : f32 to vector<1x128xf32>
    %719 = arith.addf %718, %717 : vector<1x128xf32>
    %720 = arith.divf %718, %719 : vector<1x128xf32>
    %721 = vector.extract_strided_slice %708 {offsets = [0, 256], sizes = [1, 128], strides = [1, 1]} : vector<1x512xf32> to vector<1x128xf32>
    %722 = math.tanh %721 : vector<1x128xf32>
    %723 = vector.extract_strided_slice %708 {offsets = [0, 384], sizes = [1, 128], strides = [1, 1]} : vector<1x512xf32> to vector<1x128xf32>
    %724 = arith.negf %723 : vector<1x128xf32>
    %725 = math.exp %724 : vector<1x128xf32>
    %cst_119 = arith.constant 1.000000e+00 : f32
    %726 = vector.broadcast %cst_119 : f32 to vector<1x128xf32>
    %727 = arith.addf %726, %725 : vector<1x128xf32>
    %728 = arith.divf %726, %727 : vector<1x128xf32>
    %729 = arith.mulf %720, %701 : vector<1x128xf32>
    %730 = arith.mulf %714, %722 : vector<1x128xf32>
    %731 = arith.addf %729, %730 : vector<1x128xf32>
    %732 = math.tanh %731 : vector<1x128xf32>
    %733 = arith.mulf %728, %732 : vector<1x128xf32>
    %734 = vector.extract_strided_slice %520 {offsets = [0, 7, 0], sizes = [1, 1, 512], strides = [1, 1, 1]} : vector<1x16x512xf32> to vector<1x1x512xf32>
    %735 = vector.shape_cast %734 : vector<1x1x512xf32> to vector<1x512xf32>
    %736 = arith.truncf %733 : vector<1x128xf32> to vector<1x128xbf16>
    %cst_120 = arith.constant dense<0.000000e+00> : vector<1x512xf32>
    %737 = tpu.matmul %736, %521, %cst_120 {dimension_numbers = #tpu.dot_dimension_numbers<[1], [0], [0], [1], [0, 0, 1, 1], [], []>} : vector<1x128xbf16>, vector<128x512xbf16>, vector<1x512xf32> -> vector<1x512xf32>
    %738 = arith.addf %735, %737 : vector<1x512xf32>
    %739 = vector.extract_strided_slice %738 {offsets = [0, 0], sizes = [1, 128], strides = [1, 1]} : vector<1x512xf32> to vector<1x128xf32>
    %740 = arith.negf %739 : vector<1x128xf32>
    %741 = math.exp %740 : vector<1x128xf32>
    %cst_121 = arith.constant 1.000000e+00 : f32
    %742 = vector.broadcast %cst_121 : f32 to vector<1x128xf32>
    %743 = arith.addf %742, %741 : vector<1x128xf32>
    %744 = arith.divf %742, %743 : vector<1x128xf32>
    %745 = vector.extract_strided_slice %738 {offsets = [0, 128], sizes = [1, 128], strides = [1, 1]} : vector<1x512xf32> to vector<1x128xf32>
    %746 = arith.negf %745 : vector<1x128xf32>
    %747 = math.exp %746 : vector<1x128xf32>
    %cst_122 = arith.constant 1.000000e+00 : f32
    %748 = vector.broadcast %cst_122 : f32 to vector<1x128xf32>
    %749 = arith.addf %748, %747 : vector<1x128xf32>
    %750 = arith.divf %748, %749 : vector<1x128xf32>
    %751 = vector.extract_strided_slice %738 {offsets = [0, 256], sizes = [1, 128], strides = [1, 1]} : vector<1x512xf32> to vector<1x128xf32>
    %752 = math.tanh %751 : vector<1x128xf32>
    %753 = vector.extract_strided_slice %738 {offsets = [0, 384], sizes = [1, 128], strides = [1, 1]} : vector<1x512xf32> to vector<1x128xf32>
    %754 = arith.negf %753 : vector<1x128xf32>
    %755 = math.exp %754 : vector<1x128xf32>
    %cst_123 = arith.constant 1.000000e+00 : f32
    %756 = vector.broadcast %cst_123 : f32 to vector<1x128xf32>
    %757 = arith.addf %756, %755 : vector<1x128xf32>
    %758 = arith.divf %756, %757 : vector<1x128xf32>
    %759 = arith.mulf %750, %731 : vector<1x128xf32>
    %760 = arith.mulf %744, %752 : vector<1x128xf32>
    %761 = arith.addf %759, %760 : vector<1x128xf32>
    %762 = math.tanh %761 : vector<1x128xf32>
    %763 = arith.mulf %758, %762 : vector<1x128xf32>
    %764 = vector.extract_strided_slice %520 {offsets = [0, 8, 0], sizes = [1, 1, 512], strides = [1, 1, 1]} : vector<1x16x512xf32> to vector<1x1x512xf32>
    %765 = vector.shape_cast %764 : vector<1x1x512xf32> to vector<1x512xf32>
    %766 = arith.truncf %763 : vector<1x128xf32> to vector<1x128xbf16>
    %cst_124 = arith.constant dense<0.000000e+00> : vector<1x512xf32>
    %767 = tpu.matmul %766, %521, %cst_124 {dimension_numbers = #tpu.dot_dimension_numbers<[1], [0], [0], [1], [0, 0, 1, 1], [], []>} : vector<1x128xbf16>, vector<128x512xbf16>, vector<1x512xf32> -> vector<1x512xf32>
    %768 = arith.addf %765, %767 : vector<1x512xf32>
    %769 = vector.extract_strided_slice %768 {offsets = [0, 0], sizes = [1, 128], strides = [1, 1]} : vector<1x512xf32> to vector<1x128xf32>
    %770 = arith.negf %769 : vector<1x128xf32>
    %771 = math.exp %770 : vector<1x128xf32>
    %cst_125 = arith.constant 1.000000e+00 : f32
    %772 = vector.broadcast %cst_125 : f32 to vector<1x128xf32>
    %773 = arith.addf %772, %771 : vector<1x128xf32>
    %774 = arith.divf %772, %773 : vector<1x128xf32>
    %775 = vector.extract_strided_slice %768 {offsets = [0, 128], sizes = [1, 128], strides = [1, 1]} : vector<1x512xf32> to vector<1x128xf32>
    %776 = arith.negf %775 : vector<1x128xf32>
    %777 = math.exp %776 : vector<1x128xf32>
    %cst_126 = arith.constant 1.000000e+00 : f32
    %778 = vector.broadcast %cst_126 : f32 to vector<1x128xf32>
    %779 = arith.addf %778, %777 : vector<1x128xf32>
    %780 = arith.divf %778, %779 : vector<1x128xf32>
    %781 = vector.extract_strided_slice %768 {offsets = [0, 256], sizes = [1, 128], strides = [1, 1]} : vector<1x512xf32> to vector<1x128xf32>
    %782 = math.tanh %781 : vector<1x128xf32>
    %783 = vector.extract_strided_slice %768 {offsets = [0, 384], sizes = [1, 128], strides = [1, 1]} : vector<1x512xf32> to vector<1x128xf32>
    %784 = arith.negf %783 : vector<1x128xf32>
    %785 = math.exp %784 : vector<1x128xf32>
    %cst_127 = arith.constant 1.000000e+00 : f32
    %786 = vector.broadcast %cst_127 : f32 to vector<1x128xf32>
    %787 = arith.addf %786, %785 : vector<1x128xf32>
    %788 = arith.divf %786, %787 : vector<1x128xf32>
    %789 = arith.mulf %780, %761 : vector<1x128xf32>
    %790 = arith.mulf %774, %782 : vector<1x128xf32>
    %791 = arith.addf %789, %790 : vector<1x128xf32>
    %792 = math.tanh %791 : vector<1x128xf32>
    %793 = arith.mulf %788, %792 : vector<1x128xf32>
    %794 = vector.extract_strided_slice %520 {offsets = [0, 9, 0], sizes = [1, 1, 512], strides = [1, 1, 1]} : vector<1x16x512xf32> to vector<1x1x512xf32>
    %795 = vector.shape_cast %794 : vector<1x1x512xf32> to vector<1x512xf32>
    %796 = arith.truncf %793 : vector<1x128xf32> to vector<1x128xbf16>
    %cst_128 = arith.constant dense<0.000000e+00> : vector<1x512xf32>
    %797 = tpu.matmul %796, %521, %cst_128 {dimension_numbers = #tpu.dot_dimension_numbers<[1], [0], [0], [1], [0, 0, 1, 1], [], []>} : vector<1x128xbf16>, vector<128x512xbf16>, vector<1x512xf32> -> vector<1x512xf32>
    %798 = arith.addf %795, %797 : vector<1x512xf32>
    %799 = vector.extract_strided_slice %798 {offsets = [0, 0], sizes = [1, 128], strides = [1, 1]} : vector<1x512xf32> to vector<1x128xf32>
    %800 = arith.negf %799 : vector<1x128xf32>
    %801 = math.exp %800 : vector<1x128xf32>
    %cst_129 = arith.constant 1.000000e+00 : f32
    %802 = vector.broadcast %cst_129 : f32 to vector<1x128xf32>
    %803 = arith.addf %802, %801 : vector<1x128xf32>
    %804 = arith.divf %802, %803 : vector<1x128xf32>
    %805 = vector.extract_strided_slice %798 {offsets = [0, 128], sizes = [1, 128], strides = [1, 1]} : vector<1x512xf32> to vector<1x128xf32>
    %806 = arith.negf %805 : vector<1x128xf32>
    %807 = math.exp %806 : vector<1x128xf32>
    %cst_130 = arith.constant 1.000000e+00 : f32
    %808 = vector.broadcast %cst_130 : f32 to vector<1x128xf32>
    %809 = arith.addf %808, %807 : vector<1x128xf32>
    %810 = arith.divf %808, %809 : vector<1x128xf32>
    %811 = vector.extract_strided_slice %798 {offsets = [0, 256], sizes = [1, 128], strides = [1, 1]} : vector<1x512xf32> to vector<1x128xf32>
    %812 = math.tanh %811 : vector<1x128xf32>
    %813 = vector.extract_strided_slice %798 {offsets = [0, 384], sizes = [1, 128], strides = [1, 1]} : vector<1x512xf32> to vector<1x128xf32>
    %814 = arith.negf %813 : vector<1x128xf32>
    %815 = math.exp %814 : vector<1x128xf32>
    %cst_131 = arith.constant 1.000000e+00 : f32
    %816 = vector.broadcast %cst_131 : f32 to vector<1x128xf32>
    %817 = arith.addf %816, %815 : vector<1x128xf32>
    %818 = arith.divf %816, %817 : vector<1x128xf32>
    %819 = arith.mulf %810, %791 : vector<1x128xf32>
    %820 = arith.mulf %804, %812 : vector<1x128xf32>
    %821 = arith.addf %819, %820 : vector<1x128xf32>
    %822 = math.tanh %821 : vector<1x128xf32>
    %823 = arith.mulf %818, %822 : vector<1x128xf32>
    %824 = vector.extract_strided_slice %520 {offsets = [0, 10, 0], sizes = [1, 1, 512], strides = [1, 1, 1]} : vector<1x16x512xf32> to vector<1x1x512xf32>
    %825 = vector.shape_cast %824 : vector<1x1x512xf32> to vector<1x512xf32>
    %826 = arith.truncf %823 : vector<1x128xf32> to vector<1x128xbf16>
    %cst_132 = arith.constant dense<0.000000e+00> : vector<1x512xf32>
    %827 = tpu.matmul %826, %521, %cst_132 {dimension_numbers = #tpu.dot_dimension_numbers<[1], [0], [0], [1], [0, 0, 1, 1], [], []>} : vector<1x128xbf16>, vector<128x512xbf16>, vector<1x512xf32> -> vector<1x512xf32>
    %828 = arith.addf %825, %827 : vector<1x512xf32>
    %829 = vector.extract_strided_slice %828 {offsets = [0, 0], sizes = [1, 128], strides = [1, 1]} : vector<1x512xf32> to vector<1x128xf32>
    %830 = arith.negf %829 : vector<1x128xf32>
    %831 = math.exp %830 : vector<1x128xf32>
    %cst_133 = arith.constant 1.000000e+00 : f32
    %832 = vector.broadcast %cst_133 : f32 to vector<1x128xf32>
    %833 = arith.addf %832, %831 : vector<1x128xf32>
    %834 = arith.divf %832, %833 : vector<1x128xf32>
    %835 = vector.extract_strided_slice %828 {offsets = [0, 128], sizes = [1, 128], strides = [1, 1]} : vector<1x512xf32> to vector<1x128xf32>
    %836 = arith.negf %835 : vector<1x128xf32>
    %837 = math.exp %836 : vector<1x128xf32>
    %cst_134 = arith.constant 1.000000e+00 : f32
    %838 = vector.broadcast %cst_134 : f32 to vector<1x128xf32>
    %839 = arith.addf %838, %837 : vector<1x128xf32>
    %840 = arith.divf %838, %839 : vector<1x128xf32>
    %841 = vector.extract_strided_slice %828 {offsets = [0, 256], sizes = [1, 128], strides = [1, 1]} : vector<1x512xf32> to vector<1x128xf32>
    %842 = math.tanh %841 : vector<1x128xf32>
    %843 = vector.extract_strided_slice %828 {offsets = [0, 384], sizes = [1, 128], strides = [1, 1]} : vector<1x512xf32> to vector<1x128xf32>
    %844 = arith.negf %843 : vector<1x128xf32>
    %845 = math.exp %844 : vector<1x128xf32>
    %cst_135 = arith.constant 1.000000e+00 : f32
    %846 = vector.broadcast %cst_135 : f32 to vector<1x128xf32>
    %847 = arith.addf %846, %845 : vector<1x128xf32>
    %848 = arith.divf %846, %847 : vector<1x128xf32>
    %849 = arith.mulf %840, %821 : vector<1x128xf32>
    %850 = arith.mulf %834, %842 : vector<1x128xf32>
    %851 = arith.addf %849, %850 : vector<1x128xf32>
    %852 = math.tanh %851 : vector<1x128xf32>
    %853 = arith.mulf %848, %852 : vector<1x128xf32>
    %854 = vector.extract_strided_slice %520 {offsets = [0, 11, 0], sizes = [1, 1, 512], strides = [1, 1, 1]} : vector<1x16x512xf32> to vector<1x1x512xf32>
    %855 = vector.shape_cast %854 : vector<1x1x512xf32> to vector<1x512xf32>
    %856 = arith.truncf %853 : vector<1x128xf32> to vector<1x128xbf16>
    %cst_136 = arith.constant dense<0.000000e+00> : vector<1x512xf32>
    %857 = tpu.matmul %856, %521, %cst_136 {dimension_numbers = #tpu.dot_dimension_numbers<[1], [0], [0], [1], [0, 0, 1, 1], [], []>} : vector<1x128xbf16>, vector<128x512xbf16>, vector<1x512xf32> -> vector<1x512xf32>
    %858 = arith.addf %855, %857 : vector<1x512xf32>
    %859 = vector.extract_strided_slice %858 {offsets = [0, 0], sizes = [1, 128], strides = [1, 1]} : vector<1x512xf32> to vector<1x128xf32>
    %860 = arith.negf %859 : vector<1x128xf32>
    %861 = math.exp %860 : vector<1x128xf32>
    %cst_137 = arith.constant 1.000000e+00 : f32
    %862 = vector.broadcast %cst_137 : f32 to vector<1x128xf32>
    %863 = arith.addf %862, %861 : vector<1x128xf32>
    %864 = arith.divf %862, %863 : vector<1x128xf32>
    %865 = vector.extract_strided_slice %858 {offsets = [0, 128], sizes = [1, 128], strides = [1, 1]} : vector<1x512xf32> to vector<1x128xf32>
    %866 = arith.negf %865 : vector<1x128xf32>
    %867 = math.exp %866 : vector<1x128xf32>
    %cst_138 = arith.constant 1.000000e+00 : f32
    %868 = vector.broadcast %cst_138 : f32 to vector<1x128xf32>
    %869 = arith.addf %868, %867 : vector<1x128xf32>
    %870 = arith.divf %868, %869 : vector<1x128xf32>
    %871 = vector.extract_strided_slice %858 {offsets = [0, 256], sizes = [1, 128], strides = [1, 1]} : vector<1x512xf32> to vector<1x128xf32>
    %872 = math.tanh %871 : vector<1x128xf32>
    %873 = vector.extract_strided_slice %858 {offsets = [0, 384], sizes = [1, 128], strides = [1, 1]} : vector<1x512xf32> to vector<1x128xf32>
    %874 = arith.negf %873 : vector<1x128xf32>
    %875 = math.exp %874 : vector<1x128xf32>
    %cst_139 = arith.constant 1.000000e+00 : f32
    %876 = vector.broadcast %cst_139 : f32 to vector<1x128xf32>
    %877 = arith.addf %876, %875 : vector<1x128xf32>
    %878 = arith.divf %876, %877 : vector<1x128xf32>
    %879 = arith.mulf %870, %851 : vector<1x128xf32>
    %880 = arith.mulf %864, %872 : vector<1x128xf32>
    %881 = arith.addf %879, %880 : vector<1x128xf32>
    %882 = math.tanh %881 : vector<1x128xf32>
    %883 = arith.mulf %878, %882 : vector<1x128xf32>
    %884 = vector.extract_strided_slice %520 {offsets = [0, 12, 0], sizes = [1, 1, 512], strides = [1, 1, 1]} : vector<1x16x512xf32> to vector<1x1x512xf32>
    %885 = vector.shape_cast %884 : vector<1x1x512xf32> to vector<1x512xf32>
    %886 = arith.truncf %883 : vector<1x128xf32> to vector<1x128xbf16>
    %cst_140 = arith.constant dense<0.000000e+00> : vector<1x512xf32>
    %887 = tpu.matmul %886, %521, %cst_140 {dimension_numbers = #tpu.dot_dimension_numbers<[1], [0], [0], [1], [0, 0, 1, 1], [], []>} : vector<1x128xbf16>, vector<128x512xbf16>, vector<1x512xf32> -> vector<1x512xf32>
    %888 = arith.addf %885, %887 : vector<1x512xf32>
    %889 = vector.extract_strided_slice %888 {offsets = [0, 0], sizes = [1, 128], strides = [1, 1]} : vector<1x512xf32> to vector<1x128xf32>
    %890 = arith.negf %889 : vector<1x128xf32>
    %891 = math.exp %890 : vector<1x128xf32>
    %cst_141 = arith.constant 1.000000e+00 : f32
    %892 = vector.broadcast %cst_141 : f32 to vector<1x128xf32>
    %893 = arith.addf %892, %891 : vector<1x128xf32>
    %894 = arith.divf %892, %893 : vector<1x128xf32>
    %895 = vector.extract_strided_slice %888 {offsets = [0, 128], sizes = [1, 128], strides = [1, 1]} : vector<1x512xf32> to vector<1x128xf32>
    %896 = arith.negf %895 : vector<1x128xf32>
    %897 = math.exp %896 : vector<1x128xf32>
    %cst_142 = arith.constant 1.000000e+00 : f32
    %898 = vector.broadcast %cst_142 : f32 to vector<1x128xf32>
    %899 = arith.addf %898, %897 : vector<1x128xf32>
    %900 = arith.divf %898, %899 : vector<1x128xf32>
    %901 = vector.extract_strided_slice %888 {offsets = [0, 256], sizes = [1, 128], strides = [1, 1]} : vector<1x512xf32> to vector<1x128xf32>
    %902 = math.tanh %901 : vector<1x128xf32>
    %903 = vector.extract_strided_slice %888 {offsets = [0, 384], sizes = [1, 128], strides = [1, 1]} : vector<1x512xf32> to vector<1x128xf32>
    %904 = arith.negf %903 : vector<1x128xf32>
    %905 = math.exp %904 : vector<1x128xf32>
    %cst_143 = arith.constant 1.000000e+00 : f32
    %906 = vector.broadcast %cst_143 : f32 to vector<1x128xf32>
    %907 = arith.addf %906, %905 : vector<1x128xf32>
    %908 = arith.divf %906, %907 : vector<1x128xf32>
    %909 = arith.mulf %900, %881 : vector<1x128xf32>
    %910 = arith.mulf %894, %902 : vector<1x128xf32>
    %911 = arith.addf %909, %910 : vector<1x128xf32>
    %912 = math.tanh %911 : vector<1x128xf32>
    %913 = arith.mulf %908, %912 : vector<1x128xf32>
    %914 = vector.extract_strided_slice %520 {offsets = [0, 13, 0], sizes = [1, 1, 512], strides = [1, 1, 1]} : vector<1x16x512xf32> to vector<1x1x512xf32>
    %915 = vector.shape_cast %914 : vector<1x1x512xf32> to vector<1x512xf32>
    %916 = arith.truncf %913 : vector<1x128xf32> to vector<1x128xbf16>
    %cst_144 = arith.constant dense<0.000000e+00> : vector<1x512xf32>
    %917 = tpu.matmul %916, %521, %cst_144 {dimension_numbers = #tpu.dot_dimension_numbers<[1], [0], [0], [1], [0, 0, 1, 1], [], []>} : vector<1x128xbf16>, vector<128x512xbf16>, vector<1x512xf32> -> vector<1x512xf32>
    %918 = arith.addf %915, %917 : vector<1x512xf32>
    %919 = vector.extract_strided_slice %918 {offsets = [0, 0], sizes = [1, 128], strides = [1, 1]} : vector<1x512xf32> to vector<1x128xf32>
    %920 = arith.negf %919 : vector<1x128xf32>
    %921 = math.exp %920 : vector<1x128xf32>
    %cst_145 = arith.constant 1.000000e+00 : f32
    %922 = vector.broadcast %cst_145 : f32 to vector<1x128xf32>
    %923 = arith.addf %922, %921 : vector<1x128xf32>
    %924 = arith.divf %922, %923 : vector<1x128xf32>
    %925 = vector.extract_strided_slice %918 {offsets = [0, 128], sizes = [1, 128], strides = [1, 1]} : vector<1x512xf32> to vector<1x128xf32>
    %926 = arith.negf %925 : vector<1x128xf32>
    %927 = math.exp %926 : vector<1x128xf32>
    %cst_146 = arith.constant 1.000000e+00 : f32
    %928 = vector.broadcast %cst_146 : f32 to vector<1x128xf32>
    %929 = arith.addf %928, %927 : vector<1x128xf32>
    %930 = arith.divf %928, %929 : vector<1x128xf32>
    %931 = vector.extract_strided_slice %918 {offsets = [0, 256], sizes = [1, 128], strides = [1, 1]} : vector<1x512xf32> to vector<1x128xf32>
    %932 = math.tanh %931 : vector<1x128xf32>
    %933 = vector.extract_strided_slice %918 {offsets = [0, 384], sizes = [1, 128], strides = [1, 1]} : vector<1x512xf32> to vector<1x128xf32>
    %934 = arith.negf %933 : vector<1x128xf32>
    %935 = math.exp %934 : vector<1x128xf32>
    %cst_147 = arith.constant 1.000000e+00 : f32
    %936 = vector.broadcast %cst_147 : f32 to vector<1x128xf32>
    %937 = arith.addf %936, %935 : vector<1x128xf32>
    %938 = arith.divf %936, %937 : vector<1x128xf32>
    %939 = arith.mulf %930, %911 : vector<1x128xf32>
    %940 = arith.mulf %924, %932 : vector<1x128xf32>
    %941 = arith.addf %939, %940 : vector<1x128xf32>
    %942 = math.tanh %941 : vector<1x128xf32>
    %943 = arith.mulf %938, %942 : vector<1x128xf32>
    %944 = vector.extract_strided_slice %520 {offsets = [0, 14, 0], sizes = [1, 1, 512], strides = [1, 1, 1]} : vector<1x16x512xf32> to vector<1x1x512xf32>
    %945 = vector.shape_cast %944 : vector<1x1x512xf32> to vector<1x512xf32>
    %946 = arith.truncf %943 : vector<1x128xf32> to vector<1x128xbf16>
    %cst_148 = arith.constant dense<0.000000e+00> : vector<1x512xf32>
    %947 = tpu.matmul %946, %521, %cst_148 {dimension_numbers = #tpu.dot_dimension_numbers<[1], [0], [0], [1], [0, 0, 1, 1], [], []>} : vector<1x128xbf16>, vector<128x512xbf16>, vector<1x512xf32> -> vector<1x512xf32>
    %948 = arith.addf %945, %947 : vector<1x512xf32>
    %949 = vector.extract_strided_slice %948 {offsets = [0, 0], sizes = [1, 128], strides = [1, 1]} : vector<1x512xf32> to vector<1x128xf32>
    %950 = arith.negf %949 : vector<1x128xf32>
    %951 = math.exp %950 : vector<1x128xf32>
    %cst_149 = arith.constant 1.000000e+00 : f32
    %952 = vector.broadcast %cst_149 : f32 to vector<1x128xf32>
    %953 = arith.addf %952, %951 : vector<1x128xf32>
    %954 = arith.divf %952, %953 : vector<1x128xf32>
    %955 = vector.extract_strided_slice %948 {offsets = [0, 128], sizes = [1, 128], strides = [1, 1]} : vector<1x512xf32> to vector<1x128xf32>
    %956 = arith.negf %955 : vector<1x128xf32>
    %957 = math.exp %956 : vector<1x128xf32>
    %cst_150 = arith.constant 1.000000e+00 : f32
    %958 = vector.broadcast %cst_150 : f32 to vector<1x128xf32>
    %959 = arith.addf %958, %957 : vector<1x128xf32>
    %960 = arith.divf %958, %959 : vector<1x128xf32>
    %961 = vector.extract_strided_slice %948 {offsets = [0, 256], sizes = [1, 128], strides = [1, 1]} : vector<1x512xf32> to vector<1x128xf32>
    %962 = math.tanh %961 : vector<1x128xf32>
    %963 = vector.extract_strided_slice %948 {offsets = [0, 384], sizes = [1, 128], strides = [1, 1]} : vector<1x512xf32> to vector<1x128xf32>
    %964 = arith.negf %963 : vector<1x128xf32>
    %965 = math.exp %964 : vector<1x128xf32>
    %cst_151 = arith.constant 1.000000e+00 : f32
    %966 = vector.broadcast %cst_151 : f32 to vector<1x128xf32>
    %967 = arith.addf %966, %965 : vector<1x128xf32>
    %968 = arith.divf %966, %967 : vector<1x128xf32>
    %969 = arith.mulf %960, %941 : vector<1x128xf32>
    %970 = arith.mulf %954, %962 : vector<1x128xf32>
    %971 = arith.addf %969, %970 : vector<1x128xf32>
    %972 = math.tanh %971 : vector<1x128xf32>
    %973 = arith.mulf %968, %972 : vector<1x128xf32>
    %974 = vector.extract_strided_slice %520 {offsets = [0, 15, 0], sizes = [1, 1, 512], strides = [1, 1, 1]} : vector<1x16x512xf32> to vector<1x1x512xf32>
    %975 = vector.shape_cast %974 : vector<1x1x512xf32> to vector<1x512xf32>
    %976 = arith.truncf %973 : vector<1x128xf32> to vector<1x128xbf16>
    %cst_152 = arith.constant dense<0.000000e+00> : vector<1x512xf32>
    %977 = tpu.matmul %976, %521, %cst_152 {dimension_numbers = #tpu.dot_dimension_numbers<[1], [0], [0], [1], [0, 0, 1, 1], [], []>} : vector<1x128xbf16>, vector<128x512xbf16>, vector<1x512xf32> -> vector<1x512xf32>
    %978 = arith.addf %975, %977 : vector<1x512xf32>
    %979 = vector.extract_strided_slice %978 {offsets = [0, 0], sizes = [1, 128], strides = [1, 1]} : vector<1x512xf32> to vector<1x128xf32>
    %980 = arith.negf %979 : vector<1x128xf32>
    %981 = math.exp %980 : vector<1x128xf32>
    %cst_153 = arith.constant 1.000000e+00 : f32
    %982 = vector.broadcast %cst_153 : f32 to vector<1x128xf32>
    %983 = arith.addf %982, %981 : vector<1x128xf32>
    %984 = arith.divf %982, %983 : vector<1x128xf32>
    %985 = vector.extract_strided_slice %978 {offsets = [0, 128], sizes = [1, 128], strides = [1, 1]} : vector<1x512xf32> to vector<1x128xf32>
    %986 = arith.negf %985 : vector<1x128xf32>
    %987 = math.exp %986 : vector<1x128xf32>
    %cst_154 = arith.constant 1.000000e+00 : f32
    %988 = vector.broadcast %cst_154 : f32 to vector<1x128xf32>
    %989 = arith.addf %988, %987 : vector<1x128xf32>
    %990 = arith.divf %988, %989 : vector<1x128xf32>
    %991 = vector.extract_strided_slice %978 {offsets = [0, 256], sizes = [1, 128], strides = [1, 1]} : vector<1x512xf32> to vector<1x128xf32>
    %992 = math.tanh %991 : vector<1x128xf32>
    %993 = vector.extract_strided_slice %978 {offsets = [0, 384], sizes = [1, 128], strides = [1, 1]} : vector<1x512xf32> to vector<1x128xf32>
    %994 = arith.negf %993 : vector<1x128xf32>
    %995 = math.exp %994 : vector<1x128xf32>
    %cst_155 = arith.constant 1.000000e+00 : f32
    %996 = vector.broadcast %cst_155 : f32 to vector<1x128xf32>
    %997 = arith.addf %996, %995 : vector<1x128xf32>
    %998 = arith.divf %996, %997 : vector<1x128xf32>
    %999 = arith.mulf %990, %971 : vector<1x128xf32>
    %1000 = arith.mulf %984, %992 : vector<1x128xf32>
    %1001 = arith.addf %999, %1000 : vector<1x128xf32>
    %1002 = math.tanh %1001 : vector<1x128xf32>
    %1003 = arith.mulf %998, %1002 : vector<1x128xf32>
    %c0_156 = arith.constant 0 : index
    %c0_157 = arith.constant 0 : index
    %1004 = vector.load %arg15[%c0_156, %c0_157] : memref<1x128xf32, #tpu.memory_space<vmem>>, vector<1x128xf32>
    tpu.vector_store %arg15[%c0_156, %c0_157], %1003 {strides = array<i32>} : memref<1x128xf32, #tpu.memory_space<vmem>>, vector<1x128xf32>,
    %c0_158 = arith.constant 0 : index
    %c0_159 = arith.constant 0 : index
    %1005 = vector.load %arg16[%c0_158, %c0_159] : memref<1x128xf32, #tpu.memory_space<vmem>>, vector<1x128xf32>
    tpu.vector_store %arg16[%c0_158, %c0_159], %1001 {strides = array<i32>} : memref<1x128xf32, #tpu.memory_space<vmem>>, vector<1x128xf32>,
    %1006 = vector.shape_cast %553 : vector<1x128xf32> to vector<1x1x128xf32>
    %1007 = vector.shape_cast %583 : vector<1x128xf32> to vector<1x1x128xf32>
    %1008 = vector.shape_cast %613 : vector<1x128xf32> to vector<1x1x128xf32>
    %1009 = vector.shape_cast %643 : vector<1x128xf32> to vector<1x1x128xf32>
    %1010 = vector.shape_cast %673 : vector<1x128xf32> to vector<1x1x128xf32>
    %1011 = vector.shape_cast %703 : vector<1x128xf32> to vector<1x1x128xf32>
    %1012 = vector.shape_cast %733 : vector<1x128xf32> to vector<1x1x128xf32>
    %1013 = vector.shape_cast %763 : vector<1x128xf32> to vector<1x1x128xf32>
    %1014 = vector.shape_cast %793 : vector<1x128xf32> to vector<1x1x128xf32>
    %1015 = vector.shape_cast %823 : vector<1x128xf32> to vector<1x1x128xf32>
    %1016 = vector.shape_cast %853 : vector<1x128xf32> to vector<1x1x128xf32>
    %1017 = vector.shape_cast %883 : vector<1x128xf32> to vector<1x1x128xf32>
    %1018 = vector.shape_cast %913 : vector<1x128xf32> to vector<1x1x128xf32>
    %1019 = vector.shape_cast %943 : vector<1x128xf32> to vector<1x1x128xf32>
    %1020 = vector.shape_cast %973 : vector<1x128xf32> to vector<1x1x128xf32>
    %1021 = vector.shape_cast %1003 : vector<1x128xf32> to vector<1x1x128xf32>
    %1022 = tpu.concatenate %1006, %1007, %1008, %1009, %1010, %1011, %1012, %1013, %1014, %1015, %1016, %1017, %1018, %1019, %1020, %1021 in 1 : vector<1x1x128xf32>, vector<1x1x128xf32>, vector<1x1x128xf32>, vector<1x1x128xf32>, vector<1x1x128xf32>, vector<1x1x128xf32>, vector<1x1x128xf32>, vector<1x1x128xf32>, vector<1x1x128xf32>, vector<1x1x128xf32>, vector<1x1x128xf32>, vector<1x1x128xf32>, vector<1x1x128xf32>, vector<1x1x128xf32>, vector<1x1x128xf32>, vector<1x1x128xf32> -> vector<1x16x128xf32>
    %1023 = arith.truncf %1022 : vector<1x16x128xf32> to vector<1x16x128xbf16>
    %1024 = vector.shape_cast %1023 : vector<1x16x128xbf16> to vector<16x128xbf16>
    %c0_160 = arith.constant 0 : index
    %c0_161 = arith.constant 0 : index
    %1025 = vector.load %arg9[%c0_160, %c0_161] : memref<128x512xbf16, #tpu.memory_space<vmem>>, vector<128x512xbf16>
    %cst_162 = arith.constant dense<0.000000e+00> : vector<16x512xf32>
    %1026 = tpu.matmul %1024, %1025, %cst_162 {dimension_numbers = #tpu.dot_dimension_numbers<[1], [0], [0], [1], [0, 0, 1, 1], [], []>} : vector<16x128xbf16>, vector<128x512xbf16>, vector<16x512xf32> -> vector<16x512xf32>
    %c0_163 = arith.constant 0 : index
    %c0_164 = arith.constant 0 : index
    %1027 = vector.load %arg11[%c0_163, %c0_164] : memref<1x512xf32, #tpu.memory_space<vmem>>, vector<1x512xf32>
    %1028 = vector.broadcast %1027 : vector<1x512xf32> to vector<16x512xf32>
    %1029 = arith.addf %1026, %1028 : vector<16x512xf32>
    %1030 = vector.shape_cast %1029 : vector<16x512xf32> to vector<1x16x512xf32>
    %c0_165 = arith.constant 0 : index
    %c0_166 = arith.constant 0 : index
    %1031 = vector.load %arg10[%c0_165, %c0_166] : memref<128x512xbf16, #tpu.memory_space<vmem>>, vector<128x512xbf16>
    %c0_167 = arith.constant 0 : index
    %c0_168 = arith.constant 0 : index
    %1032 = vector.load %arg17[%c0_167, %c0_168] : memref<1x128xf32, #tpu.memory_space<vmem>>, vector<1x128xf32>
    %c0_169 = arith.constant 0 : index
    %c0_170 = arith.constant 0 : index
    %1033 = vector.load %arg18[%c0_169, %c0_170] : memref<1x128xf32, #tpu.memory_space<vmem>>, vector<1x128xf32>
    %1034 = vector.extract_strided_slice %1030 {offsets = [0, 0, 0], sizes = [1, 1, 512], strides = [1, 1, 1]} : vector<1x16x512xf32> to vector<1x1x512xf32>
    %1035 = vector.shape_cast %1034 : vector<1x1x512xf32> to vector<1x512xf32>
    %1036 = arith.truncf %1032 : vector<1x128xf32> to vector<1x128xbf16>
    %cst_171 = arith.constant dense<0.000000e+00> : vector<1x512xf32>
    %1037 = tpu.matmul %1036, %1031, %cst_171 {dimension_numbers = #tpu.dot_dimension_numbers<[1], [0], [0], [1], [0, 0, 1, 1], [], []>} : vector<1x128xbf16>, vector<128x512xbf16>, vector<1x512xf32> -> vector<1x512xf32>
    %1038 = arith.addf %1035, %1037 : vector<1x512xf32>
    %1039 = vector.extract_strided_slice %1038 {offsets = [0, 0], sizes = [1, 128], strides = [1, 1]} : vector<1x512xf32> to vector<1x128xf32>
    %1040 = arith.negf %1039 : vector<1x128xf32>
    %1041 = math.exp %1040 : vector<1x128xf32>
    %cst_172 = arith.constant 1.000000e+00 : f32
    %1042 = vector.broadcast %cst_172 : f32 to vector<1x128xf32>
    %1043 = arith.addf %1042, %1041 : vector<1x128xf32>
    %1044 = arith.divf %1042, %1043 : vector<1x128xf32>
    %1045 = vector.extract_strided_slice %1038 {offsets = [0, 128], sizes = [1, 128], strides = [1, 1]} : vector<1x512xf32> to vector<1x128xf32>
    %1046 = arith.negf %1045 : vector<1x128xf32>
    %1047 = math.exp %1046 : vector<1x128xf32>
    %cst_173 = arith.constant 1.000000e+00 : f32
    %1048 = vector.broadcast %cst_173 : f32 to vector<1x128xf32>
    %1049 = arith.addf %1048, %1047 : vector<1x128xf32>
    %1050 = arith.divf %1048, %1049 : vector<1x128xf32>
    %1051 = vector.extract_strided_slice %1038 {offsets = [0, 256], sizes = [1, 128], strides = [1, 1]} : vector<1x512xf32> to vector<1x128xf32>
    %1052 = math.tanh %1051 : vector<1x128xf32>
    %1053 = vector.extract_strided_slice %1038 {offsets = [0, 384], sizes = [1, 128], strides = [1, 1]} : vector<1x512xf32> to vector<1x128xf32>
    %1054 = arith.negf %1053 : vector<1x128xf32>
    %1055 = math.exp %1054 : vector<1x128xf32>
    %cst_174 = arith.constant 1.000000e+00 : f32
    %1056 = vector.broadcast %cst_174 : f32 to vector<1x128xf32>
    %1057 = arith.addf %1056, %1055 : vector<1x128xf32>
    %1058 = arith.divf %1056, %1057 : vector<1x128xf32>
    %1059 = arith.mulf %1050, %1033 : vector<1x128xf32>
    %1060 = arith.mulf %1044, %1052 : vector<1x128xf32>
    %1061 = arith.addf %1059, %1060 : vector<1x128xf32>
    %1062 = math.tanh %1061 : vector<1x128xf32>
    %1063 = arith.mulf %1058, %1062 : vector<1x128xf32>
    %1064 = vector.extract_strided_slice %1030 {offsets = [0, 1, 0], sizes = [1, 1, 512], strides = [1, 1, 1]} : vector<1x16x512xf32> to vector<1x1x512xf32>
    %1065 = vector.shape_cast %1064 : vector<1x1x512xf32> to vector<1x512xf32>
    %1066 = arith.truncf %1063 : vector<1x128xf32> to vector<1x128xbf16>
    %cst_175 = arith.constant dense<0.000000e+00> : vector<1x512xf32>
    %1067 = tpu.matmul %1066, %1031, %cst_175 {dimension_numbers = #tpu.dot_dimension_numbers<[1], [0], [0], [1], [0, 0, 1, 1], [], []>} : vector<1x128xbf16>, vector<128x512xbf16>, vector<1x512xf32> -> vector<1x512xf32>
    %1068 = arith.addf %1065, %1067 : vector<1x512xf32>
    %1069 = vector.extract_strided_slice %1068 {offsets = [0, 0], sizes = [1, 128], strides = [1, 1]} : vector<1x512xf32> to vector<1x128xf32>
    %1070 = arith.negf %1069 : vector<1x128xf32>
    %1071 = math.exp %1070 : vector<1x128xf32>
    %cst_176 = arith.constant 1.000000e+00 : f32
    %1072 = vector.broadcast %cst_176 : f32 to vector<1x128xf32>
    %1073 = arith.addf %1072, %1071 : vector<1x128xf32>
    %1074 = arith.divf %1072, %1073 : vector<1x128xf32>
    %1075 = vector.extract_strided_slice %1068 {offsets = [0, 128], sizes = [1, 128], strides = [1, 1]} : vector<1x512xf32> to vector<1x128xf32>
    %1076 = arith.negf %1075 : vector<1x128xf32>
    %1077 = math.exp %1076 : vector<1x128xf32>
    %cst_177 = arith.constant 1.000000e+00 : f32
    %1078 = vector.broadcast %cst_177 : f32 to vector<1x128xf32>
    %1079 = arith.addf %1078, %1077 : vector<1x128xf32>
    %1080 = arith.divf %1078, %1079 : vector<1x128xf32>
    %1081 = vector.extract_strided_slice %1068 {offsets = [0, 256], sizes = [1, 128], strides = [1, 1]} : vector<1x512xf32> to vector<1x128xf32>
    %1082 = math.tanh %1081 : vector<1x128xf32>
    %1083 = vector.extract_strided_slice %1068 {offsets = [0, 384], sizes = [1, 128], strides = [1, 1]} : vector<1x512xf32> to vector<1x128xf32>
    %1084 = arith.negf %1083 : vector<1x128xf32>
    %1085 = math.exp %1084 : vector<1x128xf32>
    %cst_178 = arith.constant 1.000000e+00 : f32
    %1086 = vector.broadcast %cst_178 : f32 to vector<1x128xf32>
    %1087 = arith.addf %1086, %1085 : vector<1x128xf32>
    %1088 = arith.divf %1086, %1087 : vector<1x128xf32>
    %1089 = arith.mulf %1080, %1061 : vector<1x128xf32>
    %1090 = arith.mulf %1074, %1082 : vector<1x128xf32>
    %1091 = arith.addf %1089, %1090 : vector<1x128xf32>
    %1092 = math.tanh %1091 : vector<1x128xf32>
    %1093 = arith.mulf %1088, %1092 : vector<1x128xf32>
    %1094 = vector.extract_strided_slice %1030 {offsets = [0, 2, 0], sizes = [1, 1, 512], strides = [1, 1, 1]} : vector<1x16x512xf32> to vector<1x1x512xf32>
    %1095 = vector.shape_cast %1094 : vector<1x1x512xf32> to vector<1x512xf32>
    %1096 = arith.truncf %1093 : vector<1x128xf32> to vector<1x128xbf16>
    %cst_179 = arith.constant dense<0.000000e+00> : vector<1x512xf32>
    %1097 = tpu.matmul %1096, %1031, %cst_179 {dimension_numbers = #tpu.dot_dimension_numbers<[1], [0], [0], [1], [0, 0, 1, 1], [], []>} : vector<1x128xbf16>, vector<128x512xbf16>, vector<1x512xf32> -> vector<1x512xf32>
    %1098 = arith.addf %1095, %1097 : vector<1x512xf32>
    %1099 = vector.extract_strided_slice %1098 {offsets = [0, 0], sizes = [1, 128], strides = [1, 1]} : vector<1x512xf32> to vector<1x128xf32>
    %1100 = arith.negf %1099 : vector<1x128xf32>
    %1101 = math.exp %1100 : vector<1x128xf32>
    %cst_180 = arith.constant 1.000000e+00 : f32
    %1102 = vector.broadcast %cst_180 : f32 to vector<1x128xf32>
    %1103 = arith.addf %1102, %1101 : vector<1x128xf32>
    %1104 = arith.divf %1102, %1103 : vector<1x128xf32>
    %1105 = vector.extract_strided_slice %1098 {offsets = [0, 128], sizes = [1, 128], strides = [1, 1]} : vector<1x512xf32> to vector<1x128xf32>
    %1106 = arith.negf %1105 : vector<1x128xf32>
    %1107 = math.exp %1106 : vector<1x128xf32>
    %cst_181 = arith.constant 1.000000e+00 : f32
    %1108 = vector.broadcast %cst_181 : f32 to vector<1x128xf32>
    %1109 = arith.addf %1108, %1107 : vector<1x128xf32>
    %1110 = arith.divf %1108, %1109 : vector<1x128xf32>
    %1111 = vector.extract_strided_slice %1098 {offsets = [0, 256], sizes = [1, 128], strides = [1, 1]} : vector<1x512xf32> to vector<1x128xf32>
    %1112 = math.tanh %1111 : vector<1x128xf32>
    %1113 = vector.extract_strided_slice %1098 {offsets = [0, 384], sizes = [1, 128], strides = [1, 1]} : vector<1x512xf32> to vector<1x128xf32>
    %1114 = arith.negf %1113 : vector<1x128xf32>
    %1115 = math.exp %1114 : vector<1x128xf32>
    %cst_182 = arith.constant 1.000000e+00 : f32
    %1116 = vector.broadcast %cst_182 : f32 to vector<1x128xf32>
    %1117 = arith.addf %1116, %1115 : vector<1x128xf32>
    %1118 = arith.divf %1116, %1117 : vector<1x128xf32>
    %1119 = arith.mulf %1110, %1091 : vector<1x128xf32>
    %1120 = arith.mulf %1104, %1112 : vector<1x128xf32>
    %1121 = arith.addf %1119, %1120 : vector<1x128xf32>
    %1122 = math.tanh %1121 : vector<1x128xf32>
    %1123 = arith.mulf %1118, %1122 : vector<1x128xf32>
    %1124 = vector.extract_strided_slice %1030 {offsets = [0, 3, 0], sizes = [1, 1, 512], strides = [1, 1, 1]} : vector<1x16x512xf32> to vector<1x1x512xf32>
    %1125 = vector.shape_cast %1124 : vector<1x1x512xf32> to vector<1x512xf32>
    %1126 = arith.truncf %1123 : vector<1x128xf32> to vector<1x128xbf16>
    %cst_183 = arith.constant dense<0.000000e+00> : vector<1x512xf32>
    %1127 = tpu.matmul %1126, %1031, %cst_183 {dimension_numbers = #tpu.dot_dimension_numbers<[1], [0], [0], [1], [0, 0, 1, 1], [], []>} : vector<1x128xbf16>, vector<128x512xbf16>, vector<1x512xf32> -> vector<1x512xf32>
    %1128 = arith.addf %1125, %1127 : vector<1x512xf32>
    %1129 = vector.extract_strided_slice %1128 {offsets = [0, 0], sizes = [1, 128], strides = [1, 1]} : vector<1x512xf32> to vector<1x128xf32>
    %1130 = arith.negf %1129 : vector<1x128xf32>
    %1131 = math.exp %1130 : vector<1x128xf32>
    %cst_184 = arith.constant 1.000000e+00 : f32
    %1132 = vector.broadcast %cst_184 : f32 to vector<1x128xf32>
    %1133 = arith.addf %1132, %1131 : vector<1x128xf32>
    %1134 = arith.divf %1132, %1133 : vector<1x128xf32>
    %1135 = vector.extract_strided_slice %1128 {offsets = [0, 128], sizes = [1, 128], strides = [1, 1]} : vector<1x512xf32> to vector<1x128xf32>
    %1136 = arith.negf %1135 : vector<1x128xf32>
    %1137 = math.exp %1136 : vector<1x128xf32>
    %cst_185 = arith.constant 1.000000e+00 : f32
    %1138 = vector.broadcast %cst_185 : f32 to vector<1x128xf32>
    %1139 = arith.addf %1138, %1137 : vector<1x128xf32>
    %1140 = arith.divf %1138, %1139 : vector<1x128xf32>
    %1141 = vector.extract_strided_slice %1128 {offsets = [0, 256], sizes = [1, 128], strides = [1, 1]} : vector<1x512xf32> to vector<1x128xf32>
    %1142 = math.tanh %1141 : vector<1x128xf32>
    %1143 = vector.extract_strided_slice %1128 {offsets = [0, 384], sizes = [1, 128], strides = [1, 1]} : vector<1x512xf32> to vector<1x128xf32>
    %1144 = arith.negf %1143 : vector<1x128xf32>
    %1145 = math.exp %1144 : vector<1x128xf32>
    %cst_186 = arith.constant 1.000000e+00 : f32
    %1146 = vector.broadcast %cst_186 : f32 to vector<1x128xf32>
    %1147 = arith.addf %1146, %1145 : vector<1x128xf32>
    %1148 = arith.divf %1146, %1147 : vector<1x128xf32>
    %1149 = arith.mulf %1140, %1121 : vector<1x128xf32>
    %1150 = arith.mulf %1134, %1142 : vector<1x128xf32>
    %1151 = arith.addf %1149, %1150 : vector<1x128xf32>
    %1152 = math.tanh %1151 : vector<1x128xf32>
    %1153 = arith.mulf %1148, %1152 : vector<1x128xf32>
    %1154 = vector.extract_strided_slice %1030 {offsets = [0, 4, 0], sizes = [1, 1, 512], strides = [1, 1, 1]} : vector<1x16x512xf32> to vector<1x1x512xf32>
    %1155 = vector.shape_cast %1154 : vector<1x1x512xf32> to vector<1x512xf32>
    %1156 = arith.truncf %1153 : vector<1x128xf32> to vector<1x128xbf16>
    %cst_187 = arith.constant dense<0.000000e+00> : vector<1x512xf32>
    %1157 = tpu.matmul %1156, %1031, %cst_187 {dimension_numbers = #tpu.dot_dimension_numbers<[1], [0], [0], [1], [0, 0, 1, 1], [], []>} : vector<1x128xbf16>, vector<128x512xbf16>, vector<1x512xf32> -> vector<1x512xf32>
    %1158 = arith.addf %1155, %1157 : vector<1x512xf32>
    %1159 = vector.extract_strided_slice %1158 {offsets = [0, 0], sizes = [1, 128], strides = [1, 1]} : vector<1x512xf32> to vector<1x128xf32>
    %1160 = arith.negf %1159 : vector<1x128xf32>
    %1161 = math.exp %1160 : vector<1x128xf32>
    %cst_188 = arith.constant 1.000000e+00 : f32
    %1162 = vector.broadcast %cst_188 : f32 to vector<1x128xf32>
    %1163 = arith.addf %1162, %1161 : vector<1x128xf32>
    %1164 = arith.divf %1162, %1163 : vector<1x128xf32>
    %1165 = vector.extract_strided_slice %1158 {offsets = [0, 128], sizes = [1, 128], strides = [1, 1]} : vector<1x512xf32> to vector<1x128xf32>
    %1166 = arith.negf %1165 : vector<1x128xf32>
    %1167 = math.exp %1166 : vector<1x128xf32>
    %cst_189 = arith.constant 1.000000e+00 : f32
    %1168 = vector.broadcast %cst_189 : f32 to vector<1x128xf32>
    %1169 = arith.addf %1168, %1167 : vector<1x128xf32>
    %1170 = arith.divf %1168, %1169 : vector<1x128xf32>
    %1171 = vector.extract_strided_slice %1158 {offsets = [0, 256], sizes = [1, 128], strides = [1, 1]} : vector<1x512xf32> to vector<1x128xf32>
    %1172 = math.tanh %1171 : vector<1x128xf32>
    %1173 = vector.extract_strided_slice %1158 {offsets = [0, 384], sizes = [1, 128], strides = [1, 1]} : vector<1x512xf32> to vector<1x128xf32>
    %1174 = arith.negf %1173 : vector<1x128xf32>
    %1175 = math.exp %1174 : vector<1x128xf32>
    %cst_190 = arith.constant 1.000000e+00 : f32
    %1176 = vector.broadcast %cst_190 : f32 to vector<1x128xf32>
    %1177 = arith.addf %1176, %1175 : vector<1x128xf32>
    %1178 = arith.divf %1176, %1177 : vector<1x128xf32>
    %1179 = arith.mulf %1170, %1151 : vector<1x128xf32>
    %1180 = arith.mulf %1164, %1172 : vector<1x128xf32>
    %1181 = arith.addf %1179, %1180 : vector<1x128xf32>
    %1182 = math.tanh %1181 : vector<1x128xf32>
    %1183 = arith.mulf %1178, %1182 : vector<1x128xf32>
    %1184 = vector.extract_strided_slice %1030 {offsets = [0, 5, 0], sizes = [1, 1, 512], strides = [1, 1, 1]} : vector<1x16x512xf32> to vector<1x1x512xf32>
    %1185 = vector.shape_cast %1184 : vector<1x1x512xf32> to vector<1x512xf32>
    %1186 = arith.truncf %1183 : vector<1x128xf32> to vector<1x128xbf16>
    %cst_191 = arith.constant dense<0.000000e+00> : vector<1x512xf32>
    %1187 = tpu.matmul %1186, %1031, %cst_191 {dimension_numbers = #tpu.dot_dimension_numbers<[1], [0], [0], [1], [0, 0, 1, 1], [], []>} : vector<1x128xbf16>, vector<128x512xbf16>, vector<1x512xf32> -> vector<1x512xf32>
    %1188 = arith.addf %1185, %1187 : vector<1x512xf32>
    %1189 = vector.extract_strided_slice %1188 {offsets = [0, 0], sizes = [1, 128], strides = [1, 1]} : vector<1x512xf32> to vector<1x128xf32>
    %1190 = arith.negf %1189 : vector<1x128xf32>
    %1191 = math.exp %1190 : vector<1x128xf32>
    %cst_192 = arith.constant 1.000000e+00 : f32
    %1192 = vector.broadcast %cst_192 : f32 to vector<1x128xf32>
    %1193 = arith.addf %1192, %1191 : vector<1x128xf32>
    %1194 = arith.divf %1192, %1193 : vector<1x128xf32>
    %1195 = vector.extract_strided_slice %1188 {offsets = [0, 128], sizes = [1, 128], strides = [1, 1]} : vector<1x512xf32> to vector<1x128xf32>
    %1196 = arith.negf %1195 : vector<1x128xf32>
    %1197 = math.exp %1196 : vector<1x128xf32>
    %cst_193 = arith.constant 1.000000e+00 : f32
    %1198 = vector.broadcast %cst_193 : f32 to vector<1x128xf32>
    %1199 = arith.addf %1198, %1197 : vector<1x128xf32>
    %1200 = arith.divf %1198, %1199 : vector<1x128xf32>
    %1201 = vector.extract_strided_slice %1188 {offsets = [0, 256], sizes = [1, 128], strides = [1, 1]} : vector<1x512xf32> to vector<1x128xf32>
    %1202 = math.tanh %1201 : vector<1x128xf32>
    %1203 = vector.extract_strided_slice %1188 {offsets = [0, 384], sizes = [1, 128], strides = [1, 1]} : vector<1x512xf32> to vector<1x128xf32>
    %1204 = arith.negf %1203 : vector<1x128xf32>
    %1205 = math.exp %1204 : vector<1x128xf32>
    %cst_194 = arith.constant 1.000000e+00 : f32
    %1206 = vector.broadcast %cst_194 : f32 to vector<1x128xf32>
    %1207 = arith.addf %1206, %1205 : vector<1x128xf32>
    %1208 = arith.divf %1206, %1207 : vector<1x128xf32>
    %1209 = arith.mulf %1200, %1181 : vector<1x128xf32>
    %1210 = arith.mulf %1194, %1202 : vector<1x128xf32>
    %1211 = arith.addf %1209, %1210 : vector<1x128xf32>
    %1212 = math.tanh %1211 : vector<1x128xf32>
    %1213 = arith.mulf %1208, %1212 : vector<1x128xf32>
    %1214 = vector.extract_strided_slice %1030 {offsets = [0, 6, 0], sizes = [1, 1, 512], strides = [1, 1, 1]} : vector<1x16x512xf32> to vector<1x1x512xf32>
    %1215 = vector.shape_cast %1214 : vector<1x1x512xf32> to vector<1x512xf32>
    %1216 = arith.truncf %1213 : vector<1x128xf32> to vector<1x128xbf16>
    %cst_195 = arith.constant dense<0.000000e+00> : vector<1x512xf32>
    %1217 = tpu.matmul %1216, %1031, %cst_195 {dimension_numbers = #tpu.dot_dimension_numbers<[1], [0], [0], [1], [0, 0, 1, 1], [], []>} : vector<1x128xbf16>, vector<128x512xbf16>, vector<1x512xf32> -> vector<1x512xf32>
    %1218 = arith.addf %1215, %1217 : vector<1x512xf32>
    %1219 = vector.extract_strided_slice %1218 {offsets = [0, 0], sizes = [1, 128], strides = [1, 1]} : vector<1x512xf32> to vector<1x128xf32>
    %1220 = arith.negf %1219 : vector<1x128xf32>
    %1221 = math.exp %1220 : vector<1x128xf32>
    %cst_196 = arith.constant 1.000000e+00 : f32
    %1222 = vector.broadcast %cst_196 : f32 to vector<1x128xf32>
    %1223 = arith.addf %1222, %1221 : vector<1x128xf32>
    %1224 = arith.divf %1222, %1223 : vector<1x128xf32>
    %1225 = vector.extract_strided_slice %1218 {offsets = [0, 128], sizes = [1, 128], strides = [1, 1]} : vector<1x512xf32> to vector<1x128xf32>
    %1226 = arith.negf %1225 : vector<1x128xf32>
    %1227 = math.exp %1226 : vector<1x128xf32>
    %cst_197 = arith.constant 1.000000e+00 : f32
    %1228 = vector.broadcast %cst_197 : f32 to vector<1x128xf32>
    %1229 = arith.addf %1228, %1227 : vector<1x128xf32>
    %1230 = arith.divf %1228, %1229 : vector<1x128xf32>
    %1231 = vector.extract_strided_slice %1218 {offsets = [0, 256], sizes = [1, 128], strides = [1, 1]} : vector<1x512xf32> to vector<1x128xf32>
    %1232 = math.tanh %1231 : vector<1x128xf32>
    %1233 = vector.extract_strided_slice %1218 {offsets = [0, 384], sizes = [1, 128], strides = [1, 1]} : vector<1x512xf32> to vector<1x128xf32>
    %1234 = arith.negf %1233 : vector<1x128xf32>
    %1235 = math.exp %1234 : vector<1x128xf32>
    %cst_198 = arith.constant 1.000000e+00 : f32
    %1236 = vector.broadcast %cst_198 : f32 to vector<1x128xf32>
    %1237 = arith.addf %1236, %1235 : vector<1x128xf32>
    %1238 = arith.divf %1236, %1237 : vector<1x128xf32>
    %1239 = arith.mulf %1230, %1211 : vector<1x128xf32>
    %1240 = arith.mulf %1224, %1232 : vector<1x128xf32>
    %1241 = arith.addf %1239, %1240 : vector<1x128xf32>
    %1242 = math.tanh %1241 : vector<1x128xf32>
    %1243 = arith.mulf %1238, %1242 : vector<1x128xf32>
    %1244 = vector.extract_strided_slice %1030 {offsets = [0, 7, 0], sizes = [1, 1, 512], strides = [1, 1, 1]} : vector<1x16x512xf32> to vector<1x1x512xf32>
    %1245 = vector.shape_cast %1244 : vector<1x1x512xf32> to vector<1x512xf32>
    %1246 = arith.truncf %1243 : vector<1x128xf32> to vector<1x128xbf16>
    %cst_199 = arith.constant dense<0.000000e+00> : vector<1x512xf32>
    %1247 = tpu.matmul %1246, %1031, %cst_199 {dimension_numbers = #tpu.dot_dimension_numbers<[1], [0], [0], [1], [0, 0, 1, 1], [], []>} : vector<1x128xbf16>, vector<128x512xbf16>, vector<1x512xf32> -> vector<1x512xf32>
    %1248 = arith.addf %1245, %1247 : vector<1x512xf32>
    %1249 = vector.extract_strided_slice %1248 {offsets = [0, 0], sizes = [1, 128], strides = [1, 1]} : vector<1x512xf32> to vector<1x128xf32>
    %1250 = arith.negf %1249 : vector<1x128xf32>
    %1251 = math.exp %1250 : vector<1x128xf32>
    %cst_200 = arith.constant 1.000000e+00 : f32
    %1252 = vector.broadcast %cst_200 : f32 to vector<1x128xf32>
    %1253 = arith.addf %1252, %1251 : vector<1x128xf32>
    %1254 = arith.divf %1252, %1253 : vector<1x128xf32>
    %1255 = vector.extract_strided_slice %1248 {offsets = [0, 128], sizes = [1, 128], strides = [1, 1]} : vector<1x512xf32> to vector<1x128xf32>
    %1256 = arith.negf %1255 : vector<1x128xf32>
    %1257 = math.exp %1256 : vector<1x128xf32>
    %cst_201 = arith.constant 1.000000e+00 : f32
    %1258 = vector.broadcast %cst_201 : f32 to vector<1x128xf32>
    %1259 = arith.addf %1258, %1257 : vector<1x128xf32>
    %1260 = arith.divf %1258, %1259 : vector<1x128xf32>
    %1261 = vector.extract_strided_slice %1248 {offsets = [0, 256], sizes = [1, 128], strides = [1, 1]} : vector<1x512xf32> to vector<1x128xf32>
    %1262 = math.tanh %1261 : vector<1x128xf32>
    %1263 = vector.extract_strided_slice %1248 {offsets = [0, 384], sizes = [1, 128], strides = [1, 1]} : vector<1x512xf32> to vector<1x128xf32>
    %1264 = arith.negf %1263 : vector<1x128xf32>
    %1265 = math.exp %1264 : vector<1x128xf32>
    %cst_202 = arith.constant 1.000000e+00 : f32
    %1266 = vector.broadcast %cst_202 : f32 to vector<1x128xf32>
    %1267 = arith.addf %1266, %1265 : vector<1x128xf32>
    %1268 = arith.divf %1266, %1267 : vector<1x128xf32>
    %1269 = arith.mulf %1260, %1241 : vector<1x128xf32>
    %1270 = arith.mulf %1254, %1262 : vector<1x128xf32>
    %1271 = arith.addf %1269, %1270 : vector<1x128xf32>
    %1272 = math.tanh %1271 : vector<1x128xf32>
    %1273 = arith.mulf %1268, %1272 : vector<1x128xf32>
    %1274 = vector.extract_strided_slice %1030 {offsets = [0, 8, 0], sizes = [1, 1, 512], strides = [1, 1, 1]} : vector<1x16x512xf32> to vector<1x1x512xf32>
    %1275 = vector.shape_cast %1274 : vector<1x1x512xf32> to vector<1x512xf32>
    %1276 = arith.truncf %1273 : vector<1x128xf32> to vector<1x128xbf16>
    %cst_203 = arith.constant dense<0.000000e+00> : vector<1x512xf32>
    %1277 = tpu.matmul %1276, %1031, %cst_203 {dimension_numbers = #tpu.dot_dimension_numbers<[1], [0], [0], [1], [0, 0, 1, 1], [], []>} : vector<1x128xbf16>, vector<128x512xbf16>, vector<1x512xf32> -> vector<1x512xf32>
    %1278 = arith.addf %1275, %1277 : vector<1x512xf32>
    %1279 = vector.extract_strided_slice %1278 {offsets = [0, 0], sizes = [1, 128], strides = [1, 1]} : vector<1x512xf32> to vector<1x128xf32>
    %1280 = arith.negf %1279 : vector<1x128xf32>
    %1281 = math.exp %1280 : vector<1x128xf32>
    %cst_204 = arith.constant 1.000000e+00 : f32
    %1282 = vector.broadcast %cst_204 : f32 to vector<1x128xf32>
    %1283 = arith.addf %1282, %1281 : vector<1x128xf32>
    %1284 = arith.divf %1282, %1283 : vector<1x128xf32>
    %1285 = vector.extract_strided_slice %1278 {offsets = [0, 128], sizes = [1, 128], strides = [1, 1]} : vector<1x512xf32> to vector<1x128xf32>
    %1286 = arith.negf %1285 : vector<1x128xf32>
    %1287 = math.exp %1286 : vector<1x128xf32>
    %cst_205 = arith.constant 1.000000e+00 : f32
    %1288 = vector.broadcast %cst_205 : f32 to vector<1x128xf32>
    %1289 = arith.addf %1288, %1287 : vector<1x128xf32>
    %1290 = arith.divf %1288, %1289 : vector<1x128xf32>
    %1291 = vector.extract_strided_slice %1278 {offsets = [0, 256], sizes = [1, 128], strides = [1, 1]} : vector<1x512xf32> to vector<1x128xf32>
    %1292 = math.tanh %1291 : vector<1x128xf32>
    %1293 = vector.extract_strided_slice %1278 {offsets = [0, 384], sizes = [1, 128], strides = [1, 1]} : vector<1x512xf32> to vector<1x128xf32>
    %1294 = arith.negf %1293 : vector<1x128xf32>
    %1295 = math.exp %1294 : vector<1x128xf32>
    %cst_206 = arith.constant 1.000000e+00 : f32
    %1296 = vector.broadcast %cst_206 : f32 to vector<1x128xf32>
    %1297 = arith.addf %1296, %1295 : vector<1x128xf32>
    %1298 = arith.divf %1296, %1297 : vector<1x128xf32>
    %1299 = arith.mulf %1290, %1271 : vector<1x128xf32>
    %1300 = arith.mulf %1284, %1292 : vector<1x128xf32>
    %1301 = arith.addf %1299, %1300 : vector<1x128xf32>
    %1302 = math.tanh %1301 : vector<1x128xf32>
    %1303 = arith.mulf %1298, %1302 : vector<1x128xf32>
    %1304 = vector.extract_strided_slice %1030 {offsets = [0, 9, 0], sizes = [1, 1, 512], strides = [1, 1, 1]} : vector<1x16x512xf32> to vector<1x1x512xf32>
    %1305 = vector.shape_cast %1304 : vector<1x1x512xf32> to vector<1x512xf32>
    %1306 = arith.truncf %1303 : vector<1x128xf32> to vector<1x128xbf16>
    %cst_207 = arith.constant dense<0.000000e+00> : vector<1x512xf32>
    %1307 = tpu.matmul %1306, %1031, %cst_207 {dimension_numbers = #tpu.dot_dimension_numbers<[1], [0], [0], [1], [0, 0, 1, 1], [], []>} : vector<1x128xbf16>, vector<128x512xbf16>, vector<1x512xf32> -> vector<1x512xf32>
    %1308 = arith.addf %1305, %1307 : vector<1x512xf32>
    %1309 = vector.extract_strided_slice %1308 {offsets = [0, 0], sizes = [1, 128], strides = [1, 1]} : vector<1x512xf32> to vector<1x128xf32>
    %1310 = arith.negf %1309 : vector<1x128xf32>
    %1311 = math.exp %1310 : vector<1x128xf32>
    %cst_208 = arith.constant 1.000000e+00 : f32
    %1312 = vector.broadcast %cst_208 : f32 to vector<1x128xf32>
    %1313 = arith.addf %1312, %1311 : vector<1x128xf32>
    %1314 = arith.divf %1312, %1313 : vector<1x128xf32>
    %1315 = vector.extract_strided_slice %1308 {offsets = [0, 128], sizes = [1, 128], strides = [1, 1]} : vector<1x512xf32> to vector<1x128xf32>
    %1316 = arith.negf %1315 : vector<1x128xf32>
    %1317 = math.exp %1316 : vector<1x128xf32>
    %cst_209 = arith.constant 1.000000e+00 : f32
    %1318 = vector.broadcast %cst_209 : f32 to vector<1x128xf32>
    %1319 = arith.addf %1318, %1317 : vector<1x128xf32>
    %1320 = arith.divf %1318, %1319 : vector<1x128xf32>
    %1321 = vector.extract_strided_slice %1308 {offsets = [0, 256], sizes = [1, 128], strides = [1, 1]} : vector<1x512xf32> to vector<1x128xf32>
    %1322 = math.tanh %1321 : vector<1x128xf32>
    %1323 = vector.extract_strided_slice %1308 {offsets = [0, 384], sizes = [1, 128], strides = [1, 1]} : vector<1x512xf32> to vector<1x128xf32>
    %1324 = arith.negf %1323 : vector<1x128xf32>
    %1325 = math.exp %1324 : vector<1x128xf32>
    %cst_210 = arith.constant 1.000000e+00 : f32
    %1326 = vector.broadcast %cst_210 : f32 to vector<1x128xf32>
    %1327 = arith.addf %1326, %1325 : vector<1x128xf32>
    %1328 = arith.divf %1326, %1327 : vector<1x128xf32>
    %1329 = arith.mulf %1320, %1301 : vector<1x128xf32>
    %1330 = arith.mulf %1314, %1322 : vector<1x128xf32>
    %1331 = arith.addf %1329, %1330 : vector<1x128xf32>
    %1332 = math.tanh %1331 : vector<1x128xf32>
    %1333 = arith.mulf %1328, %1332 : vector<1x128xf32>
    %1334 = vector.extract_strided_slice %1030 {offsets = [0, 10, 0], sizes = [1, 1, 512], strides = [1, 1, 1]} : vector<1x16x512xf32> to vector<1x1x512xf32>
    %1335 = vector.shape_cast %1334 : vector<1x1x512xf32> to vector<1x512xf32>
    %1336 = arith.truncf %1333 : vector<1x128xf32> to vector<1x128xbf16>
    %cst_211 = arith.constant dense<0.000000e+00> : vector<1x512xf32>
    %1337 = tpu.matmul %1336, %1031, %cst_211 {dimension_numbers = #tpu.dot_dimension_numbers<[1], [0], [0], [1], [0, 0, 1, 1], [], []>} : vector<1x128xbf16>, vector<128x512xbf16>, vector<1x512xf32> -> vector<1x512xf32>
    %1338 = arith.addf %1335, %1337 : vector<1x512xf32>
    %1339 = vector.extract_strided_slice %1338 {offsets = [0, 0], sizes = [1, 128], strides = [1, 1]} : vector<1x512xf32> to vector<1x128xf32>
    %1340 = arith.negf %1339 : vector<1x128xf32>
    %1341 = math.exp %1340 : vector<1x128xf32>
    %cst_212 = arith.constant 1.000000e+00 : f32
    %1342 = vector.broadcast %cst_212 : f32 to vector<1x128xf32>
    %1343 = arith.addf %1342, %1341 : vector<1x128xf32>
    %1344 = arith.divf %1342, %1343 : vector<1x128xf32>
    %1345 = vector.extract_strided_slice %1338 {offsets = [0, 128], sizes = [1, 128], strides = [1, 1]} : vector<1x512xf32> to vector<1x128xf32>
    %1346 = arith.negf %1345 : vector<1x128xf32>
    %1347 = math.exp %1346 : vector<1x128xf32>
    %cst_213 = arith.constant 1.000000e+00 : f32
    %1348 = vector.broadcast %cst_213 : f32 to vector<1x128xf32>
    %1349 = arith.addf %1348, %1347 : vector<1x128xf32>
    %1350 = arith.divf %1348, %1349 : vector<1x128xf32>
    %1351 = vector.extract_strided_slice %1338 {offsets = [0, 256], sizes = [1, 128], strides = [1, 1]} : vector<1x512xf32> to vector<1x128xf32>
    %1352 = math.tanh %1351 : vector<1x128xf32>
    %1353 = vector.extract_strided_slice %1338 {offsets = [0, 384], sizes = [1, 128], strides = [1, 1]} : vector<1x512xf32> to vector<1x128xf32>
    %1354 = arith.negf %1353 : vector<1x128xf32>
    %1355 = math.exp %1354 : vector<1x128xf32>
    %cst_214 = arith.constant 1.000000e+00 : f32
    %1356 = vector.broadcast %cst_214 : f32 to vector<1x128xf32>
    %1357 = arith.addf %1356, %1355 : vector<1x128xf32>
    %1358 = arith.divf %1356, %1357 : vector<1x128xf32>
    %1359 = arith.mulf %1350, %1331 : vector<1x128xf32>
    %1360 = arith.mulf %1344, %1352 : vector<1x128xf32>
    %1361 = arith.addf %1359, %1360 : vector<1x128xf32>
    %1362 = math.tanh %1361 : vector<1x128xf32>
    %1363 = arith.mulf %1358, %1362 : vector<1x128xf32>
    %1364 = vector.extract_strided_slice %1030 {offsets = [0, 11, 0], sizes = [1, 1, 512], strides = [1, 1, 1]} : vector<1x16x512xf32> to vector<1x1x512xf32>
    %1365 = vector.shape_cast %1364 : vector<1x1x512xf32> to vector<1x512xf32>
    %1366 = arith.truncf %1363 : vector<1x128xf32> to vector<1x128xbf16>
    %cst_215 = arith.constant dense<0.000000e+00> : vector<1x512xf32>
    %1367 = tpu.matmul %1366, %1031, %cst_215 {dimension_numbers = #tpu.dot_dimension_numbers<[1], [0], [0], [1], [0, 0, 1, 1], [], []>} : vector<1x128xbf16>, vector<128x512xbf16>, vector<1x512xf32> -> vector<1x512xf32>
    %1368 = arith.addf %1365, %1367 : vector<1x512xf32>
    %1369 = vector.extract_strided_slice %1368 {offsets = [0, 0], sizes = [1, 128], strides = [1, 1]} : vector<1x512xf32> to vector<1x128xf32>
    %1370 = arith.negf %1369 : vector<1x128xf32>
    %1371 = math.exp %1370 : vector<1x128xf32>
    %cst_216 = arith.constant 1.000000e+00 : f32
    %1372 = vector.broadcast %cst_216 : f32 to vector<1x128xf32>
    %1373 = arith.addf %1372, %1371 : vector<1x128xf32>
    %1374 = arith.divf %1372, %1373 : vector<1x128xf32>
    %1375 = vector.extract_strided_slice %1368 {offsets = [0, 128], sizes = [1, 128], strides = [1, 1]} : vector<1x512xf32> to vector<1x128xf32>
    %1376 = arith.negf %1375 : vector<1x128xf32>
    %1377 = math.exp %1376 : vector<1x128xf32>
    %cst_217 = arith.constant 1.000000e+00 : f32
    %1378 = vector.broadcast %cst_217 : f32 to vector<1x128xf32>
    %1379 = arith.addf %1378, %1377 : vector<1x128xf32>
    %1380 = arith.divf %1378, %1379 : vector<1x128xf32>
    %1381 = vector.extract_strided_slice %1368 {offsets = [0, 256], sizes = [1, 128], strides = [1, 1]} : vector<1x512xf32> to vector<1x128xf32>
    %1382 = math.tanh %1381 : vector<1x128xf32>
    %1383 = vector.extract_strided_slice %1368 {offsets = [0, 384], sizes = [1, 128], strides = [1, 1]} : vector<1x512xf32> to vector<1x128xf32>
    %1384 = arith.negf %1383 : vector<1x128xf32>
    %1385 = math.exp %1384 : vector<1x128xf32>
    %cst_218 = arith.constant 1.000000e+00 : f32
    %1386 = vector.broadcast %cst_218 : f32 to vector<1x128xf32>
    %1387 = arith.addf %1386, %1385 : vector<1x128xf32>
    %1388 = arith.divf %1386, %1387 : vector<1x128xf32>
    %1389 = arith.mulf %1380, %1361 : vector<1x128xf32>
    %1390 = arith.mulf %1374, %1382 : vector<1x128xf32>
    %1391 = arith.addf %1389, %1390 : vector<1x128xf32>
    %1392 = math.tanh %1391 : vector<1x128xf32>
    %1393 = arith.mulf %1388, %1392 : vector<1x128xf32>
    %1394 = vector.extract_strided_slice %1030 {offsets = [0, 12, 0], sizes = [1, 1, 512], strides = [1, 1, 1]} : vector<1x16x512xf32> to vector<1x1x512xf32>
    %1395 = vector.shape_cast %1394 : vector<1x1x512xf32> to vector<1x512xf32>
    %1396 = arith.truncf %1393 : vector<1x128xf32> to vector<1x128xbf16>
    %cst_219 = arith.constant dense<0.000000e+00> : vector<1x512xf32>
    %1397 = tpu.matmul %1396, %1031, %cst_219 {dimension_numbers = #tpu.dot_dimension_numbers<[1], [0], [0], [1], [0, 0, 1, 1], [], []>} : vector<1x128xbf16>, vector<128x512xbf16>, vector<1x512xf32> -> vector<1x512xf32>
    %1398 = arith.addf %1395, %1397 : vector<1x512xf32>
    %1399 = vector.extract_strided_slice %1398 {offsets = [0, 0], sizes = [1, 128], strides = [1, 1]} : vector<1x512xf32> to vector<1x128xf32>
    %1400 = arith.negf %1399 : vector<1x128xf32>
    %1401 = math.exp %1400 : vector<1x128xf32>
    %cst_220 = arith.constant 1.000000e+00 : f32
    %1402 = vector.broadcast %cst_220 : f32 to vector<1x128xf32>
    %1403 = arith.addf %1402, %1401 : vector<1x128xf32>
    %1404 = arith.divf %1402, %1403 : vector<1x128xf32>
    %1405 = vector.extract_strided_slice %1398 {offsets = [0, 128], sizes = [1, 128], strides = [1, 1]} : vector<1x512xf32> to vector<1x128xf32>
    %1406 = arith.negf %1405 : vector<1x128xf32>
    %1407 = math.exp %1406 : vector<1x128xf32>
    %cst_221 = arith.constant 1.000000e+00 : f32
    %1408 = vector.broadcast %cst_221 : f32 to vector<1x128xf32>
    %1409 = arith.addf %1408, %1407 : vector<1x128xf32>
    %1410 = arith.divf %1408, %1409 : vector<1x128xf32>
    %1411 = vector.extract_strided_slice %1398 {offsets = [0, 256], sizes = [1, 128], strides = [1, 1]} : vector<1x512xf32> to vector<1x128xf32>
    %1412 = math.tanh %1411 : vector<1x128xf32>
    %1413 = vector.extract_strided_slice %1398 {offsets = [0, 384], sizes = [1, 128], strides = [1, 1]} : vector<1x512xf32> to vector<1x128xf32>
    %1414 = arith.negf %1413 : vector<1x128xf32>
    %1415 = math.exp %1414 : vector<1x128xf32>
    %cst_222 = arith.constant 1.000000e+00 : f32
    %1416 = vector.broadcast %cst_222 : f32 to vector<1x128xf32>
    %1417 = arith.addf %1416, %1415 : vector<1x128xf32>
    %1418 = arith.divf %1416, %1417 : vector<1x128xf32>
    %1419 = arith.mulf %1410, %1391 : vector<1x128xf32>
    %1420 = arith.mulf %1404, %1412 : vector<1x128xf32>
    %1421 = arith.addf %1419, %1420 : vector<1x128xf32>
    %1422 = math.tanh %1421 : vector<1x128xf32>
    %1423 = arith.mulf %1418, %1422 : vector<1x128xf32>
    %1424 = vector.extract_strided_slice %1030 {offsets = [0, 13, 0], sizes = [1, 1, 512], strides = [1, 1, 1]} : vector<1x16x512xf32> to vector<1x1x512xf32>
    %1425 = vector.shape_cast %1424 : vector<1x1x512xf32> to vector<1x512xf32>
    %1426 = arith.truncf %1423 : vector<1x128xf32> to vector<1x128xbf16>
    %cst_223 = arith.constant dense<0.000000e+00> : vector<1x512xf32>
    %1427 = tpu.matmul %1426, %1031, %cst_223 {dimension_numbers = #tpu.dot_dimension_numbers<[1], [0], [0], [1], [0, 0, 1, 1], [], []>} : vector<1x128xbf16>, vector<128x512xbf16>, vector<1x512xf32> -> vector<1x512xf32>
    %1428 = arith.addf %1425, %1427 : vector<1x512xf32>
    %1429 = vector.extract_strided_slice %1428 {offsets = [0, 0], sizes = [1, 128], strides = [1, 1]} : vector<1x512xf32> to vector<1x128xf32>
    %1430 = arith.negf %1429 : vector<1x128xf32>
    %1431 = math.exp %1430 : vector<1x128xf32>
    %cst_224 = arith.constant 1.000000e+00 : f32
    %1432 = vector.broadcast %cst_224 : f32 to vector<1x128xf32>
    %1433 = arith.addf %1432, %1431 : vector<1x128xf32>
    %1434 = arith.divf %1432, %1433 : vector<1x128xf32>
    %1435 = vector.extract_strided_slice %1428 {offsets = [0, 128], sizes = [1, 128], strides = [1, 1]} : vector<1x512xf32> to vector<1x128xf32>
    %1436 = arith.negf %1435 : vector<1x128xf32>
    %1437 = math.exp %1436 : vector<1x128xf32>
    %cst_225 = arith.constant 1.000000e+00 : f32
    %1438 = vector.broadcast %cst_225 : f32 to vector<1x128xf32>
    %1439 = arith.addf %1438, %1437 : vector<1x128xf32>
    %1440 = arith.divf %1438, %1439 : vector<1x128xf32>
    %1441 = vector.extract_strided_slice %1428 {offsets = [0, 256], sizes = [1, 128], strides = [1, 1]} : vector<1x512xf32> to vector<1x128xf32>
    %1442 = math.tanh %1441 : vector<1x128xf32>
    %1443 = vector.extract_strided_slice %1428 {offsets = [0, 384], sizes = [1, 128], strides = [1, 1]} : vector<1x512xf32> to vector<1x128xf32>
    %1444 = arith.negf %1443 : vector<1x128xf32>
    %1445 = math.exp %1444 : vector<1x128xf32>
    %cst_226 = arith.constant 1.000000e+00 : f32
    %1446 = vector.broadcast %cst_226 : f32 to vector<1x128xf32>
    %1447 = arith.addf %1446, %1445 : vector<1x128xf32>
    %1448 = arith.divf %1446, %1447 : vector<1x128xf32>
    %1449 = arith.mulf %1440, %1421 : vector<1x128xf32>
    %1450 = arith.mulf %1434, %1442 : vector<1x128xf32>
    %1451 = arith.addf %1449, %1450 : vector<1x128xf32>
    %1452 = math.tanh %1451 : vector<1x128xf32>
    %1453 = arith.mulf %1448, %1452 : vector<1x128xf32>
    %1454 = vector.extract_strided_slice %1030 {offsets = [0, 14, 0], sizes = [1, 1, 512], strides = [1, 1, 1]} : vector<1x16x512xf32> to vector<1x1x512xf32>
    %1455 = vector.shape_cast %1454 : vector<1x1x512xf32> to vector<1x512xf32>
    %1456 = arith.truncf %1453 : vector<1x128xf32> to vector<1x128xbf16>
    %cst_227 = arith.constant dense<0.000000e+00> : vector<1x512xf32>
    %1457 = tpu.matmul %1456, %1031, %cst_227 {dimension_numbers = #tpu.dot_dimension_numbers<[1], [0], [0], [1], [0, 0, 1, 1], [], []>} : vector<1x128xbf16>, vector<128x512xbf16>, vector<1x512xf32> -> vector<1x512xf32>
    %1458 = arith.addf %1455, %1457 : vector<1x512xf32>
    %1459 = vector.extract_strided_slice %1458 {offsets = [0, 0], sizes = [1, 128], strides = [1, 1]} : vector<1x512xf32> to vector<1x128xf32>
    %1460 = arith.negf %1459 : vector<1x128xf32>
    %1461 = math.exp %1460 : vector<1x128xf32>
    %cst_228 = arith.constant 1.000000e+00 : f32
    %1462 = vector.broadcast %cst_228 : f32 to vector<1x128xf32>
    %1463 = arith.addf %1462, %1461 : vector<1x128xf32>
    %1464 = arith.divf %1462, %1463 : vector<1x128xf32>
    %1465 = vector.extract_strided_slice %1458 {offsets = [0, 128], sizes = [1, 128], strides = [1, 1]} : vector<1x512xf32> to vector<1x128xf32>
    %1466 = arith.negf %1465 : vector<1x128xf32>
    %1467 = math.exp %1466 : vector<1x128xf32>
    %cst_229 = arith.constant 1.000000e+00 : f32
    %1468 = vector.broadcast %cst_229 : f32 to vector<1x128xf32>
    %1469 = arith.addf %1468, %1467 : vector<1x128xf32>
    %1470 = arith.divf %1468, %1469 : vector<1x128xf32>
    %1471 = vector.extract_strided_slice %1458 {offsets = [0, 256], sizes = [1, 128], strides = [1, 1]} : vector<1x512xf32> to vector<1x128xf32>
    %1472 = math.tanh %1471 : vector<1x128xf32>
    %1473 = vector.extract_strided_slice %1458 {offsets = [0, 384], sizes = [1, 128], strides = [1, 1]} : vector<1x512xf32> to vector<1x128xf32>
    %1474 = arith.negf %1473 : vector<1x128xf32>
    %1475 = math.exp %1474 : vector<1x128xf32>
    %cst_230 = arith.constant 1.000000e+00 : f32
    %1476 = vector.broadcast %cst_230 : f32 to vector<1x128xf32>
    %1477 = arith.addf %1476, %1475 : vector<1x128xf32>
    %1478 = arith.divf %1476, %1477 : vector<1x128xf32>
    %1479 = arith.mulf %1470, %1451 : vector<1x128xf32>
    %1480 = arith.mulf %1464, %1472 : vector<1x128xf32>
    %1481 = arith.addf %1479, %1480 : vector<1x128xf32>
    %1482 = math.tanh %1481 : vector<1x128xf32>
    %1483 = arith.mulf %1478, %1482 : vector<1x128xf32>
    %1484 = vector.extract_strided_slice %1030 {offsets = [0, 15, 0], sizes = [1, 1, 512], strides = [1, 1, 1]} : vector<1x16x512xf32> to vector<1x1x512xf32>
    %1485 = vector.shape_cast %1484 : vector<1x1x512xf32> to vector<1x512xf32>
    %1486 = arith.truncf %1483 : vector<1x128xf32> to vector<1x128xbf16>
    %cst_231 = arith.constant dense<0.000000e+00> : vector<1x512xf32>
    %1487 = tpu.matmul %1486, %1031, %cst_231 {dimension_numbers = #tpu.dot_dimension_numbers<[1], [0], [0], [1], [0, 0, 1, 1], [], []>} : vector<1x128xbf16>, vector<128x512xbf16>, vector<1x512xf32> -> vector<1x512xf32>
    %1488 = arith.addf %1485, %1487 : vector<1x512xf32>
    %1489 = vector.extract_strided_slice %1488 {offsets = [0, 0], sizes = [1, 128], strides = [1, 1]} : vector<1x512xf32> to vector<1x128xf32>
    %1490 = arith.negf %1489 : vector<1x128xf32>
    %1491 = math.exp %1490 : vector<1x128xf32>
    %cst_232 = arith.constant 1.000000e+00 : f32
    %1492 = vector.broadcast %cst_232 : f32 to vector<1x128xf32>
    %1493 = arith.addf %1492, %1491 : vector<1x128xf32>
    %1494 = arith.divf %1492, %1493 : vector<1x128xf32>
    %1495 = vector.extract_strided_slice %1488 {offsets = [0, 128], sizes = [1, 128], strides = [1, 1]} : vector<1x512xf32> to vector<1x128xf32>
    %1496 = arith.negf %1495 : vector<1x128xf32>
    %1497 = math.exp %1496 : vector<1x128xf32>
    %cst_233 = arith.constant 1.000000e+00 : f32
    %1498 = vector.broadcast %cst_233 : f32 to vector<1x128xf32>
    %1499 = arith.addf %1498, %1497 : vector<1x128xf32>
    %1500 = arith.divf %1498, %1499 : vector<1x128xf32>
    %1501 = vector.extract_strided_slice %1488 {offsets = [0, 256], sizes = [1, 128], strides = [1, 1]} : vector<1x512xf32> to vector<1x128xf32>
    %1502 = math.tanh %1501 : vector<1x128xf32>
    %1503 = vector.extract_strided_slice %1488 {offsets = [0, 384], sizes = [1, 128], strides = [1, 1]} : vector<1x512xf32> to vector<1x128xf32>
    %1504 = arith.negf %1503 : vector<1x128xf32>
    %1505 = math.exp %1504 : vector<1x128xf32>
    %cst_234 = arith.constant 1.000000e+00 : f32
    %1506 = vector.broadcast %cst_234 : f32 to vector<1x128xf32>
    %1507 = arith.addf %1506, %1505 : vector<1x128xf32>
    %1508 = arith.divf %1506, %1507 : vector<1x128xf32>
    %1509 = arith.mulf %1500, %1481 : vector<1x128xf32>
    %1510 = arith.mulf %1494, %1502 : vector<1x128xf32>
    %1511 = arith.addf %1509, %1510 : vector<1x128xf32>
    %1512 = math.tanh %1511 : vector<1x128xf32>
    %1513 = arith.mulf %1508, %1512 : vector<1x128xf32>
    %c0_235 = arith.constant 0 : index
    %c0_236 = arith.constant 0 : index
    %1514 = vector.load %arg17[%c0_235, %c0_236] : memref<1x128xf32, #tpu.memory_space<vmem>>, vector<1x128xf32>
    tpu.vector_store %arg17[%c0_235, %c0_236], %1513 {strides = array<i32>} : memref<1x128xf32, #tpu.memory_space<vmem>>, vector<1x128xf32>,
    %c0_237 = arith.constant 0 : index
    %c0_238 = arith.constant 0 : index
    %1515 = vector.load %arg18[%c0_237, %c0_238] : memref<1x128xf32, #tpu.memory_space<vmem>>, vector<1x128xf32>
    tpu.vector_store %arg18[%c0_237, %c0_238], %1511 {strides = array<i32>} : memref<1x128xf32, #tpu.memory_space<vmem>>, vector<1x128xf32>,
    %1516 = vector.shape_cast %1063 : vector<1x128xf32> to vector<1x1x128xf32>
    %1517 = vector.shape_cast %1093 : vector<1x128xf32> to vector<1x1x128xf32>
    %1518 = vector.shape_cast %1123 : vector<1x128xf32> to vector<1x1x128xf32>
    %1519 = vector.shape_cast %1153 : vector<1x128xf32> to vector<1x1x128xf32>
    %1520 = vector.shape_cast %1183 : vector<1x128xf32> to vector<1x1x128xf32>
    %1521 = vector.shape_cast %1213 : vector<1x128xf32> to vector<1x1x128xf32>
    %1522 = vector.shape_cast %1243 : vector<1x128xf32> to vector<1x1x128xf32>
    %1523 = vector.shape_cast %1273 : vector<1x128xf32> to vector<1x1x128xf32>
    %1524 = vector.shape_cast %1303 : vector<1x128xf32> to vector<1x1x128xf32>
    %1525 = vector.shape_cast %1333 : vector<1x128xf32> to vector<1x1x128xf32>
    %1526 = vector.shape_cast %1363 : vector<1x128xf32> to vector<1x1x128xf32>
    %1527 = vector.shape_cast %1393 : vector<1x128xf32> to vector<1x1x128xf32>
    %1528 = vector.shape_cast %1423 : vector<1x128xf32> to vector<1x1x128xf32>
    %1529 = vector.shape_cast %1453 : vector<1x128xf32> to vector<1x1x128xf32>
    %1530 = vector.shape_cast %1483 : vector<1x128xf32> to vector<1x1x128xf32>
    %1531 = vector.shape_cast %1513 : vector<1x128xf32> to vector<1x1x128xf32>
    %1532 = tpu.concatenate %1516, %1517, %1518, %1519, %1520, %1521, %1522, %1523, %1524, %1525, %1526, %1527, %1528, %1529, %1530, %1531 in 1 : vector<1x1x128xf32>, vector<1x1x128xf32>, vector<1x1x128xf32>, vector<1x1x128xf32>, vector<1x1x128xf32>, vector<1x1x128xf32>, vector<1x1x128xf32>, vector<1x1x128xf32>, vector<1x1x128xf32>, vector<1x1x128xf32>, vector<1x1x128xf32>, vector<1x1x128xf32>, vector<1x1x128xf32>, vector<1x1x128xf32>, vector<1x1x128xf32>, vector<1x1x128xf32> -> vector<1x16x128xf32>
    %1533 = arith.truncf %1532 : vector<1x16x128xf32> to vector<1x16x128xbf16>
    %c0_239 = arith.constant 0 : index
    %c0_240 = arith.constant 0 : index
    %c0_241 = arith.constant 0 : index
    %1534 = vector.load %arg12[%c0_239, %c0_240, %c0_241] : memref<1x16x128xbf16, #tpu.memory_space<vmem>>, vector<1x16x128xbf16>
    tpu.vector_store %arg12[%c0_239, %c0_240, %c0_241], %1533 {strides = array<i32>} : memref<1x16x128xbf16, #tpu.memory_space<vmem>>, vector<1x16x128xbf16>,
    return
  }
  func.func @transform_0(%arg0: i32, %arg1: i32) -> (i32, i32, i32) {
    %c0_i32 = arith.constant 0 : i32
    %c0_i32_0 = arith.constant 0 : i32
    return %arg0, %arg1, %c0_i32 : i32, i32, i32
  }
  func.func @transform_1(%arg0: i32, %arg1: i32) -> (i32, i32) {
    %c0_i32 = arith.constant 0 : i32
    %c0_i32_0 = arith.constant 0 : i32
    %c0_i32_1 = arith.constant 0 : i32
    return %c0_i32, %c0_i32_0 : i32, i32
  }
  func.func @transform_2(%arg0: i32, %arg1: i32) -> (i32, i32) {
    %c0_i32 = arith.constant 0 : i32
    %c0_i32_0 = arith.constant 0 : i32
    %c0_i32_1 = arith.constant 0 : i32
    return %c0_i32, %c0_i32_0 : i32, i32
  }
  func.func @transform_3(%arg0: i32, %arg1: i32) -> (i32, i32) {
    %c0_i32 = arith.constant 0 : i32
    %c0_i32_0 = arith.constant 0 : i32
    %c0_i32_1 = arith.constant 0 : i32
    return %c0_i32, %c0_i32_0 : i32, i32
  }
  func.func @transform_4(%arg0: i32, %arg1: i32) -> (i32, i32) {
    %c0_i32 = arith.constant 0 : i32
    %c0_i32_0 = arith.constant 0 : i32
    %c0_i32_1 = arith.constant 0 : i32
    return %c0_i32, %c0_i32_0 : i32, i32
  }
  func.func @transform_5(%arg0: i32, %arg1: i32) -> (i32, i32) {
    %c0_i32 = arith.constant 0 : i32
    %c0_i32_0 = arith.constant 0 : i32
    %c0_i32_1 = arith.constant 0 : i32
    return %c0_i32, %c0_i32_0 : i32, i32
  }
  func.func @transform_6(%arg0: i32, %arg1: i32) -> (i32, i32) {
    %c0_i32 = arith.constant 0 : i32
    %c0_i32_0 = arith.constant 0 : i32
    %c0_i32_1 = arith.constant 0 : i32
    return %c0_i32, %c0_i32_0 : i32, i32
  }
  func.func @transform_7(%arg0: i32, %arg1: i32) -> (i32, i32) {
    %c0_i32 = arith.constant 0 : i32
    %c0_i32_0 = arith.constant 0 : i32
    %c0_i32_1 = arith.constant 0 : i32
    return %c0_i32, %c0_i32_0 : i32, i32
  }
  func.func @transform_8(%arg0: i32, %arg1: i32) -> (i32, i32) {
    %c0_i32 = arith.constant 0 : i32
    %c0_i32_0 = arith.constant 0 : i32
    %c0_i32_1 = arith.constant 0 : i32
    return %c0_i32, %c0_i32_0 : i32, i32
  }
  func.func @transform_9(%arg0: i32, %arg1: i32) -> (i32, i32) {
    %c0_i32 = arith.constant 0 : i32
    %c0_i32_0 = arith.constant 0 : i32
    %c0_i32_1 = arith.constant 0 : i32
    return %c0_i32, %c0_i32_0 : i32, i32
  }
  func.func @transform_10(%arg0: i32, %arg1: i32) -> (i32, i32, i32) {
    %c0_i32 = arith.constant 0 : i32
    %c0_i32_0 = arith.constant 0 : i32
    return %arg0, %arg1, %c0_i32 : i32, i32, i32
  }
}

</mosaic_0001>

<llo_original>
// kernel: lstm_lm_forward.3
$region0: #{lstm_lm_forward.3}
  #allocation0 [shape = 'u32[]', space=smem, size = 0x4, offset = 0x4, fixed_abs, tag = 'smem constant byte address 0x4 - core index']
  #allocation1 [shape = 'u32[144,128]{1,0:T(1,128)}', space=vmem, size = 0x12000, scoped, tag = 'internal scratch']
  %s0 = inlined_call_operand.vmem [shape: bf16[32,128], index: 0, kind: input, shape index: {}]
  %s1 = inlined_call_operand.vmem [shape: bf16[128,128], index: 1, kind: input, shape index: {}]
  %s2 = inlined_call_operand.vmem [shape: f32[1,128], index: 2, kind: input, shape index: {}]
  %s3 = inlined_call_operand.hbm [shape: f32[32,128], index: 3, kind: output, shape index: {}]
  %s4 = sld [smem:[#allocation0]]
  $region22: #{lstm_lm_forward.3} parent=0
    _
  %s6 = ssub.s32 1, %s4
  %s7 = scalar_select 0, %s6, %s4
  $region1: #{lstm_lm_forward.3} parent=0
    #allocation2 [shape = 'u8[16384]{0}', space=vmem, size = 0x4000, scoped, tag = 'output window, operand 0, single buffered']
    #allocation3 [shape = 's32[1]{0}', space=sflag, size = 0x4, scoped, tag = 'scoped memory for lstm_lm_forward.3']
    %8 = vsyncpa [#allocation3], 0
    // Predicated region
    $region2: #{lstm_lm_forward.3} parent=1 // pred_check
      _
    $region3: #{lstm_lm_forward.3} parent=1 // pred_check_branch
      %10 = sbr.rel (0) target = $region5
    $region4: #{lstm_lm_forward.3} parent=1 // pred_region
      _
    $region5: #{lstm_lm_forward.3} parent=1 // pred_fallthru
      _
    // Predicated region
    $region6: #{lstm_lm_forward.3} parent=1 // pred_check
      _
    $region7: #{lstm_lm_forward.3} parent=1 // pred_check_branch
      %12 = sbr.rel (0) target = $region9
    $region8: #{lstm_lm_forward.3} parent=1 // pred_region
      _
    $region9: #{lstm_lm_forward.3} parent=1 // pred_fallthru
      _
    // Predicated region
    $region10: #{lstm_lm_forward.3} parent=1 // pred_check
      _
    $region11: #{lstm_lm_forward.3} parent=1 // pred_check_branch
      %14 = sbr.rel (0) target = $region13
    $region12: #{lstm_lm_forward.3} parent=1 // pred_region
      _
    $region13: #{lstm_lm_forward.3} parent=1 // pred_fallthru
      _
    %v16 = vld [vmem:[%s0] sm:$0xf]
    %v17 = vld [vmem:[%s0 + $0x4] sm:$0xf]
    %v18 = vld [vmem:[%s0 + $0x8] sm:$0xf]
    %v19 = vld [vmem:[%s0 + $0xc] sm:$0xf]
    %v20 = vld [vmem:[%s1] sm:$0xf]
    %v21 = vld [vmem:[%s1 + $0x4] sm:$0xf]
    %v22 = vld [vmem:[%s1 + $0x8] sm:$0xf]
    %v23 = vld [vmem:[%s1 + $0xc] sm:$0xf]
    %v24 = vld [vmem:[%s1 + $0x10] sm:$0xf]
    %v25 = vld [vmem:[%s1 + $0x14] sm:$0xf]
    %v26 = vld [vmem:[%s1 + $0x18] sm:$0xf]
    %v27 = vld [vmem:[%s1 + $0x1c] sm:$0xf]
    %v28 = vld [vmem:[%s1 + $0x20] sm:$0xf]
    %v29 = vld [vmem:[%s1 + $0x24] sm:$0xf]
    %v30 = vld [vmem:[%s1 + $0x28] sm:$0xf]
    %v31 = vld [vmem:[%s1 + $0x2c] sm:$0xf]
    %v32 = vld [vmem:[%s1 + $0x30] sm:$0xf]
    %v33 = vld [vmem:[%s1 + $0x34] sm:$0xf]
    %v34 = vld [vmem:[%s1 + $0x38] sm:$0xf]
    %v35 = vld [vmem:[%s1 + $0x3c] sm:$0xf]
    %v36 = vld [vmem:[%s2] sm:$0x1]
    %v38 = vlaneseq
    %v39 = vshrl.u32 %v38, 7
    %v40 = vsub.s32 0, %v39
    %v41 = vrot.slane %v36, %v40
    %v47 = vunpack.c.l.b16 %v16
    %v48 = vunpack.c.l.b16 %v17
    %v49 = vunpack.c.l.b16 %v18
    %v50 = vunpack.c.l.b16 %v19
    %v51 = vpack.c.b16 %v48, %v47
    %v52 = vpack.c.b16 %v50, %v49
    %v71 = vunpack.c.l.b16 %v20
    %v72 = vunpack.c.l.b16 %v21
    %v73 = vunpack.c.l.b16 %v22
    %v74 = vunpack.c.l.b16 %v23
    %v75 = vunpack.c.l.b16 %v24
    %v76 = vunpack.c.l.b16 %v25
    %v77 = vunpack.c.l.b16 %v26
    %v78 = vunpack.c.l.b16 %v27
    %v79 = vunpack.c.l.b16 %v28
    %v80 = vunpack.c.l.b16 %v29
    %v81 = vunpack.c.l.b16 %v30
    %v82 = vunpack.c.l.b16 %v31
    %v83 = vunpack.c.l.b16 %v32
    %v84 = vunpack.c.l.b16 %v33
    %v85 = vunpack.c.l.b16 %v34
    %v86 = vunpack.c.l.b16 %v35
    %v87 = vpack.c.b16 %v72, %v71
    %v88 = vpack.c.b16 %v74, %v73
    %v89 = vpack.c.b16 %v76, %v75
    %v90 = vpack.c.b16 %v78, %v77
    %v91 = vpack.c.b16 %v80, %v79
    %v92 = vpack.c.b16 %v82, %v81
    %v93 = vpack.c.b16 %v84, %v83
    %v94 = vpack.c.b16 %v86, %v85
    %103 = vmatprep.subr.bf16.mxu0 0
    %104 = vmatpush1.bf16.msra.mxu0 %v87
    %105 = vmatprep.subr.bf16.mxu0 0
    %106 = vmatpush1.bf16.msra.mxu0 %v88
    %107 = vmatprep.subr.bf16.mxu0 0
    %108 = vmatpush1.bf16.msra.mxu0 %v89
    %109 = vmatprep.subr.bf16.mxu0 0
    %110 = vmatpush1.bf16.msra.mxu0 %v90
    %111 = vmatprep.subr.bf16.mxu0 0
    %112 = vmatpush1.bf16.msra.mxu0 %v91
    %113 = vmatprep.subr.bf16.mxu0 0
    %114 = vmatpush1.bf16.msra.mxu0 %v92
    %115 = vmatprep.subr.bf16.mxu0 0
    %116 = vmatpush1.bf16.msra.mxu0 %v93
    %117 = vmatprep.subr.bf16.mxu0 0
    %118 = vmatpush1.bf16.msra.mxu0 %v94
    %119 = vmatprep.subr.bf16.mxu0 0
    %120 = vmatpush1.bf16.msra.mxu0 0
    %121 = vmatprep.subr.bf16.mxu0 0
    %122 = vmatpush1.bf16.msra.mxu0 0
    %123 = vmatprep.subr.bf16.mxu0 0
    %124 = vmatpush1.bf16.msra.mxu0 0
    %125 = vmatprep.subr.bf16.mxu0 0
    %126 = vmatpush1.bf16.msra.mxu0 0
    %127 = vmatprep.subr.bf16.mxu0 0
    %128 = vmatpush1.bf16.msra.mxu0 0
    %129 = vmatprep.subr.bf16.mxu0 0
    %130 = vmatpush1.bf16.msra.mxu0 0
    %131 = vmatprep.subr.bf16.mxu0 0
    %132 = vmatpush1.bf16.msra.mxu0 0
    %133 = vmatprep.subr.bf16.mxu0 0
    %134 = vmatpush1.bf16.msra.mxu0 0
    %135 = vmatprep.mubr.bf16.mxu0 0
    %136 = vmatmul.mubr.bf16.gmra.mrb[0].mxu0 %v51
    %v137 = vpop.f32.mrb[0].mxu0
    %v138 = vadd.f32 %v41, %v137
    %v139 = vpop.f32.mrb[0].mxu0
    %v140 = vpop.f32.mrb[0].mxu0
    %v141 = vadd.f32 %v41, %v140
    %v142 = vpop.f32.mrb[0].mxu0
    %143 = vmatprep.mubr.bf16.mxu0 0
    %144 = vmatmul.mubr.bf16.gmra.mrb[0].mxu0 %v52
    %v145 = vpop.f32.mrb[0].mxu0
    %v146 = vadd.f32 %v41, %v145
    %v147 = vpop.f32.mrb[0].mxu0
    %v148 = vpop.f32.mrb[0].mxu0
    %v149 = vadd.f32 %v41, %v148
    %v150 = vpop.f32.mrb[0].mxu0
    %151 = vdwg.mxu0
    %152 = vst [vmem:[#allocation2] sm:$0xff] %v138
    %153 = vst [vmem:[#allocation2 + $0x8] sm:$0xff] %v141
    %154 = vst [vmem:[#allocation2 + $0x10] sm:$0xff] %v146
    %155 = vst [vmem:[#allocation2 + $0x18] sm:$0xff] %v149
    // Predicated region
    $region14: #{lstm_lm_forward.3} parent=1 // pred_check
      _
    $region15: #{lstm_lm_forward.3} parent=1 // pred_check_branch
      %157 = sbr.rel (0) target = $region17
    $region16: #{lstm_lm_forward.3} parent=1 // pred_region
      %s159 = ssub.s32 512, 512
      %160 = vsyncadd [#allocation3], %s159
      %s161 = sshll.u32 [#allocation2], 4
      %s162 = int_to_ptr.vmem [resolvable:$true] %s161
      %167 = dma.vmem_to_hbm [thread:$0]  %s162, 512, %s3, [#allocation3], 128, 128, 8
    $region17: #{lstm_lm_forward.3} parent=1 // pred_fallthru
      _
    // Predicated region
    $region18: #{lstm_lm_forward.3} parent=1 // pred_check
      _
    $region19: #{lstm_lm_forward.3} parent=1 // pred_check_branch
      %169 = sbr.rel (0) target = $region21
    $region20: #{lstm_lm_forward.3} parent=1 // pred_region
      %170 = dma.done [#allocation3], 512
    $region21: #{lstm_lm_forward.3} parent=1 // pred_fallthru
      _
    %171 = vsyncpa [#allocation3], 1

// kernel: lstm_lm_forward.2
$region0: #{lstm_lm_forward.2}
  #allocation0 [shape = 'u32[]', space=smem, size = 0x4, offset = 0x4, fixed_abs, tag = 'smem constant byte address 0x4 - core index']
  #allocation1 [shape = 'u32[144,128]{1,0:T(1,128)}', space=vmem, size = 0x12000, scoped, tag = 'internal scratch']
  #allocation2 [shape = 'f32[1,128]{1,0:T(1,128)}', space=vmem, size = 0x200, scoped, tag = 'scratch operand']
  #allocation3 [shape = 'f32[1,128]{1,0:T(1,128)}', space=vmem, size = 0x200, scoped, tag = 'scratch operand']
  #allocation4 [shape = 'f32[1,128]{1,0:T(1,128)}', space=vmem, size = 0x200, scoped, tag = 'scratch operand']
  #allocation5 [shape = 'f32[1,128]{1,0:T(1,128)}', space=vmem, size = 0x200, scoped, tag = 'scratch operand']
  #allocation6 [shape = 'f32[1,128]{1,0:T(1,128)}', space=vmem, size = 0x200, scoped, tag = 'scratch operand']
  #allocation7 [shape = 'f32[1,128]{1,0:T(1,128)}', space=vmem, size = 0x200, scoped, tag = 'scratch operand']
  %s0 = inlined_call_operand.vmem [shape: bf16[2,16,128], index: 0, kind: input, shape index: {}]
  %s1 = inlined_call_operand.hbm [shape: bf16[128,512], index: 1, kind: input, shape index: {}]
  %s2 = inlined_call_operand.vmem [shape: f32[1,512], index: 2, kind: input, shape index: {}]
  %s3 = inlined_call_operand.hbm [shape: bf16[128,512], index: 3, kind: input, shape index: {}]
  %s4 = inlined_call_operand.hbm [shape: bf16[128,512], index: 4, kind: input, shape index: {}]
  %s5 = inlined_call_operand.hbm [shape: bf16[128,512], index: 5, kind: input, shape index: {}]
  %s6 = inlined_call_operand.vmem [shape: f32[1,512], index: 6, kind: input, shape index: {}]
  %s7 = inlined_call_operand.hbm [shape: bf16[128,512], index: 7, kind: input, shape index: {}]
  %s8 = inlined_call_operand.hbm [shape: bf16[128,512], index: 8, kind: input, shape index: {}]
  %s9 = inlined_call_operand.vmem [shape: f32[1,512], index: 9, kind: input, shape index: {}]
  %s10 = inlined_call_operand.vmem [shape: bf16[2,16,128], index: 10, kind: output, shape index: {}]
  %s11 = sld [smem:[#allocation0]]
  $region101: #{lstm_lm_forward.2} parent=0
    _
  %s13 = ssub.s32 1, %s11
  %s14 = scalar_select 0, %s13, %s11
  $region1: #{lstm_lm_forward.2} parent=0
    #allocation8 [shape = 'u8[131072]{0}', space=vmem, size = 0x20000, scoped, tag = 'input window, operand 1, single buffered']
    #allocation9 [shape = 's32[2]{0}', space=sflag, size = 0x8, scoped, tag = 'scoped memory for lstm_lm_forward.2']
    #allocation10 [shape = 'u8[131072]{0}', space=vmem, size = 0x20000, scoped, tag = 'input window, operand 3, single buffered']
    #allocation11 [shape = 's32[1]{0}', space=sflag, size = 0x4, scoped, tag = 'scoped memory for lstm_lm_forward.2']
    #allocation12 [shape = 'u8[131072]{0}', space=vmem, size = 0x20000, scoped, tag = 'input window, operand 4, single buffered']
    #allocation13 [shape = 'u8[131072]{0}', space=vmem, size = 0x20000, scoped, tag = 'input window, operand 5, single buffered']
    #allocation14 [shape = 's32[1]{0}', space=sflag, size = 0x4, scoped, tag = 'scoped memory for lstm_lm_forward.2']
    #allocation15 [shape = 'u8[131072]{0}', space=vmem, size = 0x20000, scoped, tag = 'input window, operand 7, single buffered']
    #allocation16 [shape = 'u8[131072]{0}', space=vmem, size = 0x20000, scoped, tag = 'input window, operand 8, single buffered']
    #allocation17 [shape = 's32[1]{0}', space=sflag, size = 0x4, scoped, tag = 'scoped memory for lstm_lm_forward.2']
    %15 = vsyncpa [#allocation9], 0
    %16 = vsyncpa [#allocation11], 0
    %17 = vsyncpa [#allocation14], 0
    %18 = vsyncpa [#allocation17], 0
    loop: start=0, step=1, limit=4
    $region2: #{lstm_lm_forward.2} parent=1 // loop_pre_header
      _
    $region3: #{lstm_lm_forward.2} parent=1 // loop_header
      %s20 = sphi 0, %s24
      %p21 = scmp.ge.s32.totalorder %s20, 4
      %s27 = sphi 0, %s39
      %s28 = sphi 0, %s35
      %s29 = sphi 0, %s27
      %s30 = sphi 0, %s28
      %s31 = sphi 0, %s29
      %s32 = sphi 0, %s30
      %s44 = sphi 0, %s46
      %s47 = sphi 0, %s44
      %s48 = sphi 0, %s47
      %s64 = sphi 0, %s48
      %s68 = sphi 0, %s68
      %s70 = sphi 0, %s68
      %s71 = sphi 0, %s70
      %s85 = sphi 0, %s71
      %s89 = sphi 0, %s89
      %s91 = sphi 0, %s89
      %s92 = sphi 0, %s91
      %s106 = sphi 0, %s92
      %s110 = sphi 0, %s110
      %s112 = sphi 0, %s110
      %s113 = sphi 0, %s112
      %s127 = sphi 0, %s113
      %s131 = sphi 0, %s131
      %s133 = sphi 0, %s131
      %s134 = sphi 0, %s133
      %s148 = sphi 0, %s134
      %s152 = sphi 0, %s152
      %s154 = sphi 0, %s152
      %s155 = sphi 0, %s154
      %s169 = sphi 0, %s155
      %s173 = sphi 0, %s173
      %s175 = sphi 0, %s173
      %s176 = sphi 0, %s175
      %s190 = sphi 0, %s176
      %s194 = sphi 0, %s194
      %s196 = sphi 0, %s194
      %s197 = sphi 0, %s196
      %s211 = sphi 0, %s197
      %s215 = sphi 0, %s215
      %s217 = sphi 0, %s215
      %s218 = sphi 0, %s217
      %s232 = sphi 0, %s218
      %s236 = sphi 0, %s236
      %s238 = sphi 0, %s236
      %s239 = sphi 0, %s238
      %s253 = sphi 0, %s239
      %s261 = sphi 0, %s263
      %s264 = sphi 0, %s261
      %s265 = sphi 0, %s264
      %s281 = sphi 0, %s265
    $region4: #{lstm_lm_forward.2} parent=1 // loop_header_branch
      %23 = sbr.rel (%p21) target = $region8
    $region5: #{lstm_lm_forward.2} parent=1 // loop_body
      %s25 = ssub.s32 %s20, 1
      %s26 = ssub.s32 %s20, 2
      %s33 = sadd.s32 1, %s28
      %p34 = scmp.ge.s32.totalorder %s33, 1
      %s35 = scalar_select %p34, 0, %s33
      %s36 = sadd.s32 1, %s27
      %s37 = scalar_select %p34, %s36, %s27
      %p38 = scmp.ge.s32.totalorder %s37, 2
      %s39 = scalar_select %p38, 0, %s37
      %s40 = ssub.s32 %s27, %s39
      %s41 = ssub.s32 %s28, %s35
      %s42 = sor.u32 %s40, %s41
      %p43 = scmp.eq.s32.totalorder %s42, 0
      %s45 = sadd.s32 %s44, 1
      %s46 = scalar_select %p43, %s44, %s45
      %p49 = pneg %p43
      %p50 = scmp.eq.s32.totalorder %s20, 1
      %p51 = por %p49, %p50
      %p52 = scmp.ne.s32.totalorder %s44, %s47
      %p53 = scmp.eq.s32.totalorder %s20, 0
      %p54 = por %p52, %p53
      %p55 = scmp.ne.s32.totalorder %s44, %s47
      %p56 = scmp.eq.s32.totalorder %s25, 1
      %p57 = por %p55, %p56
      %p58 = scmp.ne.s32.totalorder %s47, %s48
      %p59 = scmp.eq.s32.totalorder %s25, 0
      %p60 = por %p58, %p59
      %p61 = scmp.ne.s32.totalorder %s47, %s48
      %p62 = scmp.eq.s32.totalorder %s26, 1
      %p63 = por %p61, %p62
      %p65 = scmp.ne.s32.totalorder %s48, %s64
      %p66 = scmp.eq.s32.totalorder %s26, 0
      %p67 = por %p65, %p66
      %s69 = sadd.s32 %s68, 1
      %p72 = scmp.eq.s32.totalorder %s20, 1
      %p73 = scmp.ne.s32.totalorder %s68, %s70
      %p74 = scmp.eq.s32.totalorder %s20, 0
      %p75 = por %p73, %p74
      %p76 = scmp.ne.s32.totalorder %s68, %s70
      %p77 = scmp.eq.s32.totalorder %s25, 1
      %p78 = por %p76, %p77
      %p79 = scmp.ne.s32.totalorder %s70, %s71
      %p80 = scmp.eq.s32.totalorder %s25, 0
      %p81 = por %p79, %p80
      %p82 = scmp.ne.s32.totalorder %s70, %s71
      %p83 = scmp.eq.s32.totalorder %s26, 1
      %p84 = por %p82, %p83
      %p86 = scmp.ne.s32.totalorder %s71, %s85
      %p87 = scmp.eq.s32.totalorder %s26, 0
      %p88 = por %p86, %p87
      %s90 = sadd.s32 %s89, 1
      %p93 = scmp.eq.s32.totalorder %s20, 1
      %p94 = scmp.ne.s32.totalorder %s89, %s91
      %p95 = scmp.eq.s32.totalorder %s20, 0
      %p96 = por %p94, %p95
      %p97 = scmp.ne.s32.totalorder %s89, %s91
      %p98 = scmp.eq.s32.totalorder %s25, 1
      %p99 = por %p97, %p98
      %p100 = scmp.ne.s32.totalorder %s91, %s92
      %p101 = scmp.eq.s32.totalorder %s25, 0
      %p102 = por %p100, %p101
      %p103 = scmp.ne.s32.totalorder %s91, %s92
      %p104 = scmp.eq.s32.totalorder %s26, 1
      %p105 = por %p103, %p104
      %p107 = scmp.ne.s32.totalorder %s92, %s106
      %p108 = scmp.eq.s32.totalorder %s26, 0
      %p109 = por %p107, %p108
      %s111 = sadd.s32 %s110, 1
      %p114 = scmp.eq.s32.totalorder %s20, 1
      %p115 = scmp.ne.s32.totalorder %s110, %s112
      %p116 = scmp.eq.s32.totalorder %s20, 0
      %p117 = por %p115, %p116
      %p118 = scmp.ne.s32.totalorder %s110, %s112
      %p119 = scmp.eq.s32.totalorder %s25, 1
      %p120 = por %p118, %p119
      %p121 = scmp.ne.s32.totalorder %s112, %s113
      %p122 = scmp.eq.s32.totalorder %s25, 0
      %p123 = por %p121, %p122
      %p124 = scmp.ne.s32.totalorder %s112, %s113
      %p125 = scmp.eq.s32.totalorder %s26, 1
      %p126 = por %p124, %p125
      %p128 = scmp.ne.s32.totalorder %s113, %s127
      %p129 = scmp.eq.s32.totalorder %s26, 0
      %p130 = por %p128, %p129
      %s132 = sadd.s32 %s131, 1
      %p135 = scmp.eq.s32.totalorder %s20, 1
      %p136 = scmp.ne.s32.totalorder %s131, %s133
      %p137 = scmp.eq.s32.totalorder %s20, 0
      %p138 = por %p136, %p137
      %p139 = scmp.ne.s32.totalorder %s131, %s133
      %p140 = scmp.eq.s32.totalorder %s25, 1
      %p141 = por %p139, %p140
      %p142 = scmp.ne.s32.totalorder %s133, %s134
      %p143 = scmp.eq.s32.totalorder %s25, 0
      %p144 = por %p142, %p143
      %p145 = scmp.ne.s32.totalorder %s133, %s134
      %p146 = scmp.eq.s32.totalorder %s26, 1
      %p147 = por %p145, %p146
      %p149 = scmp.ne.s32.totalorder %s134, %s148
      %p150 = scmp.eq.s32.totalorder %s26, 0
      %p151 = por %p149, %p150
      %s153 = sadd.s32 %s152, 1
      %p156 = scmp.eq.s32.totalorder %s20, 1
      %p157 = scmp.ne.s32.totalorder %s152, %s154
      %p158 = scmp.eq.s32.totalorder %s20, 0
      %p159 = por %p157, %p158
      %p160 = scmp.ne.s32.totalorder %s152, %s154
      %p161 = scmp.eq.s32.totalorder %s25, 1
      %p162 = por %p160, %p161
      %p163 = scmp.ne.s32.totalorder %s154, %s155
      %p164 = scmp.eq.s32.totalorder %s25, 0
      %p165 = por %p163, %p164
      %p166 = scmp.ne.s32.totalorder %s154, %s155
      %p167 = scmp.eq.s32.totalorder %s26, 1
      %p168 = por %p166, %p167
      %p170 = scmp.ne.s32.totalorder %s155, %s169
      %p171 = scmp.eq.s32.totalorder %s26, 0
      %p172 = por %p170, %p171
      %s174 = sadd.s32 %s173, 1
      %p177 = scmp.eq.s32.totalorder %s20, 1
      %p178 = scmp.ne.s32.totalorder %s173, %s175
      %p179 = scmp.eq.s32.totalorder %s20, 0
      %p180 = por %p178, %p179
      %p181 = scmp.ne.s32.totalorder %s173, %s175
      %p182 = scmp.eq.s32.totalorder %s25, 1
      %p183 = por %p181, %p182
      %p184 = scmp.ne.s32.totalorder %s175, %s176
      %p185 = scmp.eq.s32.totalorder %s25, 0
      %p186 = por %p184, %p185
      %p187 = scmp.ne.s32.totalorder %s175, %s176
      %p188 = scmp.eq.s32.totalorder %s26, 1
      %p189 = por %p187, %p188
      %p191 = scmp.ne.s32.totalorder %s176, %s190
      %p192 = scmp.eq.s32.totalorder %s26, 0
      %p193 = por %p191, %p192
      %s195 = sadd.s32 %s194, 1
      %p198 = scmp.eq.s32.totalorder %s20, 1
      %p199 = scmp.ne.s32.totalorder %s194, %s196
      %p200 = scmp.eq.s32.totalorder %s20, 0
      %p201 = por %p199, %p200
      %p202 = scmp.ne.s32.totalorder %s194, %s196
      %p203 = scmp.eq.s32.totalorder %s25, 1
      %p204 = por %p202, %p203
      %p205 = scmp.ne.s32.totalorder %s196, %s197
      %p206 = scmp.eq.s32.totalorder %s25, 0
      %p207 = por %p205, %p206
      %p208 = scmp.ne.s32.totalorder %s196, %s197
      %p209 = scmp.eq.s32.totalorder %s26, 1
      %p210 = por %p208, %p209
      %p212 = scmp.ne.s32.totalorder %s197, %s211
      %p213 = scmp.eq.s32.totalorder %s26, 0
      %p214 = por %p212, %p213
      %s216 = sadd.s32 %s215, 1
      %p219 = scmp.eq.s32.totalorder %s20, 1
      %p220 = scmp.ne.s32.totalorder %s215, %s217
      %p221 = scmp.eq.s32.totalorder %s20, 0
      %p222 = por %p220, %p221
      %p223 = scmp.ne.s32.totalorder %s215, %s217
      %p224 = scmp.eq.s32.totalorder %s25, 1
      %p225 = por %p223, %p224
      %p226 = scmp.ne.s32.totalorder %s217, %s218
      %p227 = scmp.eq.s32.totalorder %s25, 0
      %p228 = por %p226, %p227
      %p229 = scmp.ne.s32.totalorder %s217, %s218
      %p230 = scmp.eq.s32.totalorder %s26, 1
      %p231 = por %p229, %p230
      %p233 = scmp.ne.s32.totalorder %s218, %s232
      %p234 = scmp.eq.s32.totalorder %s26, 0
      %p235 = por %p233, %p234
      %s237 = sadd.s32 %s236, 1
      %p240 = scmp.eq.s32.totalorder %s20, 1
      %p241 = scmp.ne.s32.totalorder %s236, %s238
      %p242 = scmp.eq.s32.totalorder %s20, 0
      %p243 = por %p241, %p242
      %p244 = scmp.ne.s32.totalorder %s236, %s238
      %p245 = scmp.eq.s32.totalorder %s25, 1
      %p246 = por %p244, %p245
      %p247 = scmp.ne.s32.totalorder %s238, %s239
      %p248 = scmp.eq.s32.totalorder %s25, 0
      %p249 = por %p247, %p248
      %p250 = scmp.ne.s32.totalorder %s238, %s239
      %p251 = scmp.eq.s32.totalorder %s26, 1
      %p252 = por %p250, %p251
      %p254 = scmp.ne.s32.totalorder %s239, %s253
      %p255 = scmp.eq.s32.totalorder %s26, 0
      %p256 = por %p254, %p255
      %s257 = ssub.s32 %s27, %s39
      %s258 = ssub.s32 %s28, %s35
      %s259 = sor.u32 %s257, %s258
      %p260 = scmp.eq.s32.totalorder %s259, 0
      %s262 = sadd.s32 %s261, 1
      %s263 = scalar_select %p260, %s261, %s262
      %p266 = pneg %p260
      %p267 = scmp.eq.s32.totalorder %s20, 1
      %p268 = por %p266, %p267
      %p269 = scmp.ne.s32.totalorder %s261, %s264
      %p270 = scmp.eq.s32.totalorder %s20, 0
      %p271 = por %p269, %p270
      %p272 = scmp.ne.s32.totalorder %s261, %s264
      %p273 = scmp.eq.s32.totalorder %s25, 1
      %p274 = por %p272, %p273
      %p275 = scmp.ne.s32.totalorder %s264, %s265
      %p276 = scmp.eq.s32.totalorder %s25, 0
      %p277 = por %p275, %p276
      %p278 = scmp.ne.s32.totalorder %s264, %s265
      %p279 = scmp.eq.s32.totalorder %s26, 1
      %p280 = por %p278, %p279
      %p282 = scmp.ne.s32.totalorder %s265, %s281
      %p283 = scmp.eq.s32.totalorder %s26, 0
      %p284 = por %p282, %p283
      %p285 = scmp.le.s32.totalorder 1, %s20
      %p286 = scmp.lt.s32.totalorder %s20, 3
      %p287 = pnand %p285, %p286
      %p288 = pneg %p287
      // Predicated region
      $region9: #{lstm_lm_forward.2} parent=5 // pred_check
        _
      $region10: #{lstm_lm_forward.2} parent=5 // pred_check_branch
        %290 = sbr.rel (%p287) target = $region12
      $region11: #{lstm_lm_forward.2} parent=5 // pred_region
        %s291 = ssub.s32 %s20, 1
        // Predicated region
        $region13: #{lstm_lm_forward.2} parent=11 // pred_check
          %p292 = pneg %p81
        $region14: #{lstm_lm_forward.2} parent=11 // pred_check_branch
          %294 = sbr.rel (%p292) target = $region16
        $region15: #{lstm_lm_forward.2} parent=11 // pred_region
          %s296 = ssub.s32 4096, 4096
          %297 = vsyncadd [#allocation9], %s296
          %s298 = sshll.u32 [#allocation8], 4
          %s299 = int_to_ptr.vmem [resolvable:$true] %s298
          %304 = dma.hbm_to_vmem [thread:$0]  %s1, 4096, %s299, [#allocation9], 256, 256, 16
        $region16: #{lstm_lm_forward.2} parent=11 // pred_fallthru
          _
        // Predicated region
        $region17: #{lstm_lm_forward.2} parent=11 // pred_check
          %p305 = pneg %p102
        $region18: #{lstm_lm_forward.2} parent=11 // pred_check_branch
          %307 = sbr.rel (%p305) target = $region20
        $region19: #{lstm_lm_forward.2} parent=11 // pred_region
          _
        $region20: #{lstm_lm_forward.2} parent=11 // pred_fallthru
          _
        // Predicated region
        $region21: #{lstm_lm_forward.2} parent=11 // pred_check
          %p308 = pneg %p123
        $region22: #{lstm_lm_forward.2} parent=11 // pred_check_branch
          %310 = sbr.rel (%p308) target = $region24
        $region23: #{lstm_lm_forward.2} parent=11 // pred_region
          %s312 = ssub.s32 4096, 4096
          %313 = vsyncadd [#allocation11], %s312
          %s314 = sshll.u32 [#allocation10], 4
          %s315 = int_to_ptr.vmem [resolvable:$true] %s314
          %320 = dma.hbm_to_vmem [thread:$0]  %s3, 4096, %s315, [#allocation11], 256, 256, 16
        $region24: #{lstm_lm_forward.2} parent=11 // pred_fallthru
          _
        // Predicated region
        $region25: #{lstm_lm_forward.2} parent=11 // pred_check
          %p321 = pneg %p144
        $region26: #{lstm_lm_forward.2} parent=11 // pred_check_branch
          %323 = sbr.rel (%p321) target = $region28
        $region27: #{lstm_lm_forward.2} parent=11 // pred_region
          %s325 = ssub.s32 4096, 4096
          %326 = vsyncadd [#allocation11], %s325
          %s327 = sshll.u32 [#allocation12], 4
          %s328 = int_to_ptr.vmem [resolvable:$true] %s327
          %333 = dma.hbm_to_vmem [thread:$0]  %s4, 4096, %s328, [#allocation11], 256, 256, 16
        $region28: #{lstm_lm_forward.2} parent=11 // pred_fallthru
          _
        // Predicated region
        $region29: #{lstm_lm_forward.2} parent=11 // pred_check
          %p334 = pneg %p165
        $region30: #{lstm_lm_forward.2} parent=11 // pred_check_branch
          %336 = sbr.rel (%p334) target = $region32
        $region31: #{lstm_lm_forward.2} parent=11 // pred_region
          %s338 = ssub.s32 4096, 4096
          %339 = vsyncadd [#allocation14], %s338
          %s340 = sshll.u32 [#allocation13], 4
          %s341 = int_to_ptr.vmem [resolvable:$true] %s340
          %346 = dma.hbm_to_vmem [thread:$0]  %s5, 4096, %s341, [#allocation14], 256, 256, 16
        $region32: #{lstm_lm_forward.2} parent=11 // pred_fallthru
          _
        // Predicated region
        $region33: #{lstm_lm_forward.2} parent=11 // pred_check
          %p347 = pneg %p186
        $region34: #{lstm_lm_forward.2} parent=11 // pred_check_branch
          %349 = sbr.rel (%p347) target = $region36
        $region35: #{lstm_lm_forward.2} parent=11 // pred_region
          _
        $region36: #{lstm_lm_forward.2} parent=11 // pred_fallthru
          _
        // Predicated region
        $region37: #{lstm_lm_forward.2} parent=11 // pred_check
          %p350 = pneg %p207
        $region38: #{lstm_lm_forward.2} parent=11 // pred_check_branch
          %352 = sbr.rel (%p350) target = $region40
        $region39: #{lstm_lm_forward.2} parent=11 // pred_region
          %s354 = ssub.s32 4096, 4096
          %355 = vsyncadd [#allocation14], %s354
          %s356 = sshll.u32 [#allocation15], 4
          %s357 = int_to_ptr.vmem [resolvable:$true] %s356
          %362 = dma.hbm_to_vmem [thread:$0]  %s7, 4096, %s357, [#allocation14], 256, 256, 16
        $region40: #{lstm_lm_forward.2} parent=11 // pred_fallthru
          _
        // Predicated region
        $region41: #{lstm_lm_forward.2} parent=11 // pred_check
          %p363 = pneg %p228
        $region42: #{lstm_lm_forward.2} parent=11 // pred_check_branch
          %365 = sbr.rel (%p363) target = $region44
        $region43: #{lstm_lm_forward.2} parent=11 // pred_region
          %s367 = ssub.s32 4096, 4096
          %368 = vsyncadd [#allocation17], %s367
          %s369 = sshll.u32 [#allocation16], 4
          %s370 = int_to_ptr.vmem [resolvable:$true] %s369
          %375 = dma.hbm_to_vmem [thread:$0]  %s8, 4096, %s370, [#allocation17], 256, 256, 16
        $region44: #{lstm_lm_forward.2} parent=11 // pred_fallthru
          _
        // Predicated region
        $region45: #{lstm_lm_forward.2} parent=11 // pred_check
          %p376 = pneg %p249
        $region46: #{lstm_lm_forward.2} parent=11 // pred_check_branch
          %378 = sbr.rel (%p376) target = $region48
        $region47: #{lstm_lm_forward.2} parent=11 // pred_region
          _
        $region48: #{lstm_lm_forward.2} parent=11 // pred_fallthru
          _
      $region12: #{lstm_lm_forward.2} parent=5 // pred_fallthru
        _
      %p379 = scmp.lt.s32.totalorder %s20, 2
      // Predicated region
      $region49: #{lstm_lm_forward.2} parent=5 // pred_check
        %p380 = pneg %p379
      $region50: #{lstm_lm_forward.2} parent=5 // pred_check_branch
        %382 = sbr.rel (%p380) target = $region52
      $region51: #{lstm_lm_forward.2} parent=5 // pred_region
        // Predicated region
        $region53: #{lstm_lm_forward.2} parent=51 // pred_check
          %p383 = pneg %p54
        $region54: #{lstm_lm_forward.2} parent=51 // pred_check_branch
          %385 = sbr.rel (%p383) target = $region56
        $region55: #{lstm_lm_forward.2} parent=51 // pred_region
          %s386 = smul.u32 2, %s28
          %p387 = scmp.lt.s32.totalorder %s27, 1
          %s388 = scalar_select %p387, %s27, 1
          %p389 = scmp.lt.s32.totalorder %s386, 1
          %s390 = scalar_select %p389, %s386, 1
          %s391 = smul.addr %s388, 2
          %s392 = sadd.s32 %s390, %s391
          %s393 = smul.addr %s392, 4
          %s394 = scalar_lea.vmem %s0, %s393
          %s395 = smul.u32 2, %s28
        $region56: #{lstm_lm_forward.2} parent=51 // pred_fallthru
          _
      $region52: #{lstm_lm_forward.2} parent=5 // pred_fallthru
        _
      %p396 = scmp.le.s32.totalorder 1, %s20
      %p397 = scmp.lt.s32.totalorder %s20, 3
      %p398 = pnand %p396, %p397
      %p399 = pneg %p398
      // Predicated region
      $region57: #{lstm_lm_forward.2} parent=5 // pred_check
        _
      $region58: #{lstm_lm_forward.2} parent=5 // pred_check_branch
        %401 = sbr.rel (%p398) target = $region60
      $region59: #{lstm_lm_forward.2} parent=5 // pred_region
        %s402 = ssub.s32 %s20, 1
        // Predicated region
        $region61: #{lstm_lm_forward.2} parent=59 // pred_check
          %p403 = pneg %p81
        $region62: #{lstm_lm_forward.2} parent=59 // pred_check_branch
          %405 = sbr.rel (%p403) target = $region64
        $region63: #{lstm_lm_forward.2} parent=59 // pred_region
          %406 = dma.done [#allocation9], 4096
        $region64: #{lstm_lm_forward.2} parent=59 // pred_fallthru
          _
        // Predicated region
        $region65: #{lstm_lm_forward.2} parent=59 // pred_check
          %p407 = pneg %p123
        $region66: #{lstm_lm_forward.2} parent=59 // pred_check_branch
          %409 = sbr.rel (%p407) target = $region68
        $region67: #{lstm_lm_forward.2} parent=59 // pred_region
          %410 = dma.done [#allocation11], 4096
        $region68: #{lstm_lm_forward.2} parent=59 // pred_fallthru
          _
        // Predicated region
        $region69: #{lstm_lm_forward.2} parent=59 // pred_check
          %p411 = pneg %p144
        $region70: #{lstm_lm_forward.2} parent=59 // pred_check_branch
          %413 = sbr.rel (%p411) target = $region72
        $region71: #{lstm_lm_forward.2} parent=59 // pred_region
          %414 = dma.done [#allocation11], 4096
        $region72: #{lstm_lm_forward.2} parent=59 // pred_fallthru
          _
        // Predicated region
        $region73: #{lstm_lm_forward.2} parent=59 // pred_check
          %p415 = pneg %p165
        $region74: #{lstm_lm_forward.2} parent=59 // pred_check_branch
          %417 = sbr.rel (%p415) target = $region76
        $region75: #{lstm_lm_forward.2} parent=59 // pred_region
          %418 = dma.done [#allocation14], 4096
        $region76: #{lstm_lm_forward.2} parent=59 // pred_fallthru
          _
        // Predicated region
        $region77: #{lstm_lm_forward.2} parent=59 // pred_check
          %p419 = pneg %p207
        $region78: #{lstm_lm_forward.2} parent=59 // pred_check_branch
          %421 = sbr.rel (%p419) target = $region80
        $region79: #{lstm_lm_forward.2} parent=59 // pred_region
          %422 = dma.done [#allocation14], 4096
        $region80: #{lstm_lm_forward.2} parent=59 // pred_fallthru
          _
        // Predicated region
        $region81: #{lstm_lm_forward.2} parent=59 // pred_check
          %p423 = pneg %p228
        $region82: #{lstm_lm_forward.2} parent=59 // pred_check_branch
          %425 = sbr.rel (%p423) target = $region84
        $region83: #{lstm_lm_forward.2} parent=59 // pred_region
          %426 = dma.done [#allocation17], 4096
        $region84: #{lstm_lm_forward.2} parent=59 // pred_fallthru
          _
        %s427 = smul.u32 2, %s30
        %p428 = scmp.lt.s32.totalorder %s29, 1
        %s429 = scalar_select %p428, %s29, 1
        %p430 = scmp.lt.s32.totalorder %s427, 1
        %s431 = scalar_select %p430, %s427, 1
        %s432 = smul.addr %s429, 2
        %s433 = sadd.s32 %s431, %s432
        %s434 = smul.addr %s433, 4
        %s435 = scalar_lea.vmem %s0, %s434
        %p436 = pneg %p60
        %p437 = pneg %p57
        %p438 = pneg %p81
        %p439 = pneg %p78
        %p440 = pneg %p102
        %p441 = pneg %p99
        %p442 = pneg %p123
        %p443 = pneg %p120
        %p444 = pneg %p144
        %p445 = pneg %p141
        %p446 = pneg %p165
        %p447 = pneg %p162
        %p448 = pneg %p186
        %p449 = pneg %p183
        %p450 = pneg %p207
        %p451 = pneg %p204
        %p452 = pneg %p228
        %p453 = pneg %p225
        %p454 = pneg %p249
        %p455 = pneg %p246
        %p456 = pneg %p277
        %p457 = pneg %p274
        %s458 = smul.u32 2, %s30
        %p459 = scmp.lt.s32.totalorder %s29, 1
        %s460 = scalar_select %p459, %s29, 1
        %p461 = scmp.lt.s32.totalorder %s458, 1
        %s462 = scalar_select %p461, %s458, 1
        %s463 = smul.addr %s460, 2
        %s464 = sadd.s32 %s462, %s463
        %s465 = smul.addr %s464, 4
        %s466 = scalar_lea.vmem %s10, %s465
        %s467 = smul.u32 2, %s30
        %p468 = scmp.lt.s32.totalorder %s29, 1
        %s469 = scalar_select %p468, %s29, 1
        %p470 = scmp.lt.s32.totalorder %s467, 1
        %s471 = scalar_select %p470, %s467, 1
        %s472 = smul.addr %s469, 2
        %s473 = sadd.s32 %s471, %s472
        %s474 = smul.addr %s473, 4
        %s475 = scalar_lea.vmem %s0, %s474
        %s476 = smul.u32 2, %s30
        %s477 = smul.u32 2, %s30
        %p478 = scmp.lt.s32.totalorder %s29, 1
        %s479 = scalar_select %p478, %s29, 1
        %p480 = scmp.lt.s32.totalorder %s477, 1
        %s481 = scalar_select %p480, %s477, 1
        %s482 = smul.addr %s479, 2
        %s483 = sadd.s32 %s481, %s482
        %s484 = smul.addr %s483, 4
        %s485 = scalar_lea.vmem %s10, %s484
        %s486 = smul.u32 2, %s30
        %p488 = scmp.eq.s32.totalorder %s30, 0
        // Predicated region
        $region85: #{lstm_lm_forward.2} parent=59 // pred_check
          %p489 = pneg %p488
        $region86: #{lstm_lm_forward.2} parent=59 // pred_check_branch
          %491 = sbr.rel (%p489) target = $region88
        $region87: #{lstm_lm_forward.2} parent=59 // pred_region
          %492 = vst [vmem:[#allocation2] sm:$0x1] 0.0
          %493 = vst [vmem:[#allocation3] sm:$0x1] 0.0
          %494 = vst [vmem:[#allocation4] sm:$0x1] 0.0
          %495 = vst [vmem:[#allocation5] sm:$0x1] 0.0
          %496 = vst [vmem:[#allocation6] sm:$0x1] 0.0
          %497 = vst [vmem:[#allocation7] sm:$0x1] 0.0
        $region88: #{lstm_lm_forward.2} parent=59 // pred_fallthru
          _
        %v498 = vld [vmem:[%s475] sm:$0xf]
        %v499 = vld [vmem:[%s475 + $0x4] sm:$0xf]
        %v500 = vld [vmem:[#allocation8] sm:$0xff]
        %v501 = vld [vmem:[#allocation8 + $0x8] sm:$0xff]
        %v502 = vld [vmem:[#allocation8 + $0x10] sm:$0xff]
        %v503 = vld [vmem:[#allocation8 + $0x18] sm:$0xff]
        %v504 = vld [vmem:[#allocation8 + $0x20] sm:$0xff]
        %v505 = vld [vmem:[#allocation8 + $0x28] sm:$0xff]
        %v506 = vld [vmem:[#allocation8 + $0x30] sm:$0xff]
        %v507 = vld [vmem:[#allocation8 + $0x38] sm:$0xff]
        %v508 = vld [vmem:[#allocation8 + $0x40] sm:$0xff]
        %v509 = vld [vmem:[#allocation8 + $0x48] sm:$0xff]
        %v510 = vld [vmem:[#allocation8 + $0x50] sm:$0xff]
        %v511 = vld [vmem:[#allocation8 + $0x58] sm:$0xff]
        %v512 = vld [vmem:[#allocation8 + $0x60] sm:$0xff]
        %v513 = vld [vmem:[#allocation8 + $0x68] sm:$0xff]
        %v514 = vld [vmem:[#allocation8 + $0x70] sm:$0xff]
        %v515 = vld [vmem:[#allocation8 + $0x78] sm:$0xff]
        %v516 = vld [vmem:[#allocation8 + $0x80] sm:$0xff]
        %v517 = vld [vmem:[#allocation8 + $0x88] sm:$0xff]
        %v518 = vld [vmem:[#allocation8 + $0x90] sm:$0xff]
        %v519 = vld [vmem:[#allocation8 + $0x98] sm:$0xff]
        %v520 = vld [vmem:[#allocation8 + $0xa0] sm:$0xff]
        %v521 = vld [vmem:[#allocation8 + $0xa8] sm:$0xff]
        %v522 = vld [vmem:[#allocation8 + $0xb0] sm:$0xff]
        %v523 = vld [vmem:[#allocation8 + $0xb8] sm:$0xff]
        %v524 = vld [vmem:[#allocation8 + $0xc0] sm:$0xff]
        %v525 = vld [vmem:[#allocation8 + $0xc8] sm:$0xff]
        %v526 = vld [vmem:[#allocation8 + $0xd0] sm:$0xff]
        %v527 = vld [vmem:[#allocation8 + $0xd8] sm:$0xff]
        %v528 = vld [vmem:[#allocation8 + $0xe0] sm:$0xff]
        %v529 = vld [vmem:[#allocation8 + $0xe8] sm:$0xff]
        %v530 = vld [vmem:[#allocation8 + $0xf0] sm:$0xff]
        %v531 = vld [vmem:[#allocation8 + $0xf8] sm:$0xff]
        %v532 = vld [vmem:[%s2] sm:$0xf]
        %v534 = vlaneseq
        %v535 = vshrl.u32 %v534, 7
        %v536 = vsub.s32 0, %v535
        %v537 = vrot.slane %v532, %v536
        %v538 = vlaneseq
        %v539 = vshrl.u32 %v538, 7
        %v540 = vsub.s32 1, %v539
        %v541 = vrot.slane %v532, %v540
        %v542 = vlaneseq
        %v543 = vshrl.u32 %v542, 7
        %v544 = vsub.s32 2, %v543
        %v545 = vrot.slane %v532, %v544
        %v546 = vlaneseq
        %v547 = vshrl.u32 %v546, 7
        %v548 = vsub.s32 3, %v547
        %v549 = vrot.slane %v532, %v548
        %v556 = vunpack.c.l.b16 %v498
        %v557 = vunpack.c.l.b16 %v499
        %v558 = vpack.c.b16 %v557, %v556
        %v592 = vunpack.c.l.b16 %v500
        %v593 = vunpack.c.h.b16 %v500
        %v594 = vunpack.c.l.b16 %v501
        %v595 = vunpack.c.h.b16 %v501
        %v596 = vunpack.c.l.b16 %v502
        %v597 = vunpack.c.h.b16 %v502
        %v598 = vunpack.c.l.b16 %v503
        %v599 = vunpack.c.h.b16 %v503
        %v600 = vunpack.c.l.b16 %v504
        %v601 = vunpack.c.h.b16 %v504
        %v602 = vunpack.c.l.b16 %v505
        %v603 = vunpack.c.h.b16 %v505
        %v604 = vunpack.c.l.b16 %v506
        %v605 = vunpack.c.h.b16 %v506
        %v606 = vunpack.c.l.b16 %v507
        %v607 = vunpack.c.h.b16 %v507
        %v608 = vunpack.c.l.b16 %v508
        %v609 = vunpack.c.h.b16 %v508
        %v610 = vunpack.c.l.b16 %v509
        %v611 = vunpack.c.h.b16 %v509
        %v612 = vunpack.c.l.b16 %v510
        %v613 = vunpack.c.h.b16 %v510
        %v614 = vunpack.c.l.b16 %v511
        %v615 = vunpack.c.h.b16 %v511
        %v616 = vunpack.c.l.b16 %v512
        %v617 = vunpack.c.h.b16 %v512
        %v618 = vunpack.c.l.b16 %v513
        %v619 = vunpack.c.h.b16 %v513
        %v620 = vunpack.c.l.b16 %v514
        %v621 = vunpack.c.h.b16 %v514
        %v622 = vunpack.c.l.b16 %v515
        %v623 = vunpack.c.h.b16 %v515
        %v624 = vunpack.c.l.b16 %v516
        %v625 = vunpack.c.h.b16 %v516
        %v626 = vunpack.c.l.b16 %v517
        %v627 = vunpack.c.h.b16 %v517
        %v628 = vunpack.c.l.b16 %v518
        %v629 = vunpack.c.h.b16 %v518
        %v630 = vunpack.c.l.b16 %v519
        %v631 = vunpack.c.h.b16 %v519
        %v632 = vunpack.c.l.b16 %v520
        %v633 = vunpack.c.h.b16 %v520
        %v634 = vunpack.c.l.b16 %v521
        %v635 = vunpack.c.h.b16 %v521
        %v636 = vunpack.c.l.b16 %v522
        %v637 = vunpack.c.h.b16 %v522
        %v638 = vunpack.c.l.b16 %v523
        %v639 = vunpack.c.h.b16 %v523
        %v640 = vunpack.c.l.b16 %v524
        %v641 = vunpack.c.h.b16 %v524
        %v642 = vunpack.c.l.b16 %v525
        %v643 = vunpack.c.h.b16 %v525
        %v644 = vunpack.c.l.b16 %v526
        %v645 = vunpack.c.h.b16 %v526
        %v646 = vunpack.c.l.b16 %v527
        %v647 = vunpack.c.h.b16 %v527
        %v648 = vunpack.c.l.b16 %v528
        %v649 = vunpack.c.h.b16 %v528
        %v650 = vunpack.c.l.b16 %v529
        %v651 = vunpack.c.h.b16 %v529
        %v652 = vunpack.c.l.b16 %v530
        %v653 = vunpack.c.h.b16 %v530
        %v654 = vunpack.c.l.b16 %v531
        %v655 = vunpack.c.h.b16 %v531
        %v656 = vpack.c.b16 %v596, %v592
        %v657 = vpack.c.b16 %v597, %v593
        %v658 = vpack.c.b16 %v598, %v594
        %v659 = vpack.c.b16 %v599, %v595
        %v660 = vpack.c.b16 %v604, %v600
        %v661 = vpack.c.b16 %v605, %v601
        %v662 = vpack.c.b16 %v606, %v602
        %v663 = vpack.c.b16 %v607, %v603
        %v664 = vpack.c.b16 %v612, %v608
        %v665 = vpack.c.b16 %v613, %v609
        %v666 = vpack.c.b16 %v614, %v610
        %v667 = vpack.c.b16 %v615, %v611
        %v668 = vpack.c.b16 %v620, %v616
        %v669 = vpack.c.b16 %v621, %v617
        %v670 = vpack.c.b16 %v622, %v618
        %v671 = vpack.c.b16 %v623, %v619
        %v672 = vpack.c.b16 %v628, %v624
        %v673 = vpack.c.b16 %v629, %v625
        %v674 = vpack.c.b16 %v630, %v626
        %v675 = vpack.c.b16 %v631, %v627
        %v676 = vpack.c.b16 %v636, %v632
        %v677 = vpack.c.b16 %v637, %v633
        %v678 = vpack.c.b16 %v638, %v634
        %v679 = vpack.c.b16 %v639, %v635
        %v680 = vpack.c.b16 %v644, %v640
        %v681 = vpack.c.b16 %v645, %v641
        %v682 = vpack.c.b16 %v646, %v642
        %v683 = vpack.c.b16 %v647, %v643
        %v684 = vpack.c.b16 %v652, %v648
        %v685 = vpack.c.b16 %v653, %v649
        %v686 = vpack.c.b16 %v654, %v650
        %v687 = vpack.c.b16 %v655, %v651
        %720 = vmatprep.subr.bf16.mxu0 %v657
        %721 = vmatpush1.bf16.msra.mxu0 %v656
        %722 = vmatprep.subr.bf16.mxu0 %v661
        %723 = vmatpush1.bf16.msra.mxu0 %v660
        %724 = vmatprep.subr.bf16.mxu0 %v665
        %725 = vmatpush1.bf16.msra.mxu0 %v664
        %726 = vmatprep.subr.bf16.mxu0 %v669
        %727 = vmatpush1.bf16.msra.mxu0 %v668
        %728 = vmatprep.subr.bf16.mxu0 %v673
        %729 = vmatpush1.bf16.msra.mxu0 %v672
        %730 = vmatprep.subr.bf16.mxu0 %v677
        %731 = vmatpush1.bf16.msra.mxu0 %v676
        %732 = vmatprep.subr.bf16.mxu0 %v681
        %733 = vmatpush1.bf16.msra.mxu0 %v680
        %734 = vmatprep.subr.bf16.mxu0 %v685
        %735 = vmatpush1.bf16.msra.mxu0 %v684
        %736 = vmatprep.subr.bf16.mxu0 0
        %737 = vmatpush1.bf16.msra.mxu0 0
        %738 = vmatprep.subr.bf16.mxu0 0
        %739 = vmatpush1.bf16.msra.mxu0 0
        %740 = vmatprep.subr.bf16.mxu0 0
        %741 = vmatpush1.bf16.msra.mxu0 0
        %742 = vmatprep.subr.bf16.mxu0 0
        %743 = vmatpush1.bf16.msra.mxu0 0
        %744 = vmatprep.subr.bf16.mxu0 0
        %745 = vmatpush1.bf16.msra.mxu0 0
        %746 = vmatprep.subr.bf16.mxu0 0
        %747 = vmatpush1.bf16.msra.mxu0 0
        %748 = vmatprep.subr.bf16.mxu0 0
        %749 = vmatpush1.bf16.msra.mxu0 0
        %750 = vmatprep.subr.bf16.mxu0 0
        %751 = vmatpush1.bf16.msra.mxu0 0
        %752 = vmatprep.mubr.bf16.mxu0 0
        %753 = vmatmul.mubr.bf16.gmra.mrb[0].mxu0 %v558
        %v754 = vpop.f32.mrb[0].mxu0
        %v755 = vadd.f32 %v537, %v754
        %v756 = vpop.f32.mrb[0].mxu0
        %v757 = vadd.f32 %v541, %v756
        %v758 = vpop.f32.mrb[0].mxu0
        %v759 = vadd.f32 %v537, %v758
        %v760 = vpop.f32.mrb[0].mxu0
        %v761 = vadd.f32 %v541, %v760
        %762 = vdwg.mxu0
        %763 = vmatprep.subr.bf16.mxu0 %v659
        %764 = vmatpush1.bf16.msra.mxu0 %v658
        %765 = vmatprep.subr.bf16.mxu0 %v663
        %766 = vmatpush1.bf16.msra.mxu0 %v662
        %767 = vmatprep.subr.bf16.mxu0 %v667
        %768 = vmatpush1.bf16.msra.mxu0 %v666
        %769 = vmatprep.subr.bf16.mxu0 %v671
        %770 = vmatpush1.bf16.msra.mxu0 %v670
        %771 = vmatprep.subr.bf16.mxu0 %v675
        %772 = vmatpush1.bf16.msra.mxu0 %v674
        %773 = vmatprep.subr.bf16.mxu0 %v679
        %774 = vmatpush1.bf16.msra.mxu0 %v678
        %775 = vmatprep.subr.bf16.mxu0 %v683
        %776 = vmatpush1.bf16.msra.mxu0 %v682
        %777 = vmatprep.subr.bf16.mxu0 %v687
        %778 = vmatpush1.bf16.msra.mxu0 %v686
        %779 = vmatprep.subr.bf16.mxu0 0
        %780 = vmatpush1.bf16.msra.mxu0 0
        %781 = vmatprep.subr.bf16.mxu0 0
        %782 = vmatpush1.bf16.msra.mxu0 0
        %783 = vmatprep.subr.bf16.mxu0 0
        %784 = vmatpush1.bf16.msra.mxu0 0
        %785 = vmatprep.subr.bf16.mxu0 0
        %786 = vmatpush1.bf16.msra.mxu0 0
        %787 = vmatprep.subr.bf16.mxu0 0
        %788 = vmatpush1.bf16.msra.mxu0 0
        %789 = vmatprep.subr.bf16.mxu0 0
        %790 = vmatpush1.bf16.msra.mxu0 0
        %791 = vmatprep.subr.bf16.mxu0 0
        %792 = vmatpush1.bf16.msra.mxu0 0
        %793 = vmatprep.subr.bf16.mxu0 0
        %794 = vmatpush1.bf16.msra.mxu0 0
        %795 = vmatprep.mubr.bf16.mxu0 0
        %796 = vmatmul.mubr.bf16.gmra.mrb[0].mxu0 %v558
        %v797 = vpop.f32.mrb[0].mxu0
        %v798 = vadd.f32 %v545, %v797
        %v799 = vpop.f32.mrb[0].mxu0
        %v800 = vadd.f32 %v549, %v799
        %v801 = vpop.f32.mrb[0].mxu0
        %v802 = vadd.f32 %v545, %v801
        %v803 = vpop.f32.mrb[0].mxu0
        %v804 = vadd.f32 %v549, %v803
        %805 = vdwg.mxu0
        %v806 = vld [vmem:[#allocation10] sm:$0xff]
        %v807 = vld [vmem:[#allocation10 + $0x8] sm:$0xff]
        %v808 = vld [vmem:[#allocation10 + $0x10] sm:$0xff]
        %v809 = vld [vmem:[#allocation10 + $0x18] sm:$0xff]
        %v810 = vld [vmem:[#allocation10 + $0x20] sm:$0xff]
        %v811 = vld [vmem:[#allocation10 + $0x28] sm:$0xff]
        %v812 = vld [vmem:[#allocation10 + $0x30] sm:$0xff]
        %v813 = vld [vmem:[#allocation10 + $0x38] sm:$0xff]
        %v814 = vld [vmem:[#allocation10 + $0x40] sm:$0xff]
        %v815 = vld [vmem:[#allocation10 + $0x48] sm:$0xff]
        %v816 = vld [vmem:[#allocation10 + $0x50] sm:$0xff]
        %v817 = vld [vmem:[#allocation10 + $0x58] sm:$0xff]
        %v818 = vld [vmem:[#allocation10 + $0x60] sm:$0xff]
        %v819 = vld [vmem:[#allocation10 + $0x68] sm:$0xff]
        %v820 = vld [vmem:[#allocation10 + $0x70] sm:$0xff]
        %v821 = vld [vmem:[#allocation10 + $0x78] sm:$0xff]
        %v822 = vld [vmem:[#allocation10 + $0x80] sm:$0xff]
        %v823 = vld [vmem:[#allocation10 + $0x88] sm:$0xff]
        %v824 = vld [vmem:[#allocation10 + $0x90] sm:$0xff]
        %v825 = vld [vmem:[#allocation10 + $0x98] sm:$0xff]
        %v826 = vld [vmem:[#allocation10 + $0xa0] sm:$0xff]
        %v827 = vld [vmem:[#allocation10 + $0xa8] sm:$0xff]
        %v828 = vld [vmem:[#allocation10 + $0xb0] sm:$0xff]
        %v829 = vld [vmem:[#allocation10 + $0xb8] sm:$0xff]
        %v830 = vld [vmem:[#allocation10 + $0xc0] sm:$0xff]
        %v831 = vld [vmem:[#allocation10 + $0xc8] sm:$0xff]
        %v832 = vld [vmem:[#allocation10 + $0xd0] sm:$0xff]
        %v833 = vld [vmem:[#allocation10 + $0xd8] sm:$0xff]
        %v834 = vld [vmem:[#allocation10 + $0xe0] sm:$0xff]
        %v835 = vld [vmem:[#allocation10 + $0xe8] sm:$0xff]
        %v836 = vld [vmem:[#allocation10 + $0xf0] sm:$0xff]
        %v837 = vld [vmem:[#allocation10 + $0xf8] sm:$0xff]
        %v838 = vld [vmem:[#allocation2] sm:$0x1]
        %v839 = vld [vmem:[#allocation3] sm:$0x1]
        %v840 = vpack.c.bf16 %v838, %v838
        %v873 = vunpack.c.l.b16 %v806
        %v874 = vunpack.c.h.b16 %v806
        %v875 = vunpack.c.l.b16 %v807
        %v876 = vunpack.c.h.b16 %v807
        %v877 = vunpack.c.l.b16 %v808
        %v878 = vunpack.c.h.b16 %v808
        %v879 = vunpack.c.l.b16 %v809
        %v880 = vunpack.c.h.b16 %v809
        %v881 = vunpack.c.l.b16 %v810
        %v882 = vunpack.c.h.b16 %v810
        %v883 = vunpack.c.l.b16 %v811
        %v884 = vunpack.c.h.b16 %v811
        %v885 = vunpack.c.l.b16 %v812
        %v886 = vunpack.c.h.b16 %v812
        %v887 = vunpack.c.l.b16 %v813
        %v888 = vunpack.c.h.b16 %v813
        %v889 = vunpack.c.l.b16 %v814
        %v890 = vunpack.c.h.b16 %v814
        %v891 = vunpack.c.l.b16 %v815
        %v892 = vunpack.c.h.b16 %v815
        %v893 = vunpack.c.l.b16 %v816
        %v894 = vunpack.c.h.b16 %v816
        %v895 = vunpack.c.l.b16 %v817
        %v896 = vunpack.c.h.b16 %v817
        %v897 = vunpack.c.l.b16 %v818
        %v898 = vunpack.c.h.b16 %v818
        %v899 = vunpack.c.l.b16 %v819
        %v900 = vunpack.c.h.b16 %v819
        %v901 = vunpack.c.l.b16 %v820
        %v902 = vunpack.c.h.b16 %v820
        %v903 = vunpack.c.l.b16 %v821
        %v904 = vunpack.c.h.b16 %v821
        %v905 = vunpack.c.l.b16 %v822
        %v906 = vunpack.c.h.b16 %v822
        %v907 = vunpack.c.l.b16 %v823
        %v908 = vunpack.c.h.b16 %v823
        %v909 = vunpack.c.l.b16 %v824
        %v910 = vunpack.c.h.b16 %v824
        %v911 = vunpack.c.l.b16 %v825
        %v912 = vunpack.c.h.b16 %v825
        %v913 = vunpack.c.l.b16 %v826
        %v914 = vunpack.c.h.b16 %v826
        %v915 = vunpack.c.l.b16 %v827
        %v916 = vunpack.c.h.b16 %v827
        %v917 = vunpack.c.l.b16 %v828
        %v918 = vunpack.c.h.b16 %v828
        %v919 = vunpack.c.l.b16 %v829
        %v920 = vunpack.c.h.b16 %v829
        %v921 = vunpack.c.l.b16 %v830
        %v922 = vunpack.c.h.b16 %v830
        %v923 = vunpack.c.l.b16 %v831
        %v924 = vunpack.c.h.b16 %v831
        %v925 = vunpack.c.l.b16 %v832
        %v926 = vunpack.c.h.b16 %v832
        %v927 = vunpack.c.l.b16 %v833
        %v928 = vunpack.c.h.b16 %v833
        %v929 = vunpack.c.l.b16 %v834
        %v930 = vunpack.c.h.b16 %v834
        %v931 = vunpack.c.l.b16 %v835
        %v932 = vunpack.c.h.b16 %v835
        %v933 = vunpack.c.l.b16 %v836
        %v934 = vunpack.c.h.b16 %v836
        %v935 = vunpack.c.l.b16 %v837
        %v936 = vunpack.c.h.b16 %v837
        %v937 = vpack.c.b16 %v877, %v873
        %v938 = vpack.c.b16 %v878, %v874
        %v939 = vpack.c.b16 %v879, %v875
        %v940 = vpack.c.b16 %v880, %v876
        %v941 = vpack.c.b16 %v885, %v881
        %v942 = vpack.c.b16 %v886, %v882
        %v943 = vpack.c.b16 %v887, %v883
        %v944 = vpack.c.b16 %v888, %v884
        %v945 = vpack.c.b16 %v893, %v889
        %v946 = vpack.c.b16 %v894, %v890
        %v947 = vpack.c.b16 %v895, %v891
        %v948 = vpack.c.b16 %v896, %v892
        %v949 = vpack.c.b16 %v901, %v897
        %v950 = vpack.c.b16 %v902, %v898
        %v951 = vpack.c.b16 %v903, %v899
        %v952 = vpack.c.b16 %v904, %v900
        %v953 = vpack.c.b16 %v909, %v905
        %v954 = vpack.c.b16 %v910, %v906
        %v955 = vpack.c.b16 %v911, %v907
        %v956 = vpack.c.b16 %v912, %v908
        %v957 = vpack.c.b16 %v917, %v913
        %v958 = vpack.c.b16 %v918, %v914
        %v959 = vpack.c.b16 %v919, %v915
        %v960 = vpack.c.b16 %v920, %v916
        %v961 = vpack.c.b16 %v925, %v921
        %v962 = vpack.c.b16 %v926, %v922
        %v963 = vpack.c.b16 %v927, %v923
        %v964 = vpack.c.b16 %v928, %v924
        %v965 = vpack.c.b16 %v933, %v929
        %v966 = vpack.c.b16 %v934, %v930
        %v967 = vpack.c.b16 %v935, %v931
        %v968 = vpack.c.b16 %v936, %v932
        %1001 = vmatprep.subr.bf16.mxu0 %v938
        %1002 = vmatpush1.bf16.msra.mxu0 %v937
        %1003 = vmatprep.subr.bf16.mxu0 %v942
        %1004 = vmatpush1.bf16.msra.mxu0 %v941
        %1005 = vmatprep.subr.bf16.mxu0 %v946
        %1006 = vmatpush1.bf16.msra.mxu0 %v945
        %1007 = vmatprep.subr.bf16.mxu0 %v950
        %1008 = vmatpush1.bf16.msra.mxu0 %v949
        %1009 = vmatprep.subr.bf16.mxu0 %v954
        %1010 = vmatpush1.bf16.msra.mxu0 %v953
        %1011 = vmatprep.subr.bf16.mxu0 %v958
        %1012 = vmatpush1.bf16.msra.mxu0 %v957
        %1013 = vmatprep.subr.bf16.mxu0 %v962
        %1014 = vmatpush1.bf16.msra.mxu0 %v961
        %1015 = vmatprep.subr.bf16.mxu0 %v966
        %1016 = vmatpush1.bf16.msra.mxu0 %v965
        %1017 = vmatprep.subr.bf16.mxu0 0
        %1018 = vmatpush1.bf16.msra.mxu0 0
        %1019 = vmatprep.subr.bf16.mxu0 0
        %1020 = vmatpush1.bf16.msra.mxu0 0
        %1021 = vmatprep.subr.bf16.mxu0 0
        %1022 = vmatpush1.bf16.msra.mxu0 0
        %1023 = vmatprep.subr.bf16.mxu0 0
        %1024 = vmatpush1.bf16.msra.mxu0 0
        %1025 = vmatprep.subr.bf16.mxu0 0
        %1026 = vmatpush1.bf16.msra.mxu0 0
        %1027 = vmatprep.subr.bf16.mxu0 0
        %1028 = vmatpush1.bf16.msra.mxu0 0
        %1029 = vmatprep.subr.bf16.mxu0 0
        %1030 = vmatpush1.bf16.msra.mxu0 0
        %1031 = vmatprep.subr.bf16.mxu0 0
        %1032 = vmatpush1.bf16.msra.mxu0 0
        %1033 = vmatprep.mubr.bf16.mxu0 0
        %1034 = vmatmul.mubr.bf16.gmra.mrb[0].mxu0 %v840
        %v1035 = vpop.f32.mrb[0].mxu0
        %v1036 = vadd.f32 0.0, %v1035
        %v1037 = vpop.f32.mrb[0].mxu0
        %v1038 = vadd.f32 0.0, %v1037
        %v1039 = vpop.f32.mrb[0].mxu0
        %v1040 = vpop.f32.mrb[0].mxu0
        %1041 = vdwg.mxu0
        %1042 = vmatprep.subr.bf16.mxu0 %v940
        %1043 = vmatpush1.bf16.msra.mxu0 %v939
        %1044 = vmatprep.subr.bf16.mxu0 %v944
        %1045 = vmatpush1.bf16.msra.mxu0 %v943
        %1046 = vmatprep.subr.bf16.mxu0 %v948
        %1047 = vmatpush1.bf16.msra.mxu0 %v947
        %1048 = vmatprep.subr.bf16.mxu0 %v952
        %1049 = vmatpush1.bf16.msra.mxu0 %v951
        %1050 = vmatprep.subr.bf16.mxu0 %v956
        %1051 = vmatpush1.bf16.msra.mxu0 %v955
        %1052 = vmatprep.subr.bf16.mxu0 %v960
        %1053 = vmatpush1.bf16.msra.mxu0 %v959
        %1054 = vmatprep.subr.bf16.mxu0 %v964
        %1055 = vmatpush1.bf16.msra.mxu0 %v963
        %1056 = vmatprep.subr.bf16.mxu0 %v968
        %1057 = vmatpush1.bf16.msra.mxu0 %v967
        %1058 = vmatprep.subr.bf16.mxu0 0
        %1059 = vmatpush1.bf16.msra.mxu0 0
        %1060 = vmatprep.subr.bf16.mxu0 0
        %1061 = vmatpush1.bf16.msra.mxu0 0
        %1062 = vmatprep.subr.bf16.mxu0 0
        %1063 = vmatpush1.bf16.msra.mxu0 0
        %1064 = vmatprep.subr.bf16.mxu0 0
        %1065 = vmatpush1.bf16.msra.mxu0 0
        %1066 = vmatprep.subr.bf16.mxu0 0
        %1067 = vmatpush1.bf16.msra.mxu0 0
        %1068 = vmatprep.subr.bf16.mxu0 0
        %1069 = vmatpush1.bf16.msra.mxu0 0
        %1070 = vmatprep.subr.bf16.mxu0 0
        %1071 = vmatpush1.bf16.msra.mxu0 0
        %1072 = vmatprep.subr.bf16.mxu0 0
        %1073 = vmatpush1.bf16.msra.mxu0 0
        %1074 = vmatprep.mubr.bf16.mxu0 0
        %1075 = vmatmul.mubr.bf16.gmra.mrb[0].mxu0 %v840
        %v1076 = vpop.f32.mrb[0].mxu0
        %v1077 = vadd.f32 0.0, %v1076
        %v1078 = vpop.f32.mrb[0].mxu0
        %v1079 = vadd.f32 0.0, %v1078
        %v1080 = vpop.f32.mrb[0].mxu0
        %v1081 = vpop.f32.mrb[0].mxu0
        %1082 = vdwg.mxu0
        %v1083 = vadd.f32 %v755, %v1036
        %v1084 = vadd.f32 %v757, %v1038
        %v1085 = vadd.f32 %v798, %v1077
        %v1086 = vadd.f32 %v800, %v1079
        %v1087 = vxor.u32 %v1083, 2147483648
        %v1088 = vmul.f32 %v1087, 1.442695
        %v1089 = vpow.pop %v1088
        %v1090 = vadd.f32 %v1089, 1.0
        %v1091 = vrcp.pop %v1090
        %v1092 = vmul.f32 1.0, %v1091
        %v1093 = vxor.u32 %v1084, 2147483648
        %v1094 = vmul.f32 %v1093, 1.442695
        %v1095 = vpow.pop %v1094
        %v1096 = vadd.f32 %v1095, 1.0
        %v1097 = vrcp.pop %v1096
        %v1098 = vmul.f32 1.0, %v1097
        %v1099 = vtanh.pop %v1085
        %v1100 = vxor.u32 %v1086, 2147483648
        %v1101 = vmul.f32 %v1100, 1.442695
        %v1102 = vpow.pop %v1101
        %v1103 = vadd.f32 %v1102, 1.0
        %v1104 = vrcp.pop %v1103
        %v1105 = vmul.f32 1.0, %v1104
        %v1106 = vmul.f32 %v1098, %v839
        %v1107 = vmul.f32 %v1092, %v1099
        %v1108 = vadd.f32 %v1106, %v1107
        %v1109 = vtanh.pop %v1108
        %v1110 = vmul.f32 %v1105, %v1109
        %v1111 = vpack.c.bf16 %v1110, %v1110
        %1112 = vmatprep.subr.bf16.mxu0 %v938
        %1113 = vmatpush1.bf16.msra.mxu0 %v937
        %1114 = vmatprep.subr.bf16.mxu0 %v942
        %1115 = vmatpush1.bf16.msra.mxu0 %v941
        %1116 = vmatprep.subr.bf16.mxu0 %v946
        %1117 = vmatpush1.bf16.msra.mxu0 %v945
        %1118 = vmatprep.subr.bf16.mxu0 %v950
        %1119 = vmatpush1.bf16.msra.mxu0 %v949
        %1120 = vmatprep.subr.bf16.mxu0 %v954
        %1121 = vmatpush1.bf16.msra.mxu0 %v953
        %1122 = vmatprep.subr.bf16.mxu0 %v958
        %1123 = vmatpush1.bf16.msra.mxu0 %v957
        %1124 = vmatprep.subr.bf16.mxu0 %v962
        %1125 = vmatpush1.bf16.msra.mxu0 %v961
        %1126 = vmatprep.subr.bf16.mxu0 %v966
        %1127 = vmatpush1.bf16.msra.mxu0 %v965
        %1128 = vmatprep.subr.bf16.mxu0 0
        %1129 = vmatpush1.bf16.msra.mxu0 0
        %1130 = vmatprep.subr.bf16.mxu0 0
        %1131 = vmatpush1.bf16.msra.mxu0 0
        %1132 = vmatprep.subr.bf16.mxu0 0
        %1133 = vmatpush1.bf16.msra.mxu0 0
        %1134 = vmatprep.subr.bf16.mxu0 0
        %1135 = vmatpush1.bf16.msra.mxu0 0
        %1136 = vmatprep.subr.bf16.mxu0 0
        %1137 = vmatpush1.bf16.msra.mxu0 0
        %1138 = vmatprep.subr.bf16.mxu0 0
        %1139 = vmatpush1.bf16.msra.mxu0 0
        %1140 = vmatprep.subr.bf16.mxu0 0
        %1141 = vmatpush1.bf16.msra.mxu0 0
        %1142 = vmatprep.subr.bf16.mxu0 0
        %1143 = vmatpush1.bf16.msra.mxu0 0
        %1144 = vmatprep.mubr.bf16.mxu0 0
        %1145 = vmatmul.mubr.bf16.gmra.mrb[0].mxu0 %v1111
        %v1146 = vpop.f32.mrb[0].mxu0
        %v1147 = vadd.f32 0.0, %v1146
        %v1148 = vpop.f32.mrb[0].mxu0
        %v1149 = vadd.f32 0.0, %v1148
        %v1150 = vpop.f32.mrb[0].mxu0
        %v1151 = vpop.f32.mrb[0].mxu0
        %1152 = vdwg.mxu0
        %1153 = vmatprep.subr.bf16.mxu0 %v940
        %1154 = vmatpush1.bf16.msra.mxu0 %v939
        %1155 = vmatprep.subr.bf16.mxu0 %v944
        %1156 = vmatpush1.bf16.msra.mxu0 %v943
        %1157 = vmatprep.subr.bf16.mxu0 %v948
        %1158 = vmatpush1.bf16.msra.mxu0 %v947
        %1159 = vmatprep.subr.bf16.mxu0 %v952
        %1160 = vmatpush1.bf16.msra.mxu0 %v951
        %1161 = vmatprep.subr.bf16.mxu0 %v956
        %1162 = vmatpush1.bf16.msra.mxu0 %v955
        %1163 = vmatprep.subr.bf16.mxu0 %v960
        %1164 = vmatpush1.bf16.msra.mxu0 %v959
        %1165 = vmatprep.subr.bf16.mxu0 %v964
        %1166 = vmatpush1.bf16.msra.mxu0 %v963
        %1167 = vmatprep.subr.bf16.mxu0 %v968
        %1168 = vmatpush1.bf16.msra.mxu0 %v967
        %1169 = vmatprep.subr.bf16.mxu0 0
        %1170 = vmatpush1.bf16.msra.mxu0 0
        %1171 = vmatprep.subr.bf16.mxu0 0
        %1172 = vmatpush1.bf16.msra.mxu0 0
        %1173 = vmatprep.subr.bf16.mxu0 0
        %1174 = vmatpush1.bf16.msra.mxu0 0
        %1175 = vmatprep.subr.bf16.mxu0 0
        %1176 = vmatpush1.bf16.msra.mxu0 0
        %1177 = vmatprep.subr.bf16.mxu0 0
        %1178 = vmatpush1.bf16.msra.mxu0 0
        %1179 = vmatprep.subr.bf16.mxu0 0
        %1180 = vmatpush1.bf16.msra.mxu0 0
        %1181 = vmatprep.subr.bf16.mxu0 0
        %1182 = vmatpush1.bf16.msra.mxu0 0
        %1183 = vmatprep.subr.bf16.mxu0 0
        %1184 = vmatpush1.bf16.msra.mxu0 0
        %1185 = vmatprep.mubr.bf16.mxu0 0
        %1186 = vmatmul.mubr.bf16.gmra.mrb[0].mxu0 %v1111
        %v1187 = vpop.f32.mrb[0].mxu0
        %v1188 = vadd.f32 0.0, %v1187
        %v1189 = vpop.f32.mrb[0].mxu0
        %v1190 = vadd.f32 0.0, %v1189
        %v1191 = vpop.f32.mrb[0].mxu0
        %v1192 = vpop.f32.mrb[0].mxu0
        %1193 = vdwg.mxu0
        %v1198 = vrot.slane %v1147, 7
        %v1199 = vrot.slane %v1149, 7
        %v1200 = vrot.slane %v1188, 7
        %v1201 = vrot.slane %v1190, 7
        %v1206 = vadd.f32 %v755, %v1198
        %v1207 = vadd.f32 %v757, %v1199
        %v1208 = vadd.f32 %v798, %v1200
        %v1209 = vadd.f32 %v800, %v1201
        %v1210 = vxor.u32 %v1206, 2147483648
        %v1211 = vmul.f32 %v1210, 1.442695
        %v1212 = vpow.pop %v1211
        %v1213 = vadd.f32 %v1212, 1.0
        %v1214 = vrcp.pop %v1213
        %v1215 = vmul.f32 1.0, %v1214
        %v1216 = vxor.u32 %v1207, 2147483648
        %v1217 = vmul.f32 %v1216, 1.442695
        %v1218 = vpow.pop %v1217
        %v1219 = vadd.f32 %v1218, 1.0
        %v1220 = vrcp.pop %v1219
        %v1221 = vmul.f32 1.0, %v1220
        %v1222 = vtanh.pop %v1208
        %v1223 = vxor.u32 %v1209, 2147483648
        %v1224 = vmul.f32 %v1223, 1.442695
        %v1225 = vpow.pop %v1224
        %v1226 = vadd.f32 %v1225, 1.0
        %v1227 = vrcp.pop %v1226
        %v1228 = vmul.f32 1.0, %v1227
        %v1230 = vrot.slane %v1108, 7
        %v1232 = vmul.f32 %v1221, %v1230
        %v1233 = vmul.f32 %v1215, %v1222
        %v1234 = vadd.f32 %v1232, %v1233
        %v1235 = vtanh.pop %v1234
        %v1236 = vmul.f32 %v1228, %v1235
        %v1237 = vpack.c.bf16 %v1236, %v1236
        %v1239 = vshrl.u32 %v1237, 16
        %1242 = vmatprep.subr.bf16.mxu0 %v938
        %1243 = vmatpush1.bf16.msra.mxu0 %v937
        %1244 = vmatprep.subr.bf16.mxu0 %v942
        %1245 = vmatpush1.bf16.msra.mxu0 %v941
        %1246 = vmatprep.subr.bf16.mxu0 %v946
        %1247 = vmatpush1.bf16.msra.mxu0 %v945
        %1248 = vmatprep.subr.bf16.mxu0 %v950
        %1249 = vmatpush1.bf16.msra.mxu0 %v949
        %1250 = vmatprep.subr.bf16.mxu0 %v954
        %1251 = vmatpush1.bf16.msra.mxu0 %v953
        %1252 = vmatprep.subr.bf16.mxu0 %v958
        %1253 = vmatpush1.bf16.msra.mxu0 %v957
        %1254 = vmatprep.subr.bf16.mxu0 %v962
        %1255 = vmatpush1.bf16.msra.mxu0 %v961
        %1256 = vmatprep.subr.bf16.mxu0 %v966
        %1257 = vmatpush1.bf16.msra.mxu0 %v965
        %1258 = vmatprep.subr.bf16.mxu0 0
        %1259 = vmatpush1.bf16.msra.mxu0 0
        %1260 = vmatprep.subr.bf16.mxu0 0
        %1261 = vmatpush1.bf16.msra.mxu0 0
        %1262 = vmatprep.subr.bf16.mxu0 0
        %1263 = vmatpush1.bf16.msra.mxu0 0
        %1264 = vmatprep.subr.bf16.mxu0 0
        %1265 = vmatpush1.bf16.msra.mxu0 0
        %1266 = vmatprep.subr.bf16.mxu0 0
        %1267 = vmatpush1.bf16.msra.mxu0 0
        %1268 = vmatprep.subr.bf16.mxu0 0
        %1269 = vmatpush1.bf16.msra.mxu0 0
        %1270 = vmatprep.subr.bf16.mxu0 0
        %1271 = vmatpush1.bf16.msra.mxu0 0
        %1272 = vmatprep.subr.bf16.mxu0 0
        %1273 = vmatpush1.bf16.msra.mxu0 0
        %1274 = vmatprep.mubr.bf16.mxu0 0
        %1275 = vmatmul.mubr.bf16.gmra.mrb[0].mxu0 %v1239
        %v1276 = vpop.f32.mrb[0].mxu0
        %v1277 = vadd.f32 0.0, %v1276
        %v1278 = vpop.f32.mrb[0].mxu0
        %v1279 = vadd.f32 0.0, %v1278
        %v1280 = vpop.f32.mrb[0].mxu0
        %v1281 = vpop.f32.mrb[0].mxu0
        %1282 = vdwg.mxu0
        %1283 = vmatprep.subr.bf16.mxu0 %v940
        %1284 = vmatpush1.bf16.msra.mxu0 %v939
        %1285 = vmatprep.subr.bf16.mxu0 %v944
        %1286 = vmatpush1.bf16.msra.mxu0 %v943
        %1287 = vmatprep.subr.bf16.mxu0 %v948
        %1288 = vmatpush1.bf16.msra.mxu0 %v947
        %1289 = vmatprep.subr.bf16.mxu0 %v952
        %1290 = vmatpush1.bf16.msra.mxu0 %v951
        %1291 = vmatprep.subr.bf16.mxu0 %v956
        %1292 = vmatpush1.bf16.msra.mxu0 %v955
        %1293 = vmatprep.subr.bf16.mxu0 %v960
        %1294 = vmatpush1.bf16.msra.mxu0 %v959
        %1295 = vmatprep.subr.bf16.mxu0 %v964
        %1296 = vmatpush1.bf16.msra.mxu0 %v963
        %1297 = vmatprep.subr.bf16.mxu0 %v968
        %1298 = vmatpush1.bf16.msra.mxu0 %v967
        %1299 = vmatprep.subr.bf16.mxu0 0
        %1300 = vmatpush1.bf16.msra.mxu0 0
        %1301 = vmatprep.subr.bf16.mxu0 0
        %1302 = vmatpush1.bf16.msra.mxu0 0
        %1303 = vmatprep.subr.bf16.mxu0 0
        %1304 = vmatpush1.bf16.msra.mxu0 0
        %1305 = vmatprep.subr.bf16.mxu0 0
        %1306 = vmatpush1.bf16.msra.mxu0 0
        %1307 = vmatprep.subr.bf16.mxu0 0
        %1308 = vmatpush1.bf16.msra.mxu0 0
        %1309 = vmatprep.subr.bf16.mxu0 0
        %1310 = vmatpush1.bf16.msra.mxu0 0
        %1311 = vmatprep.subr.bf16.mxu0 0
        %1312 = vmatpush1.bf16.msra.mxu0 0
        %1313 = vmatprep.subr.bf16.mxu0 0
        %1314 = vmatpush1.bf16.msra.mxu0 0
        %1315 = vmatprep.mubr.bf16.mxu0 0
        %1316 = vmatmul.mubr.bf16.gmra.mrb[0].mxu0 %v1239
        %v1317 = vpop.f32.mrb[0].mxu0
        %v1318 = vadd.f32 0.0, %v1317
        %v1319 = vpop.f32.mrb[0].mxu0
        %v1320 = vadd.f32 0.0, %v1319
        %v1321 = vpop.f32.mrb[0].mxu0
        %v1322 = vpop.f32.mrb[0].mxu0
        %1323 = vdwg.mxu0
        %v1328 = vrot.slane %v1277, 6
        %v1329 = vrot.slane %v1279, 6
        %v1330 = vrot.slane %v1318, 6
        %v1331 = vrot.slane %v1320, 6
        %v1336 = vadd.f32 %v755, %v1328
        %v1337 = vadd.f32 %v757, %v1329
        %v1338 = vadd.f32 %v798, %v1330
        %v1339 = vadd.f32 %v800, %v1331
        %v1340 = vxor.u32 %v1336, 2147483648
        %v1341 = vmul.f32 %v1340, 1.442695
        %v1342 = vpow.pop %v1341
        %v1343 = vadd.f32 %v1342, 1.0
        %v1344 = vrcp.pop %v1343
        %v1345 = vmul.f32 1.0, %v1344
        %v1346 = vxor.u32 %v1337, 2147483648
        %v1347 = vmul.f32 %v1346, 1.442695
        %v1348 = vpow.pop %v1347
        %v1349 = vadd.f32 %v1348, 1.0
        %v1350 = vrcp.pop %v1349
        %v1351 = vmul.f32 1.0, %v1350
        %v1352 = vtanh.pop %v1338
        %v1353 = vxor.u32 %v1339, 2147483648
        %v1354 = vmul.f32 %v1353, 1.442695
        %v1355 = vpow.pop %v1354
        %v1356 = vadd.f32 %v1355, 1.0
        %v1357 = vrcp.pop %v1356
        %v1358 = vmul.f32 1.0, %v1357
        %v1360 = vrot.slane %v1234, 7
        %v1362 = vmul.f32 %v1351, %v1360
        %v1363 = vmul.f32 %v1345, %v1352
        %v1364 = vadd.f32 %v1362, %v1363
        %v1365 = vtanh.pop %v1364
        %v1366 = vmul.f32 %v1358, %v1365
        %v1367 = vpack.c.bf16 %v1366, %v1366
        %v1369 = vrot.slane %v1367, 1
        %1371 = vmatprep.subr.bf16.mxu0 %v938
        %1372 = vmatpush1.bf16.msra.mxu0 %v937
        %1373 = vmatprep.subr.bf16.mxu0 %v942
        %1374 = vmatpush1.bf16.msra.mxu0 %v941
        %1375 = vmatprep.subr.bf16.mxu0 %v946
        %1376 = vmatpush1.bf16.msra.mxu0 %v945
        %1377 = vmatprep.subr.bf16.mxu0 %v950
        %1378 = vmatpush1.bf16.msra.mxu0 %v949
        %1379 = vmatprep.subr.bf16.mxu0 %v954
        %1380 = vmatpush1.bf16.msra.mxu0 %v953
        %1381 = vmatprep.subr.bf16.mxu0 %v958
        %1382 = vmatpush1.bf16.msra.mxu0 %v957
        %1383 = vmatprep.subr.bf16.mxu0 %v962
        %1384 = vmatpush1.bf16.msra.mxu0 %v961
        %1385 = vmatprep.subr.bf16.mxu0 %v966
        %1386 = vmatpush1.bf16.msra.mxu0 %v965
        %1387 = vmatprep.subr.bf16.mxu0 0
        %1388 = vmatpush1.bf16.msra.mxu0 0
        %1389 = vmatprep.subr.bf16.mxu0 0
        %1390 = vmatpush1.bf16.msra.mxu0 0
        %1391 = vmatprep.subr.bf16.mxu0 0
        %1392 = vmatpush1.bf16.msra.mxu0 0
        %1393 = vmatprep.subr.bf16.mxu0 0
        %1394 = vmatpush1.bf16.msra.mxu0 0
        %1395 = vmatprep.subr.bf16.mxu0 0
        %1396 = vmatpush1.bf16.msra.mxu0 0
        %1397 = vmatprep.subr.bf16.mxu0 0
        %1398 = vmatpush1.bf16.msra.mxu0 0
        %1399 = vmatprep.subr.bf16.mxu0 0
        %1400 = vmatpush1.bf16.msra.mxu0 0
        %1401 = vmatprep.subr.bf16.mxu0 0
        %1402 = vmatpush1.bf16.msra.mxu0 0
        %1403 = vmatprep.mubr.bf16.mxu0 0
        %1404 = vmatmul.mubr.bf16.gmra.mrb[0].mxu0 %v1369
        %v1405 = vpop.f32.mrb[0].mxu0
        %v1406 = vadd.f32 0.0, %v1405
        %v1407 = vpop.f32.mrb[0].mxu0
        %v1408 = vadd.f32 0.0, %v1407
        %v1409 = vpop.f32.mrb[0].mxu0
        %v1410 = vpop.f32.mrb[0].mxu0
        %1411 = vdwg.mxu0
        %1412 = vmatprep.subr.bf16.mxu0 %v940
        %1413 = vmatpush1.bf16.msra.mxu0 %v939
        %1414 = vmatprep.subr.bf16.mxu0 %v944
        %1415 = vmatpush1.bf16.msra.mxu0 %v943
        %1416 = vmatprep.subr.bf16.mxu0 %v948
        %1417 = vmatpush1.bf16.msra.mxu0 %v947
        %1418 = vmatprep.subr.bf16.mxu0 %v952
        %1419 = vmatpush1.bf16.msra.mxu0 %v951
        %1420 = vmatprep.subr.bf16.mxu0 %v956
        %1421 = vmatpush1.bf16.msra.mxu0 %v955
        %1422 = vmatprep.subr.bf16.mxu0 %v960
        %1423 = vmatpush1.bf16.msra.mxu0 %v959
        %1424 = vmatprep.subr.bf16.mxu0 %v964
        %1425 = vmatpush1.bf16.msra.mxu0 %v963
        %1426 = vmatprep.subr.bf16.mxu0 %v968
        %1427 = vmatpush1.bf16.msra.mxu0 %v967
        %1428 = vmatprep.subr.bf16.mxu0 0
        %1429 = vmatpush1.bf16.msra.mxu0 0
        %1430 = vmatprep.subr.bf16.mxu0 0
        %1431 = vmatpush1.bf16.msra.mxu0 0
        %1432 = vmatprep.subr.bf16.mxu0 0
        %1433 = vmatpush1.bf16.msra.mxu0 0
        %1434 = vmatprep.subr.bf16.mxu0 0
        %1435 = vmatpush1.bf16.msra.mxu0 0
        %1436 = vmatprep.subr.bf16.mxu0 0
        %1437 = vmatpush1.bf16.msra.mxu0 0
        %1438 = vmatprep.subr.bf16.mxu0 0
        %1439 = vmatpush1.bf16.msra.mxu0 0
        %1440 = vmatprep.subr.bf16.mxu0 0
        %1441 = vmatpush1.bf16.msra.mxu0 0
        %1442 = vmatprep.subr.bf16.mxu0 0
        %1443 = vmatpush1.bf16.msra.mxu0 0
        %1444 = vmatprep.mubr.bf16.mxu0 0
        %1445 = vmatmul.mubr.bf16.gmra.mrb[0].mxu0 %v1369
        %v1446 = vpop.f32.mrb[0].mxu0
        %v1447 = vadd.f32 0.0, %v1446
        %v1448 = vpop.f32.mrb[0].mxu0
        %v1449 = vadd.f32 0.0, %v1448
        %v1450 = vpop.f32.mrb[0].mxu0
        %v1451 = vpop.f32.mrb[0].mxu0
        %1452 = vdwg.mxu0
        %v1457 = vrot.slane %v1406, 5
        %v1458 = vrot.slane %v1408, 5
        %v1459 = vrot.slane %v1447, 5
        %v1460 = vrot.slane %v1449, 5
        %v1465 = vadd.f32 %v755, %v1457
        %v1466 = vadd.f32 %v757, %v1458
        %v1467 = vadd.f32 %v798, %v1459
        %v1468 = vadd.f32 %v800, %v1460
        %v1469 = vxor.u32 %v1465, 2147483648
        %v1470 = vmul.f32 %v1469, 1.442695
        %v1471 = vpow.pop %v1470
        %v1472 = vadd.f32 %v1471, 1.0
        %v1473 = vrcp.pop %v1472
        %v1474 = vmul.f32 1.0, %v1473
        %v1475 = vxor.u32 %v1466, 2147483648
        %v1476 = vmul.f32 %v1475, 1.442695
        %v1477 = vpow.pop %v1476
        %v1478 = vadd.f32 %v1477, 1.0
        %v1479 = vrcp.pop %v1478
        %v1480 = vmul.f32 1.0, %v1479
        %v1481 = vtanh.pop %v1467
        %v1482 = vxor.u32 %v1468, 2147483648
        %v1483 = vmul.f32 %v1482, 1.442695
        %v1484 = vpow.pop %v1483
        %v1485 = vadd.f32 %v1484, 1.0
        %v1486 = vrcp.pop %v1485
        %v1487 = vmul.f32 1.0, %v1486
        %v1489 = vrot.slane %v1364, 7
        %v1491 = vmul.f32 %v1480, %v1489
        %v1492 = vmul.f32 %v1474, %v1481
        %v1493 = vadd.f32 %v1491, %v1492
        %v1494 = vtanh.pop %v1493
        %v1495 = vmul.f32 %v1487, %v1494
        %v1496 = vpack.c.bf16 %v1495, %v1495
        %v1498 = vshrl.u32 %v1496, 16
        %v1500 = vrot.slane %v1498, 1
        %1502 = vmatprep.subr.bf16.mxu0 %v938
        %1503 = vmatpush1.bf16.msra.mxu0 %v937
        %1504 = vmatprep.subr.bf16.mxu0 %v942
        %1505 = vmatpush1.bf16.msra.mxu0 %v941
        %1506 = vmatprep.subr.bf16.mxu0 %v946
        %1507 = vmatpush1.bf16.msra.mxu0 %v945
        %1508 = vmatprep.subr.bf16.mxu0 %v950
        %1509 = vmatpush1.bf16.msra.mxu0 %v949
        %1510 = vmatprep.subr.bf16.mxu0 %v954
        %1511 = vmatpush1.bf16.msra.mxu0 %v953
        %1512 = vmatprep.subr.bf16.mxu0 %v958
        %1513 = vmatpush1.bf16.msra.mxu0 %v957
        %1514 = vmatprep.subr.bf16.mxu0 %v962
        %1515 = vmatpush1.bf16.msra.mxu0 %v961
        %1516 = vmatprep.subr.bf16.mxu0 %v966
        %1517 = vmatpush1.bf16.msra.mxu0 %v965
        %1518 = vmatprep.subr.bf16.mxu0 0
        %1519 = vmatpush1.bf16.msra.mxu0 0
        %1520 = vmatprep.subr.bf16.mxu0 0
        %1521 = vmatpush1.bf16.msra.mxu0 0
        %1522 = vmatprep.subr.bf16.mxu0 0
        %1523 = vmatpush1.bf16.msra.mxu0 0
        %1524 = vmatprep.subr.bf16.mxu0 0
        %1525 = vmatpush1.bf16.msra.mxu0 0
        %1526 = vmatprep.subr.bf16.mxu0 0
        %1527 = vmatpush1.bf16.msra.mxu0 0
        %1528 = vmatprep.subr.bf16.mxu0 0
        %1529 = vmatpush1.bf16.msra.mxu0 0
        %1530 = vmatprep.subr.bf16.mxu0 0
        %1531 = vmatpush1.bf16.msra.mxu0 0
        %1532 = vmatprep.subr.bf16.mxu0 0
        %1533 = vmatpush1.bf16.msra.mxu0 0
        %1534 = vmatprep.mubr.bf16.mxu0 0
        %1535 = vmatmul.mubr.bf16.gmra.mrb[0].mxu0 %v1500
        %v1536 = vpop.f32.mrb[0].mxu0
        %v1537 = vadd.f32 0.0, %v1536
        %v1538 = vpop.f32.mrb[0].mxu0
        %v1539 = vadd.f32 0.0, %v1538
        %v1540 = vpop.f32.mrb[0].mxu0
        %v1541 = vpop.f32.mrb[0].mxu0
        %1542 = vdwg.mxu0
        %1543 = vmatprep.subr.bf16.mxu0 %v940
        %1544 = vmatpush1.bf16.msra.mxu0 %v939
        %1545 = vmatprep.subr.bf16.mxu0 %v944
        %1546 = vmatpush1.bf16.msra.mxu0 %v943
        %1547 = vmatprep.subr.bf16.mxu0 %v948
        %1548 = vmatpush1.bf16.msra.mxu0 %v947
        %1549 = vmatprep.subr.bf16.mxu0 %v952
        %1550 = vmatpush1.bf16.msra.mxu0 %v951
        %1551 = vmatprep.subr.bf16.mxu0 %v956
        %1552 = vmatpush1.bf16.msra.mxu0 %v955
        %1553 = vmatprep.subr.bf16.mxu0 %v960
        %1554 = vmatpush1.bf16.msra.mxu0 %v959
        %1555 = vmatprep.subr.bf16.mxu0 %v964
        %1556 = vmatpush1.bf16.msra.mxu0 %v963
        %1557 = vmatprep.subr.bf16.mxu0 %v968
        %1558 = vmatpush1.bf16.msra.mxu0 %v967
        %1559 = vmatprep.subr.bf16.mxu0 0
        %1560 = vmatpush1.bf16.msra.mxu0 0
        %1561 = vmatprep.subr.bf16.mxu0 0
        %1562 = vmatpush1.bf16.msra.mxu0 0
        %1563 = vmatprep.subr.bf16.mxu0 0
        %1564 = vmatpush1.bf16.msra.mxu0 0
        %1565 = vmatprep.subr.bf16.mxu0 0
        %1566 = vmatpush1.bf16.msra.mxu0 0
        %1567 = vmatprep.subr.bf16.mxu0 0
        %1568 = vmatpush1.bf16.msra.mxu0 0
        %1569 = vmatprep.subr.bf16.mxu0 0
        %1570 = vmatpush1.bf16.msra.mxu0 0
        %1571 = vmatprep.subr.bf16.mxu0 0
        %1572 = vmatpush1.bf16.msra.mxu0 0
        %1573 = vmatprep.subr.bf16.mxu0 0
        %1574 = vmatpush1.bf16.msra.mxu0 0
        %1575 = vmatprep.mubr.bf16.mxu0 0
        %1576 = vmatmul.mubr.bf16.gmra.mrb[0].mxu0 %v1500
        %v1577 = vpop.f32.mrb[0].mxu0
        %v1578 = vadd.f32 0.0, %v1577
        %v1579 = vpop.f32.mrb[0].mxu0
        %v1580 = vadd.f32 0.0, %v1579
        %v1581 = vpop.f32.mrb[0].mxu0
        %v1582 = vpop.f32.mrb[0].mxu0
        %1583 = vdwg.mxu0
        %v1588 = vrot.slane %v1537, 4
        %v1589 = vrot.slane %v1539, 4
        %v1590 = vrot.slane %v1578, 4
        %v1591 = vrot.slane %v1580, 4
        %v1596 = vadd.f32 %v755, %v1588
        %v1597 = vadd.f32 %v757, %v1589
        %v1598 = vadd.f32 %v798, %v1590
        %v1599 = vadd.f32 %v800, %v1591
        %v1600 = vxor.u32 %v1596, 2147483648
        %v1601 = vmul.f32 %v1600, 1.442695
        %v1602 = vpow.pop %v1601
        %v1603 = vadd.f32 %v1602, 1.0
        %v1604 = vrcp.pop %v1603
        %v1605 = vmul.f32 1.0, %v1604
        %v1606 = vxor.u32 %v1597, 2147483648
        %v1607 = vmul.f32 %v1606, 1.442695
        %v1608 = vpow.pop %v1607
        %v1609 = vadd.f32 %v1608, 1.0
        %v1610 = vrcp.pop %v1609
        %v1611 = vmul.f32 1.0, %v1610
        %v1612 = vtanh.pop %v1598
        %v1613 = vxor.u32 %v1599, 2147483648
        %v1614 = vmul.f32 %v1613, 1.442695
        %v1615 = vpow.pop %v1614
        %v1616 = vadd.f32 %v1615, 1.0
        %v1617 = vrcp.pop %v1616
        %v1618 = vmul.f32 1.0, %v1617
        %v1620 = vrot.slane %v1493, 7
        %v1622 = vmul.f32 %v1611, %v1620
        %v1623 = vmul.f32 %v1605, %v1612
        %v1624 = vadd.f32 %v1622, %v1623
        %v1625 = vtanh.pop %v1624
        %v1626 = vmul.f32 %v1618, %v1625
        %v1627 = vpack.c.bf16 %v1626, %v1626
        %v1629 = vrot.slane %v1627, 2
        %1631 = vmatprep.subr.bf16.mxu0 %v938
        %1632 = vmatpush1.bf16.msra.mxu0 %v937
        %1633 = vmatprep.subr.bf16.mxu0 %v942
        %1634 = vmatpush1.bf16.msra.mxu0 %v941
        %1635 = vmatprep.subr.bf16.mxu0 %v946
        %1636 = vmatpush1.bf16.msra.mxu0 %v945
        %1637 = vmatprep.subr.bf16.mxu0 %v950
        %1638 = vmatpush1.bf16.msra.mxu0 %v949
        %1639 = vmatprep.subr.bf16.mxu0 %v954
        %1640 = vmatpush1.bf16.msra.mxu0 %v953
        %1641 = vmatprep.subr.bf16.mxu0 %v958
        %1642 = vmatpush1.bf16.msra.mxu0 %v957
        %1643 = vmatprep.subr.bf16.mxu0 %v962
        %1644 = vmatpush1.bf16.msra.mxu0 %v961
        %1645 = vmatprep.subr.bf16.mxu0 %v966
        %1646 = vmatpush1.bf16.msra.mxu0 %v965
        %1647 = vmatprep.subr.bf16.mxu0 0
        %1648 = vmatpush1.bf16.msra.mxu0 0
        %1649 = vmatprep.subr.bf16.mxu0 0
        %1650 = vmatpush1.bf16.msra.mxu0 0
        %1651 = vmatprep.subr.bf16.mxu0 0
        %1652 = vmatpush1.bf16.msra.mxu0 0
        %1653 = vmatprep.subr.bf16.mxu0 0
        %1654 = vmatpush1.bf16.msra.mxu0 0
        %1655 = vmatprep.subr.bf16.mxu0 0
        %1656 = vmatpush1.bf16.msra.mxu0 0
        %1657 = vmatprep.subr.bf16.mxu0 0
        %1658 = vmatpush1.bf16.msra.mxu0 0
        %1659 = vmatprep.subr.bf16.mxu0 0
        %1660 = vmatpush1.bf16.msra.mxu0 0
        %1661 = vmatprep.subr.bf16.mxu0 0
        %1662 = vmatpush1.bf16.msra.mxu0 0
        %1663 = vmatprep.mubr.bf16.mxu0 0
        %1664 = vmatmul.mubr.bf16.gmra.mrb[0].mxu0 %v1629
        %v1665 = vpop.f32.mrb[0].mxu0
        %v1666 = vadd.f32 0.0, %v1665
        %v1667 = vpop.f32.mrb[0].mxu0
        %v1668 = vadd.f32 0.0, %v1667
        %v1669 = vpop.f32.mrb[0].mxu0
        %v1670 = vpop.f32.mrb[0].mxu0
        %1671 = vdwg.mxu0
        %1672 = vmatprep.subr.bf16.mxu0 %v940
        %1673 = vmatpush1.bf16.msra.mxu0 %v939
        %1674 = vmatprep.subr.bf16.mxu0 %v944
        %1675 = vmatpush1.bf16.msra.mxu0 %v943
        %1676 = vmatprep.subr.bf16.mxu0 %v948
        %1677 = vmatpush1.bf16.msra.mxu0 %v947
        %1678 = vmatprep.subr.bf16.mxu0 %v952
        %1679 = vmatpush1.bf16.msra.mxu0 %v951
        %1680 = vmatprep.subr.bf16.mxu0 %v956
        %1681 = vmatpush1.bf16.msra.mxu0 %v955
        %1682 = vmatprep.subr.bf16.mxu0 %v960
        %1683 = vmatpush1.bf16.msra.mxu0 %v959
        %1684 = vmatprep.subr.bf16.mxu0 %v964
        %1685 = vmatpush1.bf16.msra.mxu0 %v963
        %1686 = vmatprep.subr.bf16.mxu0 %v968
        %1687 = vmatpush1.bf16.msra.mxu0 %v967
        %1688 = vmatprep.subr.bf16.mxu0 0
        %1689 = vmatpush1.bf16.msra.mxu0 0
        %1690 = vmatprep.subr.bf16.mxu0 0
        %1691 = vmatpush1.bf16.msra.mxu0 0
        %1692 = vmatprep.subr.bf16.mxu0 0
        %1693 = vmatpush1.bf16.msra.mxu0 0
        %1694 = vmatprep.subr.bf16.mxu0 0
        %1695 = vmatpush1.bf16.msra.mxu0 0
        %1696 = vmatprep.subr.bf16.mxu0 0
        %1697 = vmatpush1.bf16.msra.mxu0 0
        %1698 = vmatprep.subr.bf16.mxu0 0
        %1699 = vmatpush1.bf16.msra.mxu0 0
        %1700 = vmatprep.subr.bf16.mxu0 0
        %1701 = vmatpush1.bf16.msra.mxu0 0
        %1702 = vmatprep.subr.bf16.mxu0 0
        %1703 = vmatpush1.bf16.msra.mxu0 0
        %1704 = vmatprep.mubr.bf16.mxu0 0
        %1705 = vmatmul.mubr.bf16.gmra.mrb[0].mxu0 %v1629
        %v1706 = vpop.f32.mrb[0].mxu0
        %v1707 = vadd.f32 0.0, %v1706
        %v1708 = vpop.f32.mrb[0].mxu0
        %v1709 = vadd.f32 0.0, %v1708
        %v1710 = vpop.f32.mrb[0].mxu0
        %v1711 = vpop.f32.mrb[0].mxu0
        %1712 = vdwg.mxu0
        %v1717 = vrot.slane %v1666, 3
        %v1718 = vrot.slane %v1668, 3
        %v1719 = vrot.slane %v1707, 3
        %v1720 = vrot.slane %v1709, 3
        %v1725 = vadd.f32 %v755, %v1717
        %v1726 = vadd.f32 %v757, %v1718
        %v1727 = vadd.f32 %v798, %v1719
        %v1728 = vadd.f32 %v800, %v1720
        %v1729 = vxor.u32 %v1725, 2147483648
        %v1730 = vmul.f32 %v1729, 1.442695
        %v1731 = vpow.pop %v1730
        %v1732 = vadd.f32 %v1731, 1.0
        %v1733 = vrcp.pop %v1732
        %v1734 = vmul.f32 1.0, %v1733
        %v1735 = vxor.u32 %v1726, 2147483648
        %v1736 = vmul.f32 %v1735, 1.442695
        %v1737 = vpow.pop %v1736
        %v1738 = vadd.f32 %v1737, 1.0
        %v1739 = vrcp.pop %v1738
        %v1740 = vmul.f32 1.0, %v1739
        %v1741 = vtanh.pop %v1727
        %v1742 = vxor.u32 %v1728, 2147483648
        %v1743 = vmul.f32 %v1742, 1.442695
        %v1744 = vpow.pop %v1743
        %v1745 = vadd.f32 %v1744, 1.0
        %v1746 = vrcp.pop %v1745
        %v1747 = vmul.f32 1.0, %v1746
        %v1749 = vrot.slane %v1624, 7
        %v1751 = vmul.f32 %v1740, %v1749
        %v1752 = vmul.f32 %v1734, %v1741
        %v1753 = vadd.f32 %v1751, %v1752
        %v1754 = vtanh.pop %v1753
        %v1755 = vmul.f32 %v1747, %v1754
        %v1756 = vpack.c.bf16 %v1755, %v1755
        %v1758 = vshrl.u32 %v1756, 16
        %v1760 = vrot.slane %v1758, 2
        %1762 = vmatprep.subr.bf16.mxu0 %v938
        %1763 = vmatpush1.bf16.msra.mxu0 %v937
        %1764 = vmatprep.subr.bf16.mxu0 %v942
        %1765 = vmatpush1.bf16.msra.mxu0 %v941
        %1766 = vmatprep.subr.bf16.mxu0 %v946
        %1767 = vmatpush1.bf16.msra.mxu0 %v945
        %1768 = vmatprep.subr.bf16.mxu0 %v950
        %1769 = vmatpush1.bf16.msra.mxu0 %v949
        %1770 = vmatprep.subr.bf16.mxu0 %v954
        %1771 = vmatpush1.bf16.msra.mxu0 %v953
        %1772 = vmatprep.subr.bf16.mxu0 %v958
        %1773 = vmatpush1.bf16.msra.mxu0 %v957
        %1774 = vmatprep.subr.bf16.mxu0 %v962
        %1775 = vmatpush1.bf16.msra.mxu0 %v961
        %1776 = vmatprep.subr.bf16.mxu0 %v966
        %1777 = vmatpush1.bf16.msra.mxu0 %v965
        %1778 = vmatprep.subr.bf16.mxu0 0
        %1779 = vmatpush1.bf16.msra.mxu0 0
        %1780 = vmatprep.subr.bf16.mxu0 0
        %1781 = vmatpush1.bf16.msra.mxu0 0
        %1782 = vmatprep.subr.bf16.mxu0 0
        %1783 = vmatpush1.bf16.msra.mxu0 0
        %1784 = vmatprep.subr.bf16.mxu0 0
        %1785 = vmatpush1.bf16.msra.mxu0 0
        %1786 = vmatprep.subr.bf16.mxu0 0
        %1787 = vmatpush1.bf16.msra.mxu0 0
        %1788 = vmatprep.subr.bf16.mxu0 0
        %1789 = vmatpush1.bf16.msra.mxu0 0
        %1790 = vmatprep.subr.bf16.mxu0 0
        %1791 = vmatpush1.bf16.msra.mxu0 0
        %1792 = vmatprep.subr.bf16.mxu0 0
        %1793 = vmatpush1.bf16.msra.mxu0 0
        %1794 = vmatprep.mubr.bf16.mxu0 0
        %1795 = vmatmul.mubr.bf16.gmra.mrb[0].mxu0 %v1760
        %v1796 = vpop.f32.mrb[0].mxu0
        %v1797 = vadd.f32 0.0, %v1796
        %v1798 = vpop.f32.mrb[0].mxu0
        %v1799 = vadd.f32 0.0, %v1798
        %v1800 = vpop.f32.mrb[0].mxu0
        %v1801 = vpop.f32.mrb[0].mxu0
        %1802 = vdwg.mxu0
        %1803 = vmatprep.subr.bf16.mxu0 %v940
        %1804 = vmatpush1.bf16.msra.mxu0 %v939
        %1805 = vmatprep.subr.bf16.mxu0 %v944
        %1806 = vmatpush1.bf16.msra.mxu0 %v943
        %1807 = vmatprep.subr.bf16.mxu0 %v948
        %1808 = vmatpush1.bf16.msra.mxu0 %v947
        %1809 = vmatprep.subr.bf16.mxu0 %v952
        %1810 = vmatpush1.bf16.msra.mxu0 %v951
        %1811 = vmatprep.subr.bf16.mxu0 %v956
        %1812 = vmatpush1.bf16.msra.mxu0 %v955
        %1813 = vmatprep.subr.bf16.mxu0 %v960
        %1814 = vmatpush1.bf16.msra.mxu0 %v959
        %1815 = vmatprep.subr.bf16.mxu0 %v964
        %1816 = vmatpush1.bf16.msra.mxu0 %v963
        %1817 = vmatprep.subr.bf16.mxu0 %v968
        %1818 = vmatpush1.bf16.msra.mxu0 %v967
        %1819 = vmatprep.subr.bf16.mxu0 0
        %1820 = vmatpush1.bf16.msra.mxu0 0
        %1821 = vmatprep.subr.bf16.mxu0 0
        %1822 = vmatpush1.bf16.msra.mxu0 0
        %1823 = vmatprep.subr.bf16.mxu0 0
        %1824 = vmatpush1.bf16.msra.mxu0 0
        %1825 = vmatprep.subr.bf16.mxu0 0
        %1826 = vmatpush1.bf16.msra.mxu0 0
        %1827 = vmatprep.subr.bf16.mxu0 0
        %1828 = vmatpush1.bf16.msra.mxu0 0
        %1829 = vmatprep.subr.bf16.mxu0 0
        %1830 = vmatpush1.bf16.msra.mxu0 0
        %1831 = vmatprep.subr.bf16.mxu0 0
        %1832 = vmatpush1.bf16.msra.mxu0 0
        %1833 = vmatprep.subr.bf16.mxu0 0
        %1834 = vmatpush1.bf16.msra.mxu0 0
        %1835 = vmatprep.mubr.bf16.mxu0 0
        %1836 = vmatmul.mubr.bf16.gmra.mrb[0].mxu0 %v1760
        %v1837 = vpop.f32.mrb[0].mxu0
        %v1838 = vadd.f32 0.0, %v1837
        %v1839 = vpop.f32.mrb[0].mxu0
        %v1840 = vadd.f32 0.0, %v1839
        %v1841 = vpop.f32.mrb[0].mxu0
        %v1842 = vpop.f32.mrb[0].mxu0
        %1843 = vdwg.mxu0
        %v1848 = vrot.slane %v1797, 2
        %v1849 = vrot.slane %v1799, 2
        %v1850 = vrot.slane %v1838, 2
        %v1851 = vrot.slane %v1840, 2
        %v1856 = vadd.f32 %v755, %v1848
        %v1857 = vadd.f32 %v757, %v1849
        %v1858 = vadd.f32 %v798, %v1850
        %v1859 = vadd.f32 %v800, %v1851
        %v1860 = vxor.u32 %v1856, 2147483648
        %v1861 = vmul.f32 %v1860, 1.442695
        %v1862 = vpow.pop %v1861
        %v1863 = vadd.f32 %v1862, 1.0
        %v1864 = vrcp.pop %v1863
        %v1865 = vmul.f32 1.0, %v1864
        %v1866 = vxor.u32 %v1857, 2147483648
        %v1867 = vmul.f32 %v1866, 1.442695
        %v1868 = vpow.pop %v1867
        %v1869 = vadd.f32 %v1868, 1.0
        %v1870 = vrcp.pop %v1869
        %v1871 = vmul.f32 1.0, %v1870
        %v1872 = vtanh.pop %v1858
        %v1873 = vxor.u32 %v1859, 2147483648
        %v1874 = vmul.f32 %v1873, 1.442695
        %v1875 = vpow.pop %v1874
        %v1876 = vadd.f32 %v1875, 1.0
        %v1877 = vrcp.pop %v1876
        %v1878 = vmul.f32 1.0, %v1877
        %v1880 = vrot.slane %v1753, 7
        %v1882 = vmul.f32 %v1871, %v1880
        %v1883 = vmul.f32 %v1865, %v1872
        %v1884 = vadd.f32 %v1882, %v1883
        %v1885 = vtanh.pop %v1884
        %v1886 = vmul.f32 %v1878, %v1885
        %v1887 = vpack.c.bf16 %v1886, %v1886
        %v1889 = vrot.slane %v1887, 3
        %1891 = vmatprep.subr.bf16.mxu0 %v938
        %1892 = vmatpush1.bf16.msra.mxu0 %v937
        %1893 = vmatprep.subr.bf16.mxu0 %v942
        %1894 = vmatpush1.bf16.msra.mxu0 %v941
        %1895 = vmatprep.subr.bf16.mxu0 %v946
        %1896 = vmatpush1.bf16.msra.mxu0 %v945
        %1897 = vmatprep.subr.bf16.mxu0 %v950
        %1898 = vmatpush1.bf16.msra.mxu0 %v949
        %1899 = vmatprep.subr.bf16.mxu0 %v954
        %1900 = vmatpush1.bf16.msra.mxu0 %v953
        %1901 = vmatprep.subr.bf16.mxu0 %v958
        %1902 = vmatpush1.bf16.msra.mxu0 %v957
        %1903 = vmatprep.subr.bf16.mxu0 %v962
        %1904 = vmatpush1.bf16.msra.mxu0 %v961
        %1905 = vmatprep.subr.bf16.mxu0 %v966
        %1906 = vmatpush1.bf16.msra.mxu0 %v965
        %1907 = vmatprep.subr.bf16.mxu0 0
        %1908 = vmatpush1.bf16.msra.mxu0 0
        %1909 = vmatprep.subr.bf16.mxu0 0
        %1910 = vmatpush1.bf16.msra.mxu0 0
        %1911 = vmatprep.subr.bf16.mxu0 0
        %1912 = vmatpush1.bf16.msra.mxu0 0
        %1913 = vmatprep.subr.bf16.mxu0 0
        %1914 = vmatpush1.bf16.msra.mxu0 0
        %1915 = vmatprep.subr.bf16.mxu0 0
        %1916 = vmatpush1.bf16.msra.mxu0 0
        %1917 = vmatprep.subr.bf16.mxu0 0
        %1918 = vmatpush1.bf16.msra.mxu0 0
        %1919 = vmatprep.subr.bf16.mxu0 0
        %1920 = vmatpush1.bf16.msra.mxu0 0
        %1921 = vmatprep.subr.bf16.mxu0 0
        %1922 = vmatpush1.bf16.msra.mxu0 0
        %1923 = vmatprep.mubr.bf16.mxu0 0
        %1924 = vmatmul.mubr.bf16.gmra.mrb[0].mxu0 %v1889
        %v1925 = vpop.f32.mrb[0].mxu0
        %v1926 = vadd.f32 0.0, %v1925
        %v1927 = vpop.f32.mrb[0].mxu0
        %v1928 = vadd.f32 0.0, %v1927
        %v1929 = vpop.f32.mrb[0].mxu0
        %v1930 = vpop.f32.mrb[0].mxu0
        %1931 = vdwg.mxu0
        %1932 = vmatprep.subr.bf16.mxu0 %v940
        %1933 = vmatpush1.bf16.msra.mxu0 %v939
        %1934 = vmatprep.subr.bf16.mxu0 %v944
        %1935 = vmatpush1.bf16.msra.mxu0 %v943
        %1936 = vmatprep.subr.bf16.mxu0 %v948
        %1937 = vmatpush1.bf16.msra.mxu0 %v947
        %1938 = vmatprep.subr.bf16.mxu0 %v952
        %1939 = vmatpush1.bf16.msra.mxu0 %v951
        %1940 = vmatprep.subr.bf16.mxu0 %v956
        %1941 = vmatpush1.bf16.msra.mxu0 %v955
        %1942 = vmatprep.subr.bf16.mxu0 %v960
        %1943 = vmatpush1.bf16.msra.mxu0 %v959
        %1944 = vmatprep.subr.bf16.mxu0 %v964
        %1945 = vmatpush1.bf16.msra.mxu0 %v963
        %1946 = vmatprep.subr.bf16.mxu0 %v968
        %1947 = vmatpush1.bf16.msra.mxu0 %v967
        %1948 = vmatprep.subr.bf16.mxu0 0
        %1949 = vmatpush1.bf16.msra.mxu0 0
        %1950 = vmatprep.subr.bf16.mxu0 0
        %1951 = vmatpush1.bf16.msra.mxu0 0
        %1952 = vmatprep.subr.bf16.mxu0 0
        %1953 = vmatpush1.bf16.msra.mxu0 0
        %1954 = vmatprep.subr.bf16.mxu0 0
        %1955 = vmatpush1.bf16.msra.mxu0 0
        %1956 = vmatprep.subr.bf16.mxu0 0
        %1957 = vmatpush1.bf16.msra.mxu0 0
        %1958 = vmatprep.subr.bf16.mxu0 0
        %1959 = vmatpush1.bf16.msra.mxu0 0
        %1960 = vmatprep.subr.bf16.mxu0 0
        %1961 = vmatpush1.bf16.msra.mxu0 0
        %1962 = vmatprep.subr.bf16.mxu0 0
        %1963 = vmatpush1.bf16.msra.mxu0 0
        %1964 = vmatprep.mubr.bf16.mxu0 0
        %1965 = vmatmul.mubr.bf16.gmra.mrb[0].mxu0 %v1889
        %v1966 = vpop.f32.mrb[0].mxu0
        %v1967 = vadd.f32 0.0, %v1966
        %v1968 = vpop.f32.mrb[0].mxu0
        %v1969 = vadd.f32 0.0, %v1968
        %v1970 = vpop.f32.mrb[0].mxu0
        %v1971 = vpop.f32.mrb[0].mxu0
        %1972 = vdwg.mxu0
        %v1977 = vrot.slane %v1926, 1
        %v1978 = vrot.slane %v1928, 1
        %v1979 = vrot.slane %v1967, 1
        %v1980 = vrot.slane %v1969, 1
        %v1985 = vadd.f32 %v755, %v1977
        %v1986 = vadd.f32 %v757, %v1978
        %v1987 = vadd.f32 %v798, %v1979
        %v1988 = vadd.f32 %v800, %v1980
        %v1989 = vxor.u32 %v1985, 2147483648
        %v1990 = vmul.f32 %v1989, 1.442695
        %v1991 = vpow.pop %v1990
        %v1992 = vadd.f32 %v1991, 1.0
        %v1993 = vrcp.pop %v1992
        %v1994 = vmul.f32 1.0, %v1993
        %v1995 = vxor.u32 %v1986, 2147483648
        %v1996 = vmul.f32 %v1995, 1.442695
        %v1997 = vpow.pop %v1996
        %v1998 = vadd.f32 %v1997, 1.0
        %v1999 = vrcp.pop %v1998
        %v2000 = vmul.f32 1.0, %v1999
        %v2001 = vtanh.pop %v1987
        %v2002 = vxor.u32 %v1988, 2147483648
        %v2003 = vmul.f32 %v2002, 1.442695
        %v2004 = vpow.pop %v2003
        %v2005 = vadd.f32 %v2004, 1.0
        %v2006 = vrcp.pop %v2005
        %v2007 = vmul.f32 1.0, %v2006
        %v2009 = vrot.slane %v1884, 7
        %v2011 = vmul.f32 %v2000, %v2009
        %v2012 = vmul.f32 %v1994, %v2001
        %v2013 = vadd.f32 %v2011, %v2012
        %v2014 = vtanh.pop %v2013
        %v2015 = vmul.f32 %v2007, %v2014
        %v2016 = vpack.c.bf16 %v2015, %v2015
        %v2018 = vshrl.u32 %v2016, 16
        %v2020 = vrot.slane %v2018, 3
        %2022 = vmatprep.subr.bf16.mxu0 %v938
        %2023 = vmatpush1.bf16.msra.mxu0 %v937
        %2024 = vmatprep.subr.bf16.mxu0 %v942
        %2025 = vmatpush1.bf16.msra.mxu0 %v941
        %2026 = vmatprep.subr.bf16.mxu0 %v946
        %2027 = vmatpush1.bf16.msra.mxu0 %v945
        %2028 = vmatprep.subr.bf16.mxu0 %v950
        %2029 = vmatpush1.bf16.msra.mxu0 %v949
        %2030 = vmatprep.subr.bf16.mxu0 %v954
        %2031 = vmatpush1.bf16.msra.mxu0 %v953
        %2032 = vmatprep.subr.bf16.mxu0 %v958
        %2033 = vmatpush1.bf16.msra.mxu0 %v957
        %2034 = vmatprep.subr.bf16.mxu0 %v962
        %2035 = vmatpush1.bf16.msra.mxu0 %v961
        %2036 = vmatprep.subr.bf16.mxu0 %v966
        %2037 = vmatpush1.bf16.msra.mxu0 %v965
        %2038 = vmatprep.subr.bf16.mxu0 0
        %2039 = vmatpush1.bf16.msra.mxu0 0
        %2040 = vmatprep.subr.bf16.mxu0 0
        %2041 = vmatpush1.bf16.msra.mxu0 0
        %2042 = vmatprep.subr.bf16.mxu0 0
        %2043 = vmatpush1.bf16.msra.mxu0 0
        %2044 = vmatprep.subr.bf16.mxu0 0
        %2045 = vmatpush1.bf16.msra.mxu0 0
        %2046 = vmatprep.subr.bf16.mxu0 0
        %2047 = vmatpush1.bf16.msra.mxu0 0
        %2048 = vmatprep.subr.bf16.mxu0 0
        %2049 = vmatpush1.bf16.msra.mxu0 0
        %2050 = vmatprep.subr.bf16.mxu0 0
        %2051 = vmatpush1.bf16.msra.mxu0 0
        %2052 = vmatprep.subr.bf16.mxu0 0
        %2053 = vmatpush1.bf16.msra.mxu0 0
        %2054 = vmatprep.mubr.bf16.mxu0 0
        %2055 = vmatmul.mubr.bf16.gmra.mrb[0].mxu0 %v2020
        %v2056 = vpop.f32.mrb[0].mxu0
        %v2057 = vadd.f32 0.0, %v2056
        %v2058 = vpop.f32.mrb[0].mxu0
        %v2059 = vadd.f32 0.0, %v2058
        %v2060 = vpop.f32.mrb[0].mxu0
        %v2061 = vpop.f32.mrb[0].mxu0
        %2062 = vdwg.mxu0
        %2063 = vmatprep.subr.bf16.mxu0 %v940
        %2064 = vmatpush1.bf16.msra.mxu0 %v939
        %2065 = vmatprep.subr.bf16.mxu0 %v944
        %2066 = vmatpush1.bf16.msra.mxu0 %v943
        %2067 = vmatprep.subr.bf16.mxu0 %v948
        %2068 = vmatpush1.bf16.msra.mxu0 %v947
        %2069 = vmatprep.subr.bf16.mxu0 %v952
        %2070 = vmatpush1.bf16.msra.mxu0 %v951
        %2071 = vmatprep.subr.bf16.mxu0 %v956
        %2072 = vmatpush1.bf16.msra.mxu0 %v955
        %2073 = vmatprep.subr.bf16.mxu0 %v960
        %2074 = vmatpush1.bf16.msra.mxu0 %v959
        %2075 = vmatprep.subr.bf16.mxu0 %v964
        %2076 = vmatpush1.bf16.msra.mxu0 %v963
        %2077 = vmatprep.subr.bf16.mxu0 %v968
        %2078 = vmatpush1.bf16.msra.mxu0 %v967
        %2079 = vmatprep.subr.bf16.mxu0 0
        %2080 = vmatpush1.bf16.msra.mxu0 0
        %2081 = vmatprep.subr.bf16.mxu0 0
        %2082 = vmatpush1.bf16.msra.mxu0 0
        %2083 = vmatprep.subr.bf16.mxu0 0
        %2084 = vmatpush1.bf16.msra.mxu0 0
        %2085 = vmatprep.subr.bf16.mxu0 0
        %2086 = vmatpush1.bf16.msra.mxu0 0
        %2087 = vmatprep.subr.bf16.mxu0 0
        %2088 = vmatpush1.bf16.msra.mxu0 0
        %2089 = vmatprep.subr.bf16.mxu0 0
        %2090 = vmatpush1.bf16.msra.mxu0 0
        %2091 = vmatprep.subr.bf16.mxu0 0
        %2092 = vmatpush1.bf16.msra.mxu0 0
        %2093 = vmatprep.subr.bf16.mxu0 0
        %2094 = vmatpush1.bf16.msra.mxu0 0
        %2095 = vmatprep.mubr.bf16.mxu0 0
        %2096 = vmatmul.mubr.bf16.gmra.mrb[0].mxu0 %v2020
        %v2097 = vpop.f32.mrb[0].mxu0
        %v2098 = vadd.f32 0.0, %v2097
        %v2099 = vpop.f32.mrb[0].mxu0
        %v2100 = vadd.f32 0.0, %v2099
        %v2101 = vpop.f32.mrb[0].mxu0
        %v2102 = vpop.f32.mrb[0].mxu0
        %2103 = vdwg.mxu0
        %v2104 = vadd.f32 %v759, %v2057
        %v2105 = vadd.f32 %v761, %v2059
        %v2106 = vadd.f32 %v802, %v2098
        %v2107 = vadd.f32 %v804, %v2100
        %v2108 = vxor.u32 %v2104, 2147483648
        %v2109 = vmul.f32 %v2108, 1.442695
        %v2110 = vpow.pop %v2109
        %v2111 = vadd.f32 %v2110, 1.0
        %v2112 = vrcp.pop %v2111
        %v2113 = vmul.f32 1.0, %v2112
        %v2114 = vxor.u32 %v2105, 2147483648
        %v2115 = vmul.f32 %v2114, 1.442695
        %v2116 = vpow.pop %v2115
        %v2117 = vadd.f32 %v2116, 1.0
        %v2118 = vrcp.pop %v2117
        %v2119 = vmul.f32 1.0, %v2118
        %v2120 = vtanh.pop %v2106
        %v2121 = vxor.u32 %v2107, 2147483648
        %v2122 = vmul.f32 %v2121, 1.442695
        %v2123 = vpow.pop %v2122
        %v2124 = vadd.f32 %v2123, 1.0
        %v2125 = vrcp.pop %v2124
        %v2126 = vmul.f32 1.0, %v2125
        %v2128 = vrot.slane %v2013, 7
        %v2130 = vmul.f32 %v2119, %v2128
        %v2131 = vmul.f32 %v2113, %v2120
        %v2132 = vadd.f32 %v2130, %v2131
        %v2133 = vtanh.pop %v2132
        %v2134 = vmul.f32 %v2126, %v2133
        %v2135 = vpack.c.bf16 %v2134, %v2134
        %2136 = vmatprep.subr.bf16.mxu0 %v938
        %2137 = vmatpush1.bf16.msra.mxu0 %v937
        %2138 = vmatprep.subr.bf16.mxu0 %v942
        %2139 = vmatpush1.bf16.msra.mxu0 %v941
        %2140 = vmatprep.subr.bf16.mxu0 %v946
        %2141 = vmatpush1.bf16.msra.mxu0 %v945
        %2142 = vmatprep.subr.bf16.mxu0 %v950
        %2143 = vmatpush1.bf16.msra.mxu0 %v949
        %2144 = vmatprep.subr.bf16.mxu0 %v954
        %2145 = vmatpush1.bf16.msra.mxu0 %v953
        %2146 = vmatprep.subr.bf16.mxu0 %v958
        %2147 = vmatpush1.bf16.msra.mxu0 %v957
        %2148 = vmatprep.subr.bf16.mxu0 %v962
        %2149 = vmatpush1.bf16.msra.mxu0 %v961
        %2150 = vmatprep.subr.bf16.mxu0 %v966
        %2151 = vmatpush1.bf16.msra.mxu0 %v965
        %2152 = vmatprep.subr.bf16.mxu0 0
        %2153 = vmatpush1.bf16.msra.mxu0 0
        %2154 = vmatprep.subr.bf16.mxu0 0
        %2155 = vmatpush1.bf16.msra.mxu0 0
        %2156 = vmatprep.subr.bf16.mxu0 0
        %2157 = vmatpush1.bf16.msra.mxu0 0
        %2158 = vmatprep.subr.bf16.mxu0 0
        %2159 = vmatpush1.bf16.msra.mxu0 0
        %2160 = vmatprep.subr.bf16.mxu0 0
        %2161 = vmatpush1.bf16.msra.mxu0 0
        %2162 = vmatprep.subr.bf16.mxu0 0
        %2163 = vmatpush1.bf16.msra.mxu0 0
        %2164 = vmatprep.subr.bf16.mxu0 0
        %2165 = vmatpush1.bf16.msra.mxu0 0
        %2166 = vmatprep.subr.bf16.mxu0 0
        %2167 = vmatpush1.bf16.msra.mxu0 0
        %2168 = vmatprep.mubr.bf16.mxu0 0
        %2169 = vmatmul.mubr.bf16.gmra.mrb[0].mxu0 %v2135
        %v2170 = vpop.f32.mrb[0].mxu0
        %v2171 = vadd.f32 0.0, %v2170
        %v2172 = vpop.f32.mrb[0].mxu0
        %v2173 = vadd.f32 0.0, %v2172
        %v2174 = vpop.f32.mrb[0].mxu0
        %v2175 = vpop.f32.mrb[0].mxu0
        %2176 = vdwg.mxu0
        %2177 = vmatprep.subr.bf16.mxu0 %v940
        %2178 = vmatpush1.bf16.msra.mxu0 %v939
        %2179 = vmatprep.subr.bf16.mxu0 %v944
        %2180 = vmatpush1.bf16.msra.mxu0 %v943
        %2181 = vmatprep.subr.bf16.mxu0 %v948
        %2182 = vmatpush1.bf16.msra.mxu0 %v947
        %2183 = vmatprep.subr.bf16.mxu0 %v952
        %2184 = vmatpush1.bf16.msra.mxu0 %v951
        %2185 = vmatprep.subr.bf16.mxu0 %v956
        %2186 = vmatpush1.bf16.msra.mxu0 %v955
        %2187 = vmatprep.subr.bf16.mxu0 %v960
        %2188 = vmatpush1.bf16.msra.mxu0 %v959
        %2189 = vmatprep.subr.bf16.mxu0 %v964
        %2190 = vmatpush1.bf16.msra.mxu0 %v963
        %2191 = vmatprep.subr.bf16.mxu0 %v968
        %2192 = vmatpush1.bf16.msra.mxu0 %v967
        %2193 = vmatprep.subr.bf16.mxu0 0
        %2194 = vmatpush1.bf16.msra.mxu0 0
        %2195 = vmatprep.subr.bf16.mxu0 0
        %2196 = vmatpush1.bf16.msra.mxu0 0
        %2197 = vmatprep.subr.bf16.mxu0 0
        %2198 = vmatpush1.bf16.msra.mxu0 0
        %2199 = vmatprep.subr.bf16.mxu0 0
        %2200 = vmatpush1.bf16.msra.mxu0 0
        %2201 = vmatprep.subr.bf16.mxu0 0
        %2202 = vmatpush1.bf16.msra.mxu0 0
        %2203 = vmatprep.subr.bf16.mxu0 0
        %2204 = vmatpush1.bf16.msra.mxu0 0
        %2205 = vmatprep.subr.bf16.mxu0 0
        %2206 = vmatpush1.bf16.msra.mxu0 0
        %2207 = vmatprep.subr.bf16.mxu0 0
        %2208 = vmatpush1.bf16.msra.mxu0 0
        %2209 = vmatprep.mubr.bf16.mxu0 0
        %2210 = vmatmul.mubr.bf16.gmra.mrb[0].mxu0 %v2135
        %v2211 = vpop.f32.mrb[0].mxu0
        %v2212 = vadd.f32 0.0, %v2211
        %v2213 = vpop.f32.mrb[0].mxu0
        %v2214 = vadd.f32 0.0, %v2213
        %v2215 = vpop.f32.mrb[0].mxu0
        %v2216 = vpop.f32.mrb[0].mxu0
        %2217 = vdwg.mxu0
        %v2222 = vrot.slane %v2171, 7
        %v2223 = vrot.slane %v2173, 7
        %v2224 = vrot.slane %v2212, 7
        %v2225 = vrot.slane %v2214, 7
        %v2230 = vadd.f32 %v759, %v2222
        %v2231 = vadd.f32 %v761, %v2223
        %v2232 = vadd.f32 %v802, %v2224
        %v2233 = vadd.f32 %v804, %v2225
        %v2234 = vxor.u32 %v2230, 2147483648
        %v2235 = vmul.f32 %v2234, 1.442695
        %v2236 = vpow.pop %v2235
        %v2237 = vadd.f32 %v2236, 1.0
        %v2238 = vrcp.pop %v2237
        %v2239 = vmul.f32 1.0, %v2238
        %v2240 = vxor.u32 %v2231, 2147483648
        %v2241 = vmul.f32 %v2240, 1.442695
        %v2242 = vpow.pop %v2241
        %v2243 = vadd.f32 %v2242, 1.0
        %v2244 = vrcp.pop %v2243
        %v2245 = vmul.f32 1.0, %v2244
        %v2246 = vtanh.pop %v2232
        %v2247 = vxor.u32 %v2233, 2147483648
        %v2248 = vmul.f32 %v2247, 1.442695
        %v2249 = vpow.pop %v2248
        %v2250 = vadd.f32 %v2249, 1.0
        %v2251 = vrcp.pop %v2250
        %v2252 = vmul.f32 1.0, %v2251
        %v2254 = vrot.slane %v2132, 7
        %v2256 = vmul.f32 %v2245, %v2254
        %v2257 = vmul.f32 %v2239, %v2246
        %v2258 = vadd.f32 %v2256, %v2257
        %v2259 = vtanh.pop %v2258
        %v2260 = vmul.f32 %v2252, %v2259
        %v2261 = vpack.c.bf16 %v2260, %v2260
        %v2263 = vshrl.u32 %v2261, 16
        %2266 = vmatprep.subr.bf16.mxu0 %v938
        %2267 = vmatpush1.bf16.msra.mxu0 %v937
        %2268 = vmatprep.subr.bf16.mxu0 %v942
        %2269 = vmatpush1.bf16.msra.mxu0 %v941
        %2270 = vmatprep.subr.bf16.mxu0 %v946
        %2271 = vmatpush1.bf16.msra.mxu0 %v945
        %2272 = vmatprep.subr.bf16.mxu0 %v950
        %2273 = vmatpush1.bf16.msra.mxu0 %v949
        %2274 = vmatprep.subr.bf16.mxu0 %v954
        %2275 = vmatpush1.bf16.msra.mxu0 %v953
        %2276 = vmatprep.subr.bf16.mxu0 %v958
        %2277 = vmatpush1.bf16.msra.mxu0 %v957
        %2278 = vmatprep.subr.bf16.mxu0 %v962
        %2279 = vmatpush1.bf16.msra.mxu0 %v961
        %2280 = vmatprep.subr.bf16.mxu0 %v966
        %2281 = vmatpush1.bf16.msra.mxu0 %v965
        %2282 = vmatprep.subr.bf16.mxu0 0
        %2283 = vmatpush1.bf16.msra.mxu0 0
        %2284 = vmatprep.subr.bf16.mxu0 0
        %2285 = vmatpush1.bf16.msra.mxu0 0
        %2286 = vmatprep.subr.bf16.mxu0 0
        %2287 = vmatpush1.bf16.msra.mxu0 0
        %2288 = vmatprep.subr.bf16.mxu0 0
        %2289 = vmatpush1.bf16.msra.mxu0 0
        %2290 = vmatprep.subr.bf16.mxu0 0
        %2291 = vmatpush1.bf16.msra.mxu0 0
        %2292 = vmatprep.subr.bf16.mxu0 0
        %2293 = vmatpush1.bf16.msra.mxu0 0
        %2294 = vmatprep.subr.bf16.mxu0 0
        %2295 = vmatpush1.bf16.msra.mxu0 0
        %2296 = vmatprep.subr.bf16.mxu0 0
        %2297 = vmatpush1.bf16.msra.mxu0 0
        %2298 = vmatprep.mubr.bf16.mxu0 0
        %2299 = vmatmul.mubr.bf16.gmra.mrb[0].mxu0 %v2263
        %v2300 = vpop.f32.mrb[0].mxu0
        %v2301 = vadd.f32 0.0, %v2300
        %v2302 = vpop.f32.mrb[0].mxu0
        %v2303 = vadd.f32 0.0, %v2302
        %v2304 = vpop.f32.mrb[0].mxu0
        %v2305 = vpop.f32.mrb[0].mxu0
        %2306 = vdwg.mxu0
        %2307 = vmatprep.subr.bf16.mxu0 %v940
        %2308 = vmatpush1.bf16.msra.mxu0 %v939
        %2309 = vmatprep.subr.bf16.mxu0 %v944
        %2310 = vmatpush1.bf16.msra.mxu0 %v943
        %2311 = vmatprep.subr.bf16.mxu0 %v948
        %2312 = vmatpush1.bf16.msra.mxu0 %v947
        %2313 = vmatprep.subr.bf16.mxu0 %v952
        %2314 = vmatpush1.bf16.msra.mxu0 %v951
        %2315 = vmatprep.subr.bf16.mxu0 %v956
        %2316 = vmatpush1.bf16.msra.mxu0 %v955
        %2317 = vmatprep.subr.bf16.mxu0 %v960
        %2318 = vmatpush1.bf16.msra.mxu0 %v959
        %2319 = vmatprep.subr.bf16.mxu0 %v964
        %2320 = vmatpush1.bf16.msra.mxu0 %v963
        %2321 = vmatprep.subr.bf16.mxu0 %v968
        %2322 = vmatpush1.bf16.msra.mxu0 %v967
        %2323 = vmatprep.subr.bf16.mxu0 0
        %2324 = vmatpush1.bf16.msra.mxu0 0
        %2325 = vmatprep.subr.bf16.mxu0 0
        %2326 = vmatpush1.bf16.msra.mxu0 0
        %2327 = vmatprep.subr.bf16.mxu0 0
        %2328 = vmatpush1.bf16.msra.mxu0 0
        %2329 = vmatprep.subr.bf16.mxu0 0
        %2330 = vmatpush1.bf16.msra.mxu0 0
        %2331 = vmatprep.subr.bf16.mxu0 0
        %2332 = vmatpush1.bf16.msra.mxu0 0
        %2333 = vmatprep.subr.bf16.mxu0 0
        %2334 = vmatpush1.bf16.msra.mxu0 0
        %2335 = vmatprep.subr.bf16.mxu0 0
        %2336 = vmatpush1.bf16.msra.mxu0 0
        %2337 = vmatprep.subr.bf16.mxu0 0
        %2338 = vmatpush1.bf16.msra.mxu0 0
        %2339 = vmatprep.mubr.bf16.mxu0 0
        %2340 = vmatmul.mubr.bf16.gmra.mrb[0].mxu0 %v2263
        %v2341 = vpop.f32.mrb[0].mxu0
        %v2342 = vadd.f32 0.0, %v2341
        %v2343 = vpop.f32.mrb[0].mxu0
        %v2344 = vadd.f32 0.0, %v2343
        %v2345 = vpop.f32.mrb[0].mxu0
        %v2346 = vpop.f32.mrb[0].mxu0
        %2347 = vdwg.mxu0
        %v2352 = vrot.slane %v2301, 6
        %v2353 = vrot.slane %v2303, 6
        %v2354 = vrot.slane %v2342, 6
        %v2355 = vrot.slane %v2344, 6
        %v2360 = vadd.f32 %v759, %v2352
        %v2361 = vadd.f32 %v761, %v2353
        %v2362 = vadd.f32 %v802, %v2354
        %v2363 = vadd.f32 %v804, %v2355
        %v2364 = vxor.u32 %v2360, 2147483648
        %v2365 = vmul.f32 %v2364, 1.442695
        %v2366 = vpow.pop %v2365
        %v2367 = vadd.f32 %v2366, 1.0
        %v2368 = vrcp.pop %v2367
        %v2369 = vmul.f32 1.0, %v2368
        %v2370 = vxor.u32 %v2361, 2147483648
        %v2371 = vmul.f32 %v2370, 1.442695
        %v2372 = vpow.pop %v2371
        %v2373 = vadd.f32 %v2372, 1.0
        %v2374 = vrcp.pop %v2373
        %v2375 = vmul.f32 1.0, %v2374
        %v2376 = vtanh.pop %v2362
        %v2377 = vxor.u32 %v2363, 2147483648
        %v2378 = vmul.f32 %v2377, 1.442695
        %v2379 = vpow.pop %v2378
        %v2380 = vadd.f32 %v2379, 1.0
        %v2381 = vrcp.pop %v2380
        %v2382 = vmul.f32 1.0, %v2381
        %v2384 = vrot.slane %v2258, 7
        %v2386 = vmul.f32 %v2375, %v2384
        %v2387 = vmul.f32 %v2369, %v2376
        %v2388 = vadd.f32 %v2386, %v2387
        %v2389 = vtanh.pop %v2388
        %v2390 = vmul.f32 %v2382, %v2389
        %v2391 = vpack.c.bf16 %v2390, %v2390
        %v2393 = vrot.slane %v2391, 1
        %2395 = vmatprep.subr.bf16.mxu0 %v938
        %2396 = vmatpush1.bf16.msra.mxu0 %v937
        %2397 = vmatprep.subr.bf16.mxu0 %v942
        %2398 = vmatpush1.bf16.msra.mxu0 %v941
        %2399 = vmatprep.subr.bf16.mxu0 %v946
        %2400 = vmatpush1.bf16.msra.mxu0 %v945
        %2401 = vmatprep.subr.bf16.mxu0 %v950
        %2402 = vmatpush1.bf16.msra.mxu0 %v949
        %2403 = vmatprep.subr.bf16.mxu0 %v954
        %2404 = vmatpush1.bf16.msra.mxu0 %v953
        %2405 = vmatprep.subr.bf16.mxu0 %v958
        %2406 = vmatpush1.bf16.msra.mxu0 %v957
        %2407 = vmatprep.subr.bf16.mxu0 %v962
        %2408 = vmatpush1.bf16.msra.mxu0 %v961
        %2409 = vmatprep.subr.bf16.mxu0 %v966
        %2410 = vmatpush1.bf16.msra.mxu0 %v965
        %2411 = vmatprep.subr.bf16.mxu0 0
        %2412 = vmatpush1.bf16.msra.mxu0 0
        %2413 = vmatprep.subr.bf16.mxu0 0
        %2414 = vmatpush1.bf16.msra.mxu0 0
        %2415 = vmatprep.subr.bf16.mxu0 0
        %2416 = vmatpush1.bf16.msra.mxu0 0
        %2417 = vmatprep.subr.bf16.mxu0 0
        %2418 = vmatpush1.bf16.msra.mxu0 0
        %2419 = vmatprep.subr.bf16.mxu0 0
        %2420 = vmatpush1.bf16.msra.mxu0 0
        %2421 = vmatprep.subr.bf16.mxu0 0
        %2422 = vmatpush1.bf16.msra.mxu0 0
        %2423 = vmatprep.subr.bf16.mxu0 0
        %2424 = vmatpush1.bf16.msra.mxu0 0
        %2425 = vmatprep.subr.bf16.mxu0 0
        %2426 = vmatpush1.bf16.msra.mxu0 0
        %2427 = vmatprep.mubr.bf16.mxu0 0
        %2428 = vmatmul.mubr.bf16.gmra.mrb[0].mxu0 %v2393
        %v2429 = vpop.f32.mrb[0].mxu0
        %v2430 = vadd.f32 0.0, %v2429
        %v2431 = vpop.f32.mrb[0].mxu0
        %v2432 = vadd.f32 0.0, %v2431
        %v2433 = vpop.f32.mrb[0].mxu0
        %v2434 = vpop.f32.mrb[0].mxu0
        %2435 = vdwg.mxu0
        %2436 = vmatprep.subr.bf16.mxu0 %v940
        %2437 = vmatpush1.bf16.msra.mxu0 %v939
        %2438 = vmatprep.subr.bf16.mxu0 %v944
        %2439 = vmatpush1.bf16.msra.mxu0 %v943
        %2440 = vmatprep.subr.bf16.mxu0 %v948
        %2441 = vmatpush1.bf16.msra.mxu0 %v947
        %2442 = vmatprep.subr.bf16.mxu0 %v952
        %2443 = vmatpush1.bf16.msra.mxu0 %v951
        %2444 = vmatprep.subr.bf16.mxu0 %v956
        %2445 = vmatpush1.bf16.msra.mxu0 %v955
        %2446 = vmatprep.subr.bf16.mxu0 %v960
        %2447 = vmatpush1.bf16.msra.mxu0 %v959
        %2448 = vmatprep.subr.bf16.mxu0 %v964
        %2449 = vmatpush1.bf16.msra.mxu0 %v963
        %2450 = vmatprep.subr.bf16.mxu0 %v968
        %2451 = vmatpush1.bf16.msra.mxu0 %v967
        %2452 = vmatprep.subr.bf16.mxu0 0
        %2453 = vmatpush1.bf16.msra.mxu0 0
        %2454 = vmatprep.subr.bf16.mxu0 0
        %2455 = vmatpush1.bf16.msra.mxu0 0
        %2456 = vmatprep.subr.bf16.mxu0 0
        %2457 = vmatpush1.bf16.msra.mxu0 0
        %2458 = vmatprep.subr.bf16.mxu0 0
        %2459 = vmatpush1.bf16.msra.mxu0 0
        %2460 = vmatprep.subr.bf16.mxu0 0
        %2461 = vmatpush1.bf16.msra.mxu0 0
        %2462 = vmatprep.subr.bf16.mxu0 0
        %2463 = vmatpush1.bf16.msra.mxu0 0
        %2464 = vmatprep.subr.bf16.mxu0 0
        %2465 = vmatpush1.bf16.msra.mxu0 0
        %2466 = vmatprep.subr.bf16.mxu0 0
        %2467 = vmatpush1.bf16.msra.mxu0 0
        %2468 = vmatprep.mubr.bf16.mxu0 0
        %2469 = vmatmul.mubr.bf16.gmra.mrb[0].mxu0 %v2393
        %v2470 = vpop.f32.mrb[0].mxu0
        %v2471 = vadd.f32 0.0, %v2470
        %v2472 = vpop.f32.mrb[0].mxu0
        %v2473 = vadd.f32 0.0, %v2472
        %v2474 = vpop.f32.mrb[0].mxu0
        %v2475 = vpop.f32.mrb[0].mxu0
        %2476 = vdwg.mxu0
        %v2481 = vrot.slane %v2430, 5
        %v2482 = vrot.slane %v2432, 5
        %v2483 = vrot.slane %v2471, 5
        %v2484 = vrot.slane %v2473, 5
        %v2489 = vadd.f32 %v759, %v2481
        %v2490 = vadd.f32 %v761, %v2482
        %v2491 = vadd.f32 %v802, %v2483
        %v2492 = vadd.f32 %v804, %v2484
        %v2493 = vxor.u32 %v2489, 2147483648
        %v2494 = vmul.f32 %v2493, 1.442695
        %v2495 = vpow.pop %v2494
        %v2496 = vadd.f32 %v2495, 1.0
        %v2497 = vrcp.pop %v2496
        %v2498 = vmul.f32 1.0, %v2497
        %v2499 = vxor.u32 %v2490, 2147483648
        %v2500 = vmul.f32 %v2499, 1.442695
        %v2501 = vpow.pop %v2500
        %v2502 = vadd.f32 %v2501, 1.0
        %v2503 = vrcp.pop %v2502
        %v2504 = vmul.f32 1.0, %v2503
        %v2505 = vtanh.pop %v2491
        %v2506 = vxor.u32 %v2492, 2147483648
        %v2507 = vmul.f32 %v2506, 1.442695
        %v2508 = vpow.pop %v2507
        %v2509 = vadd.f32 %v2508, 1.0
        %v2510 = vrcp.pop %v2509
        %v2511 = vmul.f32 1.0, %v2510
        %v2513 = vrot.slane %v2388, 7
        %v2515 = vmul.f32 %v2504, %v2513
        %v2516 = vmul.f32 %v2498, %v2505
        %v2517 = vadd.f32 %v2515, %v2516
        %v2518 = vtanh.pop %v2517
        %v2519 = vmul.f32 %v2511, %v2518
        %v2520 = vpack.c.bf16 %v2519, %v2519
        %v2522 = vshrl.u32 %v2520, 16
        %v2524 = vrot.slane %v2522, 1
        %2526 = vmatprep.subr.bf16.mxu0 %v938
        %2527 = vmatpush1.bf16.msra.mxu0 %v937
        %2528 = vmatprep.subr.bf16.mxu0 %v942
        %2529 = vmatpush1.bf16.msra.mxu0 %v941
        %2530 = vmatprep.subr.bf16.mxu0 %v946
        %2531 = vmatpush1.bf16.msra.mxu0 %v945
        %2532 = vmatprep.subr.bf16.mxu0 %v950
        %2533 = vmatpush1.bf16.msra.mxu0 %v949
        %2534 = vmatprep.subr.bf16.mxu0 %v954
        %2535 = vmatpush1.bf16.msra.mxu0 %v953
        %2536 = vmatprep.subr.bf16.mxu0 %v958
        %2537 = vmatpush1.bf16.msra.mxu0 %v957
        %2538 = vmatprep.subr.bf16.mxu0 %v962
        %2539 = vmatpush1.bf16.msra.mxu0 %v961
        %2540 = vmatprep.subr.bf16.mxu0 %v966
        %2541 = vmatpush1.bf16.msra.mxu0 %v965
        %2542 = vmatprep.subr.bf16.mxu0 0
        %2543 = vmatpush1.bf16.msra.mxu0 0
        %2544 = vmatprep.subr.bf16.mxu0 0
        %2545 = vmatpush1.bf16.msra.mxu0 0
        %2546 = vmatprep.subr.bf16.mxu0 0
        %2547 = vmatpush1.bf16.msra.mxu0 0
        %2548 = vmatprep.subr.bf16.mxu0 0
        %2549 = vmatpush1.bf16.msra.mxu0 0
        %2550 = vmatprep.subr.bf16.mxu0 0
        %2551 = vmatpush1.bf16.msra.mxu0 0
        %2552 = vmatprep.subr.bf16.mxu0 0
        %2553 = vmatpush1.bf16.msra.mxu0 0
        %2554 = vmatprep.subr.bf16.mxu0 0
        %2555 = vmatpush1.bf16.msra.mxu0 0
        %2556 = vmatprep.subr.bf16.mxu0 0
        %2557 = vmatpush1.bf16.msra.mxu0 0
        %2558 = vmatprep.mubr.bf16.mxu0 0
        %2559 = vmatmul.mubr.bf16.gmra.mrb[0].mxu0 %v2524
        %v2560 = vpop.f32.mrb[0].mxu0
        %v2561 = vadd.f32 0.0, %v2560
        %v2562 = vpop.f32.mrb[0].mxu0
        %v2563 = vadd.f32 0.0, %v2562
        %v2564 = vpop.f32.mrb[0].mxu0
        %v2565 = vpop.f32.mrb[0].mxu0
        %2566 = vdwg.mxu0
        %2567 = vmatprep.subr.bf16.mxu0 %v940
        %2568 = vmatpush1.bf16.msra.mxu0 %v939
        %2569 = vmatprep.subr.bf16.mxu0 %v944
        %2570 = vmatpush1.bf16.msra.mxu0 %v943
        %2571 = vmatprep.subr.bf16.mxu0 %v948
        %2572 = vmatpush1.bf16.msra.mxu0 %v947
        %2573 = vmatprep.subr.bf16.mxu0 %v952
        %2574 = vmatpush1.bf16.msra.mxu0 %v951
        %2575 = vmatprep.subr.bf16.mxu0 %v956
        %2576 = vmatpush1.bf16.msra.mxu0 %v955
        %2577 = vmatprep.subr.bf16.mxu0 %v960
        %2578 = vmatpush1.bf16.msra.mxu0 %v959
        %2579 = vmatprep.subr.bf16.mxu0 %v964
        %2580 = vmatpush1.bf16.msra.mxu0 %v963
        %2581 = vmatprep.subr.bf16.mxu0 %v968
        %2582 = vmatpush1.bf16.msra.mxu0 %v967
        %2583 = vmatprep.subr.bf16.mxu0 0
        %2584 = vmatpush1.bf16.msra.mxu0 0
        %2585 = vmatprep.subr.bf16.mxu0 0
        %2586 = vmatpush1.bf16.msra.mxu0 0
        %2587 = vmatprep.subr.bf16.mxu0 0
        %2588 = vmatpush1.bf16.msra.mxu0 0
        %2589 = vmatprep.subr.bf16.mxu0 0
        %2590 = vmatpush1.bf16.msra.mxu0 0
        %2591 = vmatprep.subr.bf16.mxu0 0
        %2592 = vmatpush1.bf16.msra.mxu0 0
        %2593 = vmatprep.subr.bf16.mxu0 0
        %2594 = vmatpush1.bf16.msra.mxu0 0
        %2595 = vmatprep.subr.bf16.mxu0 0
        %2596 = vmatpush1.bf16.msra.mxu0 0
        %2597 = vmatprep.subr.bf16.mxu0 0
        %2598 = vmatpush1.bf16.msra.mxu0 0
        %2599 = vmatprep.mubr.bf16.mxu0 0
        %2600 = vmatmul.mubr.bf16.gmra.mrb[0].mxu0 %v2524
        %v2601 = vpop.f32.mrb[0].mxu0
        %v2602 = vadd.f32 0.0, %v2601
        %v2603 = vpop.f32.mrb[0].mxu0
        %v2604 = vadd.f32 0.0, %v2603
        %v2605 = vpop.f32.mrb[0].mxu0
        %v2606 = vpop.f32.mrb[0].mxu0
        %2607 = vdwg.mxu0
        %v2612 = vrot.slane %v2561, 4
        %v2613 = vrot.slane %v2563, 4
        %v2614 = vrot.slane %v2602, 4
        %v2615 = vrot.slane %v2604, 4
        %v2620 = vadd.f32 %v759, %v2612
        %v2621 = vadd.f32 %v761, %v2613
        %v2622 = vadd.f32 %v802, %v2614
        %v2623 = vadd.f32 %v804, %v2615
        %v2624 = vxor.u32 %v2620, 2147483648
        %v2625 = vmul.f32 %v2624, 1.442695
        %v2626 = vpow.pop %v2625
        %v2627 = vadd.f32 %v2626, 1.0
        %v2628 = vrcp.pop %v2627
        %v2629 = vmul.f32 1.0, %v2628
        %v2630 = vxor.u32 %v2621, 2147483648
        %v2631 = vmul.f32 %v2630, 1.442695
        %v2632 = vpow.pop %v2631
        %v2633 = vadd.f32 %v2632, 1.0
        %v2634 = vrcp.pop %v2633
        %v2635 = vmul.f32 1.0, %v2634
        %v2636 = vtanh.pop %v2622
        %v2637 = vxor.u32 %v2623, 2147483648
        %v2638 = vmul.f32 %v2637, 1.442695
        %v2639 = vpow.pop %v2638
        %v2640 = vadd.f32 %v2639, 1.0
        %v2641 = vrcp.pop %v2640
        %v2642 = vmul.f32 1.0, %v2641
        %v2644 = vrot.slane %v2517, 7
        %v2646 = vmul.f32 %v2635, %v2644
        %v2647 = vmul.f32 %v2629, %v2636
        %v2648 = vadd.f32 %v2646, %v2647
        %v2649 = vtanh.pop %v2648
        %v2650 = vmul.f32 %v2642, %v2649
        %v2651 = vpack.c.bf16 %v2650, %v2650
        %v2653 = vrot.slane %v2651, 2
        %2655 = vmatprep.subr.bf16.mxu0 %v938
        %2656 = vmatpush1.bf16.msra.mxu0 %v937
        %2657 = vmatprep.subr.bf16.mxu0 %v942
        %2658 = vmatpush1.bf16.msra.mxu0 %v941
        %2659 = vmatprep.subr.bf16.mxu0 %v946
        %2660 = vmatpush1.bf16.msra.mxu0 %v945
        %2661 = vmatprep.subr.bf16.mxu0 %v950
        %2662 = vmatpush1.bf16.msra.mxu0 %v949
        %2663 = vmatprep.subr.bf16.mxu0 %v954
        %2664 = vmatpush1.bf16.msra.mxu0 %v953
        %2665 = vmatprep.subr.bf16.mxu0 %v958
        %2666 = vmatpush1.bf16.msra.mxu0 %v957
        %2667 = vmatprep.subr.bf16.mxu0 %v962
        %2668 = vmatpush1.bf16.msra.mxu0 %v961
        %2669 = vmatprep.subr.bf16.mxu0 %v966
        %2670 = vmatpush1.bf16.msra.mxu0 %v965
        %2671 = vmatprep.subr.bf16.mxu0 0
        %2672 = vmatpush1.bf16.msra.mxu0 0
        %2673 = vmatprep.subr.bf16.mxu0 0
        %2674 = vmatpush1.bf16.msra.mxu0 0
        %2675 = vmatprep.subr.bf16.mxu0 0
        %2676 = vmatpush1.bf16.msra.mxu0 0
        %2677 = vmatprep.subr.bf16.mxu0 0
        %2678 = vmatpush1.bf16.msra.mxu0 0
        %2679 = vmatprep.subr.bf16.mxu0 0
        %2680 = vmatpush1.bf16.msra.mxu0 0
        %2681 = vmatprep.subr.bf16.mxu0 0
        %2682 = vmatpush1.bf16.msra.mxu0 0
        %2683 = vmatprep.subr.bf16.mxu0 0
        %2684 = vmatpush1.bf16.msra.mxu0 0
        %2685 = vmatprep.subr.bf16.mxu0 0
        %2686 = vmatpush1.bf16.msra.mxu0 0
        %2687 = vmatprep.mubr.bf16.mxu0 0
        %2688 = vmatmul.mubr.bf16.gmra.mrb[0].mxu0 %v2653
        %v2689 = vpop.f32.mrb[0].mxu0
        %v2690 = vadd.f32 0.0, %v2689
        %v2691 = vpop.f32.mrb[0].mxu0
        %v2692 = vadd.f32 0.0, %v2691
        %v2693 = vpop.f32.mrb[0].mxu0
        %v2694 = vpop.f32.mrb[0].mxu0
        %2695 = vdwg.mxu0
        %2696 = vmatprep.subr.bf16.mxu0 %v940
        %2697 = vmatpush1.bf16.msra.mxu0 %v939
        %2698 = vmatprep.subr.bf16.mxu0 %v944
        %2699 = vmatpush1.bf16.msra.mxu0 %v943
        %2700 = vmatprep.subr.bf16.mxu0 %v948
        %2701 = vmatpush1.bf16.msra.mxu0 %v947
        %2702 = vmatprep.subr.bf16.mxu0 %v952
        %2703 = vmatpush1.bf16.msra.mxu0 %v951
        %2704 = vmatprep.subr.bf16.mxu0 %v956
        %2705 = vmatpush1.bf16.msra.mxu0 %v955
        %2706 = vmatprep.subr.bf16.mxu0 %v960
        %2707 = vmatpush1.bf16.msra.mxu0 %v959
        %2708 = vmatprep.subr.bf16.mxu0 %v964
        %2709 = vmatpush1.bf16.msra.mxu0 %v963
        %2710 = vmatprep.subr.bf16.mxu0 %v968
        %2711 = vmatpush1.bf16.msra.mxu0 %v967
        %2712 = vmatprep.subr.bf16.mxu0 0
        %2713 = vmatpush1.bf16.msra.mxu0 0
        %2714 = vmatprep.subr.bf16.mxu0 0
        %2715 = vmatpush1.bf16.msra.mxu0 0
        %2716 = vmatprep.subr.bf16.mxu0 0
        %2717 = vmatpush1.bf16.msra.mxu0 0
        %2718 = vmatprep.subr.bf16.mxu0 0
        %2719 = vmatpush1.bf16.msra.mxu0 0
        %2720 = vmatprep.subr.bf16.mxu0 0
        %2721 = vmatpush1.bf16.msra.mxu0 0
        %2722 = vmatprep.subr.bf16.mxu0 0
        %2723 = vmatpush1.bf16.msra.mxu0 0
        %2724 = vmatprep.subr.bf16.mxu0 0
        %2725 = vmatpush1.bf16.msra.mxu0 0
        %2726 = vmatprep.subr.bf16.mxu0 0
        %2727 = vmatpush1.bf16.msra.mxu0 0
        %2728 = vmatprep.mubr.bf16.mxu0 0
        %2729 = vmatmul.mubr.bf16.gmra.mrb[0].mxu0 %v2653
        %v2730 = vpop.f32.mrb[0].mxu0
        %v2731 = vadd.f32 0.0, %v2730
        %v2732 = vpop.f32.mrb[0].mxu0
        %v2733 = vadd.f32 0.0, %v2732
        %v2734 = vpop.f32.mrb[0].mxu0
        %v2735 = vpop.f32.mrb[0].mxu0
        %2736 = vdwg.mxu0
        %v2741 = vrot.slane %v2690, 3
        %v2742 = vrot.slane %v2692, 3
        %v2743 = vrot.slane %v2731, 3
        %v2744 = vrot.slane %v2733, 3
        %v2749 = vadd.f32 %v759, %v2741
        %v2750 = vadd.f32 %v761, %v2742
        %v2751 = vadd.f32 %v802, %v2743
        %v2752 = vadd.f32 %v804, %v2744
        %v2753 = vxor.u32 %v2749, 2147483648
        %v2754 = vmul.f32 %v2753, 1.442695
        %v2755 = vpow.pop %v2754
        %v2756 = vadd.f32 %v2755, 1.0
        %v2757 = vrcp.pop %v2756
        %v2758 = vmul.f32 1.0, %v2757
        %v2759 = vxor.u32 %v2750, 2147483648
        %v2760 = vmul.f32 %v2759, 1.442695
        %v2761 = vpow.pop %v2760
        %v2762 = vadd.f32 %v2761, 1.0
        %v2763 = vrcp.pop %v2762
        %v2764 = vmul.f32 1.0, %v2763
        %v2765 = vtanh.pop %v2751
        %v2766 = vxor.u32 %v2752, 2147483648
        %v2767 = vmul.f32 %v2766, 1.442695
        %v2768 = vpow.pop %v2767
        %v2769 = vadd.f32 %v2768, 1.0
        %v2770 = vrcp.pop %v2769
        %v2771 = vmul.f32 1.0, %v2770
        %v2773 = vrot.slane %v2648, 7
        %v2775 = vmul.f32 %v2764, %v2773
        %v2776 = vmul.f32 %v2758, %v2765
        %v2777 = vadd.f32 %v2775, %v2776
        %v2778 = vtanh.pop %v2777
        %v2779 = vmul.f32 %v2771, %v2778
        %v2780 = vpack.c.bf16 %v2779, %v2779
        %v2782 = vshrl.u32 %v2780, 16
        %v2784 = vrot.slane %v2782, 2
        %2786 = vmatprep.subr.bf16.mxu0 %v938
        %2787 = vmatpush1.bf16.msra.mxu0 %v937
        %2788 = vmatprep.subr.bf16.mxu0 %v942
        %2789 = vmatpush1.bf16.msra.mxu0 %v941
        %2790 = vmatprep.subr.bf16.mxu0 %v946
        %2791 = vmatpush1.bf16.msra.mxu0 %v945
        %2792 = vmatprep.subr.bf16.mxu0 %v950
        %2793 = vmatpush1.bf16.msra.mxu0 %v949
        %2794 = vmatprep.subr.bf16.mxu0 %v954
        %2795 = vmatpush1.bf16.msra.mxu0 %v953
        %2796 = vmatprep.subr.bf16.mxu0 %v958
        %2797 = vmatpush1.bf16.msra.mxu0 %v957
        %2798 = vmatprep.subr.bf16.mxu0 %v962
        %2799 = vmatpush1.bf16.msra.mxu0 %v961
        %2800 = vmatprep.subr.bf16.mxu0 %v966
        %2801 = vmatpush1.bf16.msra.mxu0 %v965
        %2802 = vmatprep.subr.bf16.mxu0 0
        %2803 = vmatpush1.bf16.msra.mxu0 0
        %2804 = vmatprep.subr.bf16.mxu0 0
        %2805 = vmatpush1.bf16.msra.mxu0 0
        %2806 = vmatprep.subr.bf16.mxu0 0
        %2807 = vmatpush1.bf16.msra.mxu0 0
        %2808 = vmatprep.subr.bf16.mxu0 0
        %2809 = vmatpush1.bf16.msra.mxu0 0
        %2810 = vmatprep.subr.bf16.mxu0 0
        %2811 = vmatpush1.bf16.msra.mxu0 0
        %2812 = vmatprep.subr.bf16.mxu0 0
        %2813 = vmatpush1.bf16.msra.mxu0 0
        %2814 = vmatprep.subr.bf16.mxu0 0
        %2815 = vmatpush1.bf16.msra.mxu0 0
        %2816 = vmatprep.subr.bf16.mxu0 0
        %2817 = vmatpush1.bf16.msra.mxu0 0
        %2818 = vmatprep.mubr.bf16.mxu0 0
        %2819 = vmatmul.mubr.bf16.gmra.mrb[0].mxu0 %v2784
        %v2820 = vpop.f32.mrb[0].mxu0
        %v2821 = vadd.f32 0.0, %v2820
        %v2822 = vpop.f32.mrb[0].mxu0
        %v2823 = vadd.f32 0.0, %v2822
        %v2824 = vpop.f32.mrb[0].mxu0
        %v2825 = vpop.f32.mrb[0].mxu0
        %2826 = vdwg.mxu0
        %2827 = vmatprep.subr.bf16.mxu0 %v940
        %2828 = vmatpush1.bf16.msra.mxu0 %v939
        %2829 = vmatprep.subr.bf16.mxu0 %v944
        %2830 = vmatpush1.bf16.msra.mxu0 %v943
        %2831 = vmatprep.subr.bf16.mxu0 %v948
        %2832 = vmatpush1.bf16.msra.mxu0 %v947
        %2833 = vmatprep.subr.bf16.mxu0 %v952
        %2834 = vmatpush1.bf16.msra.mxu0 %v951
        %2835 = vmatprep.subr.bf16.mxu0 %v956
        %2836 = vmatpush1.bf16.msra.mxu0 %v955
        %2837 = vmatprep.subr.bf16.mxu0 %v960
        %2838 = vmatpush1.bf16.msra.mxu0 %v959
        %2839 = vmatprep.subr.bf16.mxu0 %v964
        %2840 = vmatpush1.bf16.msra.mxu0 %v963
        %2841 = vmatprep.subr.bf16.mxu0 %v968
        %2842 = vmatpush1.bf16.msra.mxu0 %v967
        %2843 = vmatprep.subr.bf16.mxu0 0
        %2844 = vmatpush1.bf16.msra.mxu0 0
        %2845 = vmatprep.subr.bf16.mxu0 0
        %2846 = vmatpush1.bf16.msra.mxu0 0
        %2847 = vmatprep.subr.bf16.mxu0 0
        %2848 = vmatpush1.bf16.msra.mxu0 0
        %2849 = vmatprep.subr.bf16.mxu0 0
        %2850 = vmatpush1.bf16.msra.mxu0 0
        %2851 = vmatprep.subr.bf16.mxu0 0
        %2852 = vmatpush1.bf16.msra.mxu0 0
        %2853 = vmatprep.subr.bf16.mxu0 0
        %2854 = vmatpush1.bf16.msra.mxu0 0
        %2855 = vmatprep.subr.bf16.mxu0 0
        %2856 = vmatpush1.bf16.msra.mxu0 0
        %2857 = vmatprep.subr.bf16.mxu0 0
        %2858 = vmatpush1.bf16.msra.mxu0 0
        %2859 = vmatprep.mubr.bf16.mxu0 0
        %2860 = vmatmul.mubr.bf16.gmra.mrb[0].mxu0 %v2784
        %v2861 = vpop.f32.mrb[0].mxu0
        %v2862 = vadd.f32 0.0, %v2861
        %v2863 = vpop.f32.mrb[0].mxu0
        %v2864 = vadd.f32 0.0, %v2863
        %v2865 = vpop.f32.mrb[0].mxu0
        %v2866 = vpop.f32.mrb[0].mxu0
        %2867 = vdwg.mxu0
        %v2872 = vrot.slane %v2821, 2
        %v2873 = vrot.slane %v2823, 2
        %v2874 = vrot.slane %v2862, 2
        %v2875 = vrot.slane %v2864, 2
        %v2880 = vadd.f32 %v759, %v2872
        %v2881 = vadd.f32 %v761, %v2873
        %v2882 = vadd.f32 %v802, %v2874
        %v2883 = vadd.f32 %v804, %v2875
        %v2884 = vxor.u32 %v2880, 2147483648
        %v2885 = vmul.f32 %v2884, 1.442695
        %v2886 = vpow.pop %v2885
        %v2887 = vadd.f32 %v2886, 1.0
        %v2888 = vrcp.pop %v2887
        %v2889 = vmul.f32 1.0, %v2888
        %v2890 = vxor.u32 %v2881, 2147483648
        %v2891 = vmul.f32 %v2890, 1.442695
        %v2892 = vpow.pop %v2891
        %v2893 = vadd.f32 %v2892, 1.0
        %v2894 = vrcp.pop %v2893
        %v2895 = vmul.f32 1.0, %v2894
        %v2896 = vtanh.pop %v2882
        %v2897 = vxor.u32 %v2883, 2147483648
        %v2898 = vmul.f32 %v2897, 1.442695
        %v2899 = vpow.pop %v2898
        %v2900 = vadd.f32 %v2899, 1.0
        %v2901 = vrcp.pop %v2900
        %v2902 = vmul.f32 1.0, %v2901
        %v2904 = vrot.slane %v2777, 7
        %v2906 = vmul.f32 %v2895, %v2904
        %v2907 = vmul.f32 %v2889, %v2896
        %v2908 = vadd.f32 %v2906, %v2907
        %v2909 = vtanh.pop %v2908
        %v2910 = vmul.f32 %v2902, %v2909
        %v2911 = vpack.c.bf16 %v2910, %v2910
        %v2913 = vrot.slane %v2911, 3
        %2915 = vmatprep.subr.bf16.mxu0 %v938
        %2916 = vmatpush1.bf16.msra.mxu0 %v937
        %2917 = vmatprep.subr.bf16.mxu0 %v942
        %2918 = vmatpush1.bf16.msra.mxu0 %v941
        %2919 = vmatprep.subr.bf16.mxu0 %v946
        %2920 = vmatpush1.bf16.msra.mxu0 %v945
        %2921 = vmatprep.subr.bf16.mxu0 %v950
        %2922 = vmatpush1.bf16.msra.mxu0 %v949
        %2923 = vmatprep.subr.bf16.mxu0 %v954
        %2924 = vmatpush1.bf16.msra.mxu0 %v953
        %2925 = vmatprep.subr.bf16.mxu0 %v958
        %2926 = vmatpush1.bf16.msra.mxu0 %v957
        %2927 = vmatprep.subr.bf16.mxu0 %v962
        %2928 = vmatpush1.bf16.msra.mxu0 %v961
        %2929 = vmatprep.subr.bf16.mxu0 %v966
        %2930 = vmatpush1.bf16.msra.mxu0 %v965
        %2931 = vmatprep.subr.bf16.mxu0 0
        %2932 = vmatpush1.bf16.msra.mxu0 0
        %2933 = vmatprep.subr.bf16.mxu0 0
        %2934 = vmatpush1.bf16.msra.mxu0 0
        %2935 = vmatprep.subr.bf16.mxu0 0
        %2936 = vmatpush1.bf16.msra.mxu0 0
        %2937 = vmatprep.subr.bf16.mxu0 0
        %2938 = vmatpush1.bf16.msra.mxu0 0
        %2939 = vmatprep.subr.bf16.mxu0 0
        %2940 = vmatpush1.bf16.msra.mxu0 0
        %2941 = vmatprep.subr.bf16.mxu0 0
        %2942 = vmatpush1.bf16.msra.mxu0 0
        %2943 = vmatprep.subr.bf16.mxu0 0
        %2944 = vmatpush1.bf16.msra.mxu0 0
        %2945 = vmatprep.subr.bf16.mxu0 0
        %2946 = vmatpush1.bf16.msra.mxu0 0
        %2947 = vmatprep.mubr.bf16.mxu0 0
        %2948 = vmatmul.mubr.bf16.gmra.mrb[0].mxu0 %v2913
        %v2949 = vpop.f32.mrb[0].mxu0
        %v2950 = vadd.f32 0.0, %v2949
        %v2951 = vpop.f32.mrb[0].mxu0
        %v2952 = vadd.f32 0.0, %v2951
        %v2953 = vpop.f32.mrb[0].mxu0
        %v2954 = vpop.f32.mrb[0].mxu0
        %2955 = vdwg.mxu0
        %2956 = vmatprep.subr.bf16.mxu0 %v940
        %2957 = vmatpush1.bf16.msra.mxu0 %v939
        %2958 = vmatprep.subr.bf16.mxu0 %v944
        %2959 = vmatpush1.bf16.msra.mxu0 %v943
        %2960 = vmatprep.subr.bf16.mxu0 %v948
        %2961 = vmatpush1.bf16.msra.mxu0 %v947
        %2962 = vmatprep.subr.bf16.mxu0 %v952
        %2963 = vmatpush1.bf16.msra.mxu0 %v951
        %2964 = vmatprep.subr.bf16.mxu0 %v956
        %2965 = vmatpush1.bf16.msra.mxu0 %v955
        %2966 = vmatprep.subr.bf16.mxu0 %v960
        %2967 = vmatpush1.bf16.msra.mxu0 %v959
        %2968 = vmatprep.subr.bf16.mxu0 %v964
        %2969 = vmatpush1.bf16.msra.mxu0 %v963
        %2970 = vmatprep.subr.bf16.mxu0 %v968
        %2971 = vmatpush1.bf16.msra.mxu0 %v967
        %2972 = vmatprep.subr.bf16.mxu0 0
        %2973 = vmatpush1.bf16.msra.mxu0 0
        %2974 = vmatprep.subr.bf16.mxu0 0
        %2975 = vmatpush1.bf16.msra.mxu0 0
        %2976 = vmatprep.subr.bf16.mxu0 0
        %2977 = vmatpush1.bf16.msra.mxu0 0
        %2978 = vmatprep.subr.bf16.mxu0 0
        %2979 = vmatpush1.bf16.msra.mxu0 0
        %2980 = vmatprep.subr.bf16.mxu0 0
        %2981 = vmatpush1.bf16.msra.mxu0 0
        %2982 = vmatprep.subr.bf16.mxu0 0
        %2983 = vmatpush1.bf16.msra.mxu0 0
        %2984 = vmatprep.subr.bf16.mxu0 0
        %2985 = vmatpush1.bf16.msra.mxu0 0
        %2986 = vmatprep.subr.bf16.mxu0 0
        %2987 = vmatpush1.bf16.msra.mxu0 0
        %2988 = vmatprep.mubr.bf16.mxu0 0
        %2989 = vmatmul.mubr.bf16.gmra.mrb[0].mxu0 %v2913
        %v2990 = vpop.f32.mrb[0].mxu0
        %v2991 = vadd.f32 0.0, %v2990
        %v2992 = vpop.f32.mrb[0].mxu0
        %v2993 = vadd.f32 0.0, %v2992
        %v2994 = vpop.f32.mrb[0].mxu0
        %v2995 = vpop.f32.mrb[0].mxu0
        %2996 = vdwg.mxu0
        %v3001 = vrot.slane %v2950, 1
        %v3002 = vrot.slane %v2952, 1
        %v3003 = vrot.slane %v2991, 1
        %v3004 = vrot.slane %v2993, 1
        %v3009 = vadd.f32 %v759, %v3001
        %v3010 = vadd.f32 %v761, %v3002
        %v3011 = vadd.f32 %v802, %v3003
        %v3012 = vadd.f32 %v804, %v3004
        %v3013 = vxor.u32 %v3009, 2147483648
        %v3014 = vmul.f32 %v3013, 1.442695
        %v3015 = vpow.pop %v3014
        %v3016 = vadd.f32 %v3015, 1.0
        %v3017 = vrcp.pop %v3016
        %v3018 = vmul.f32 1.0, %v3017
        %v3019 = vxor.u32 %v3010, 2147483648
        %v3020 = vmul.f32 %v3019, 1.442695
        %v3021 = vpow.pop %v3020
        %v3022 = vadd.f32 %v3021, 1.0
        %v3023 = vrcp.pop %v3022
        %v3024 = vmul.f32 1.0, %v3023
        %v3025 = vtanh.pop %v3011
        %v3026 = vxor.u32 %v3012, 2147483648
        %v3027 = vmul.f32 %v3026, 1.442695
        %v3028 = vpow.pop %v3027
        %v3029 = vadd.f32 %v3028, 1.0
        %v3030 = vrcp.pop %v3029
        %v3031 = vmul.f32 1.0, %v3030
        %v3033 = vrot.slane %v2908, 7
        %v3035 = vmul.f32 %v3024, %v3033
        %v3036 = vmul.f32 %v3018, %v3025
        %v3037 = vadd.f32 %v3035, %v3036
        %v3038 = vtanh.pop %v3037
        %v3039 = vmul.f32 %v3031, %v3038
        %3040 = vst [vmem:[#allocation2 - $0x7] sm:$0x80] %v3039
        %3041 = vst [vmem:[#allocation3 - $0x7] sm:$0x80] %v3037
        %vm3042 = vcmask 1040384
        %v3043 = vsel %vm3042, %v1110, %v1236
        %vm3044 = vcmask 1041408
        %v3045 = vsel %vm3044, %v3043, %v1366
        %vm3046 = vcmask 1042432
        %v3047 = vsel %vm3046, %v3045, %v1495
        %vm3048 = vcmask 1043456
        %v3049 = vsel %vm3048, %v3047, %v1626
        %vm3050 = vcmask 1044480
        %v3051 = vsel %vm3050, %v3049, %v1755
        %vm3052 = vcmask 1045504
        %v3053 = vsel %vm3052, %v3051, %v1886
        %vm3054 = vcmask 1046528
        %v3055 = vsel %vm3054, %v3053, %v2015
        %v3056 = vsel %vm3042, %v2134, %v2260
        %v3057 = vsel %vm3044, %v3056, %v2390
        %v3058 = vsel %vm3046, %v3057, %v2519
        %v3059 = vsel %vm3048, %v3058, %v2650
        %v3060 = vsel %vm3050, %v3059, %v2779
        %v3061 = vsel %vm3052, %v3060, %v2910
        %v3062 = vsel %vm3054, %v3061, %v3039
        %v3063 = vpack.c.bf16 %v3062, %v3055
        %v3064 = vld [vmem:[#allocation12] sm:$0xff]
        %v3065 = vld [vmem:[#allocation12 + $0x8] sm:$0xff]
        %v3066 = vld [vmem:[#allocation12 + $0x10] sm:$0xff]
        %v3067 = vld [vmem:[#allocation12 + $0x18] sm:$0xff]
        %v3068 = vld [vmem:[#allocation12 + $0x20] sm:$0xff]
        %v3069 = vld [vmem:[#allocation12 + $0x28] sm:$0xff]
        %v3070 = vld [vmem:[#allocation12 + $0x30] sm:$0xff]
        %v3071 = vld [vmem:[#allocation12 + $0x38] sm:$0xff]
        %v3072 = vld [vmem:[#allocation12 + $0x40] sm:$0xff]
        %v3073 = vld [vmem:[#allocation12 + $0x48] sm:$0xff]
        %v3074 = vld [vmem:[#allocation12 + $0x50] sm:$0xff]
        %v3075 = vld [vmem:[#allocation12 + $0x58] sm:$0xff]
        %v3076 = vld [vmem:[#allocation12 + $0x60] sm:$0xff]
        %v3077 = vld [vmem:[#allocation12 + $0x68] sm:$0xff]
        %v3078 = vld [vmem:[#allocation12 + $0x70] sm:$0xff]
        %v3079 = vld [vmem:[#allocation12 + $0x78] sm:$0xff]
        %v3080 = vld [vmem:[#allocation12 + $0x80] sm:$0xff]
        %v3081 = vld [vmem:[#allocation12 + $0x88] sm:$0xff]
        %v3082 = vld [vmem:[#allocation12 + $0x90] sm:$0xff]
        %v3083 = vld [vmem:[#allocation12 + $0x98] sm:$0xff]
        %v3084 = vld [vmem:[#allocation12 + $0xa0] sm:$0xff]
        %v3085 = vld [vmem:[#allocation12 + $0xa8] sm:$0xff]
        %v3086 = vld [vmem:[#allocation12 + $0xb0] sm:$0xff]
        %v3087 = vld [vmem:[#allocation12 + $0xb8] sm:$0xff]
        %v3088 = vld [vmem:[#allocation12 + $0xc0] sm:$0xff]
        %v3089 = vld [vmem:[#allocation12 + $0xc8] sm:$0xff]
        %v3090 = vld [vmem:[#allocation12 + $0xd0] sm:$0xff]
        %v3091 = vld [vmem:[#allocation12 + $0xd8] sm:$0xff]
        %v3092 = vld [vmem:[#allocation12 + $0xe0] sm:$0xff]
        %v3093 = vld [vmem:[#allocation12 + $0xe8] sm:$0xff]
        %v3094 = vld [vmem:[#allocation12 + $0xf0] sm:$0xff]
        %v3095 = vld [vmem:[#allocation12 + $0xf8] sm:$0xff]
        %v3096 = vld [vmem:[%s6] sm:$0xf]
        %v3098 = vlaneseq
        %v3099 = vshrl.u32 %v3098, 7
        %v3100 = vsub.s32 0, %v3099
        %v3101 = vrot.slane %v3096, %v3100
        %v3102 = vlaneseq
        %v3103 = vshrl.u32 %v3102, 7
        %v3104 = vsub.s32 1, %v3103
        %v3105 = vrot.slane %v3096, %v3104
        %v3106 = vlaneseq
        %v3107 = vshrl.u32 %v3106, 7
        %v3108 = vsub.s32 2, %v3107
        %v3109 = vrot.slane %v3096, %v3108
        %v3110 = vlaneseq
        %v3111 = vshrl.u32 %v3110, 7
        %v3112 = vsub.s32 3, %v3111
        %v3113 = vrot.slane %v3096, %v3112
        %v3150 = vunpack.c.l.b16 %v3064
        %v3151 = vunpack.c.h.b16 %v3064
        %v3152 = vunpack.c.l.b16 %v3065
        %v3153 = vunpack.c.h.b16 %v3065
        %v3154 = vunpack.c.l.b16 %v3066
        %v3155 = vunpack.c.h.b16 %v3066
        %v3156 = vunpack.c.l.b16 %v3067
        %v3157 = vunpack.c.h.b16 %v3067
        %v3158 = vunpack.c.l.b16 %v3068
        %v3159 = vunpack.c.h.b16 %v3068
        %v3160 = vunpack.c.l.b16 %v3069
        %v3161 = vunpack.c.h.b16 %v3069
        %v3162 = vunpack.c.l.b16 %v3070
        %v3163 = vunpack.c.h.b16 %v3070
        %v3164 = vunpack.c.l.b16 %v3071
        %v3165 = vunpack.c.h.b16 %v3071
        %v3166 = vunpack.c.l.b16 %v3072
        %v3167 = vunpack.c.h.b16 %v3072
        %v3168 = vunpack.c.l.b16 %v3073
        %v3169 = vunpack.c.h.b16 %v3073
        %v3170 = vunpack.c.l.b16 %v3074
        %v3171 = vunpack.c.h.b16 %v3074
        %v3172 = vunpack.c.l.b16 %v3075
        %v3173 = vunpack.c.h.b16 %v3075
        %v3174 = vunpack.c.l.b16 %v3076
        %v3175 = vunpack.c.h.b16 %v3076
        %v3176 = vunpack.c.l.b16 %v3077
        %v3177 = vunpack.c.h.b16 %v3077
        %v3178 = vunpack.c.l.b16 %v3078
        %v3179 = vunpack.c.h.b16 %v3078
        %v3180 = vunpack.c.l.b16 %v3079
        %v3181 = vunpack.c.h.b16 %v3079
        %v3182 = vunpack.c.l.b16 %v3080
        %v3183 = vunpack.c.h.b16 %v3080
        %v3184 = vunpack.c.l.b16 %v3081
        %v3185 = vunpack.c.h.b16 %v3081
        %v3186 = vunpack.c.l.b16 %v3082
        %v3187 = vunpack.c.h.b16 %v3082
        %v3188 = vunpack.c.l.b16 %v3083
        %v3189 = vunpack.c.h.b16 %v3083
        %v3190 = vunpack.c.l.b16 %v3084
        %v3191 = vunpack.c.h.b16 %v3084
        %v3192 = vunpack.c.l.b16 %v3085
        %v3193 = vunpack.c.h.b16 %v3085
        %v3194 = vunpack.c.l.b16 %v3086
        %v3195 = vunpack.c.h.b16 %v3086
        %v3196 = vunpack.c.l.b16 %v3087
        %v3197 = vunpack.c.h.b16 %v3087
        %v3198 = vunpack.c.l.b16 %v3088
        %v3199 = vunpack.c.h.b16 %v3088
        %v3200 = vunpack.c.l.b16 %v3089
        %v3201 = vunpack.c.h.b16 %v3089
        %v3202 = vunpack.c.l.b16 %v3090
        %v3203 = vunpack.c.h.b16 %v3090
        %v3204 = vunpack.c.l.b16 %v3091
        %v3205 = vunpack.c.h.b16 %v3091
        %v3206 = vunpack.c.l.b16 %v3092
        %v3207 = vunpack.c.h.b16 %v3092
        %v3208 = vunpack.c.l.b16 %v3093
        %v3209 = vunpack.c.h.b16 %v3093
        %v3210 = vunpack.c.l.b16 %v3094
        %v3211 = vunpack.c.h.b16 %v3094
        %v3212 = vunpack.c.l.b16 %v3095
        %v3213 = vunpack.c.h.b16 %v3095
        %v3214 = vpack.c.b16 %v3154, %v3150
        %v3215 = vpack.c.b16 %v3155, %v3151
        %v3216 = vpack.c.b16 %v3156, %v3152
        %v3217 = vpack.c.b16 %v3157, %v3153
        %v3218 = vpack.c.b16 %v3162, %v3158
        %v3219 = vpack.c.b16 %v3163, %v3159
        %v3220 = vpack.c.b16 %v3164, %v3160
        %v3221 = vpack.c.b16 %v3165, %v3161
        %v3222 = vpack.c.b16 %v3170, %v3166
        %v3223 = vpack.c.b16 %v3171, %v3167
        %v3224 = vpack.c.b16 %v3172, %v3168
        %v3225 = vpack.c.b16 %v3173, %v3169
        %v3226 = vpack.c.b16 %v3178, %v3174
        %v3227 = vpack.c.b16 %v3179, %v3175
        %v3228 = vpack.c.b16 %v3180, %v3176
        %v3229 = vpack.c.b16 %v3181, %v3177
        %v3230 = vpack.c.b16 %v3186, %v3182
        %v3231 = vpack.c.b16 %v3187, %v3183
        %v3232 = vpack.c.b16 %v3188, %v3184
        %v3233 = vpack.c.b16 %v3189, %v3185
        %v3234 = vpack.c.b16 %v3194, %v3190
        %v3235 = vpack.c.b16 %v3195, %v3191
        %v3236 = vpack.c.b16 %v3196, %v3192
        %v3237 = vpack.c.b16 %v3197, %v3193
        %v3238 = vpack.c.b16 %v3202, %v3198
        %v3239 = vpack.c.b16 %v3203, %v3199
        %v3240 = vpack.c.b16 %v3204, %v3200
        %v3241 = vpack.c.b16 %v3205, %v3201
        %v3242 = vpack.c.b16 %v3210, %v3206
        %v3243 = vpack.c.b16 %v3211, %v3207
        %v3244 = vpack.c.b16 %v3212, %v3208
        %v3245 = vpack.c.b16 %v3213, %v3209
        %3278 = vmatprep.subr.bf16.mxu0 %v3215
        %3279 = vmatpush1.bf16.msra.mxu0 %v3214
        %3280 = vmatprep.subr.bf16.mxu0 %v3219
        %3281 = vmatpush1.bf16.msra.mxu0 %v3218
        %3282 = vmatprep.subr.bf16.mxu0 %v3223
        %3283 = vmatpush1.bf16.msra.mxu0 %v3222
        %3284 = vmatprep.subr.bf16.mxu0 %v3227
        %3285 = vmatpush1.bf16.msra.mxu0 %v3226
        %3286 = vmatprep.subr.bf16.mxu0 %v3231
        %3287 = vmatpush1.bf16.msra.mxu0 %v3230
        %3288 = vmatprep.subr.bf16.mxu0 %v3235
        %3289 = vmatpush1.bf16.msra.mxu0 %v3234
        %3290 = vmatprep.subr.bf16.mxu0 %v3239
        %3291 = vmatpush1.bf16.msra.mxu0 %v3238
        %3292 = vmatprep.subr.bf16.mxu0 %v3243
        %3293 = vmatpush1.bf16.msra.mxu0 %v3242
        %3294 = vmatprep.subr.bf16.mxu0 0
        %3295 = vmatpush1.bf16.msra.mxu0 0
        %3296 = vmatprep.subr.bf16.mxu0 0
        %3297 = vmatpush1.bf16.msra.mxu0 0
        %3298 = vmatprep.subr.bf16.mxu0 0
        %3299 = vmatpush1.bf16.msra.mxu0 0
        %3300 = vmatprep.subr.bf16.mxu0 0
        %3301 = vmatpush1.bf16.msra.mxu0 0
        %3302 = vmatprep.subr.bf16.mxu0 0
        %3303 = vmatpush1.bf16.msra.mxu0 0
        %3304 = vmatprep.subr.bf16.mxu0 0
        %3305 = vmatpush1.bf16.msra.mxu0 0
        %3306 = vmatprep.subr.bf16.mxu0 0
        %3307 = vmatpush1.bf16.msra.mxu0 0
        %3308 = vmatprep.subr.bf16.mxu0 0
        %3309 = vmatpush1.bf16.msra.mxu0 0
        %3310 = vmatprep.mubr.bf16.mxu0 0
        %3311 = vmatmul.mubr.bf16.gmra.mrb[0].mxu0 %v3063
        %v3312 = vpop.f32.mrb[0].mxu0
        %v3313 = vadd.f32 %v3101, %v3312
        %v3314 = vpop.f32.mrb[0].mxu0
        %v3315 = vadd.f32 %v3105, %v3314
        %v3316 = vpop.f32.mrb[0].mxu0
        %v3317 = vadd.f32 %v3101, %v3316
        %v3318 = vpop.f32.mrb[0].mxu0
        %v3319 = vadd.f32 %v3105, %v3318
        %3320 = vdwg.mxu0
        %3321 = vmatprep.subr.bf16.mxu0 %v3217
        %3322 = vmatpush1.bf16.msra.mxu0 %v3216
        %3323 = vmatprep.subr.bf16.mxu0 %v3221
        %3324 = vmatpush1.bf16.msra.mxu0 %v3220
        %3325 = vmatprep.subr.bf16.mxu0 %v3225
        %3326 = vmatpush1.bf16.msra.mxu0 %v3224
        %3327 = vmatprep.subr.bf16.mxu0 %v3229
        %3328 = vmatpush1.bf16.msra.mxu0 %v3228
        %3329 = vmatprep.subr.bf16.mxu0 %v3233
        %3330 = vmatpush1.bf16.msra.mxu0 %v3232
        %3331 = vmatprep.subr.bf16.mxu0 %v3237
        %3332 = vmatpush1.bf16.msra.mxu0 %v3236
        %3333 = vmatprep.subr.bf16.mxu0 %v3241
        %3334 = vmatpush1.bf16.msra.mxu0 %v3240
        %3335 = vmatprep.subr.bf16.mxu0 %v3245
        %3336 = vmatpush1.bf16.msra.mxu0 %v3244
        %3337 = vmatprep.subr.bf16.mxu0 0
        %3338 = vmatpush1.bf16.msra.mxu0 0
        %3339 = vmatprep.subr.bf16.mxu0 0
        %3340 = vmatpush1.bf16.msra.mxu0 0
        %3341 = vmatprep.subr.bf16.mxu0 0
        %3342 = vmatpush1.bf16.msra.mxu0 0
        %3343 = vmatprep.subr.bf16.mxu0 0
        %3344 = vmatpush1.bf16.msra.mxu0 0
        %3345 = vmatprep.subr.bf16.mxu0 0
        %3346 = vmatpush1.bf16.msra.mxu0 0
        %3347 = vmatprep.subr.bf16.mxu0 0
        %3348 = vmatpush1.bf16.msra.mxu0 0
        %3349 = vmatprep.subr.bf16.mxu0 0
        %3350 = vmatpush1.bf16.msra.mxu0 0
        %3351 = vmatprep.subr.bf16.mxu0 0
        %3352 = vmatpush1.bf16.msra.mxu0 0
        %3353 = vmatprep.mubr.bf16.mxu0 0
        %3354 = vmatmul.mubr.bf16.gmra.mrb[0].mxu0 %v3063
        %v3355 = vpop.f32.mrb[0].mxu0
        %v3356 = vadd.f32 %v3109, %v3355
        %v3357 = vpop.f32.mrb[0].mxu0
        %v3358 = vadd.f32 %v3113, %v3357
        %v3359 = vpop.f32.mrb[0].mxu0
        %v3360 = vadd.f32 %v3109, %v3359
        %v3361 = vpop.f32.mrb[0].mxu0
        %v3362 = vadd.f32 %v3113, %v3361
        %3363 = vdwg.mxu0
        %v3364 = vld [vmem:[#allocation13] sm:$0xff]
        %v3365 = vld [vmem:[#allocation13 + $0x8] sm:$0xff]
        %v3366 = vld [vmem:[#allocation13 + $0x10] sm:$0xff]
        %v3367 = vld [vmem:[#allocation13 + $0x18] sm:$0xff]
        %v3368 = vld [vmem:[#allocation13 + $0x20] sm:$0xff]
        %v3369 = vld [vmem:[#allocation13 + $0x28] sm:$0xff]
        %v3370 = vld [vmem:[#allocation13 + $0x30] sm:$0xff]
        %v3371 = vld [vmem:[#allocation13 + $0x38] sm:$0xff]
        %v3372 = vld [vmem:[#allocation13 + $0x40] sm:$0xff]
        %v3373 = vld [vmem:[#allocation13 + $0x48] sm:$0xff]
        %v3374 = vld [vmem:[#allocation13 + $0x50] sm:$0xff]
        %v3375 = vld [vmem:[#allocation13 + $0x58] sm:$0xff]
        %v3376 = vld [vmem:[#allocation13 + $0x60] sm:$0xff]
        %v3377 = vld [vmem:[#allocation13 + $0x68] sm:$0xff]
        %v3378 = vld [vmem:[#allocation13 + $0x70] sm:$0xff]
        %v3379 = vld [vmem:[#allocation13 + $0x78] sm:$0xff]
        %v3380 = vld [vmem:[#allocation13 + $0x80] sm:$0xff]
        %v3381 = vld [vmem:[#allocation13 + $0x88] sm:$0xff]
        %v3382 = vld [vmem:[#allocation13 + $0x90] sm:$0xff]
        %v3383 = vld [vmem:[#allocation13 + $0x98] sm:$0xff]
        %v3384 = vld [vmem:[#allocation13 + $0xa0] sm:$0xff]
        %v3385 = vld [vmem:[#allocation13 + $0xa8] sm:$0xff]
        %v3386 = vld [vmem:[#allocation13 + $0xb0] sm:$0xff]
        %v3387 = vld [vmem:[#allocation13 + $0xb8] sm:$0xff]
        %v3388 = vld [vmem:[#allocation13 + $0xc0] sm:$0xff]
        %v3389 = vld [vmem:[#allocation13 + $0xc8] sm:$0xff]
        %v3390 = vld [vmem:[#allocation13 + $0xd0] sm:$0xff]
        %v3391 = vld [vmem:[#allocation13 + $0xd8] sm:$0xff]
        %v3392 = vld [vmem:[#allocation13 + $0xe0] sm:$0xff]
        %v3393 = vld [vmem:[#allocation13 + $0xe8] sm:$0xff]
        %v3394 = vld [vmem:[#allocation13 + $0xf0] sm:$0xff]
        %v3395 = vld [vmem:[#allocation13 + $0xf8] sm:$0xff]
        %v3396 = vld [vmem:[#allocation4] sm:$0x1]
        %v3397 = vld [vmem:[#allocation5] sm:$0x1]
        %v3398 = vpack.c.bf16 %v3396, %v3396
        %v3431 = vunpack.c.l.b16 %v3364
        %v3432 = vunpack.c.h.b16 %v3364
        %v3433 = vunpack.c.l.b16 %v3365
        %v3434 = vunpack.c.h.b16 %v3365
        %v3435 = vunpack.c.l.b16 %v3366
        %v3436 = vunpack.c.h.b16 %v3366
        %v3437 = vunpack.c.l.b16 %v3367
        %v3438 = vunpack.c.h.b16 %v3367
        %v3439 = vunpack.c.l.b16 %v3368
        %v3440 = vunpack.c.h.b16 %v3368
        %v3441 = vunpack.c.l.b16 %v3369
        %v3442 = vunpack.c.h.b16 %v3369
        %v3443 = vunpack.c.l.b16 %v3370
        %v3444 = vunpack.c.h.b16 %v3370
        %v3445 = vunpack.c.l.b16 %v3371
        %v3446 = vunpack.c.h.b16 %v3371
        %v3447 = vunpack.c.l.b16 %v3372
        %v3448 = vunpack.c.h.b16 %v3372
        %v3449 = vunpack.c.l.b16 %v3373
        %v3450 = vunpack.c.h.b16 %v3373
        %v3451 = vunpack.c.l.b16 %v3374
        %v3452 = vunpack.c.h.b16 %v3374
        %v3453 = vunpack.c.l.b16 %v3375
        %v3454 = vunpack.c.h.b16 %v3375
        %v3455 = vunpack.c.l.b16 %v3376
        %v3456 = vunpack.c.h.b16 %v3376
        %v3457 = vunpack.c.l.b16 %v3377
        %v3458 = vunpack.c.h.b16 %v3377
        %v3459 = vunpack.c.l.b16 %v3378
        %v3460 = vunpack.c.h.b16 %v3378
        %v3461 = vunpack.c.l.b16 %v3379
        %v3462 = vunpack.c.h.b16 %v3379
        %v3463 = vunpack.c.l.b16 %v3380
        %v3464 = vunpack.c.h.b16 %v3380
        %v3465 = vunpack.c.l.b16 %v3381
        %v3466 = vunpack.c.h.b16 %v3381
        %v3467 = vunpack.c.l.b16 %v3382
        %v3468 = vunpack.c.h.b16 %v3382
        %v3469 = vunpack.c.l.b16 %v3383
        %v3470 = vunpack.c.h.b16 %v3383
        %v3471 = vunpack.c.l.b16 %v3384
        %v3472 = vunpack.c.h.b16 %v3384
        %v3473 = vunpack.c.l.b16 %v3385
        %v3474 = vunpack.c.h.b16 %v3385
        %v3475 = vunpack.c.l.b16 %v3386
        %v3476 = vunpack.c.h.b16 %v3386
        %v3477 = vunpack.c.l.b16 %v3387
        %v3478 = vunpack.c.h.b16 %v3387
        %v3479 = vunpack.c.l.b16 %v3388
        %v3480 = vunpack.c.h.b16 %v3388
        %v3481 = vunpack.c.l.b16 %v3389
        %v3482 = vunpack.c.h.b16 %v3389
        %v3483 = vunpack.c.l.b16 %v3390
        %v3484 = vunpack.c.h.b16 %v3390
        %v3485 = vunpack.c.l.b16 %v3391
        %v3486 = vunpack.c.h.b16 %v3391
        %v3487 = vunpack.c.l.b16 %v3392
        %v3488 = vunpack.c.h.b16 %v3392
        %v3489 = vunpack.c.l.b16 %v3393
        %v3490 = vunpack.c.h.b16 %v3393
        %v3491 = vunpack.c.l.b16 %v3394
        %v3492 = vunpack.c.h.b16 %v3394
        %v3493 = vunpack.c.l.b16 %v3395
        %v3494 = vunpack.c.h.b16 %v3395
        %v3495 = vpack.c.b16 %v3435, %v3431
        %v3496 = vpack.c.b16 %v3436, %v3432
        %v3497 = vpack.c.b16 %v3437, %v3433
        %v3498 = vpack.c.b16 %v3438, %v3434
        %v3499 = vpack.c.b16 %v3443, %v3439
        %v3500 = vpack.c.b16 %v3444, %v3440
        %v3501 = vpack.c.b16 %v3445, %v3441
        %v3502 = vpack.c.b16 %v3446, %v3442
        %v3503 = vpack.c.b16 %v3451, %v3447
        %v3504 = vpack.c.b16 %v3452, %v3448
        %v3505 = vpack.c.b16 %v3453, %v3449
        %v3506 = vpack.c.b16 %v3454, %v3450
        %v3507 = vpack.c.b16 %v3459, %v3455
        %v3508 = vpack.c.b16 %v3460, %v3456
        %v3509 = vpack.c.b16 %v3461, %v3457
        %v3510 = vpack.c.b16 %v3462, %v3458
        %v3511 = vpack.c.b16 %v3467, %v3463
        %v3512 = vpack.c.b16 %v3468, %v3464
        %v3513 = vpack.c.b16 %v3469, %v3465
        %v3514 = vpack.c.b16 %v3470, %v3466
        %v3515 = vpack.c.b16 %v3475, %v3471
        %v3516 = vpack.c.b16 %v3476, %v3472
        %v3517 = vpack.c.b16 %v3477, %v3473
        %v3518 = vpack.c.b16 %v3478, %v3474
        %v3519 = vpack.c.b16 %v3483, %v3479
        %v3520 = vpack.c.b16 %v3484, %v3480
        %v3521 = vpack.c.b16 %v3485, %v3481
        %v3522 = vpack.c.b16 %v3486, %v3482
        %v3523 = vpack.c.b16 %v3491, %v3487
        %v3524 = vpack.c.b16 %v3492, %v3488
        %v3525 = vpack.c.b16 %v3493, %v3489
        %v3526 = vpack.c.b16 %v3494, %v3490
        %3559 = vmatprep.subr.bf16.mxu0 %v3496
        %3560 = vmatpush1.bf16.msra.mxu0 %v3495
        %3561 = vmatprep.subr.bf16.mxu0 %v3500
        %3562 = vmatpush1.bf16.msra.mxu0 %v3499
        %3563 = vmatprep.subr.bf16.mxu0 %v3504
        %3564 = vmatpush1.bf16.msra.mxu0 %v3503
        %3565 = vmatprep.subr.bf16.mxu0 %v3508
        %3566 = vmatpush1.bf16.msra.mxu0 %v3507
        %3567 = vmatprep.subr.bf16.mxu0 %v3512
        %3568 = vmatpush1.bf16.msra.mxu0 %v3511
        %3569 = vmatprep.subr.bf16.mxu0 %v3516
        %3570 = vmatpush1.bf16.msra.mxu0 %v3515
        %3571 = vmatprep.subr.bf16.mxu0 %v3520
        %3572 = vmatpush1.bf16.msra.mxu0 %v3519
        %3573 = vmatprep.subr.bf16.mxu0 %v3524
        %3574 = vmatpush1.bf16.msra.mxu0 %v3523
        %3575 = vmatprep.subr.bf16.mxu0 0
        %3576 = vmatpush1.bf16.msra.mxu0 0
        %3577 = vmatprep.subr.bf16.mxu0 0
        %3578 = vmatpush1.bf16.msra.mxu0 0
        %3579 = vmatprep.subr.bf16.mxu0 0
        %3580 = vmatpush1.bf16.msra.mxu0 0
        %3581 = vmatprep.subr.bf16.mxu0 0
        %3582 = vmatpush1.bf16.msra.mxu0 0
        %3583 = vmatprep.subr.bf16.mxu0 0
        %3584 = vmatpush1.bf16.msra.mxu0 0
        %3585 = vmatprep.subr.bf16.mxu0 0
        %3586 = vmatpush1.bf16.msra.mxu0 0
        %3587 = vmatprep.subr.bf16.mxu0 0
        %3588 = vmatpush1.bf16.msra.mxu0 0
        %3589 = vmatprep.subr.bf16.mxu0 0
        %3590 = vmatpush1.bf16.msra.mxu0 0
        %3591 = vmatprep.mubr.bf16.mxu0 0
        %3592 = vmatmul.mubr.bf16.gmra.mrb[0].mxu0 %v3398
        %v3593 = vpop.f32.mrb[0].mxu0
        %v3594 = vadd.f32 0.0, %v3593
        %v3595 = vpop.f32.mrb[0].mxu0
        %v3596 = vadd.f32 0.0, %v3595
        %v3597 = vpop.f32.mrb[0].mxu0
        %v3598 = vpop.f32.mrb[0].mxu0
        %3599 = vdwg.mxu0
        %3600 = vmatprep.subr.bf16.mxu0 %v3498
        %3601 = vmatpush1.bf16.msra.mxu0 %v3497
        %3602 = vmatprep.subr.bf16.mxu0 %v3502
        %3603 = vmatpush1.bf16.msra.mxu0 %v3501
        %3604 = vmatprep.subr.bf16.mxu0 %v3506
        %3605 = vmatpush1.bf16.msra.mxu0 %v3505
        %3606 = vmatprep.subr.bf16.mxu0 %v3510
        %3607 = vmatpush1.bf16.msra.mxu0 %v3509
        %3608 = vmatprep.subr.bf16.mxu0 %v3514
        %3609 = vmatpush1.bf16.msra.mxu0 %v3513
        %3610 = vmatprep.subr.bf16.mxu0 %v3518
        %3611 = vmatpush1.bf16.msra.mxu0 %v3517
        %3612 = vmatprep.subr.bf16.mxu0 %v3522
        %3613 = vmatpush1.bf16.msra.mxu0 %v3521
        %3614 = vmatprep.subr.bf16.mxu0 %v3526
        %3615 = vmatpush1.bf16.msra.mxu0 %v3525
        %3616 = vmatprep.subr.bf16.mxu0 0
        %3617 = vmatpush1.bf16.msra.mxu0 0
        %3618 = vmatprep.subr.bf16.mxu0 0
        %3619 = vmatpush1.bf16.msra.mxu0 0
        %3620 = vmatprep.subr.bf16.mxu0 0
        %3621 = vmatpush1.bf16.msra.mxu0 0
        %3622 = vmatprep.subr.bf16.mxu0 0
        %3623 = vmatpush1.bf16.msra.mxu0 0
        %3624 = vmatprep.subr.bf16.mxu0 0
        %3625 = vmatpush1.bf16.msra.mxu0 0
        %3626 = vmatprep.subr.bf16.mxu0 0
        %3627 = vmatpush1.bf16.msra.mxu0 0
        %3628 = vmatprep.subr.bf16.mxu0 0
        %3629 = vmatpush1.bf16.msra.mxu0 0
        %3630 = vmatprep.subr.bf16.mxu0 0
        %3631 = vmatpush1.bf16.msra.mxu0 0
        %3632 = vmatprep.mubr.bf16.mxu0 0
        %3633 = vmatmul.mubr.bf16.gmra.mrb[0].mxu0 %v3398
        %v3634 = vpop.f32.mrb[0].mxu0
        %v3635 = vadd.f32 0.0, %v3634
        %v3636 = vpop.f32.mrb[0].mxu0
        %v3637 = vadd.f32 0.0, %v3636
        %v3638 = vpop.f32.mrb[0].mxu0
        %v3639 = vpop.f32.mrb[0].mxu0
        %3640 = vdwg.mxu0
        %v3641 = vadd.f32 %v3313, %v3594
        %v3642 = vadd.f32 %v3315, %v3596
        %v3643 = vadd.f32 %v3356, %v3635
        %v3644 = vadd.f32 %v3358, %v3637
        %v3645 = vxor.u32 %v3641, 2147483648
        %v3646 = vmul.f32 %v3645, 1.442695
        %v3647 = vpow.pop %v3646
        %v3648 = vadd.f32 %v3647, 1.0
        %v3649 = vrcp.pop %v3648
        %v3650 = vmul.f32 1.0, %v3649
        %v3651 = vxor.u32 %v3642, 2147483648
        %v3652 = vmul.f32 %v3651, 1.442695
        %v3653 = vpow.pop %v3652
        %v3654 = vadd.f32 %v3653, 1.0
        %v3655 = vrcp.pop %v3654
        %v3656 = vmul.f32 1.0, %v3655
        %v3657 = vtanh.pop %v3643
        %v3658 = vxor.u32 %v3644, 2147483648
        %v3659 = vmul.f32 %v3658, 1.442695
        %v3660 = vpow.pop %v3659
        %v3661 = vadd.f32 %v3660, 1.0
        %v3662 = vrcp.pop %v3661
        %v3663 = vmul.f32 1.0, %v3662
        %v3664 = vmul.f32 %v3656, %v3397
        %v3665 = vmul.f32 %v3650, %v3657
        %v3666 = vadd.f32 %v3664, %v3665
        %v3667 = vtanh.pop %v3666
        %v3668 = vmul.f32 %v3663, %v3667
        %v3669 = vpack.c.bf16 %v3668, %v3668
        %3670 = vmatprep.subr.bf16.mxu0 %v3496
        %3671 = vmatpush1.bf16.msra.mxu0 %v3495
        %3672 = vmatprep.subr.bf16.mxu0 %v3500
        %3673 = vmatpush1.bf16.msra.mxu0 %v3499
        %3674 = vmatprep.subr.bf16.mxu0 %v3504
        %3675 = vmatpush1.bf16.msra.mxu0 %v3503
        %3676 = vmatprep.subr.bf16.mxu0 %v3508
        %3677 = vmatpush1.bf16.msra.mxu0 %v3507
        %3678 = vmatprep.subr.bf16.mxu0 %v3512
        %3679 = vmatpush1.bf16.msra.mxu0 %v3511
        %3680 = vmatprep.subr.bf16.mxu0 %v3516
        %3681 = vmatpush1.bf16.msra.mxu0 %v3515
        %3682 = vmatprep.subr.bf16.mxu0 %v3520
        %3683 = vmatpush1.bf16.msra.mxu0 %v3519
        %3684 = vmatprep.subr.bf16.mxu0 %v3524
        %3685 = vmatpush1.bf16.msra.mxu0 %v3523
        %3686 = vmatprep.subr.bf16.mxu0 0
        %3687 = vmatpush1.bf16.msra.mxu0 0
        %3688 = vmatprep.subr.bf16.mxu0 0
        %3689 = vmatpush1.bf16.msra.mxu0 0
        %3690 = vmatprep.subr.bf16.mxu0 0
        %3691 = vmatpush1.bf16.msra.mxu0 0
        %3692 = vmatprep.subr.bf16.mxu0 0
        %3693 = vmatpush1.bf16.msra.mxu0 0
        %3694 = vmatprep.subr.bf16.mxu0 0
        %3695 = vmatpush1.bf16.msra.mxu0 0
        %3696 = vmatprep.subr.bf16.mxu0 0
        %3697 = vmatpush1.bf16.msra.mxu0 0
        %3698 = vmatprep.subr.bf16.mxu0 0
        %3699 = vmatpush1.bf16.msra.mxu0 0
        %3700 = vmatprep.subr.bf16.mxu0 0
        %3701 = vmatpush1.bf16.msra.mxu0 0
        %3702 = vmatprep.mubr.bf16.mxu0 0
        %3703 = vmatmul.mubr.bf16.gmra.mrb[0].mxu0 %v3669
        %v3704 = vpop.f32.mrb[0].mxu0
        %v3705 = vadd.f32 0.0, %v3704
        %v3706 = vpop.f32.mrb[0].mxu0
        %v3707 = vadd.f32 0.0, %v3706
        %v3708 = vpop.f32.mrb[0].mxu0
        %v3709 = vpop.f32.mrb[0].mxu0
        %3710 = vdwg.mxu0
        %3711 = vmatprep.subr.bf16.mxu0 %v3498
        %3712 = vmatpush1.bf16.msra.mxu0 %v3497
        %3713 = vmatprep.subr.bf16.mxu0 %v3502
        %3714 = vmatpush1.bf16.msra.mxu0 %v3501
        %3715 = vmatprep.subr.bf16.mxu0 %v3506
        %3716 = vmatpush1.bf16.msra.mxu0 %v3505
        %3717 = vmatprep.subr.bf16.mxu0 %v3510
        %3718 = vmatpush1.bf16.msra.mxu0 %v3509
        %3719 = vmatprep.subr.bf16.mxu0 %v3514
        %3720 = vmatpush1.bf16.msra.mxu0 %v3513
        %3721 = vmatprep.subr.bf16.mxu0 %v3518
        %3722 = vmatpush1.bf16.msra.mxu0 %v3517
        %3723 = vmatprep.subr.bf16.mxu0 %v3522
        %3724 = vmatpush1.bf16.msra.mxu0 %v3521
        %3725 = vmatprep.subr.bf16.mxu0 %v3526
        %3726 = vmatpush1.bf16.msra.mxu0 %v3525
        %3727 = vmatprep.subr.bf16.mxu0 0
        %3728 = vmatpush1.bf16.msra.mxu0 0
        %3729 = vmatprep.subr.bf16.mxu0 0
        %3730 = vmatpush1.bf16.msra.mxu0 0
        %3731 = vmatprep.subr.bf16.mxu0 0
        %3732 = vmatpush1.bf16.msra.mxu0 0
        %3733 = vmatprep.subr.bf16.mxu0 0
        %3734 = vmatpush1.bf16.msra.mxu0 0
        %3735 = vmatprep.subr.bf16.mxu0 0
        %3736 = vmatpush1.bf16.msra.mxu0 0
        %3737 = vmatprep.subr.bf16.mxu0 0
        %3738 = vmatpush1.bf16.msra.mxu0 0
        %3739 = vmatprep.subr.bf16.mxu0 0
        %3740 = vmatpush1.bf16.msra.mxu0 0
        %3741 = vmatprep.subr.bf16.mxu0 0
        %3742 = vmatpush1.bf16.msra.mxu0 0
        %3743 = vmatprep.mubr.bf16.mxu0 0
        %3744 = vmatmul.mubr.bf16.gmra.mrb[0].mxu0 %v3669
        %v3745 = vpop.f32.mrb[0].mxu0
        %v3746 = vadd.f32 0.0, %v3745
        %v3747 = vpop.f32.mrb[0].mxu0
        %v3748 = vadd.f32 0.0, %v3747
        %v3749 = vpop.f32.mrb[0].mxu0
        %v3750 = vpop.f32.mrb[0].mxu0
        %3751 = vdwg.mxu0
        %v3756 = vrot.slane %v3705, 7
        %v3757 = vrot.slane %v3707, 7
        %v3758 = vrot.slane %v3746, 7
        %v3759 = vrot.slane %v3748, 7
        %v3764 = vadd.f32 %v3313, %v3756
        %v3765 = vadd.f32 %v3315, %v3757
        %v3766 = vadd.f32 %v3356, %v3758
        %v3767 = vadd.f32 %v3358, %v3759
        %v3768 = vxor.u32 %v3764, 2147483648
        %v3769 = vmul.f32 %v3768, 1.442695
        %v3770 = vpow.pop %v3769
        %v3771 = vadd.f32 %v3770, 1.0
        %v3772 = vrcp.pop %v3771
        %v3773 = vmul.f32 1.0, %v3772
        %v3774 = vxor.u32 %v3765, 2147483648
        %v3775 = vmul.f32 %v3774, 1.442695
        %v3776 = vpow.pop %v3775
        %v3777 = vadd.f32 %v3776, 1.0
        %v3778 = vrcp.pop %v3777
        %v3779 = vmul.f32 1.0, %v3778
        %v3780 = vtanh.pop %v3766
        %v3781 = vxor.u32 %v3767, 2147483648
        %v3782 = vmul.f32 %v3781, 1.442695
        %v3783 = vpow.pop %v3782
        %v3784 = vadd.f32 %v3783, 1.0
        %v3785 = vrcp.pop %v3784
        %v3786 = vmul.f32 1.0, %v3785
        %v3788 = vrot.slane %v3666, 7
        %v3790 = vmul.f32 %v3779, %v3788
        %v3791 = vmul.f32 %v3773, %v3780
        %v3792 = vadd.f32 %v3790, %v3791
        %v3793 = vtanh.pop %v3792
        %v3794 = vmul.f32 %v3786, %v3793
        %v3795 = vpack.c.bf16 %v3794, %v3794
        %v3797 = vshrl.u32 %v3795, 16
        %3800 = vmatprep.subr.bf16.mxu0 %v3496
        %3801 = vmatpush1.bf16.msra.mxu0 %v3495
        %3802 = vmatprep.subr.bf16.mxu0 %v3500
        %3803 = vmatpush1.bf16.msra.mxu0 %v3499
        %3804 = vmatprep.subr.bf16.mxu0 %v3504
        %3805 = vmatpush1.bf16.msra.mxu0 %v3503
        %3806 = vmatprep.subr.bf16.mxu0 %v3508
        %3807 = vmatpush1.bf16.msra.mxu0 %v3507
        %3808 = vmatprep.subr.bf16.mxu0 %v3512
        %3809 = vmatpush1.bf16.msra.mxu0 %v3511
        %3810 = vmatprep.subr.bf16.mxu0 %v3516
        %3811 = vmatpush1.bf16.msra.mxu0 %v3515
        %3812 = vmatprep.subr.bf16.mxu0 %v3520
        %3813 = vmatpush1.bf16.msra.mxu0 %v3519
        %3814 = vmatprep.subr.bf16.mxu0 %v3524
        %3815 = vmatpush1.bf16.msra.mxu0 %v3523
        %3816 = vmatprep.subr.bf16.mxu0 0
        %3817 = vmatpush1.bf16.msra.mxu0 0
        %3818 = vmatprep.subr.bf16.mxu0 0
        %3819 = vmatpush1.bf16.msra.mxu0 0
        %3820 = vmatprep.subr.bf16.mxu0 0
        %3821 = vmatpush1.bf16.msra.mxu0 0
        %3822 = vmatprep.subr.bf16.mxu0 0
        %3823 = vmatpush1.bf16.msra.mxu0 0
        %3824 = vmatprep.subr.bf16.mxu0 0
        %3825 = vmatpush1.bf16.msra.mxu0 0
        %3826 = vmatprep.subr.bf16.mxu0 0
        %3827 = vmatpush1.bf16.msra.mxu0 0
        %3828 = vmatprep.subr.bf16.mxu0 0
        %3829 = vmatpush1.bf16.msra.mxu0 0
        %3830 = vmatprep.subr.bf16.mxu0 0
        %3831 = vmatpush1.bf16.msra.mxu0 0
        %3832 = vmatprep.mubr.bf16.mxu0 0
        %3833 = vmatmul.mubr.bf16.gmra.mrb[0].mxu0 %v3797
        %v3834 = vpop.f32.mrb[0].mxu0
        %v3835 = vadd.f32 0.0, %v3834
        %v3836 = vpop.f32.mrb[0].mxu0
        %v3837 = vadd.f32 0.0, %v3836
        %v3838 = vpop.f32.mrb[0].mxu0
        %v3839 = vpop.f32.mrb[0].mxu0
        %3840 = vdwg.mxu0
        %3841 = vmatprep.subr.bf16.mxu0 %v3498
        %3842 = vmatpush1.bf16.msra.mxu0 %v3497
        %3843 = vmatprep.subr.bf16.mxu0 %v3502
        %3844 = vmatpush1.bf16.msra.mxu0 %v3501
        %3845 = vmatprep.subr.bf16.mxu0 %v3506
        %3846 = vmatpush1.bf16.msra.mxu0 %v3505
        %3847 = vmatprep.subr.bf16.mxu0 %v3510
        %3848 = vmatpush1.bf16.msra.mxu0 %v3509
        %3849 = vmatprep.subr.bf16.mxu0 %v3514
        %3850 = vmatpush1.bf16.msra.mxu0 %v3513
        %3851 = vmatprep.subr.bf16.mxu0 %v3518
        %3852 = vmatpush1.bf16.msra.mxu0 %v3517
        %3853 = vmatprep.subr.bf16.mxu0 %v3522
        %3854 = vmatpush1.bf16.msra.mxu0 %v3521
        %3855 = vmatprep.subr.bf16.mxu0 %v3526
        %3856 = vmatpush1.bf16.msra.mxu0 %v3525
        %3857 = vmatprep.subr.bf16.mxu0 0
        %3858 = vmatpush1.bf16.msra.mxu0 0
        %3859 = vmatprep.subr.bf16.mxu0 0
        %3860 = vmatpush1.bf16.msra.mxu0 0
        %3861 = vmatprep.subr.bf16.mxu0 0
        %3862 = vmatpush1.bf16.msra.mxu0 0
        %3863 = vmatprep.subr.bf16.mxu0 0
        %3864 = vmatpush1.bf16.msra.mxu0 0
        %3865 = vmatprep.subr.bf16.mxu0 0
        %3866 = vmatpush1.bf16.msra.mxu0 0
        %3867 = vmatprep.subr.bf16.mxu0 0
        %3868 = vmatpush1.bf16.msra.mxu0 0
        %3869 = vmatprep.subr.bf16.mxu0 0
        %3870 = vmatpush1.bf16.msra.mxu0 0
        %3871 = vmatprep.subr.bf16.mxu0 0
        %3872 = vmatpush1.bf16.msra.mxu0 0
        %3873 = vmatprep.mubr.bf16.mxu0 0
        %3874 = vmatmul.mubr.bf16.gmra.mrb[0].mxu0 %v3797
        %v3875 = vpop.f32.mrb[0].mxu0
        %v3876 = vadd.f32 0.0, %v3875
        %v3877 = vpop.f32.mrb[0].mxu0
        %v3878 = vadd.f32 0.0, %v3877
        %v3879 = vpop.f32.mrb[0].mxu0
        %v3880 = vpop.f32.mrb[0].mxu0
        %3881 = vdwg.mxu0
        %v3886 = vrot.slane %v3835, 6
        %v3887 = vrot.slane %v3837, 6
        %v3888 = vrot.slane %v3876, 6
        %v3889 = vrot.slane %v3878, 6
        %v3894 = vadd.f32 %v3313, %v3886
        %v3895 = vadd.f32 %v3315, %v3887
        %v3896 = vadd.f32 %v3356, %v3888
        %v3897 = vadd.f32 %v3358, %v3889
        %v3898 = vxor.u32 %v3894, 2147483648
        %v3899 = vmul.f32 %v3898, 1.442695
        %v3900 = vpow.pop %v3899
        %v3901 = vadd.f32 %v3900, 1.0
        %v3902 = vrcp.pop %v3901
        %v3903 = vmul.f32 1.0, %v3902
        %v3904 = vxor.u32 %v3895, 2147483648
        %v3905 = vmul.f32 %v3904, 1.442695
        %v3906 = vpow.pop %v3905
        %v3907 = vadd.f32 %v3906, 1.0
        %v3908 = vrcp.pop %v3907
        %v3909 = vmul.f32 1.0, %v3908
        %v3910 = vtanh.pop %v3896
        %v3911 = vxor.u32 %v3897, 2147483648
        %v3912 = vmul.f32 %v3911, 1.442695
        %v3913 = vpow.pop %v3912
        %v3914 = vadd.f32 %v3913, 1.0
        %v3915 = vrcp.pop %v3914
        %v3916 = vmul.f32 1.0, %v3915
        %v3918 = vrot.slane %v3792, 7
        %v3920 = vmul.f32 %v3909, %v3918
        %v3921 = vmul.f32 %v3903, %v3910
        %v3922 = vadd.f32 %v3920, %v3921
        %v3923 = vtanh.pop %v3922
        %v3924 = vmul.f32 %v3916, %v3923
        %v3925 = vpack.c.bf16 %v3924, %v3924
        %v3927 = vrot.slane %v3925, 1
        %3929 = vmatprep.subr.bf16.mxu0 %v3496
        %3930 = vmatpush1.bf16.msra.mxu0 %v3495
        %3931 = vmatprep.subr.bf16.mxu0 %v3500
        %3932 = vmatpush1.bf16.msra.mxu0 %v3499
        %3933 = vmatprep.subr.bf16.mxu0 %v3504
        %3934 = vmatpush1.bf16.msra.mxu0 %v3503
        %3935 = vmatprep.subr.bf16.mxu0 %v3508
        %3936 = vmatpush1.bf16.msra.mxu0 %v3507
        %3937 = vmatprep.subr.bf16.mxu0 %v3512
        %3938 = vmatpush1.bf16.msra.mxu0 %v3511
        %3939 = vmatprep.subr.bf16.mxu0 %v3516
        %3940 = vmatpush1.bf16.msra.mxu0 %v3515
        %3941 = vmatprep.subr.bf16.mxu0 %v3520
        %3942 = vmatpush1.bf16.msra.mxu0 %v3519
        %3943 = vmatprep.subr.bf16.mxu0 %v3524
        %3944 = vmatpush1.bf16.msra.mxu0 %v3523
        %3945 = vmatprep.subr.bf16.mxu0 0
        %3946 = vmatpush1.bf16.msra.mxu0 0
        %3947 = vmatprep.subr.bf16.mxu0 0
        %3948 = vmatpush1.bf16.msra.mxu0 0
        %3949 = vmatprep.subr.bf16.mxu0 0
        %3950 = vmatpush1.bf16.msra.mxu0 0
        %3951 = vmatprep.subr.bf16.mxu0 0
        %3952 = vmatpush1.bf16.msra.mxu0 0
        %3953 = vmatprep.subr.bf16.mxu0 0
        %3954 = vmatpush1.bf16.msra.mxu0 0
        %3955 = vmatprep.subr.bf16.mxu0 0
        %3956 = vmatpush1.bf16.msra.mxu0 0
        %3957 = vmatprep.subr.bf16.mxu0 0
        %3958 = vmatpush1.bf16.msra.mxu0 0
        %3959 = vmatprep.subr.bf16.mxu0 0
        %3960 = vmatpush1.bf16.msra.mxu0 0
        %3961 = vmatprep.mubr.bf16.mxu0 0
        %3962 = vmatmul.mubr.bf16.gmra.mrb[0].mxu0 %v3927
        %v3963 = vpop.f32.mrb[0].mxu0
        %v3964 = vadd.f32 0.0, %v3963
        %v3965 = vpop.f32.mrb[0].mxu0
        %v3966 = vadd.f32 0.0, %v3965
        %v3967 = vpop.f32.mrb[0].mxu0
        %v3968 = vpop.f32.mrb[0].mxu0
        %3969 = vdwg.mxu0
        %3970 = vmatprep.subr.bf16.mxu0 %v3498
        %3971 = vmatpush1.bf16.msra.mxu0 %v3497
        %3972 = vmatprep.subr.bf16.mxu0 %v3502
        %3973 = vmatpush1.bf16.msra.mxu0 %v3501
        %3974 = vmatprep.subr.bf16.mxu0 %v3506
        %3975 = vmatpush1.bf16.msra.mxu0 %v3505
        %3976 = vmatprep.subr.bf16.mxu0 %v3510
        %3977 = vmatpush1.bf16.msra.mxu0 %v3509
        %3978 = vmatprep.subr.bf16.mxu0 %v3514
        %3979 = vmatpush1.bf16.msra.mxu0 %v3513
        %3980 = vmatprep.subr.bf16.mxu0 %v3518
        %3981 = vmatpush1.bf16.msra.mxu0 %v3517
        %3982 = vmatprep.subr.bf16.mxu0 %v3522
        %3983 = vmatpush1.bf16.msra.mxu0 %v3521
        %3984 = vmatprep.subr.bf16.mxu0 %v3526
        %3985 = vmatpush1.bf16.msra.mxu0 %v3525
        %3986 = vmatprep.subr.bf16.mxu0 0
        %3987 = vmatpush1.bf16.msra.mxu0 0
        %3988 = vmatprep.subr.bf16.mxu0 0
        %3989 = vmatpush1.bf16.msra.mxu0 0
        %3990 = vmatprep.subr.bf16.mxu0 0
        %3991 = vmatpush1.bf16.msra.mxu0 0
        %3992 = vmatprep.subr.bf16.mxu0 0
        %3993 = vmatpush1.bf16.msra.mxu0 0
        %3994 = vmatprep.subr.bf16.mxu0 0
        %3995 = vmatpush1.bf16.msra.mxu0 0
        %3996 = vmatprep.subr.bf16.mxu0 0
        %3997 = vmatpush1.bf16.msra.mxu0 0
        %3998 = vmatprep.subr.bf16.mxu0 0
        %3999 = vmatpush1.bf16.msra.mxu0 0
        %4000 = vmatprep.subr.bf16.mxu0 0
        %4001 = vmatpush1.bf16.msra.mxu0 0
        %4002 = vmatprep.mubr.bf16.mxu0 0
        %4003 = vmatmul.mubr.bf16.gmra.mrb[0].mxu0 %v3927
        %v4004 = vpop.f32.mrb[0].mxu0
        %v4005 = vadd.f32 0.0, %v4004
        %v4006 = vpop.f32.mrb[0].mxu0
        %v4007 = vadd.f32 0.0, %v4006
        %v4008 = vpop.f32.mrb[0].mxu0
        %v4009 = vpop.f32.mrb[0].mxu0
        %4010 = vdwg.mxu0
        %v4015 = vrot.slane %v3964, 5
        %v4016 = vrot.slane %v3966, 5
        %v4017 = vrot.slane %v4005, 5
        %v4018 = vrot.slane %v4007, 5
        %v4023 = vadd.f32 %v3313, %v4015
        %v4024 = vadd.f32 %v3315, %v4016
        %v4025 = vadd.f32 %v3356, %v4017
        %v4026 = vadd.f32 %v3358, %v4018
        %v4027 = vxor.u32 %v4023, 2147483648
        %v4028 = vmul.f32 %v4027, 1.442695
        %v4029 = vpow.pop %v4028
        %v4030 = vadd.f32 %v4029, 1.0
        %v4031 = vrcp.pop %v4030
        %v4032 = vmul.f32 1.0, %v4031
        %v4033 = vxor.u32 %v4024, 2147483648
        %v4034 = vmul.f32 %v4033, 1.442695
        %v4035 = vpow.pop %v4034
        %v4036 = vadd.f32 %v4035, 1.0
        %v4037 = vrcp.pop %v4036
        %v4038 = vmul.f32 1.0, %v4037
        %v4039 = vtanh.pop %v4025
        %v4040 = vxor.u32 %v4026, 2147483648
        %v4041 = vmul.f32 %v4040, 1.442695
        %v4042 = vpow.pop %v4041
        %v4043 = vadd.f32 %v4042, 1.0
        %v4044 = vrcp.pop %v4043
        %v4045 = vmul.f32 1.0, %v4044
        %v4047 = vrot.slane %v3922, 7
        %v4049 = vmul.f32 %v4038, %v4047
        %v4050 = vmul.f32 %v4032, %v4039
        %v4051 = vadd.f32 %v4049, %v4050
        %v4052 = vtanh.pop %v4051
        %v4053 = vmul.f32 %v4045, %v4052
        %v4054 = vpack.c.bf16 %v4053, %v4053
        %v4056 = vshrl.u32 %v4054, 16
        %v4058 = vrot.slane %v4056, 1
        %4060 = vmatprep.subr.bf16.mxu0 %v3496
        %4061 = vmatpush1.bf16.msra.mxu0 %v3495
        %4062 = vmatprep.subr.bf16.mxu0 %v3500
        %4063 = vmatpush1.bf16.msra.mxu0 %v3499
        %4064 = vmatprep.subr.bf16.mxu0 %v3504
        %4065 = vmatpush1.bf16.msra.mxu0 %v3503
        %4066 = vmatprep.subr.bf16.mxu0 %v3508
        %4067 = vmatpush1.bf16.msra.mxu0 %v3507
        %4068 = vmatprep.subr.bf16.mxu0 %v3512
        %4069 = vmatpush1.bf16.msra.mxu0 %v3511
        %4070 = vmatprep.subr.bf16.mxu0 %v3516
        %4071 = vmatpush1.bf16.msra.mxu0 %v3515
        %4072 = vmatprep.subr.bf16.mxu0 %v3520
        %4073 = vmatpush1.bf16.msra.mxu0 %v3519
        %4074 = vmatprep.subr.bf16.mxu0 %v3524
        %4075 = vmatpush1.bf16.msra.mxu0 %v3523
        %4076 = vmatprep.subr.bf16.mxu0 0
        %4077 = vmatpush1.bf16.msra.mxu0 0
        %4078 = vmatprep.subr.bf16.mxu0 0
        %4079 = vmatpush1.bf16.msra.mxu0 0
        %4080 = vmatprep.subr.bf16.mxu0 0
        %4081 = vmatpush1.bf16.msra.mxu0 0
        %4082 = vmatprep.subr.bf16.mxu0 0
        %4083 = vmatpush1.bf16.msra.mxu0 0
        %4084 = vmatprep.subr.bf16.mxu0 0
        %4085 = vmatpush1.bf16.msra.mxu0 0
        %4086 = vmatprep.subr.bf16.mxu0 0
        %4087 = vmatpush1.bf16.msra.mxu0 0
        %4088 = vmatprep.subr.bf16.mxu0 0
        %4089 = vmatpush1.bf16.msra.mxu0 0
        %4090 = vmatprep.subr.bf16.mxu0 0
        %4091 = vmatpush1.bf16.msra.mxu0 0
        %4092 = vmatprep.mubr.bf16.mxu0 0
        %4093 = vmatmul.mubr.bf16.gmra.mrb[0].mxu0 %v4058
        %v4094 = vpop.f32.mrb[0].mxu0
        %v4095 = vadd.f32 0.0, %v4094
        %v4096 = vpop.f32.mrb[0].mxu0
        %v4097 = vadd.f32 0.0, %v4096
        %v4098 = vpop.f32.mrb[0].mxu0
        %v4099 = vpop.f32.mrb[0].mxu0
        %4100 = vdwg.mxu0
        %4101 = vmatprep.subr.bf16.mxu0 %v3498
        %4102 = vmatpush1.bf16.msra.mxu0 %v3497
        %4103 = vmatprep.subr.bf16.mxu0 %v3502
        %4104 = vmatpush1.bf16.msra.mxu0 %v3501
        %4105 = vmatprep.subr.bf16.mxu0 %v3506
        %4106 = vmatpush1.bf16.msra.mxu0 %v3505
        %4107 = vmatprep.subr.bf16.mxu0 %v3510
        %4108 = vmatpush1.bf16.msra.mxu0 %v3509
        %4109 = vmatprep.subr.bf16.mxu0 %v3514
        %4110 = vmatpush1.bf16.msra.mxu0 %v3513
        %4111 = vmatprep.subr.bf16.mxu0 %v3518
        %4112 = vmatpush1.bf16.msra.mxu0 %v3517
        %4113 = vmatprep.subr.bf16.mxu0 %v3522
        %4114 = vmatpush1.bf16.msra.mxu0 %v3521
        %4115 = vmatprep.subr.bf16.mxu0 %v3526
        %4116 = vmatpush1.bf16.msra.mxu0 %v3525
        %4117 = vmatprep.subr.bf16.mxu0 0
        %4118 = vmatpush1.bf16.msra.mxu0 0
        %4119 = vmatprep.subr.bf16.mxu0 0
        %4120 = vmatpush1.bf16.msra.mxu0 0
        %4121 = vmatprep.subr.bf16.mxu0 0
        %4122 = vmatpush1.bf16.msra.mxu0 0
        %4123 = vmatprep.subr.bf16.mxu0 0
        %4124 = vmatpush1.bf16.msra.mxu0 0
        %4125 = vmatprep.subr.bf16.mxu0 0
        %4126 = vmatpush1.bf16.msra.mxu0 0
        %4127 = vmatprep.subr.bf16.mxu0 0
        %4128 = vmatpush1.bf16.msra.mxu0 0
        %4129 = vmatprep.subr.bf16.mxu0 0
        %4130 = vmatpush1.bf16.msra.mxu0 0
        %4131 = vmatprep.subr.bf16.mxu0 0
        %4132 = vmatpush1.bf16.msra.mxu0 0
        %4133 = vmatprep.mubr.bf16.mxu0 0
        %4134 = vmatmul.mubr.bf16.gmra.mrb[0].mxu0 %v4058
        %v4135 = vpop.f32.mrb[0].mxu0
        %v4136 = vadd.f32 0.0, %v4135
        %v4137 = vpop.f32.mrb[0].mxu0
        %v4138 = vadd.f32 0.0, %v4137
        %v4139 = vpop.f32.mrb[0].mxu0
        %v4140 = vpop.f32.mrb[0].mxu0
        %4141 = vdwg.mxu0
        %v4146 = vrot.slane %v4095, 4
        %v4147 = vrot.slane %v4097, 4
        %v4148 = vrot.slane %v4136, 4
        %v4149 = vrot.slane %v4138, 4
        %v4154 = vadd.f32 %v3313, %v4146
        %v4155 = vadd.f32 %v3315, %v4147
        %v4156 = vadd.f32 %v3356, %v4148
        %v4157 = vadd.f32 %v3358, %v4149
        %v4158 = vxor.u32 %v4154, 2147483648
        %v4159 = vmul.f32 %v4158, 1.442695
        %v4160 = vpow.pop %v4159
        %v4161 = vadd.f32 %v4160, 1.0
        %v4162 = vrcp.pop %v4161
        %v4163 = vmul.f32 1.0, %v4162
        %v4164 = vxor.u32 %v4155, 2147483648
        %v4165 = vmul.f32 %v4164, 1.442695
        %v4166 = vpow.pop %v4165
        %v4167 = vadd.f32 %v4166, 1.0
        %v4168 = vrcp.pop %v4167
        %v4169 = vmul.f32 1.0, %v4168
        %v4170 = vtanh.pop %v4156
        %v4171 = vxor.u32 %v4157, 2147483648
        %v4172 = vmul.f32 %v4171, 1.442695
        %v4173 = vpow.pop %v4172
        %v4174 = vadd.f32 %v4173, 1.0
        %v4175 = vrcp.pop %v4174
        %v4176 = vmul.f32 1.0, %v4175
        %v4178 = vrot.slane %v4051, 7
        %v4180 = vmul.f32 %v4169, %v4178
        %v4181 = vmul.f32 %v4163, %v4170
        %v4182 = vadd.f32 %v4180, %v4181
        %v4183 = vtanh.pop %v4182
        %v4184 = vmul.f32 %v4176, %v4183
        %v4185 = vpack.c.bf16 %v4184, %v4184
        %v4187 = vrot.slane %v4185, 2
        %4189 = vmatprep.subr.bf16.mxu0 %v3496
        %4190 = vmatpush1.bf16.msra.mxu0 %v3495
        %4191 = vmatprep.subr.bf16.mxu0 %v3500
        %4192 = vmatpush1.bf16.msra.mxu0 %v3499
        %4193 = vmatprep.subr.bf16.mxu0 %v3504
        %4194 = vmatpush1.bf16.msra.mxu0 %v3503
        %4195 = vmatprep.subr.bf16.mxu0 %v3508
        %4196 = vmatpush1.bf16.msra.mxu0 %v3507
        %4197 = vmatprep.subr.bf16.mxu0 %v3512
        %4198 = vmatpush1.bf16.msra.mxu0 %v3511
        %4199 = vmatprep.subr.bf16.mxu0 %v3516
        %4200 = vmatpush1.bf16.msra.mxu0 %v3515
        %4201 = vmatprep.subr.bf16.mxu0 %v3520
        %4202 = vmatpush1.bf16.msra.mxu0 %v3519
        %4203 = vmatprep.subr.bf16.mxu0 %v3524
        %4204 = vmatpush1.bf16.msra.mxu0 %v3523
        %4205 = vmatprep.subr.bf16.mxu0 0
        %4206 = vmatpush1.bf16.msra.mxu0 0
        %4207 = vmatprep.subr.bf16.mxu0 0
        %4208 = vmatpush1.bf16.msra.mxu0 0
        %4209 = vmatprep.subr.bf16.mxu0 0
        %4210 = vmatpush1.bf16.msra.mxu0 0
        %4211 = vmatprep.subr.bf16.mxu0 0
        %4212 = vmatpush1.bf16.msra.mxu0 0
        %4213 = vmatprep.subr.bf16.mxu0 0
        %4214 = vmatpush1.bf16.msra.mxu0 0
        %4215 = vmatprep.subr.bf16.mxu0 0
        %4216 = vmatpush1.bf16.msra.mxu0 0
        %4217 = vmatprep.subr.bf16.mxu0 0
        %4218 = vmatpush1.bf16.msra.mxu0 0
        %4219 = vmatprep.subr.bf16.mxu0 0
        %4220 = vmatpush1.bf16.msra.mxu0 0
        %4221 = vmatprep.mubr.bf16.mxu0 0
        %4222 = vmatmul.mubr.bf16.gmra.mrb[0].mxu0 %v4187
        %v4223 = vpop.f32.mrb[0].mxu0
        %v4224 = vadd.f32 0.0, %v4223
        %v4225 = vpop.f32.mrb[0].mxu0
        %v4226 = vadd.f32 0.0, %v4225
        %v4227 = vpop.f32.mrb[0].mxu0
        %v4228 = vpop.f32.mrb[0].mxu0
        %4229 = vdwg.mxu0
        %4230 = vmatprep.subr.bf16.mxu0 %v3498
        %4231 = vmatpush1.bf16.msra.mxu0 %v3497
        %4232 = vmatprep.subr.bf16.mxu0 %v3502
        %4233 = vmatpush1.bf16.msra.mxu0 %v3501
        %4234 = vmatprep.subr.bf16.mxu0 %v3506
        %4235 = vmatpush1.bf16.msra.mxu0 %v3505
        %4236 = vmatprep.subr.bf16.mxu0 %v3510
        %4237 = vmatpush1.bf16.msra.mxu0 %v3509
        %4238 = vmatprep.subr.bf16.mxu0 %v3514
        %4239 = vmatpush1.bf16.msra.mxu0 %v3513
        %4240 = vmatprep.subr.bf16.mxu0 %v3518
        %4241 = vmatpush1.bf16.msra.mxu0 %v3517
        %4242 = vmatprep.subr.bf16.mxu0 %v3522
        %4243 = vmatpush1.bf16.msra.mxu0 %v3521
        %4244 = vmatprep.subr.bf16.mxu0 %v3526
        %4245 = vmatpush1.bf16.msra.mxu0 %v3525
        %4246 = vmatprep.subr.bf16.mxu0 0
        %4247 = vmatpush1.bf16.msra.mxu0 0
        %4248 = vmatprep.subr.bf16.mxu0 0
        %4249 = vmatpush1.bf16.msra.mxu0 0
        %4250 = vmatprep.subr.bf16.mxu0 0
        %4251 = vmatpush1.bf16.msra.mxu0 0
        %4252 = vmatprep.subr.bf16.mxu0 0
        %4253 = vmatpush1.bf16.msra.mxu0 0
        %4254 = vmatprep.subr.bf16.mxu0 0
        %4255 = vmatpush1.bf16.msra.mxu0 0
        %4256 = vmatprep.subr.bf16.mxu0 0
        %4257 = vmatpush1.bf16.msra.mxu0 0
        %4258 = vmatprep.subr.bf16.mxu0 0
        %4259 = vmatpush1.bf16.msra.mxu0 0
        %4260 = vmatprep.subr.bf16.mxu0 0
        %4261 = vmatpush1.bf16.msra.mxu0 0
        %4262 = vmatprep.mubr.bf16.mxu0 0
        %4263 = vmatmul.mubr.bf16.gmra.mrb[0].mxu0 %v4187
        %v4264 = vpop.f32.mrb[0].mxu0
        %v4265 = vadd.f32 0.0, %v4264
        %v4266 = vpop.f32.mrb[0].mxu0
        %v4267 = vadd.f32 0.0, %v4266
        %v4268 = vpop.f32.mrb[0].mxu0
        %v4269 = vpop.f32.mrb[0].mxu0
        %4270 = vdwg.mxu0
        %v4275 = vrot.slane %v4224, 3
        %v4276 = vrot.slane %v4226, 3
        %v4277 = vrot.slane %v4265, 3
        %v4278 = vrot.slane %v4267, 3
        %v4283 = vadd.f32 %v3313, %v4275
        %v4284 = vadd.f32 %v3315, %v4276
        %v4285 = vadd.f32 %v3356, %v4277
        %v4286 = vadd.f32 %v3358, %v4278
        %v4287 = vxor.u32 %v4283, 2147483648
        %v4288 = vmul.f32 %v4287, 1.442695
        %v4289 = vpow.pop %v4288
        %v4290 = vadd.f32 %v4289, 1.0
        %v4291 = vrcp.pop %v4290
        %v4292 = vmul.f32 1.0, %v4291
        %v4293 = vxor.u32 %v4284, 2147483648
        %v4294 = vmul.f32 %v4293, 1.442695
        %v4295 = vpow.pop %v4294
        %v4296 = vadd.f32 %v4295, 1.0
        %v4297 = vrcp.pop %v4296
        %v4298 = vmul.f32 1.0, %v4297
        %v4299 = vtanh.pop %v4285
        %v4300 = vxor.u32 %v4286, 2147483648
        %v4301 = vmul.f32 %v4300, 1.442695
        %v4302 = vpow.pop %v4301
        %v4303 = vadd.f32 %v4302, 1.0
        %v4304 = vrcp.pop %v4303
        %v4305 = vmul.f32 1.0, %v4304
        %v4307 = vrot.slane %v4182, 7
        %v4309 = vmul.f32 %v4298, %v4307
        %v4310 = vmul.f32 %v4292, %v4299
        %v4311 = vadd.f32 %v4309, %v4310
        %v4312 = vtanh.pop %v4311
        %v4313 = vmul.f32 %v4305, %v4312
        %v4314 = vpack.c.bf16 %v4313, %v4313
        %v4316 = vshrl.u32 %v4314, 16
        %v4318 = vrot.slane %v4316, 2
        %4320 = vmatprep.subr.bf16.mxu0 %v3496
        %4321 = vmatpush1.bf16.msra.mxu0 %v3495
        %4322 = vmatprep.subr.bf16.mxu0 %v3500
        %4323 = vmatpush1.bf16.msra.mxu0 %v3499
        %4324 = vmatprep.subr.bf16.mxu0 %v3504
        %4325 = vmatpush1.bf16.msra.mxu0 %v3503
        %4326 = vmatprep.subr.bf16.mxu0 %v3508
        %4327 = vmatpush1.bf16.msra.mxu0 %v3507
        %4328 = vmatprep.subr.bf16.mxu0 %v3512
        %4329 = vmatpush1.bf16.msra.mxu0 %v3511
        %4330 = vmatprep.subr.bf16.mxu0 %v3516
        %4331 = vmatpush1.bf16.msra.mxu0 %v3515
        %4332 = vmatprep.subr.bf16.mxu0 %v3520
        %4333 = vmatpush1.bf16.msra.mxu0 %v3519
        %4334 = vmatprep.subr.bf16.mxu0 %v3524
        %4335 = vmatpush1.bf16.msra.mxu0 %v3523
        %4336 = vmatprep.subr.bf16.mxu0 0
        %4337 = vmatpush1.bf16.msra.mxu0 0
        %4338 = vmatprep.subr.bf16.mxu0 0
        %4339 = vmatpush1.bf16.msra.mxu0 0
        %4340 = vmatprep.subr.bf16.mxu0 0
        %4341 = vmatpush1.bf16.msra.mxu0 0
        %4342 = vmatprep.subr.bf16.mxu0 0
        %4343 = vmatpush1.bf16.msra.mxu0 0
        %4344 = vmatprep.subr.bf16.mxu0 0
        %4345 = vmatpush1.bf16.msra.mxu0 0
        %4346 = vmatprep.subr.bf16.mxu0 0
        %4347 = vmatpush1.bf16.msra.mxu0 0
        %4348 = vmatprep.subr.bf16.mxu0 0
        %4349 = vmatpush1.bf16.msra.mxu0 0
        %4350 = vmatprep.subr.bf16.mxu0 0
        %4351 = vmatpush1.bf16.msra.mxu0 0
        %4352 = vmatprep.mubr.bf16.mxu0 0
        %4353 = vmatmul.mubr.bf16.gmra.mrb[0].mxu0 %v4318
        %v4354 = vpop.f32.mrb[0].mxu0
        %v4355 = vadd.f32 0.0, %v4354
        %v4356 = vpop.f32.mrb[0].mxu0
        %v4357 = vadd.f32 0.0, %v4356
        %v4358 = vpop.f32.mrb[0].mxu0
        %v4359 = vpop.f32.mrb[0].mxu0
        %4360 = vdwg.mxu0
        %4361 = vmatprep.subr.bf16.mxu0 %v3498
        %4362 = vmatpush1.bf16.msra.mxu0 %v3497
        %4363 = vmatprep.subr.bf16.mxu0 %v3502
        %4364 = vmatpush1.bf16.msra.mxu0 %v3501
        %4365 = vmatprep.subr.bf16.mxu0 %v3506
        %4366 = vmatpush1.bf16.msra.mxu0 %v3505
        %4367 = vmatprep.subr.bf16.mxu0 %v3510
        %4368 = vmatpush1.bf16.msra.mxu0 %v3509
        %4369 = vmatprep.subr.bf16.mxu0 %v3514
        %4370 = vmatpush1.bf16.msra.mxu0 %v3513
        %4371 = vmatprep.subr.bf16.mxu0 %v3518
        %4372 = vmatpush1.bf16.msra.mxu0 %v3517
        %4373 = vmatprep.subr.bf16.mxu0 %v3522
        %4374 = vmatpush1.bf16.msra.mxu0 %v3521
        %4375 = vmatprep.subr.bf16.mxu0 %v3526
        %4376 = vmatpush1.bf16.msra.mxu0 %v3525
        %4377 = vmatprep.subr.bf16.mxu0 0
        %4378 = vmatpush1.bf16.msra.mxu0 0
        %4379 = vmatprep.subr.bf16.mxu0 0
        %4380 = vmatpush1.bf16.msra.mxu0 0
        %4381 = vmatprep.subr.bf16.mxu0 0
        %4382 = vmatpush1.bf16.msra.mxu0 0
        %4383 = vmatprep.subr.bf16.mxu0 0
        %4384 = vmatpush1.bf16.msra.mxu0 0
        %4385 = vmatprep.subr.bf16.mxu0 0
        %4386 = vmatpush1.bf16.msra.mxu0 0
        %4387 = vmatprep.subr.bf16.mxu0 0
        %4388 = vmatpush1.bf16.msra.mxu0 0
        %4389 = vmatprep.subr.bf16.mxu0 0
        %4390 = vmatpush1.bf16.msra.mxu0 0
        %4391 = vmatprep.subr.bf16.mxu0 0
        %4392 = vmatpush1.bf16.msra.mxu0 0
        %4393 = vmatprep.mubr.bf16.mxu0 0
        %4394 = vmatmul.mubr.bf16.gmra.mrb[0].mxu0 %v4318
        %v4395 = vpop.f32.mrb[0].mxu0
        %v4396 = vadd.f32 0.0, %v4395
        %v4397 = vpop.f32.mrb[0].mxu0
        %v4398 = vadd.f32 0.0, %v4397
        %v4399 = vpop.f32.mrb[0].mxu0
        %v4400 = vpop.f32.mrb[0].mxu0
        %4401 = vdwg.mxu0
        %v4406 = vrot.slane %v4355, 2
        %v4407 = vrot.slane %v4357, 2
        %v4408 = vrot.slane %v4396, 2
        %v4409 = vrot.slane %v4398, 2
        %v4414 = vadd.f32 %v3313, %v4406
        %v4415 = vadd.f32 %v3315, %v4407
        %v4416 = vadd.f32 %v3356, %v4408
        %v4417 = vadd.f32 %v3358, %v4409
        %v4418 = vxor.u32 %v4414, 2147483648
        %v4419 = vmul.f32 %v4418, 1.442695
        %v4420 = vpow.pop %v4419
        %v4421 = vadd.f32 %v4420, 1.0
        %v4422 = vrcp.pop %v4421
        %v4423 = vmul.f32 1.0, %v4422
        %v4424 = vxor.u32 %v4415, 2147483648
        %v4425 = vmul.f32 %v4424, 1.442695
        %v4426 = vpow.pop %v4425
        %v4427 = vadd.f32 %v4426, 1.0
        %v4428 = vrcp.pop %v4427
        %v4429 = vmul.f32 1.0, %v4428
        %v4430 = vtanh.pop %v4416
        %v4431 = vxor.u32 %v4417, 2147483648
        %v4432 = vmul.f32 %v4431, 1.442695
        %v4433 = vpow.pop %v4432
        %v4434 = vadd.f32 %v4433, 1.0
        %v4435 = vrcp.pop %v4434
        %v4436 = vmul.f32 1.0, %v4435
        %v4438 = vrot.slane %v4311, 7
        %v4440 = vmul.f32 %v4429, %v4438
        %v4441 = vmul.f32 %v4423, %v4430
        %v4442 = vadd.f32 %v4440, %v4441
        %v4443 = vtanh.pop %v4442
        %v4444 = vmul.f32 %v4436, %v4443
        %v4445 = vpack.c.bf16 %v4444, %v4444
        %v4447 = vrot.slane %v4445, 3
        %4449 = vmatprep.subr.bf16.mxu0 %v3496
        %4450 = vmatpush1.bf16.msra.mxu0 %v3495
        %4451 = vmatprep.subr.bf16.mxu0 %v3500
        %4452 = vmatpush1.bf16.msra.mxu0 %v3499
        %4453 = vmatprep.subr.bf16.mxu0 %v3504
        %4454 = vmatpush1.bf16.msra.mxu0 %v3503
        %4455 = vmatprep.subr.bf16.mxu0 %v3508
        %4456 = vmatpush1.bf16.msra.mxu0 %v3507
        %4457 = vmatprep.subr.bf16.mxu0 %v3512
        %4458 = vmatpush1.bf16.msra.mxu0 %v3511
        %4459 = vmatprep.subr.bf16.mxu0 %v3516
        %4460 = vmatpush1.bf16.msra.mxu0 %v3515
        %4461 = vmatprep.subr.bf16.mxu0 %v3520
        %4462 = vmatpush1.bf16.msra.mxu0 %v3519
        %4463 = vmatprep.subr.bf16.mxu0 %v3524
        %4464 = vmatpush1.bf16.msra.mxu0 %v3523
        %4465 = vmatprep.subr.bf16.mxu0 0
        %4466 = vmatpush1.bf16.msra.mxu0 0
        %4467 = vmatprep.subr.bf16.mxu0 0
        %4468 = vmatpush1.bf16.msra.mxu0 0
        %4469 = vmatprep.subr.bf16.mxu0 0
        %4470 = vmatpush1.bf16.msra.mxu0 0
        %4471 = vmatprep.subr.bf16.mxu0 0
        %4472 = vmatpush1.bf16.msra.mxu0 0
        %4473 = vmatprep.subr.bf16.mxu0 0
        %4474 = vmatpush1.bf16.msra.mxu0 0
        %4475 = vmatprep.subr.bf16.mxu0 0
        %4476 = vmatpush1.bf16.msra.mxu0 0
        %4477 = vmatprep.subr.bf16.mxu0 0
        %4478 = vmatpush1.bf16.msra.mxu0 0
        %4479 = vmatprep.subr.bf16.mxu0 0
        %4480 = vmatpush1.bf16.msra.mxu0 0
        %4481 = vmatprep.mubr.bf16.mxu0 0
        %4482 = vmatmul.mubr.bf16.gmra.mrb[0].mxu0 %v4447
        %v4483 = vpop.f32.mrb[0].mxu0
        %v4484 = vadd.f32 0.0, %v4483
        %v4485 = vpop.f32.mrb[0].mxu0
        %v4486 = vadd.f32 0.0, %v4485
        %v4487 = vpop.f32.mrb[0].mxu0
        %v4488 = vpop.f32.mrb[0].mxu0
        %4489 = vdwg.mxu0
        %4490 = vmatprep.subr.bf16.mxu0 %v3498
        %4491 = vmatpush1.bf16.msra.mxu0 %v3497
        %4492 = vmatprep.subr.bf16.mxu0 %v3502
        %4493 = vmatpush1.bf16.msra.mxu0 %v3501
        %4494 = vmatprep.subr.bf16.mxu0 %v3506
        %4495 = vmatpush1.bf16.msra.mxu0 %v3505
        %4496 = vmatprep.subr.bf16.mxu0 %v3510
        %4497 = vmatpush1.bf16.msra.mxu0 %v3509
        %4498 = vmatprep.subr.bf16.mxu0 %v3514
        %4499 = vmatpush1.bf16.msra.mxu0 %v3513
        %4500 = vmatprep.subr.bf16.mxu0 %v3518
        %4501 = vmatpush1.bf16.msra.mxu0 %v3517
        %4502 = vmatprep.subr.bf16.mxu0 %v3522
        %4503 = vmatpush1.bf16.msra.mxu0 %v3521
        %4504 = vmatprep.subr.bf16.mxu0 %v3526
        %4505 = vmatpush1.bf16.msra.mxu0 %v3525
        %4506 = vmatprep.subr.bf16.mxu0 0
        %4507 = vmatpush1.bf16.msra.mxu0 0
        %4508 = vmatprep.subr.bf16.mxu0 0
        %4509 = vmatpush1.bf16.msra.mxu0 0
        %4510 = vmatprep.subr.bf16.mxu0 0
        %4511 = vmatpush1.bf16.msra.mxu0 0
        %4512 = vmatprep.subr.bf16.mxu0 0
        %4513 = vmatpush1.bf16.msra.mxu0 0
        %4514 = vmatprep.subr.bf16.mxu0 0
        %4515 = vmatpush1.bf16.msra.mxu0 0
        %4516 = vmatprep.subr.bf16.mxu0 0
        %4517 = vmatpush1.bf16.msra.mxu0 0
        %4518 = vmatprep.subr.bf16.mxu0 0
        %4519 = vmatpush1.bf16.msra.mxu0 0
        %4520 = vmatprep.subr.bf16.mxu0 0
        %4521 = vmatpush1.bf16.msra.mxu0 0
        %4522 = vmatprep.mubr.bf16.mxu0 0
        %4523 = vmatmul.mubr.bf16.gmra.mrb[0].mxu0 %v4447
        %v4524 = vpop.f32.mrb[0].mxu0
        %v4525 = vadd.f32 0.0, %v4524
        %v4526 = vpop.f32.mrb[0].mxu0
        %v4527 = vadd.f32 0.0, %v4526
        %v4528 = vpop.f32.mrb[0].mxu0
        %v4529 = vpop.f32.mrb[0].mxu0
        %4530 = vdwg.mxu0
        %v4535 = vrot.slane %v4484, 1
        %v4536 = vrot.slane %v4486, 1
        %v4537 = vrot.slane %v4525, 1
        %v4538 = vrot.slane %v4527, 1
        %v4543 = vadd.f32 %v3313, %v4535
        %v4544 = vadd.f32 %v3315, %v4536
        %v4545 = vadd.f32 %v3356, %v4537
        %v4546 = vadd.f32 %v3358, %v4538
        %v4547 = vxor.u32 %v4543, 2147483648
        %v4548 = vmul.f32 %v4547, 1.442695
        %v4549 = vpow.pop %v4548
        %v4550 = vadd.f32 %v4549, 1.0
        %v4551 = vrcp.pop %v4550
        %v4552 = vmul.f32 1.0, %v4551
        %v4553 = vxor.u32 %v4544, 2147483648
        %v4554 = vmul.f32 %v4553, 1.442695
        %v4555 = vpow.pop %v4554
        %v4556 = vadd.f32 %v4555, 1.0
        %v4557 = vrcp.pop %v4556
        %v4558 = vmul.f32 1.0, %v4557
        %v4559 = vtanh.pop %v4545
        %v4560 = vxor.u32 %v4546, 2147483648
        %v4561 = vmul.f32 %v4560, 1.442695
        %v4562 = vpow.pop %v4561
        %v4563 = vadd.f32 %v4562, 1.0
        %v4564 = vrcp.pop %v4563
        %v4565 = vmul.f32 1.0, %v4564
        %v4567 = vrot.slane %v4442, 7
        %v4569 = vmul.f32 %v4558, %v4567
        %v4570 = vmul.f32 %v4552, %v4559
        %v4571 = vadd.f32 %v4569, %v4570
        %v4572 = vtanh.pop %v4571
        %v4573 = vmul.f32 %v4565, %v4572
        %v4574 = vpack.c.bf16 %v4573, %v4573
        %v4576 = vshrl.u32 %v4574, 16
        %v4578 = vrot.slane %v4576, 3
        %4580 = vmatprep.subr.bf16.mxu0 %v3496
        %4581 = vmatpush1.bf16.msra.mxu0 %v3495
        %4582 = vmatprep.subr.bf16.mxu0 %v3500
        %4583 = vmatpush1.bf16.msra.mxu0 %v3499
        %4584 = vmatprep.subr.bf16.mxu0 %v3504
        %4585 = vmatpush1.bf16.msra.mxu0 %v3503
        %4586 = vmatprep.subr.bf16.mxu0 %v3508
        %4587 = vmatpush1.bf16.msra.mxu0 %v3507
        %4588 = vmatprep.subr.bf16.mxu0 %v3512
        %4589 = vmatpush1.bf16.msra.mxu0 %v3511
        %4590 = vmatprep.subr.bf16.mxu0 %v3516
        %4591 = vmatpush1.bf16.msra.mxu0 %v3515
        %4592 = vmatprep.subr.bf16.mxu0 %v3520
        %4593 = vmatpush1.bf16.msra.mxu0 %v3519
        %4594 = vmatprep.subr.bf16.mxu0 %v3524
        %4595 = vmatpush1.bf16.msra.mxu0 %v3523
        %4596 = vmatprep.subr.bf16.mxu0 0
        %4597 = vmatpush1.bf16.msra.mxu0 0
        %4598 = vmatprep.subr.bf16.mxu0 0
        %4599 = vmatpush1.bf16.msra.mxu0 0
        %4600 = vmatprep.subr.bf16.mxu0 0
        %4601 = vmatpush1.bf16.msra.mxu0 0
        %4602 = vmatprep.subr.bf16.mxu0 0
        %4603 = vmatpush1.bf16.msra.mxu0 0
        %4604 = vmatprep.subr.bf16.mxu0 0
        %4605 = vmatpush1.bf16.msra.mxu0 0
        %4606 = vmatprep.subr.bf16.mxu0 0
        %4607 = vmatpush1.bf16.msra.mxu0 0
        %4608 = vmatprep.subr.bf16.mxu0 0
        %4609 = vmatpush1.bf16.msra.mxu0 0
        %4610 = vmatprep.subr.bf16.mxu0 0
        %4611 = vmatpush1.bf16.msra.mxu0 0
        %4612 = vmatprep.mubr.bf16.mxu0 0
        %4613 = vmatmul.mubr.bf16.gmra.mrb[0].mxu0 %v4578
        %v4614 = vpop.f32.mrb[0].mxu0
        %v4615 = vadd.f32 0.0, %v4614
        %v4616 = vpop.f32.mrb[0].mxu0
        %v4617 = vadd.f32 0.0, %v4616
        %v4618 = vpop.f32.mrb[0].mxu0
        %v4619 = vpop.f32.mrb[0].mxu0
        %4620 = vdwg.mxu0
        %4621 = vmatprep.subr.bf16.mxu0 %v3498
        %4622 = vmatpush1.bf16.msra.mxu0 %v3497
        %4623 = vmatprep.subr.bf16.mxu0 %v3502
        %4624 = vmatpush1.bf16.msra.mxu0 %v3501
        %4625 = vmatprep.subr.bf16.mxu0 %v3506
        %4626 = vmatpush1.bf16.msra.mxu0 %v3505
        %4627 = vmatprep.subr.bf16.mxu0 %v3510
        %4628 = vmatpush1.bf16.msra.mxu0 %v3509
        %4629 = vmatprep.subr.bf16.mxu0 %v3514
        %4630 = vmatpush1.bf16.msra.mxu0 %v3513
        %4631 = vmatprep.subr.bf16.mxu0 %v3518
        %4632 = vmatpush1.bf16.msra.mxu0 %v3517
        %4633 = vmatprep.subr.bf16.mxu0 %v3522
        %4634 = vmatpush1.bf16.msra.mxu0 %v3521
        %4635 = vmatprep.subr.bf16.mxu0 %v3526
        %4636 = vmatpush1.bf16.msra.mxu0 %v3525
        %4637 = vmatprep.subr.bf16.mxu0 0
        %4638 = vmatpush1.bf16.msra.mxu0 0
        %4639 = vmatprep.subr.bf16.mxu0 0
        %4640 = vmatpush1.bf16.msra.mxu0 0
        %4641 = vmatprep.subr.bf16.mxu0 0
        %4642 = vmatpush1.bf16.msra.mxu0 0
        %4643 = vmatprep.subr.bf16.mxu0 0
        %4644 = vmatpush1.bf16.msra.mxu0 0
        %4645 = vmatprep.subr.bf16.mxu0 0
        %4646 = vmatpush1.bf16.msra.mxu0 0
        %4647 = vmatprep.subr.bf16.mxu0 0
        %4648 = vmatpush1.bf16.msra.mxu0 0
        %4649 = vmatprep.subr.bf16.mxu0 0
        %4650 = vmatpush1.bf16.msra.mxu0 0
        %4651 = vmatprep.subr.bf16.mxu0 0
        %4652 = vmatpush1.bf16.msra.mxu0 0
        %4653 = vmatprep.mubr.bf16.mxu0 0
        %4654 = vmatmul.mubr.bf16.gmra.mrb[0].mxu0 %v4578
        %v4655 = vpop.f32.mrb[0].mxu0
        %v4656 = vadd.f32 0.0, %v4655
        %v4657 = vpop.f32.mrb[0].mxu0
        %v4658 = vadd.f32 0.0, %v4657
        %v4659 = vpop.f32.mrb[0].mxu0
        %v4660 = vpop.f32.mrb[0].mxu0
        %4661 = vdwg.mxu0
        %v4662 = vadd.f32 %v3317, %v4615
        %v4663 = vadd.f32 %v3319, %v4617
        %v4664 = vadd.f32 %v3360, %v4656
        %v4665 = vadd.f32 %v3362, %v4658
        %v4666 = vxor.u32 %v4662, 2147483648
        %v4667 = vmul.f32 %v4666, 1.442695
        %v4668 = vpow.pop %v4667
        %v4669 = vadd.f32 %v4668, 1.0
        %v4670 = vrcp.pop %v4669
        %v4671 = vmul.f32 1.0, %v4670
        %v4672 = vxor.u32 %v4663, 2147483648
        %v4673 = vmul.f32 %v4672, 1.442695
        %v4674 = vpow.pop %v4673
        %v4675 = vadd.f32 %v4674, 1.0
        %v4676 = vrcp.pop %v4675
        %v4677 = vmul.f32 1.0, %v4676
        %v4678 = vtanh.pop %v4664
        %v4679 = vxor.u32 %v4665, 2147483648
        %v4680 = vmul.f32 %v4679, 1.442695
        %v4681 = vpow.pop %v4680
        %v4682 = vadd.f32 %v4681, 1.0
        %v4683 = vrcp.pop %v4682
        %v4684 = vmul.f32 1.0, %v4683
        %v4686 = vrot.slane %v4571, 7
        %v4688 = vmul.f32 %v4677, %v4686
        %v4689 = vmul.f32 %v4671, %v4678
        %v4690 = vadd.f32 %v4688, %v4689
        %v4691 = vtanh.pop %v4690
        %v4692 = vmul.f32 %v4684, %v4691
        %v4693 = vpack.c.bf16 %v4692, %v4692
        %4694 = vmatprep.subr.bf16.mxu0 %v3496
        %4695 = vmatpush1.bf16.msra.mxu0 %v3495
        %4696 = vmatprep.subr.bf16.mxu0 %v3500
        %4697 = vmatpush1.bf16.msra.mxu0 %v3499
        %4698 = vmatprep.subr.bf16.mxu0 %v3504
        %4699 = vmatpush1.bf16.msra.mxu0 %v3503
        %4700 = vmatprep.subr.bf16.mxu0 %v3508
        %4701 = vmatpush1.bf16.msra.mxu0 %v3507
        %4702 = vmatprep.subr.bf16.mxu0 %v3512
        %4703 = vmatpush1.bf16.msra.mxu0 %v3511
        %4704 = vmatprep.subr.bf16.mxu0 %v3516
        %4705 = vmatpush1.bf16.msra.mxu0 %v3515
        %4706 = vmatprep.subr.bf16.mxu0 %v3520
        %4707 = vmatpush1.bf16.msra.mxu0 %v3519
        %4708 = vmatprep.subr.bf16.mxu0 %v3524
        %4709 = vmatpush1.bf16.msra.mxu0 %v3523
        %4710 = vmatprep.subr.bf16.mxu0 0
        %4711 = vmatpush1.bf16.msra.mxu0 0
        %4712 = vmatprep.subr.bf16.mxu0 0
        %4713 = vmatpush1.bf16.msra.mxu0 0
        %4714 = vmatprep.subr.bf16.mxu0 0
        %4715 = vmatpush1.bf16.msra.mxu0 0
        %4716 = vmatprep.subr.bf16.mxu0 0
        %4717 = vmatpush1.bf16.msra.mxu0 0
        %4718 = vmatprep.subr.bf16.mxu0 0
        %4719 = vmatpush1.bf16.msra.mxu0 0
        %4720 = vmatprep.subr.bf16.mxu0 0
        %4721 = vmatpush1.bf16.msra.mxu0 0
        %4722 = vmatprep.subr.bf16.mxu0 0
        %4723 = vmatpush1.bf16.msra.mxu0 0
        %4724 = vmatprep.subr.bf16.mxu0 0
        %4725 = vmatpush1.bf16.msra.mxu0 0
        %4726 = vmatprep.mubr.bf16.mxu0 0
        %4727 = vmatmul.mubr.bf16.gmra.mrb[0].mxu0 %v4693
        %v4728 = vpop.f32.mrb[0].mxu0
        %v4729 = vadd.f32 0.0, %v4728
        %v4730 = vpop.f32.mrb[0].mxu0
        %v4731 = vadd.f32 0.0, %v4730
        %v4732 = vpop.f32.mrb[0].mxu0
        %v4733 = vpop.f32.mrb[0].mxu0
        %4734 = vdwg.mxu0
        %4735 = vmatprep.subr.bf16.mxu0 %v3498
        %4736 = vmatpush1.bf16.msra.mxu0 %v3497
        %4737 = vmatprep.subr.bf16.mxu0 %v3502
        %4738 = vmatpush1.bf16.msra.mxu0 %v3501
        %4739 = vmatprep.subr.bf16.mxu0 %v3506
        %4740 = vmatpush1.bf16.msra.mxu0 %v3505
        %4741 = vmatprep.subr.bf16.mxu0 %v3510
        %4742 = vmatpush1.bf16.msra.mxu0 %v3509
        %4743 = vmatprep.subr.bf16.mxu0 %v3514
        %4744 = vmatpush1.bf16.msra.mxu0 %v3513
        %4745 = vmatprep.subr.bf16.mxu0 %v3518
        %4746 = vmatpush1.bf16.msra.mxu0 %v3517
        %4747 = vmatprep.subr.bf16.mxu0 %v3522
        %4748 = vmatpush1.bf16.msra.mxu0 %v3521
        %4749 = vmatprep.subr.bf16.mxu0 %v3526
        %4750 = vmatpush1.bf16.msra.mxu0 %v3525
        %4751 = vmatprep.subr.bf16.mxu0 0
        %4752 = vmatpush1.bf16.msra.mxu0 0
        %4753 = vmatprep.subr.bf16.mxu0 0
        %4754 = vmatpush1.bf16.msra.mxu0 0
        %4755 = vmatprep.subr.bf16.mxu0 0
        %4756 = vmatpush1.bf16.msra.mxu0 0
        %4757 = vmatprep.subr.bf16.mxu0 0
        %4758 = vmatpush1.bf16.msra.mxu0 0
        %4759 = vmatprep.subr.bf16.mxu0 0
        %4760 = vmatpush1.bf16.msra.mxu0 0
        %4761 = vmatprep.subr.bf16.mxu0 0
        %4762 = vmatpush1.bf16.msra.mxu0 0
        %4763 = vmatprep.subr.bf16.mxu0 0
        %4764 = vmatpush1.bf16.msra.mxu0 0
        %4765 = vmatprep.subr.bf16.mxu0 0
        %4766 = vmatpush1.bf16.msra.mxu0 0
        %4767 = vmatprep.mubr.bf16.mxu0 0
        %4768 = vmatmul.mubr.bf16.gmra.mrb[0].mxu0 %v4693
        %v4769 = vpop.f32.mrb[0].mxu0
        %v4770 = vadd.f32 0.0, %v4769
        %v4771 = vpop.f32.mrb[0].mxu0
        %v4772 = vadd.f32 0.0, %v4771
        %v4773 = vpop.f32.mrb[0].mxu0
        %v4774 = vpop.f32.mrb[0].mxu0
        %4775 = vdwg.mxu0
        %v4780 = vrot.slane %v4729, 7
        %v4781 = vrot.slane %v4731, 7
        %v4782 = vrot.slane %v4770, 7
        %v4783 = vrot.slane %v4772, 7
        %v4788 = vadd.f32 %v3317, %v4780
        %v4789 = vadd.f32 %v3319, %v4781
        %v4790 = vadd.f32 %v3360, %v4782
        %v4791 = vadd.f32 %v3362, %v4783
        %v4792 = vxor.u32 %v4788, 2147483648
        %v4793 = vmul.f32 %v4792, 1.442695
        %v4794 = vpow.pop %v4793
        %v4795 = vadd.f32 %v4794, 1.0
        %v4796 = vrcp.pop %v4795
        %v4797 = vmul.f32 1.0, %v4796
        %v4798 = vxor.u32 %v4789, 2147483648
        %v4799 = vmul.f32 %v4798, 1.442695
        %v4800 = vpow.pop %v4799
        %v4801 = vadd.f32 %v4800, 1.0
        %v4802 = vrcp.pop %v4801
        %v4803 = vmul.f32 1.0, %v4802
        %v4804 = vtanh.pop %v4790
        %v4805 = vxor.u32 %v4791, 2147483648
        %v4806 = vmul.f32 %v4805, 1.442695
        %v4807 = vpow.pop %v4806
        %v4808 = vadd.f32 %v4807, 1.0
        %v4809 = vrcp.pop %v4808
        %v4810 = vmul.f32 1.0, %v4809
        %v4812 = vrot.slane %v4690, 7
        %v4814 = vmul.f32 %v4803, %v4812
        %v4815 = vmul.f32 %v4797, %v4804
        %v4816 = vadd.f32 %v4814, %v4815
        %v4817 = vtanh.pop %v4816
        %v4818 = vmul.f32 %v4810, %v4817
        %v4819 = vpack.c.bf16 %v4818, %v4818
        %v4821 = vshrl.u32 %v4819, 16
        %4824 = vmatprep.subr.bf16.mxu0 %v3496
        %4825 = vmatpush1.bf16.msra.mxu0 %v3495
        %4826 = vmatprep.subr.bf16.mxu0 %v3500
        %4827 = vmatpush1.bf16.msra.mxu0 %v3499
        %4828 = vmatprep.subr.bf16.mxu0 %v3504
        %4829 = vmatpush1.bf16.msra.mxu0 %v3503
        %4830 = vmatprep.subr.bf16.mxu0 %v3508
        %4831 = vmatpush1.bf16.msra.mxu0 %v3507
        %4832 = vmatprep.subr.bf16.mxu0 %v3512
        %4833 = vmatpush1.bf16.msra.mxu0 %v3511
        %4834 = vmatprep.subr.bf16.mxu0 %v3516
        %4835 = vmatpush1.bf16.msra.mxu0 %v3515
        %4836 = vmatprep.subr.bf16.mxu0 %v3520
        %4837 = vmatpush1.bf16.msra.mxu0 %v3519
        %4838 = vmatprep.subr.bf16.mxu0 %v3524
        %4839 = vmatpush1.bf16.msra.mxu0 %v3523
        %4840 = vmatprep.subr.bf16.mxu0 0
        %4841 = vmatpush1.bf16.msra.mxu0 0
        %4842 = vmatprep.subr.bf16.mxu0 0
        %4843 = vmatpush1.bf16.msra.mxu0 0
        %4844 = vmatprep.subr.bf16.mxu0 0
        %4845 = vmatpush1.bf16.msra.mxu0 0
        %4846 = vmatprep.subr.bf16.mxu0 0
        %4847 = vmatpush1.bf16.msra.mxu0 0
        %4848 = vmatprep.subr.bf16.mxu0 0
        %4849 = vmatpush1.bf16.msra.mxu0 0
        %4850 = vmatprep.subr.bf16.mxu0 0
        %4851 = vmatpush1.bf16.msra.mxu0 0
        %4852 = vmatprep.subr.bf16.mxu0 0
        %4853 = vmatpush1.bf16.msra.mxu0 0
        %4854 = vmatprep.subr.bf16.mxu0 0
        %4855 = vmatpush1.bf16.msra.mxu0 0
        %4856 = vmatprep.mubr.bf16.mxu0 0
        %4857 = vmatmul.mubr.bf16.gmra.mrb[0].mxu0 %v4821
        %v4858 = vpop.f32.mrb[0].mxu0
        %v4859 = vadd.f32 0.0, %v4858
        %v4860 = vpop.f32.mrb[0].mxu0
        %v4861 = vadd.f32 0.0, %v4860
        %v4862 = vpop.f32.mrb[0].mxu0
        %v4863 = vpop.f32.mrb[0].mxu0
        %4864 = vdwg.mxu0
        %4865 = vmatprep.subr.bf16.mxu0 %v3498
        %4866 = vmatpush1.bf16.msra.mxu0 %v3497
        %4867 = vmatprep.subr.bf16.mxu0 %v3502
        %4868 = vmatpush1.bf16.msra.mxu0 %v3501
        %4869 = vmatprep.subr.bf16.mxu0 %v3506
        %4870 = vmatpush1.bf16.msra.mxu0 %v3505
        %4871 = vmatprep.subr.bf16.mxu0 %v3510
        %4872 = vmatpush1.bf16.msra.mxu0 %v3509
        %4873 = vmatprep.subr.bf16.mxu0 %v3514
        %4874 = vmatpush1.bf16.msra.mxu0 %v3513
        %4875 = vmatprep.subr.bf16.mxu0 %v3518
        %4876 = vmatpush1.bf16.msra.mxu0 %v3517
        %4877 = vmatprep.subr.bf16.mxu0 %v3522
        %4878 = vmatpush1.bf16.msra.mxu0 %v3521
        %4879 = vmatprep.subr.bf16.mxu0 %v3526
        %4880 = vmatpush1.bf16.msra.mxu0 %v3525
        %4881 = vmatprep.subr.bf16.mxu0 0
        %4882 = vmatpush1.bf16.msra.mxu0 0
        %4883 = vmatprep.subr.bf16.mxu0 0
        %4884 = vmatpush1.bf16.msra.mxu0 0
        %4885 = vmatprep.subr.bf16.mxu0 0
        %4886 = vmatpush1.bf16.msra.mxu0 0
        %4887 = vmatprep.subr.bf16.mxu0 0
        %4888 = vmatpush1.bf16.msra.mxu0 0
        %4889 = vmatprep.subr.bf16.mxu0 0
        %4890 = vmatpush1.bf16.msra.mxu0 0
        %4891 = vmatprep.subr.bf16.mxu0 0
        %4892 = vmatpush1.bf16.msra.mxu0 0
        %4893 = vmatprep.subr.bf16.mxu0 0
        %4894 = vmatpush1.bf16.msra.mxu0 0
        %4895 = vmatprep.subr.bf16.mxu0 0
        %4896 = vmatpush1.bf16.msra.mxu0 0
        %4897 = vmatprep.mubr.bf16.mxu0 0
        %4898 = vmatmul.mubr.bf16.gmra.mrb[0].mxu0 %v4821
        %v4899 = vpop.f32.mrb[0].mxu0
        %v4900 = vadd.f32 0.0, %v4899
        %v4901 = vpop.f32.mrb[0].mxu0
        %v4902 = vadd.f32 0.0, %v4901
        %v4903 = vpop.f32.mrb[0].mxu0
        %v4904 = vpop.f32.mrb[0].mxu0
        %4905 = vdwg.mxu0
        %v4910 = vrot.slane %v4859, 6
        %v4911 = vrot.slane %v4861, 6
        %v4912 = vrot.slane %v4900, 6
        %v4913 = vrot.slane %v4902, 6
        %v4918 = vadd.f32 %v3317, %v4910
        %v4919 = vadd.f32 %v3319, %v4911
        %v4920 = vadd.f32 %v3360, %v4912
        %v4921 = vadd.f32 %v3362, %v4913
        %v4922 = vxor.u32 %v4918, 2147483648
        %v4923 = vmul.f32 %v4922, 1.442695
        %v4924 = vpow.pop %v4923
        %v4925 = vadd.f32 %v4924, 1.0
        %v4926 = vrcp.pop %v4925
        %v4927 = vmul.f32 1.0, %v4926
        %v4928 = vxor.u32 %v4919, 2147483648
        %v4929 = vmul.f32 %v4928, 1.442695
        %v4930 = vpow.pop %v4929
        %v4931 = vadd.f32 %v4930, 1.0
        %v4932 = vrcp.pop %v4931
        %v4933 = vmul.f32 1.0, %v4932
        %v4934 = vtanh.pop %v4920
        %v4935 = vxor.u32 %v4921, 2147483648
        %v4936 = vmul.f32 %v4935, 1.442695
        %v4937 = vpow.pop %v4936
        %v4938 = vadd.f32 %v4937, 1.0
        %v4939 = vrcp.pop %v4938
        %v4940 = vmul.f32 1.0, %v4939
        %v4942 = vrot.slane %v4816, 7
        %v4944 = vmul.f32 %v4933, %v4942
        %v4945 = vmul.f32 %v4927, %v4934
        %v4946 = vadd.f32 %v4944, %v4945
        %v4947 = vtanh.pop %v4946
        %v4948 = vmul.f32 %v4940, %v4947
        %v4949 = vpack.c.bf16 %v4948, %v4948
        %v4951 = vrot.slane %v4949, 1
        %4953 = vmatprep.subr.bf16.mxu0 %v3496
        %4954 = vmatpush1.bf16.msra.mxu0 %v3495
        %4955 = vmatprep.subr.bf16.mxu0 %v3500
        %4956 = vmatpush1.bf16.msra.mxu0 %v3499
        %4957 = vmatprep.subr.bf16.mxu0 %v3504
        %4958 = vmatpush1.bf16.msra.mxu0 %v3503
        %4959 = vmatprep.subr.bf16.mxu0 %v3508
        %4960 = vmatpush1.bf16.msra.mxu0 %v3507
        %4961 = vmatprep.subr.bf16.mxu0 %v3512
        %4962 = vmatpush1.bf16.msra.mxu0 %v3511
        %4963 = vmatprep.subr.bf16.mxu0 %v3516
        %4964 = vmatpush1.bf16.msra.mxu0 %v3515
        %4965 = vmatprep.subr.bf16.mxu0 %v3520
        %4966 = vmatpush1.bf16.msra.mxu0 %v3519
        %4967 = vmatprep.subr.bf16.mxu0 %v3524
        %4968 = vmatpush1.bf16.msra.mxu0 %v3523
        %4969 = vmatprep.subr.bf16.mxu0 0
        %4970 = vmatpush1.bf16.msra.mxu0 0
        %4971 = vmatprep.subr.bf16.mxu0 0
        %4972 = vmatpush1.bf16.msra.mxu0 0
        %4973 = vmatprep.subr.bf16.mxu0 0
        %4974 = vmatpush1.bf16.msra.mxu0 0
        %4975 = vmatprep.subr.bf16.mxu0 0
        %4976 = vmatpush1.bf16.msra.mxu0 0
        %4977 = vmatprep.subr.bf16.mxu0 0
        %4978 = vmatpush1.bf16.msra.mxu0 0
        %4979 = vmatprep.subr.bf16.mxu0 0
        %4980 = vmatpush1.bf16.msra.mxu0 0
        %4981 = vmatprep.subr.bf16.mxu0 0
        %4982 = vmatpush1.bf16.msra.mxu0 0
        %4983 = vmatprep.subr.bf16.mxu0 0
        %4984 = vmatpush1.bf16.msra.mxu0 0
        %4985 = vmatprep.mubr.bf16.mxu0 0
        %4986 = vmatmul.mubr.bf16.gmra.mrb[0].mxu0 %v4951
        %v4987 = vpop.f32.mrb[0].mxu0
        %v4988 = vadd.f32 0.0, %v4987
        %v4989 = vpop.f32.mrb[0].mxu0
        %v4990 = vadd.f32 0.0, %v4989
        %v4991 = vpop.f32.mrb[0].mxu0
        %v4992 = vpop.f32.mrb[0].mxu0
        %4993 = vdwg.mxu0
        %4994 = vmatprep.subr.bf16.mxu0 %v3498
        %4995 = vmatpush1.bf16.msra.mxu0 %v3497
        %4996 = vmatprep.subr.bf16.mxu0 %v3502
        %4997 = vmatpush1.bf16.msra.mxu0 %v3501
        %4998 = vmatprep.subr.bf16.mxu0 %v3506
        %4999 = vmatpush1.bf16.msra.mxu0 %v3505
        %5000 = vmatprep.subr.bf16.mxu0 %v3510
        %5001 = vmatpush1.bf16.msra.mxu0 %v3509
        %5002 = vmatprep.subr.bf16.mxu0 %v3514
        %5003 = vmatpush1.bf16.msra.mxu0 %v3513
        %5004 = vmatprep.subr.bf16.mxu0 %v3518
        %5005 = vmatpush1.bf16.msra.mxu0 %v3517
        %5006 = vmatprep.subr.bf16.mxu0 %v3522
        %5007 = vmatpush1.bf16.msra.mxu0 %v3521
        %5008 = vmatprep.subr.bf16.mxu0 %v3526
        %5009 = vmatpush1.bf16.msra.mxu0 %v3525
        %5010 = vmatprep.subr.bf16.mxu0 0
        %5011 = vmatpush1.bf16.msra.mxu0 0
        %5012 = vmatprep.subr.bf16.mxu0 0
        %5013 = vmatpush1.bf16.msra.mxu0 0
        %5014 = vmatprep.subr.bf16.mxu0 0
        %5015 = vmatpush1.bf16.msra.mxu0 0
        %5016 = vmatprep.subr.bf16.mxu0 0
        %5017 = vmatpush1.bf16.msra.mxu0 0
        %5018 = vmatprep.subr.bf16.mxu0 0
        %5019 = vmatpush1.bf16.msra.mxu0 0
        %5020 = vmatprep.subr.bf16.mxu0 0
        %5021 = vmatpush1.bf16.msra.mxu0 0
        %5022 = vmatprep.subr.bf16.mxu0 0
        %5023 = vmatpush1.bf16.msra.mxu0 0
        %5024 = vmatprep.subr.bf16.mxu0 0
        %5025 = vmatpush1.bf16.msra.mxu0 0
        %5026 = vmatprep.mubr.bf16.mxu0 0
        %5027 = vmatmul.mubr.bf16.gmra.mrb[0].mxu0 %v4951
        %v5028 = vpop.f32.mrb[0].mxu0
        %v5029 = vadd.f32 0.0, %v5028
        %v5030 = vpop.f32.mrb[0].mxu0
        %v5031 = vadd.f32 0.0, %v5030
        %v5032 = vpop.f32.mrb[0].mxu0
        %v5033 = vpop.f32.mrb[0].mxu0
        %5034 = vdwg.mxu0
        %v5039 = vrot.slane %v4988, 5
        %v5040 = vrot.slane %v4990, 5
        %v5041 = vrot.slane %v5029, 5
        %v5042 = vrot.slane %v5031, 5
        %v5047 = vadd.f32 %v3317, %v5039
        %v5048 = vadd.f32 %v3319, %v5040
        %v5049 = vadd.f32 %v3360, %v5041
        %v5050 = vadd.f32 %v3362, %v5042
        %v5051 = vxor.u32 %v5047, 2147483648
        %v5052 = vmul.f32 %v5051, 1.442695
        %v5053 = vpow.pop %v5052
        %v5054 = vadd.f32 %v5053, 1.0
        %v5055 = vrcp.pop %v5054
        %v5056 = vmul.f32 1.0, %v5055
        %v5057 = vxor.u32 %v5048, 2147483648
        %v5058 = vmul.f32 %v5057, 1.442695
        %v5059 = vpow.pop %v5058
        %v5060 = vadd.f32 %v5059, 1.0
        %v5061 = vrcp.pop %v5060
        %v5062 = vmul.f32 1.0, %v5061
        %v5063 = vtanh.pop %v5049
        %v5064 = vxor.u32 %v5050, 2147483648
        %v5065 = vmul.f32 %v5064, 1.442695
        %v5066 = vpow.pop %v5065
        %v5067 = vadd.f32 %v5066, 1.0
        %v5068 = vrcp.pop %v5067
        %v5069 = vmul.f32 1.0, %v5068
        %v5071 = vrot.slane %v4946, 7
        %v5073 = vmul.f32 %v5062, %v5071
        %v5074 = vmul.f32 %v5056, %v5063
        %v5075 = vadd.f32 %v5073, %v5074
        %v5076 = vtanh.pop %v5075
        %v5077 = vmul.f32 %v5069, %v5076
        %v5078 = vpack.c.bf16 %v5077, %v5077
        %v5080 = vshrl.u32 %v5078, 16
        %v5082 = vrot.slane %v5080, 1
        %5084 = vmatprep.subr.bf16.mxu0 %v3496
        %5085 = vmatpush1.bf16.msra.mxu0 %v3495
        %5086 = vmatprep.subr.bf16.mxu0 %v3500
        %5087 = vmatpush1.bf16.msra.mxu0 %v3499
        %5088 = vmatprep.subr.bf16.mxu0 %v3504
        %5089 = vmatpush1.bf16.msra.mxu0 %v3503
        %5090 = vmatprep.subr.bf16.mxu0 %v3508
        %5091 = vmatpush1.bf16.msra.mxu0 %v3507
        %5092 = vmatprep.subr.bf16.mxu0 %v3512
        %5093 = vmatpush1.bf16.msra.mxu0 %v3511
        %5094 = vmatprep.subr.bf16.mxu0 %v3516
        %5095 = vmatpush1.bf16.msra.mxu0 %v3515
        %5096 = vmatprep.subr.bf16.mxu0 %v3520
        %5097 = vmatpush1.bf16.msra.mxu0 %v3519
        %5098 = vmatprep.subr.bf16.mxu0 %v3524
        %5099 = vmatpush1.bf16.msra.mxu0 %v3523
        %5100 = vmatprep.subr.bf16.mxu0 0
        %5101 = vmatpush1.bf16.msra.mxu0 0
        %5102 = vmatprep.subr.bf16.mxu0 0
        %5103 = vmatpush1.bf16.msra.mxu0 0
        %5104 = vmatprep.subr.bf16.mxu0 0
        %5105 = vmatpush1.bf16.msra.mxu0 0
        %5106 = vmatprep.subr.bf16.mxu0 0
        %5107 = vmatpush1.bf16.msra.mxu0 0
        %5108 = vmatprep.subr.bf16.mxu0 0
        %5109 = vmatpush1.bf16.msra.mxu0 0
        %5110 = vmatprep.subr.bf16.mxu0 0
        %5111 = vmatpush1.bf16.msra.mxu0 0
        %5112 = vmatprep.subr.bf16.mxu0 0
        %5113 = vmatpush1.bf16.msra.mxu0 0
        %5114 = vmatprep.subr.bf16.mxu0 0
        %5115 = vmatpush1.bf16.msra.mxu0 0
        %5116 = vmatprep.mubr.bf16.mxu0 0
        %5117 = vmatmul.mubr.bf16.gmra.mrb[0].mxu0 %v5082
        %v5118 = vpop.f32.mrb[0].mxu0
        %v5119 = vadd.f32 0.0, %v5118
        %v5120 = vpop.f32.mrb[0].mxu0
        %v5121 = vadd.f32 0.0, %v5120
        %v5122 = vpop.f32.mrb[0].mxu0
        %v5123 = vpop.f32.mrb[0].mxu0
        %5124 = vdwg.mxu0
        %5125 = vmatprep.subr.bf16.mxu0 %v3498
        %5126 = vmatpush1.bf16.msra.mxu0 %v3497
        %5127 = vmatprep.subr.bf16.mxu0 %v3502
        %5128 = vmatpush1.bf16.msra.mxu0 %v3501
        %5129 = vmatprep.subr.bf16.mxu0 %v3506
        %5130 = vmatpush1.bf16.msra.mxu0 %v3505
        %5131 = vmatprep.subr.bf16.mxu0 %v3510
        %5132 = vmatpush1.bf16.msra.mxu0 %v3509
        %5133 = vmatprep.subr.bf16.mxu0 %v3514
        %5134 = vmatpush1.bf16.msra.mxu0 %v3513
        %5135 = vmatprep.subr.bf16.mxu0 %v3518
        %5136 = vmatpush1.bf16.msra.mxu0 %v3517
        %5137 = vmatprep.subr.bf16.mxu0 %v3522
        %5138 = vmatpush1.bf16.msra.mxu0 %v3521
        %5139 = vmatprep.subr.bf16.mxu0 %v3526
        %5140 = vmatpush1.bf16.msra.mxu0 %v3525
        %5141 = vmatprep.subr.bf16.mxu0 0
        %5142 = vmatpush1.bf16.msra.mxu0 0
        %5143 = vmatprep.subr.bf16.mxu0 0
        %5144 = vmatpush1.bf16.msra.mxu0 0
        %5145 = vmatprep.subr.bf16.mxu0 0
        %5146 = vmatpush1.bf16.msra.mxu0 0
        %5147 = vmatprep.subr.bf16.mxu0 0
        %5148 = vmatpush1.bf16.msra.mxu0 0
        %5149 = vmatprep.subr.bf16.mxu0 0
        %5150 = vmatpush1.bf16.msra.mxu0 0
        %5151 = vmatprep.subr.bf16.mxu0 0
        %5152 = vmatpush1.bf16.msra.mxu0 0
        %5153 = vmatprep.subr.bf16.mxu0 0
        %5154 = vmatpush1.bf16.msra.mxu0 0
        %5155 = vmatprep.subr.bf16.mxu0 0
        %5156 = vmatpush1.bf16.msra.mxu0 0
        %5157 = vmatprep.mubr.bf16.mxu0 0
        %5158 = vmatmul.mubr.bf16.gmra.mrb[0].mxu0 %v5082
        %v5159 = vpop.f32.mrb[0].mxu0
        %v5160 = vadd.f32 0.0, %v5159
        %v5161 = vpop.f32.mrb[0].mxu0
        %v5162 = vadd.f32 0.0, %v5161
        %v5163 = vpop.f32.mrb[0].mxu0
        %v5164 = vpop.f32.mrb[0].mxu0
        %5165 = vdwg.mxu0
        %v5170 = vrot.slane %v5119, 4
        %v5171 = vrot.slane %v5121, 4
        %v5172 = vrot.slane %v5160, 4
        %v5173 = vrot.slane %v5162, 4
        %v5178 = vadd.f32 %v3317, %v5170
        %v5179 = vadd.f32 %v3319, %v5171
        %v5180 = vadd.f32 %v3360, %v5172
        %v5181 = vadd.f32 %v3362, %v5173
        %v5182 = vxor.u32 %v5178, 2147483648
        %v5183 = vmul.f32 %v5182, 1.442695
        %v5184 = vpow.pop %v5183
        %v5185 = vadd.f32 %v5184, 1.0
        %v5186 = vrcp.pop %v5185
        %v5187 = vmul.f32 1.0, %v5186
        %v5188 = vxor.u32 %v5179, 2147483648
        %v5189 = vmul.f32 %v5188, 1.442695
        %v5190 = vpow.pop %v5189
        %v5191 = vadd.f32 %v5190, 1.0
        %v5192 = vrcp.pop %v5191
        %v5193 = vmul.f32 1.0, %v5192
        %v5194 = vtanh.pop %v5180
        %v5195 = vxor.u32 %v5181, 2147483648
        %v5196 = vmul.f32 %v5195, 1.442695
        %v5197 = vpow.pop %v5196
        %v5198 = vadd.f32 %v5197, 1.0
        %v5199 = vrcp.pop %v5198
        %v5200 = vmul.f32 1.0, %v5199
        %v5202 = vrot.slane %v5075, 7
        %v5204 = vmul.f32 %v5193, %v5202
        %v5205 = vmul.f32 %v5187, %v5194
        %v5206 = vadd.f32 %v5204, %v5205
        %v5207 = vtanh.pop %v5206
        %v5208 = vmul.f32 %v5200, %v5207
        %v5209 = vpack.c.bf16 %v5208, %v5208
        %v5211 = vrot.slane %v5209, 2
        %5213 = vmatprep.subr.bf16.mxu0 %v3496
        %5214 = vmatpush1.bf16.msra.mxu0 %v3495
        %5215 = vmatprep.subr.bf16.mxu0 %v3500
        %5216 = vmatpush1.bf16.msra.mxu0 %v3499
        %5217 = vmatprep.subr.bf16.mxu0 %v3504
        %5218 = vmatpush1.bf16.msra.mxu0 %v3503
        %5219 = vmatprep.subr.bf16.mxu0 %v3508
        %5220 = vmatpush1.bf16.msra.mxu0 %v3507
        %5221 = vmatprep.subr.bf16.mxu0 %v3512
        %5222 = vmatpush1.bf16.msra.mxu0 %v3511
        %5223 = vmatprep.subr.bf16.mxu0 %v3516
        %5224 = vmatpush1.bf16.msra.mxu0 %v3515
        %5225 = vmatprep.subr.bf16.mxu0 %v3520
        %5226 = vmatpush1.bf16.msra.mxu0 %v3519
        %5227 = vmatprep.subr.bf16.mxu0 %v3524
        %5228 = vmatpush1.bf16.msra.mxu0 %v3523
        %5229 = vmatprep.subr.bf16.mxu0 0
        %5230 = vmatpush1.bf16.msra.mxu0 0
        %5231 = vmatprep.subr.bf16.mxu0 0
        %5232 = vmatpush1.bf16.msra.mxu0 0
        %5233 = vmatprep.subr.bf16.mxu0 0
        %5234 = vmatpush1.bf16.msra.mxu0 0
        %5235 = vmatprep.subr.bf16.mxu0 0
        %5236 = vmatpush1.bf16.msra.mxu0 0
        %5237 = vmatprep.subr.bf16.mxu0 0
        %5238 = vmatpush1.bf16.msra.mxu0 0
        %5239 = vmatprep.subr.bf16.mxu0 0
        %5240 = vmatpush1.bf16.msra.mxu0 0
        %5241 = vmatprep.subr.bf16.mxu0 0
        %5242 = vmatpush1.bf16.msra.mxu0 0
        %5243 = vmatprep.subr.bf16.mxu0 0
        %5244 = vmatpush1.bf16.msra.mxu0 0
        %5245 = vmatprep.mubr.bf16.mxu0 0
        %5246 = vmatmul.mubr.bf16.gmra.mrb[0].mxu0 %v5211
        %v5247 = vpop.f32.mrb[0].mxu0
        %v5248 = vadd.f32 0.0, %v5247
        %v5249 = vpop.f32.mrb[0].mxu0
        %v5250 = vadd.f32 0.0, %v5249
        %v5251 = vpop.f32.mrb[0].mxu0
        %v5252 = vpop.f32.mrb[0].mxu0
        %5253 = vdwg.mxu0
        %5254 = vmatprep.subr.bf16.mxu0 %v3498
        %5255 = vmatpush1.bf16.msra.mxu0 %v3497
        %5256 = vmatprep.subr.bf16.mxu0 %v3502
        %5257 = vmatpush1.bf16.msra.mxu0 %v3501
        %5258 = vmatprep.subr.bf16.mxu0 %v3506
        %5259 = vmatpush1.bf16.msra.mxu0 %v3505
        %5260 = vmatprep.subr.bf16.mxu0 %v3510
        %5261 = vmatpush1.bf16.msra.mxu0 %v3509
        %5262 = vmatprep.subr.bf16.mxu0 %v3514
        %5263 = vmatpush1.bf16.msra.mxu0 %v3513
        %5264 = vmatprep.subr.bf16.mxu0 %v3518
        %5265 = vmatpush1.bf16.msra.mxu0 %v3517
        %5266 = vmatprep.subr.bf16.mxu0 %v3522
        %5267 = vmatpush1.bf16.msra.mxu0 %v3521
        %5268 = vmatprep.subr.bf16.mxu0 %v3526
        %5269 = vmatpush1.bf16.msra.mxu0 %v3525
        %5270 = vmatprep.subr.bf16.mxu0 0
        %5271 = vmatpush1.bf16.msra.mxu0 0
        %5272 = vmatprep.subr.bf16.mxu0 0
        %5273 = vmatpush1.bf16.msra.mxu0 0
        %5274 = vmatprep.subr.bf16.mxu0 0
        %5275 = vmatpush1.bf16.msra.mxu0 0
        %5276 = vmatprep.subr.bf16.mxu0 0
        %5277 = vmatpush1.bf16.msra.mxu0 0
        %5278 = vmatprep.subr.bf16.mxu0 0
        %5279 = vmatpush1.bf16.msra.mxu0 0
        %5280 = vmatprep.subr.bf16.mxu0 0
        %5281 = vmatpush1.bf16.msra.mxu0 0
        %5282 = vmatprep.subr.bf16.mxu0 0
        %5283 = vmatpush1.bf16.msra.mxu0 0
        %5284 = vmatprep.subr.bf16.mxu0 0
        %5285 = vmatpush1.bf16.msra.mxu0 0
        %5286 = vmatprep.mubr.bf16.mxu0 0
        %5287 = vmatmul.mubr.bf16.gmra.mrb[0].mxu0 %v5211
        %v5288 = vpop.f32.mrb[0].mxu0
        %v5289 = vadd.f32 0.0, %v5288
        %v5290 = vpop.f32.mrb[0].mxu0
        %v5291 = vadd.f32 0.0, %v5290
        %v5292 = vpop.f32.mrb[0].mxu0
        %v5293 = vpop.f32.mrb[0].mxu0
        %5294 = vdwg.mxu0
        %v5299 = vrot.slane %v5248, 3
        %v5300 = vrot.slane %v5250, 3
        %v5301 = vrot.slane %v5289, 3
        %v5302 = vrot.slane %v5291, 3
        %v5307 = vadd.f32 %v3317, %v5299
        %v5308 = vadd.f32 %v3319, %v5300
        %v5309 = vadd.f32 %v3360, %v5301
        %v5310 = vadd.f32 %v3362, %v5302
        %v5311 = vxor.u32 %v5307, 2147483648
        %v5312 = vmul.f32 %v5311, 1.442695
        %v5313 = vpow.pop %v5312
        %v5314 = vadd.f32 %v5313, 1.0
        %v5315 = vrcp.pop %v5314
        %v5316 = vmul.f32 1.0, %v5315
        %v5317 = vxor.u32 %v5308, 2147483648
        %v5318 = vmul.f32 %v5317, 1.442695
        %v5319 = vpow.pop %v5318
        %v5320 = vadd.f32 %v5319, 1.0
        %v5321 = vrcp.pop %v5320
        %v5322 = vmul.f32 1.0, %v5321
        %v5323 = vtanh.pop %v5309
        %v5324 = vxor.u32 %v5310, 2147483648
        %v5325 = vmul.f32 %v5324, 1.442695
        %v5326 = vpow.pop %v5325
        %v5327 = vadd.f32 %v5326, 1.0
        %v5328 = vrcp.pop %v5327
        %v5329 = vmul.f32 1.0, %v5328
        %v5331 = vrot.slane %v5206, 7
        %v5333 = vmul.f32 %v5322, %v5331
        %v5334 = vmul.f32 %v5316, %v5323
        %v5335 = vadd.f32 %v5333, %v5334
        %v5336 = vtanh.pop %v5335
        %v5337 = vmul.f32 %v5329, %v5336
        %v5338 = vpack.c.bf16 %v5337, %v5337
        %v5340 = vshrl.u32 %v5338, 16
        %v5342 = vrot.slane %v5340, 2
        %5344 = vmatprep.subr.bf16.mxu0 %v3496
        %5345 = vmatpush1.bf16.msra.mxu0 %v3495
        %5346 = vmatprep.subr.bf16.mxu0 %v3500
        %5347 = vmatpush1.bf16.msra.mxu0 %v3499
        %5348 = vmatprep.subr.bf16.mxu0 %v3504
        %5349 = vmatpush1.bf16.msra.mxu0 %v3503
        %5350 = vmatprep.subr.bf16.mxu0 %v3508
        %5351 = vmatpush1.bf16.msra.mxu0 %v3507
        %5352 = vmatprep.subr.bf16.mxu0 %v3512
        %5353 = vmatpush1.bf16.msra.mxu0 %v3511
        %5354 = vmatprep.subr.bf16.mxu0 %v3516
        %5355 = vmatpush1.bf16.msra.mxu0 %v3515
        %5356 = vmatprep.subr.bf16.mxu0 %v3520
        %5357 = vmatpush1.bf16.msra.mxu0 %v3519
        %5358 = vmatprep.subr.bf16.mxu0 %v3524
        %5359 = vmatpush1.bf16.msra.mxu0 %v3523
        %5360 = vmatprep.subr.bf16.mxu0 0
        %5361 = vmatpush1.bf16.msra.mxu0 0
        %5362 = vmatprep.subr.bf16.mxu0 0
        %5363 = vmatpush1.bf16.msra.mxu0 0
        %5364 = vmatprep.subr.bf16.mxu0 0
        %5365 = vmatpush1.bf16.msra.mxu0 0
        %5366 = vmatprep.subr.bf16.mxu0 0
        %5367 = vmatpush1.bf16.msra.mxu0 0
        %5368 = vmatprep.subr.bf16.mxu0 0
        %5369 = vmatpush1.bf16.msra.mxu0 0
        %5370 = vmatprep.subr.bf16.mxu0 0
        %5371 = vmatpush1.bf16.msra.mxu0 0
        %5372 = vmatprep.subr.bf16.mxu0 0
        %5373 = vmatpush1.bf16.msra.mxu0 0
        %5374 = vmatprep.subr.bf16.mxu0 0
        %5375 = vmatpush1.bf16.msra.mxu0 0
        %5376 = vmatprep.mubr.bf16.mxu0 0
        %5377 = vmatmul.mubr.bf16.gmra.mrb[0].mxu0 %v5342
        %v5378 = vpop.f32.mrb[0].mxu0
        %v5379 = vadd.f32 0.0, %v5378
        %v5380 = vpop.f32.mrb[0].mxu0
        %v5381 = vadd.f32 0.0, %v5380
        %v5382 = vpop.f32.mrb[0].mxu0
        %v5383 = vpop.f32.mrb[0].mxu0
        %5384 = vdwg.mxu0
        %5385 = vmatprep.subr.bf16.mxu0 %v3498
        %5386 = vmatpush1.bf16.msra.mxu0 %v3497
        %5387 = vmatprep.subr.bf16.mxu0 %v3502
        %5388 = vmatpush1.bf16.msra.mxu0 %v3501
        %5389 = vmatprep.subr.bf16.mxu0 %v3506
        %5390 = vmatpush1.bf16.msra.mxu0 %v3505
        %5391 = vmatprep.subr.bf16.mxu0 %v3510
        %5392 = vmatpush1.bf16.msra.mxu0 %v3509
        %5393 = vmatprep.subr.bf16.mxu0 %v3514
        %5394 = vmatpush1.bf16.msra.mxu0 %v3513
        %5395 = vmatprep.subr.bf16.mxu0 %v3518
        %5396 = vmatpush1.bf16.msra.mxu0 %v3517
        %5397 = vmatprep.subr.bf16.mxu0 %v3522
        %5398 = vmatpush1.bf16.msra.mxu0 %v3521
        %5399 = vmatprep.subr.bf16.mxu0 %v3526
        %5400 = vmatpush1.bf16.msra.mxu0 %v3525
        %5401 = vmatprep.subr.bf16.mxu0 0
        %5402 = vmatpush1.bf16.msra.mxu0 0
        %5403 = vmatprep.subr.bf16.mxu0 0
        %5404 = vmatpush1.bf16.msra.mxu0 0
        %5405 = vmatprep.subr.bf16.mxu0 0
        %5406 = vmatpush1.bf16.msra.mxu0 0
        %5407 = vmatprep.subr.bf16.mxu0 0
        %5408 = vmatpush1.bf16.msra.mxu0 0
        %5409 = vmatprep.subr.bf16.mxu0 0
        %5410 = vmatpush1.bf16.msra.mxu0 0
        %5411 = vmatprep.subr.bf16.mxu0 0
        %5412 = vmatpush1.bf16.msra.mxu0 0
        %5413 = vmatprep.subr.bf16.mxu0 0
        %5414 = vmatpush1.bf16.msra.mxu0 0
        %5415 = vmatprep.subr.bf16.mxu0 0
        %5416 = vmatpush1.bf16.msra.mxu0 0
        %5417 = vmatprep.mubr.bf16.mxu0 0
        %5418 = vmatmul.mubr.bf16.gmra.mrb[0].mxu0 %v5342
        %v5419 = vpop.f32.mrb[0].mxu0
        %v5420 = vadd.f32 0.0, %v5419
        %v5421 = vpop.f32.mrb[0].mxu0
        %v5422 = vadd.f32 0.0, %v5421
        %v5423 = vpop.f32.mrb[0].mxu0
        %v5424 = vpop.f32.mrb[0].mxu0
        %5425 = vdwg.mxu0
        %v5430 = vrot.slane %v5379, 2
        %v5431 = vrot.slane %v5381, 2
        %v5432 = vrot.slane %v5420, 2
        %v5433 = vrot.slane %v5422, 2
        %v5438 = vadd.f32 %v3317, %v5430
        %v5439 = vadd.f32 %v3319, %v5431
        %v5440 = vadd.f32 %v3360, %v5432
        %v5441 = vadd.f32 %v3362, %v5433
        %v5442 = vxor.u32 %v5438, 2147483648
        %v5443 = vmul.f32 %v5442, 1.442695
        %v5444 = vpow.pop %v5443
        %v5445 = vadd.f32 %v5444, 1.0
        %v5446 = vrcp.pop %v5445
        %v5447 = vmul.f32 1.0, %v5446
        %v5448 = vxor.u32 %v5439, 2147483648
        %v5449 = vmul.f32 %v5448, 1.442695
        %v5450 = vpow.pop %v5449
        %v5451 = vadd.f32 %v5450, 1.0
        %v5452 = vrcp.pop %v5451
        %v5453 = vmul.f32 1.0, %v5452
        %v5454 = vtanh.pop %v5440
        %v5455 = vxor.u32 %v5441, 2147483648
        %v5456 = vmul.f32 %v5455, 1.442695
        %v5457 = vpow.pop %v5456
        %v5458 = vadd.f32 %v5457, 1.0
        %v5459 = vrcp.pop %v5458
        %v5460 = vmul.f32 1.0, %v5459
        %v5462 = vrot.slane %v5335, 7
        %v5464 = vmul.f32 %v5453, %v5462
        %v5465 = vmul.f32 %v5447, %v5454
        %v5466 = vadd.f32 %v5464, %v5465
        %v5467 = vtanh.pop %v5466
        %v5468 = vmul.f32 %v5460, %v5467
        %v5469 = vpack.c.bf16 %v5468, %v5468
        %v5471 = vrot.slane %v5469, 3
        %5473 = vmatprep.subr.bf16.mxu0 %v3496
        %5474 = vmatpush1.bf16.msra.mxu0 %v3495
        %5475 = vmatprep.subr.bf16.mxu0 %v3500
        %5476 = vmatpush1.bf16.msra.mxu0 %v3499
        %5477 = vmatprep.subr.bf16.mxu0 %v3504
        %5478 = vmatpush1.bf16.msra.mxu0 %v3503
        %5479 = vmatprep.subr.bf16.mxu0 %v3508
        %5480 = vmatpush1.bf16.msra.mxu0 %v3507
        %5481 = vmatprep.subr.bf16.mxu0 %v3512
        %5482 = vmatpush1.bf16.msra.mxu0 %v3511
        %5483 = vmatprep.subr.bf16.mxu0 %v3516
        %5484 = vmatpush1.bf16.msra.mxu0 %v3515
        %5485 = vmatprep.subr.bf16.mxu0 %v3520
        %5486 = vmatpush1.bf16.msra.mxu0 %v3519
        %5487 = vmatprep.subr.bf16.mxu0 %v3524
        %5488 = vmatpush1.bf16.msra.mxu0 %v3523
        %5489 = vmatprep.subr.bf16.mxu0 0
        %5490 = vmatpush1.bf16.msra.mxu0 0
        %5491 = vmatprep.subr.bf16.mxu0 0
        %5492 = vmatpush1.bf16.msra.mxu0 0
        %5493 = vmatprep.subr.bf16.mxu0 0
        %5494 = vmatpush1.bf16.msra.mxu0 0
        %5495 = vmatprep.subr.bf16.mxu0 0
        %5496 = vmatpush1.bf16.msra.mxu0 0
        %5497 = vmatprep.subr.bf16.mxu0 0
        %5498 = vmatpush1.bf16.msra.mxu0 0
        %5499 = vmatprep.subr.bf16.mxu0 0
        %5500 = vmatpush1.bf16.msra.mxu0 0
        %5501 = vmatprep.subr.bf16.mxu0 0
        %5502 = vmatpush1.bf16.msra.mxu0 0
        %5503 = vmatprep.subr.bf16.mxu0 0
        %5504 = vmatpush1.bf16.msra.mxu0 0
        %5505 = vmatprep.mubr.bf16.mxu0 0
        %5506 = vmatmul.mubr.bf16.gmra.mrb[0].mxu0 %v5471
        %v5507 = vpop.f32.mrb[0].mxu0
        %v5508 = vadd.f32 0.0, %v5507
        %v5509 = vpop.f32.mrb[0].mxu0
        %v5510 = vadd.f32 0.0, %v5509
        %v5511 = vpop.f32.mrb[0].mxu0
        %v5512 = vpop.f32.mrb[0].mxu0
        %5513 = vdwg.mxu0
        %5514 = vmatprep.subr.bf16.mxu0 %v3498
        %5515 = vmatpush1.bf16.msra.mxu0 %v3497
        %5516 = vmatprep.subr.bf16.mxu0 %v3502
        %5517 = vmatpush1.bf16.msra.mxu0 %v3501
        %5518 = vmatprep.subr.bf16.mxu0 %v3506
        %5519 = vmatpush1.bf16.msra.mxu0 %v3505
        %5520 = vmatprep.subr.bf16.mxu0 %v3510
        %5521 = vmatpush1.bf16.msra.mxu0 %v3509
        %5522 = vmatprep.subr.bf16.mxu0 %v3514
        %5523 = vmatpush1.bf16.msra.mxu0 %v3513
        %5524 = vmatprep.subr.bf16.mxu0 %v3518
        %5525 = vmatpush1.bf16.msra.mxu0 %v3517
        %5526 = vmatprep.subr.bf16.mxu0 %v3522
        %5527 = vmatpush1.bf16.msra.mxu0 %v3521
        %5528 = vmatprep.subr.bf16.mxu0 %v3526
        %5529 = vmatpush1.bf16.msra.mxu0 %v3525
        %5530 = vmatprep.subr.bf16.mxu0 0
        %5531 = vmatpush1.bf16.msra.mxu0 0
        %5532 = vmatprep.subr.bf16.mxu0 0
        %5533 = vmatpush1.bf16.msra.mxu0 0
        %5534 = vmatprep.subr.bf16.mxu0 0
        %5535 = vmatpush1.bf16.msra.mxu0 0
        %5536 = vmatprep.subr.bf16.mxu0 0
        %5537 = vmatpush1.bf16.msra.mxu0 0
        %5538 = vmatprep.subr.bf16.mxu0 0
        %5539 = vmatpush1.bf16.msra.mxu0 0
        %5540 = vmatprep.subr.bf16.mxu0 0
        %5541 = vmatpush1.bf16.msra.mxu0 0
        %5542 = vmatprep.subr.bf16.mxu0 0
        %5543 = vmatpush1.bf16.msra.mxu0 0
        %5544 = vmatprep.subr.bf16.mxu0 0
        %5545 = vmatpush1.bf16.msra.mxu0 0
        %5546 = vmatprep.mubr.bf16.mxu0 0
        %5547 = vmatmul.mubr.bf16.gmra.mrb[0].mxu0 %v5471
        %v5548 = vpop.f32.mrb[0].mxu0
        %v5549 = vadd.f32 0.0, %v5548
        %v5550 = vpop.f32.mrb[0].mxu0
        %v5551 = vadd.f32 0.0, %v5550
        %v5552 = vpop.f32.mrb[0].mxu0
        %v5553 = vpop.f32.mrb[0].mxu0
        %5554 = vdwg.mxu0
        %v5559 = vrot.slane %v5508, 1
        %v5560 = vrot.slane %v5510, 1
        %v5561 = vrot.slane %v5549, 1
        %v5562 = vrot.slane %v5551, 1
        %v5567 = vadd.f32 %v3317, %v5559
        %v5568 = vadd.f32 %v3319, %v5560
        %v5569 = vadd.f32 %v3360, %v5561
        %v5570 = vadd.f32 %v3362, %v5562
        %v5571 = vxor.u32 %v5567, 2147483648
        %v5572 = vmul.f32 %v5571, 1.442695
        %v5573 = vpow.pop %v5572
        %v5574 = vadd.f32 %v5573, 1.0
        %v5575 = vrcp.pop %v5574
        %v5576 = vmul.f32 1.0, %v5575
        %v5577 = vxor.u32 %v5568, 2147483648
        %v5578 = vmul.f32 %v5577, 1.442695
        %v5579 = vpow.pop %v5578
        %v5580 = vadd.f32 %v5579, 1.0
        %v5581 = vrcp.pop %v5580
        %v5582 = vmul.f32 1.0, %v5581
        %v5583 = vtanh.pop %v5569
        %v5584 = vxor.u32 %v5570, 2147483648
        %v5585 = vmul.f32 %v5584, 1.442695
        %v5586 = vpow.pop %v5585
        %v5587 = vadd.f32 %v5586, 1.0
        %v5588 = vrcp.pop %v5587
        %v5589 = vmul.f32 1.0, %v5588
        %v5591 = vrot.slane %v5466, 7
        %v5593 = vmul.f32 %v5582, %v5591
        %v5594 = vmul.f32 %v5576, %v5583
        %v5595 = vadd.f32 %v5593, %v5594
        %v5596 = vtanh.pop %v5595
        %v5597 = vmul.f32 %v5589, %v5596
        %5598 = vst [vmem:[#allocation4 - $0x7] sm:$0x80] %v5597
        %5599 = vst [vmem:[#allocation5 - $0x7] sm:$0x80] %v5595
        %v5600 = vsel %vm3042, %v3668, %v3794
        %v5601 = vsel %vm3044, %v5600, %v3924
        %v5602 = vsel %vm3046, %v5601, %v4053
        %v5603 = vsel %vm3048, %v5602, %v4184
        %v5604 = vsel %vm3050, %v5603, %v4313
        %v5605 = vsel %vm3052, %v5604, %v4444
        %v5606 = vsel %vm3054, %v5605, %v4573
        %v5607 = vsel %vm3042, %v4692, %v4818
        %v5608 = vsel %vm3044, %v5607, %v4948
        %v5609 = vsel %vm3046, %v5608, %v5077
        %v5610 = vsel %vm3048, %v5609, %v5208
        %v5611 = vsel %vm3050, %v5610, %v5337
        %v5612 = vsel %vm3052, %v5611, %v5468
        %v5613 = vsel %vm3054, %v5612, %v5597
        %v5614 = vpack.c.bf16 %v5613, %v5606
        %v5615 = vld [vmem:[#allocation15] sm:$0xff]
        %v5616 = vld [vmem:[#allocation15 + $0x8] sm:$0xff]
        %v5617 = vld [vmem:[#allocation15 + $0x10] sm:$0xff]
        %v5618 = vld [vmem:[#allocation15 + $0x18] sm:$0xff]
        %v5619 = vld [vmem:[#allocation15 + $0x20] sm:$0xff]
        %v5620 = vld [vmem:[#allocation15 + $0x28] sm:$0xff]
        %v5621 = vld [vmem:[#allocation15 + $0x30] sm:$0xff]
        %v5622 = vld [vmem:[#allocation15 + $0x38] sm:$0xff]
        %v5623 = vld [vmem:[#allocation15 + $0x40] sm:$0xff]
        %v5624 = vld [vmem:[#allocation15 + $0x48] sm:$0xff]
        %v5625 = vld [vmem:[#allocation15 + $0x50] sm:$0xff]
        %v5626 = vld [vmem:[#allocation15 + $0x58] sm:$0xff]
        %v5627 = vld [vmem:[#allocation15 + $0x60] sm:$0xff]
        %v5628 = vld [vmem:[#allocation15 + $0x68] sm:$0xff]
        %v5629 = vld [vmem:[#allocation15 + $0x70] sm:$0xff]
        %v5630 = vld [vmem:[#allocation15 + $0x78] sm:$0xff]
        %v5631 = vld [vmem:[#allocation15 + $0x80] sm:$0xff]
        %v5632 = vld [vmem:[#allocation15 + $0x88] sm:$0xff]
        %v5633 = vld [vmem:[#allocation15 + $0x90] sm:$0xff]
        %v5634 = vld [vmem:[#allocation15 + $0x98] sm:$0xff]
        %v5635 = vld [vmem:[#allocation15 + $0xa0] sm:$0xff]
        %v5636 = vld [vmem:[#allocation15 + $0xa8] sm:$0xff]
        %v5637 = vld [vmem:[#allocation15 + $0xb0] sm:$0xff]
        %v5638 = vld [vmem:[#allocation15 + $0xb8] sm:$0xff]
        %v5639 = vld [vmem:[#allocation15 + $0xc0] sm:$0xff]
        %v5640 = vld [vmem:[#allocation15 + $0xc8] sm:$0xff]
        %v5641 = vld [vmem:[#allocation15 + $0xd0] sm:$0xff]
        %v5642 = vld [vmem:[#allocation15 + $0xd8] sm:$0xff]
        %v5643 = vld [vmem:[#allocation15 + $0xe0] sm:$0xff]
        %v5644 = vld [vmem:[#allocation15 + $0xe8] sm:$0xff]
        %v5645 = vld [vmem:[#allocation15 + $0xf0] sm:$0xff]
        %v5646 = vld [vmem:[#allocation15 + $0xf8] sm:$0xff]
        %v5647 = vld [vmem:[%s9] sm:$0xf]
        %v5649 = vlaneseq
        %v5650 = vshrl.u32 %v5649, 7
        %v5651 = vsub.s32 0, %v5650
        %v5652 = vrot.slane %v5647, %v5651
        %v5653 = vlaneseq
        %v5654 = vshrl.u32 %v5653, 7
        %v5655 = vsub.s32 1, %v5654
        %v5656 = vrot.slane %v5647, %v5655
        %v5657 = vlaneseq
        %v5658 = vshrl.u32 %v5657, 7
        %v5659 = vsub.s32 2, %v5658
        %v5660 = vrot.slane %v5647, %v5659
        %v5661 = vlaneseq
        %v5662 = vshrl.u32 %v5661, 7
        %v5663 = vsub.s32 3, %v5662
        %v5664 = vrot.slane %v5647, %v5663
        %v5701 = vunpack.c.l.b16 %v5615
        %v5702 = vunpack.c.h.b16 %v5615
        %v5703 = vunpack.c.l.b16 %v5616
        %v5704 = vunpack.c.h.b16 %v5616
        %v5705 = vunpack.c.l.b16 %v5617
        %v5706 = vunpack.c.h.b16 %v5617
        %v5707 = vunpack.c.l.b16 %v5618
        %v5708 = vunpack.c.h.b16 %v5618
        %v5709 = vunpack.c.l.b16 %v5619
        %v5710 = vunpack.c.h.b16 %v5619
        %v5711 = vunpack.c.l.b16 %v5620
        %v5712 = vunpack.c.h.b16 %v5620
        %v5713 = vunpack.c.l.b16 %v5621
        %v5714 = vunpack.c.h.b16 %v5621
        %v5715 = vunpack.c.l.b16 %v5622
        %v5716 = vunpack.c.h.b16 %v5622
        %v5717 = vunpack.c.l.b16 %v5623
        %v5718 = vunpack.c.h.b16 %v5623
        %v5719 = vunpack.c.l.b16 %v5624
        %v5720 = vunpack.c.h.b16 %v5624
        %v5721 = vunpack.c.l.b16 %v5625
        %v5722 = vunpack.c.h.b16 %v5625
        %v5723 = vunpack.c.l.b16 %v5626
        %v5724 = vunpack.c.h.b16 %v5626
        %v5725 = vunpack.c.l.b16 %v5627
        %v5726 = vunpack.c.h.b16 %v5627
        %v5727 = vunpack.c.l.b16 %v5628
        %v5728 = vunpack.c.h.b16 %v5628
        %v5729 = vunpack.c.l.b16 %v5629
        %v5730 = vunpack.c.h.b16 %v5629
        %v5731 = vunpack.c.l.b16 %v5630
        %v5732 = vunpack.c.h.b16 %v5630
        %v5733 = vunpack.c.l.b16 %v5631
        %v5734 = vunpack.c.h.b16 %v5631
        %v5735 = vunpack.c.l.b16 %v5632
        %v5736 = vunpack.c.h.b16 %v5632
        %v5737 = vunpack.c.l.b16 %v5633
        %v5738 = vunpack.c.h.b16 %v5633
        %v5739 = vunpack.c.l.b16 %v5634
        %v5740 = vunpack.c.h.b16 %v5634
        %v5741 = vunpack.c.l.b16 %v5635
        %v5742 = vunpack.c.h.b16 %v5635
        %v5743 = vunpack.c.l.b16 %v5636
        %v5744 = vunpack.c.h.b16 %v5636
        %v5745 = vunpack.c.l.b16 %v5637
        %v5746 = vunpack.c.h.b16 %v5637
        %v5747 = vunpack.c.l.b16 %v5638
        %v5748 = vunpack.c.h.b16 %v5638
        %v5749 = vunpack.c.l.b16 %v5639
        %v5750 = vunpack.c.h.b16 %v5639
        %v5751 = vunpack.c.l.b16 %v5640
        %v5752 = vunpack.c.h.b16 %v5640
        %v5753 = vunpack.c.l.b16 %v5641
        %v5754 = vunpack.c.h.b16 %v5641
        %v5755 = vunpack.c.l.b16 %v5642
        %v5756 = vunpack.c.h.b16 %v5642
        %v5757 = vunpack.c.l.b16 %v5643
        %v5758 = vunpack.c.h.b16 %v5643
        %v5759 = vunpack.c.l.b16 %v5644
        %v5760 = vunpack.c.h.b16 %v5644
        %v5761 = vunpack.c.l.b16 %v5645
        %v5762 = vunpack.c.h.b16 %v5645
        %v5763 = vunpack.c.l.b16 %v5646
        %v5764 = vunpack.c.h.b16 %v5646
        %v5765 = vpack.c.b16 %v5705, %v5701
        %v5766 = vpack.c.b16 %v5706, %v5702
        %v5767 = vpack.c.b16 %v5707, %v5703
        %v5768 = vpack.c.b16 %v5708, %v5704
        %v5769 = vpack.c.b16 %v5713, %v5709
        %v5770 = vpack.c.b16 %v5714, %v5710
        %v5771 = vpack.c.b16 %v5715, %v5711
        %v5772 = vpack.c.b16 %v5716, %v5712
        %v5773 = vpack.c.b16 %v5721, %v5717
        %v5774 = vpack.c.b16 %v5722, %v5718
        %v5775 = vpack.c.b16 %v5723, %v5719
        %v5776 = vpack.c.b16 %v5724, %v5720
        %v5777 = vpack.c.b16 %v5729, %v5725
        %v5778 = vpack.c.b16 %v5730, %v5726
        %v5779 = vpack.c.b16 %v5731, %v5727
        %v5780 = vpack.c.b16 %v5732, %v5728
        %v5781 = vpack.c.b16 %v5737, %v5733
        %v5782 = vpack.c.b16 %v5738, %v5734
        %v5783 = vpack.c.b16 %v5739, %v5735
        %v5784 = vpack.c.b16 %v5740, %v5736
        %v5785 = vpack.c.b16 %v5745, %v5741
        %v5786 = vpack.c.b16 %v5746, %v5742
        %v5787 = vpack.c.b16 %v5747, %v5743
        %v5788 = vpack.c.b16 %v5748, %v5744
        %v5789 = vpack.c.b16 %v5753, %v5749
        %v5790 = vpack.c.b16 %v5754, %v5750
        %v5791 = vpack.c.b16 %v5755, %v5751
        %v5792 = vpack.c.b16 %v5756, %v5752
        %v5793 = vpack.c.b16 %v5761, %v5757
        %v5794 = vpack.c.b16 %v5762, %v5758
        %v5795 = vpack.c.b16 %v5763, %v5759
        %v5796 = vpack.c.b16 %v5764, %v5760
        %5829 = vmatprep.subr.bf16.mxu0 %v5766
        %5830 = vmatpush1.bf16.msra.mxu0 %v5765
        %5831 = vmatprep.subr.bf16.mxu0 %v5770
        %5832 = vmatpush1.bf16.msra.mxu0 %v5769
        %5833 = vmatprep.subr.bf16.mxu0 %v5774
        %5834 = vmatpush1.bf16.msra.mxu0 %v5773
        %5835 = vmatprep.subr.bf16.mxu0 %v5778
        %5836 = vmatpush1.bf16.msra.mxu0 %v5777
        %5837 = vmatprep.subr.bf16.mxu0 %v5782
        %5838 = vmatpush1.bf16.msra.mxu0 %v5781
        %5839 = vmatprep.subr.bf16.mxu0 %v5786
        %5840 = vmatpush1.bf16.msra.mxu0 %v5785
        %5841 = vmatprep.subr.bf16.mxu0 %v5790
        %5842 = vmatpush1.bf16.msra.mxu0 %v5789
        %5843 = vmatprep.subr.bf16.mxu0 %v5794
        %5844 = vmatpush1.bf16.msra.mxu0 %v5793
        %5845 = vmatprep.subr.bf16.mxu0 0
        %5846 = vmatpush1.bf16.msra.mxu0 0
        %5847 = vmatprep.subr.bf16.mxu0 0
        %5848 = vmatpush1.bf16.msra.mxu0 0
        %5849 = vmatprep.subr.bf16.mxu0 0
        %5850 = vmatpush1.bf16.msra.mxu0 0
        %5851 = vmatprep.subr.bf16.mxu0 0
        %5852 = vmatpush1.bf16.msra.mxu0 0
        %5853 = vmatprep.subr.bf16.mxu0 0
        %5854 = vmatpush1.bf16.msra.mxu0 0
        %5855 = vmatprep.subr.bf16.mxu0 0
        %5856 = vmatpush1.bf16.msra.mxu0 0
        %5857 = vmatprep.subr.bf16.mxu0 0
        %5858 = vmatpush1.bf16.msra.mxu0 0
        %5859 = vmatprep.subr.bf16.mxu0 0
        %5860 = vmatpush1.bf16.msra.mxu0 0
        %5861 = vmatprep.mubr.bf16.mxu0 0
        %5862 = vmatmul.mubr.bf16.gmra.mrb[0].mxu0 %v5614
        %v5863 = vpop.f32.mrb[0].mxu0
        %v5864 = vadd.f32 %v5652, %v5863
        %v5865 = vpop.f32.mrb[0].mxu0
        %v5866 = vadd.f32 %v5656, %v5865
        %v5867 = vpop.f32.mrb[0].mxu0
        %v5868 = vadd.f32 %v5652, %v5867
        %v5869 = vpop.f32.mrb[0].mxu0
        %v5870 = vadd.f32 %v5656, %v5869
        %5871 = vdwg.mxu0
        %5872 = vmatprep.subr.bf16.mxu0 %v5768
        %5873 = vmatpush1.bf16.msra.mxu0 %v5767
        %5874 = vmatprep.subr.bf16.mxu0 %v5772
        %5875 = vmatpush1.bf16.msra.mxu0 %v5771
        %5876 = vmatprep.subr.bf16.mxu0 %v5776
        %5877 = vmatpush1.bf16.msra.mxu0 %v5775
        %5878 = vmatprep.subr.bf16.mxu0 %v5780
        %5879 = vmatpush1.bf16.msra.mxu0 %v5779
        %5880 = vmatprep.subr.bf16.mxu0 %v5784
        %5881 = vmatpush1.bf16.msra.mxu0 %v5783
        %5882 = vmatprep.subr.bf16.mxu0 %v5788
        %5883 = vmatpush1.bf16.msra.mxu0 %v5787
        %5884 = vmatprep.subr.bf16.mxu0 %v5792
        %5885 = vmatpush1.bf16.msra.mxu0 %v5791
        %5886 = vmatprep.subr.bf16.mxu0 %v5796
        %5887 = vmatpush1.bf16.msra.mxu0 %v5795
        %5888 = vmatprep.subr.bf16.mxu0 0
        %5889 = vmatpush1.bf16.msra.mxu0 0
        %5890 = vmatprep.subr.bf16.mxu0 0
        %5891 = vmatpush1.bf16.msra.mxu0 0
        %5892 = vmatprep.subr.bf16.mxu0 0
        %5893 = vmatpush1.bf16.msra.mxu0 0
        %5894 = vmatprep.subr.bf16.mxu0 0
        %5895 = vmatpush1.bf16.msra.mxu0 0
        %5896 = vmatprep.subr.bf16.mxu0 0
        %5897 = vmatpush1.bf16.msra.mxu0 0
        %5898 = vmatprep.subr.bf16.mxu0 0
        %5899 = vmatpush1.bf16.msra.mxu0 0
        %5900 = vmatprep.subr.bf16.mxu0 0
        %5901 = vmatpush1.bf16.msra.mxu0 0
        %5902 = vmatprep.subr.bf16.mxu0 0
        %5903 = vmatpush1.bf16.msra.mxu0 0
        %5904 = vmatprep.mubr.bf16.mxu0 0
        %5905 = vmatmul.mubr.bf16.gmra.mrb[0].mxu0 %v5614
        %v5906 = vpop.f32.mrb[0].mxu0
        %v5907 = vadd.f32 %v5660, %v5906
        %v5908 = vpop.f32.mrb[0].mxu0
        %v5909 = vadd.f32 %v5664, %v5908
        %v5910 = vpop.f32.mrb[0].mxu0
        %v5911 = vadd.f32 %v5660, %v5910
        %v5912 = vpop.f32.mrb[0].mxu0
        %v5913 = vadd.f32 %v5664, %v5912
        %5914 = vdwg.mxu0
        %v5915 = vld [vmem:[#allocation16] sm:$0xff]
        %v5916 = vld [vmem:[#allocation16 + $0x8] sm:$0xff]
        %v5917 = vld [vmem:[#allocation16 + $0x10] sm:$0xff]
        %v5918 = vld [vmem:[#allocation16 + $0x18] sm:$0xff]
        %v5919 = vld [vmem:[#allocation16 + $0x20] sm:$0xff]
        %v5920 = vld [vmem:[#allocation16 + $0x28] sm:$0xff]
        %v5921 = vld [vmem:[#allocation16 + $0x30] sm:$0xff]
        %v5922 = vld [vmem:[#allocation16 + $0x38] sm:$0xff]
        %v5923 = vld [vmem:[#allocation16 + $0x40] sm:$0xff]
        %v5924 = vld [vmem:[#allocation16 + $0x48] sm:$0xff]
        %v5925 = vld [vmem:[#allocation16 + $0x50] sm:$0xff]
        %v5926 = vld [vmem:[#allocation16 + $0x58] sm:$0xff]
        %v5927 = vld [vmem:[#allocation16 + $0x60] sm:$0xff]
        %v5928 = vld [vmem:[#allocation16 + $0x68] sm:$0xff]
        %v5929 = vld [vmem:[#allocation16 + $0x70] sm:$0xff]
        %v5930 = vld [vmem:[#allocation16 + $0x78] sm:$0xff]
        %v5931 = vld [vmem:[#allocation16 + $0x80] sm:$0xff]
        %v5932 = vld [vmem:[#allocation16 + $0x88] sm:$0xff]
        %v5933 = vld [vmem:[#allocation16 + $0x90] sm:$0xff]
        %v5934 = vld [vmem:[#allocation16 + $0x98] sm:$0xff]
        %v5935 = vld [vmem:[#allocation16 + $0xa0] sm:$0xff]
        %v5936 = vld [vmem:[#allocation16 + $0xa8] sm:$0xff]
        %v5937 = vld [vmem:[#allocation16 + $0xb0] sm:$0xff]
        %v5938 = vld [vmem:[#allocation16 + $0xb8] sm:$0xff]
        %v5939 = vld [vmem:[#allocation16 + $0xc0] sm:$0xff]
        %v5940 = vld [vmem:[#allocation16 + $0xc8] sm:$0xff]
        %v5941 = vld [vmem:[#allocation16 + $0xd0] sm:$0xff]
        %v5942 = vld [vmem:[#allocation16 + $0xd8] sm:$0xff]
        %v5943 = vld [vmem:[#allocation16 + $0xe0] sm:$0xff]
        %v5944 = vld [vmem:[#allocation16 + $0xe8] sm:$0xff]
        %v5945 = vld [vmem:[#allocation16 + $0xf0] sm:$0xff]
        %v5946 = vld [vmem:[#allocation16 + $0xf8] sm:$0xff]
        %v5947 = vld [vmem:[#allocation6] sm:$0x1]
        %v5948 = vld [vmem:[#allocation7] sm:$0x1]
        %v5949 = vpack.c.bf16 %v5947, %v5947
        %v5982 = vunpack.c.l.b16 %v5915
        %v5983 = vunpack.c.h.b16 %v5915
        %v5984 = vunpack.c.l.b16 %v5916
        %v5985 = vunpack.c.h.b16 %v5916
        %v5986 = vunpack.c.l.b16 %v5917
        %v5987 = vunpack.c.h.b16 %v5917
        %v5988 = vunpack.c.l.b16 %v5918
        %v5989 = vunpack.c.h.b16 %v5918
        %v5990 = vunpack.c.l.b16 %v5919
        %v5991 = vunpack.c.h.b16 %v5919
        %v5992 = vunpack.c.l.b16 %v5920
        %v5993 = vunpack.c.h.b16 %v5920
        %v5994 = vunpack.c.l.b16 %v5921
        %v5995 = vunpack.c.h.b16 %v5921
        %v5996 = vunpack.c.l.b16 %v5922
        %v5997 = vunpack.c.h.b16 %v5922
        %v5998 = vunpack.c.l.b16 %v5923
        %v5999 = vunpack.c.h.b16 %v5923
        %v6000 = vunpack.c.l.b16 %v5924
        %v6001 = vunpack.c.h.b16 %v5924
        %v6002 = vunpack.c.l.b16 %v5925
        %v6003 = vunpack.c.h.b16 %v5925
        %v6004 = vunpack.c.l.b16 %v5926
        %v6005 = vunpack.c.h.b16 %v5926
        %v6006 = vunpack.c.l.b16 %v5927
        %v6007 = vunpack.c.h.b16 %v5927
        %v6008 = vunpack.c.l.b16 %v5928
        %v6009 = vunpack.c.h.b16 %v5928
        %v6010 = vunpack.c.l.b16 %v5929
        %v6011 = vunpack.c.h.b16 %v5929
        %v6012 = vunpack.c.l.b16 %v5930
        %v6013 = vunpack.c.h.b16 %v5930
        %v6014 = vunpack.c.l.b16 %v5931
        %v6015 = vunpack.c.h.b16 %v5931
        %v6016 = vunpack.c.l.b16 %v5932
        %v6017 = vunpack.c.h.b16 %v5932
        %v6018 = vunpack.c.l.b16 %v5933
        %v6019 = vunpack.c.h.b16 %v5933
        %v6020 = vunpack.c.l.b16 %v5934
        %v6021 = vunpack.c.h.b16 %v5934
        %v6022 = vunpack.c.l.b16 %v5935
        %v6023 = vunpack.c.h.b16 %v5935
        %v6024 = vunpack.c.l.b16 %v5936
        %v6025 = vunpack.c.h.b16 %v5936
        %v6026 = vunpack.c.l.b16 %v5937
        %v6027 = vunpack.c.h.b16 %v5937
        %v6028 = vunpack.c.l.b16 %v5938
        %v6029 = vunpack.c.h.b16 %v5938
        %v6030 = vunpack.c.l.b16 %v5939
        %v6031 = vunpack.c.h.b16 %v5939
        %v6032 = vunpack.c.l.b16 %v5940
        %v6033 = vunpack.c.h.b16 %v5940
        %v6034 = vunpack.c.l.b16 %v5941
        %v6035 = vunpack.c.h.b16 %v5941
        %v6036 = vunpack.c.l.b16 %v5942
        %v6037 = vunpack.c.h.b16 %v5942
        %v6038 = vunpack.c.l.b16 %v5943
        %v6039 = vunpack.c.h.b16 %v5943
        %v6040 = vunpack.c.l.b16 %v5944
        %v6041 = vunpack.c.h.b16 %v5944
        %v6042 = vunpack.c.l.b16 %v5945
        %v6043 = vunpack.c.h.b16 %v5945
        %v6044 = vunpack.c.l.b16 %v5946
        %v6045 = vunpack.c.h.b16 %v5946
        %v6046 = vpack.c.b16 %v5986, %v5982
        %v6047 = vpack.c.b16 %v5987, %v5983
        %v6048 = vpack.c.b16 %v5988, %v5984
        %v6049 = vpack.c.b16 %v5989, %v5985
        %v6050 = vpack.c.b16 %v5994, %v5990
        %v6051 = vpack.c.b16 %v5995, %v5991
        %v6052 = vpack.c.b16 %v5996, %v5992
        %v6053 = vpack.c.b16 %v5997, %v5993
        %v6054 = vpack.c.b16 %v6002, %v5998
        %v6055 = vpack.c.b16 %v6003, %v5999
        %v6056 = vpack.c.b16 %v6004, %v6000
        %v6057 = vpack.c.b16 %v6005, %v6001
        %v6058 = vpack.c.b16 %v6010, %v6006
        %v6059 = vpack.c.b16 %v6011, %v6007
        %v6060 = vpack.c.b16 %v6012, %v6008
        %v6061 = vpack.c.b16 %v6013, %v6009
        %v6062 = vpack.c.b16 %v6018, %v6014
        %v6063 = vpack.c.b16 %v6019, %v6015
        %v6064 = vpack.c.b16 %v6020, %v6016
        %v6065 = vpack.c.b16 %v6021, %v6017
        %v6066 = vpack.c.b16 %v6026, %v6022
        %v6067 = vpack.c.b16 %v6027, %v6023
        %v6068 = vpack.c.b16 %v6028, %v6024
        %v6069 = vpack.c.b16 %v6029, %v6025
        %v6070 = vpack.c.b16 %v6034, %v6030
        %v6071 = vpack.c.b16 %v6035, %v6031
        %v6072 = vpack.c.b16 %v6036, %v6032
        %v6073 = vpack.c.b16 %v6037, %v6033
        %v6074 = vpack.c.b16 %v6042, %v6038
        %v6075 = vpack.c.b16 %v6043, %v6039
        %v6076 = vpack.c.b16 %v6044, %v6040
        %v6077 = vpack.c.b16 %v6045, %v6041
        %6110 = vmatprep.subr.bf16.mxu0 %v6047
        %6111 = vmatpush1.bf16.msra.mxu0 %v6046
        %6112 = vmatprep.subr.bf16.mxu0 %v6051
        %6113 = vmatpush1.bf16.msra.mxu0 %v6050
        %6114 = vmatprep.subr.bf16.mxu0 %v6055
        %6115 = vmatpush1.bf16.msra.mxu0 %v6054
        %6116 = vmatprep.subr.bf16.mxu0 %v6059
        %6117 = vmatpush1.bf16.msra.mxu0 %v6058
        %6118 = vmatprep.subr.bf16.mxu0 %v6063
        %6119 = vmatpush1.bf16.msra.mxu0 %v6062
        %6120 = vmatprep.subr.bf16.mxu0 %v6067
        %6121 = vmatpush1.bf16.msra.mxu0 %v6066
        %6122 = vmatprep.subr.bf16.mxu0 %v6071
        %6123 = vmatpush1.bf16.msra.mxu0 %v6070
        %6124 = vmatprep.subr.bf16.mxu0 %v6075
        %6125 = vmatpush1.bf16.msra.mxu0 %v6074
        %6126 = vmatprep.subr.bf16.mxu0 0
        %6127 = vmatpush1.bf16.msra.mxu0 0
        %6128 = vmatprep.subr.bf16.mxu0 0
        %6129 = vmatpush1.bf16.msra.mxu0 0
        %6130 = vmatprep.subr.bf16.mxu0 0
        %6131 = vmatpush1.bf16.msra.mxu0 0
        %6132 = vmatprep.subr.bf16.mxu0 0
        %6133 = vmatpush1.bf16.msra.mxu0 0
        %6134 = vmatprep.subr.bf16.mxu0 0
        %6135 = vmatpush1.bf16.msra.mxu0 0
        %6136 = vmatprep.subr.bf16.mxu0 0
        %6137 = vmatpush1.bf16.msra.mxu0 0
        %6138 = vmatprep.subr.bf16.mxu0 0
        %6139 = vmatpush1.bf16.msra.mxu0 0
        %6140 = vmatprep.subr.bf16.mxu0 0
        %6141 = vmatpush1.bf16.msra.mxu0 0
        %6142 = vmatprep.mubr.bf16.mxu0 0
        %6143 = vmatmul.mubr.bf16.gmra.mrb[0].mxu0 %v5949
        %v6144 = vpop.f32.mrb[0].mxu0
        %v6145 = vadd.f32 0.0, %v6144
        %v6146 = vpop.f32.mrb[0].mxu0
        %v6147 = vadd.f32 0.0, %v6146
        %v6148 = vpop.f32.mrb[0].mxu0
        %v6149 = vpop.f32.mrb[0].mxu0
        %6150 = vdwg.mxu0
        %6151 = vmatprep.subr.bf16.mxu0 %v6049
        %6152 = vmatpush1.bf16.msra.mxu0 %v6048
        %6153 = vmatprep.subr.bf16.mxu0 %v6053
        %6154 = vmatpush1.bf16.msra.mxu0 %v6052
        %6155 = vmatprep.subr.bf16.mxu0 %v6057
        %6156 = vmatpush1.bf16.msra.mxu0 %v6056
        %6157 = vmatprep.subr.bf16.mxu0 %v6061
        %6158 = vmatpush1.bf16.msra.mxu0 %v6060
        %6159 = vmatprep.subr.bf16.mxu0 %v6065
        %6160 = vmatpush1.bf16.msra.mxu0 %v6064
        %6161 = vmatprep.subr.bf16.mxu0 %v6069
        %6162 = vmatpush1.bf16.msra.mxu0 %v6068
        %6163 = vmatprep.subr.bf16.mxu0 %v6073
        %6164 = vmatpush1.bf16.msra.mxu0 %v6072
        %6165 = vmatprep.subr.bf16.mxu0 %v6077
        %6166 = vmatpush1.bf16.msra.mxu0 %v6076
        %6167 = vmatprep.subr.bf16.mxu0 0
        %6168 = vmatpush1.bf16.msra.mxu0 0
        %6169 = vmatprep.subr.bf16.mxu0 0
        %6170 = vmatpush1.bf16.msra.mxu0 0
        %6171 = vmatprep.subr.bf16.mxu0 0
        %6172 = vmatpush1.bf16.msra.mxu0 0
        %6173 = vmatprep.subr.bf16.mxu0 0
        %6174 = vmatpush1.bf16.msra.mxu0 0
        %6175 = vmatprep.subr.bf16.mxu0 0
        %6176 = vmatpush1.bf16.msra.mxu0 0
        %6177 = vmatprep.subr.bf16.mxu0 0
        %6178 = vmatpush1.bf16.msra.mxu0 0
        %6179 = vmatprep.subr.bf16.mxu0 0
        %6180 = vmatpush1.bf16.msra.mxu0 0
        %6181 = vmatprep.subr.bf16.mxu0 0
        %6182 = vmatpush1.bf16.msra.mxu0 0
        %6183 = vmatprep.mubr.bf16.mxu0 0
        %6184 = vmatmul.mubr.bf16.gmra.mrb[0].mxu0 %v5949
        %v6185 = vpop.f32.mrb[0].mxu0
        %v6186 = vadd.f32 0.0, %v6185
        %v6187 = vpop.f32.mrb[0].mxu0
        %v6188 = vadd.f32 0.0, %v6187
        %v6189 = vpop.f32.mrb[0].mxu0
        %v6190 = vpop.f32.mrb[0].mxu0
        %6191 = vdwg.mxu0
        %v6192 = vadd.f32 %v5864, %v6145
        %v6193 = vadd.f32 %v5866, %v6147
        %v6194 = vadd.f32 %v5907, %v6186
        %v6195 = vadd.f32 %v5909, %v6188
        %v6196 = vxor.u32 %v6192, 2147483648
        %v6197 = vmul.f32 %v6196, 1.442695
        %v6198 = vpow.pop %v6197
        %v6199 = vadd.f32 %v6198, 1.0
        %v6200 = vrcp.pop %v6199
        %v6201 = vmul.f32 1.0, %v6200
        %v6202 = vxor.u32 %v6193, 2147483648
        %v6203 = vmul.f32 %v6202, 1.442695
        %v6204 = vpow.pop %v6203
        %v6205 = vadd.f32 %v6204, 1.0
        %v6206 = vrcp.pop %v6205
        %v6207 = vmul.f32 1.0, %v6206
        %v6208 = vtanh.pop %v6194
        %v6209 = vxor.u32 %v6195, 2147483648
        %v6210 = vmul.f32 %v6209, 1.442695
        %v6211 = vpow.pop %v6210
        %v6212 = vadd.f32 %v6211, 1.0
        %v6213 = vrcp.pop %v6212
        %v6214 = vmul.f32 1.0, %v6213
        %v6215 = vmul.f32 %v6207, %v5948
        %v6216 = vmul.f32 %v6201, %v6208
        %v6217 = vadd.f32 %v6215, %v6216
        %v6218 = vtanh.pop %v6217
        %v6219 = vmul.f32 %v6214, %v6218
        %v6220 = vpack.c.bf16 %v6219, %v6219
        %6221 = vmatprep.subr.bf16.mxu0 %v6047
        %6222 = vmatpush1.bf16.msra.mxu0 %v6046
        %6223 = vmatprep.subr.bf16.mxu0 %v6051
        %6224 = vmatpush1.bf16.msra.mxu0 %v6050
        %6225 = vmatprep.subr.bf16.mxu0 %v6055
        %6226 = vmatpush1.bf16.msra.mxu0 %v6054
        %6227 = vmatprep.subr.bf16.mxu0 %v6059
        %6228 = vmatpush1.bf16.msra.mxu0 %v6058
        %6229 = vmatprep.subr.bf16.mxu0 %v6063
        %6230 = vmatpush1.bf16.msra.mxu0 %v6062
        %6231 = vmatprep.subr.bf16.mxu0 %v6067
        %6232 = vmatpush1.bf16.msra.mxu0 %v6066
        %6233 = vmatprep.subr.bf16.mxu0 %v6071
        %6234 = vmatpush1.bf16.msra.mxu0 %v6070
        %6235 = vmatprep.subr.bf16.mxu0 %v6075
        %6236 = vmatpush1.bf16.msra.mxu0 %v6074
        %6237 = vmatprep.subr.bf16.mxu0 0
        %6238 = vmatpush1.bf16.msra.mxu0 0
        %6239 = vmatprep.subr.bf16.mxu0 0
        %6240 = vmatpush1.bf16.msra.mxu0 0
        %6241 = vmatprep.subr.bf16.mxu0 0
        %6242 = vmatpush1.bf16.msra.mxu0 0
        %6243 = vmatprep.subr.bf16.mxu0 0
        %6244 = vmatpush1.bf16.msra.mxu0 0
        %6245 = vmatprep.subr.bf16.mxu0 0
        %6246 = vmatpush1.bf16.msra.mxu0 0
        %6247 = vmatprep.subr.bf16.mxu0 0
        %6248 = vmatpush1.bf16.msra.mxu0 0
        %6249 = vmatprep.subr.bf16.mxu0 0
        %6250 = vmatpush1.bf16.msra.mxu0 0
        %6251 = vmatprep.subr.bf16.mxu0 0
        %6252 = vmatpush1.bf16.msra.mxu0 0
        %6253 = vmatprep.mubr.bf16.mxu0 0
        %6254 = vmatmul.mubr.bf16.gmra.mrb[0].mxu0 %v6220
        %v6255 = vpop.f32.mrb[0].mxu0
        %v6256 = vadd.f32 0.0, %v6255
        %v6257 = vpop.f32.mrb[0].mxu0
        %v6258 = vadd.f32 0.0, %v6257
        %v6259 = vpop.f32.mrb[0].mxu0
        %v6260 = vpop.f32.mrb[0].mxu0
        %6261 = vdwg.mxu0
        %6262 = vmatprep.subr.bf16.mxu0 %v6049
        %6263 = vmatpush1.bf16.msra.mxu0 %v6048
        %6264 = vmatprep.subr.bf16.mxu0 %v6053
        %6265 = vmatpush1.bf16.msra.mxu0 %v6052
        %6266 = vmatprep.subr.bf16.mxu0 %v6057
        %6267 = vmatpush1.bf16.msra.mxu0 %v6056
        %6268 = vmatprep.subr.bf16.mxu0 %v6061
        %6269 = vmatpush1.bf16.msra.mxu0 %v6060
        %6270 = vmatprep.subr.bf16.mxu0 %v6065
        %6271 = vmatpush1.bf16.msra.mxu0 %v6064
        %6272 = vmatprep.subr.bf16.mxu0 %v6069
        %6273 = vmatpush1.bf16.msra.mxu0 %v6068
        %6274 = vmatprep.subr.bf16.mxu0 %v6073
        %6275 = vmatpush1.bf16.msra.mxu0 %v6072
        %6276 = vmatprep.subr.bf16.mxu0 %v6077
        %6277 = vmatpush1.bf16.msra.mxu0 %v6076
        %6278 = vmatprep.subr.bf16.mxu0 0
        %6279 = vmatpush1.bf16.msra.mxu0 0
        %6280 = vmatprep.subr.bf16.mxu0 0
        %6281 = vmatpush1.bf16.msra.mxu0 0
        %6282 = vmatprep.subr.bf16.mxu0 0
        %6283 = vmatpush1.bf16.msra.mxu0 0
        %6284 = vmatprep.subr.bf16.mxu0 0
        %6285 = vmatpush1.bf16.msra.mxu0 0
        %6286 = vmatprep.subr.bf16.mxu0 0
        %6287 = vmatpush1.bf16.msra.mxu0 0
        %6288 = vmatprep.subr.bf16.mxu0 0
        %6289 = vmatpush1.bf16.msra.mxu0 0
        %6290 = vmatprep.subr.bf16.mxu0 0
        %6291 = vmatpush1.bf16.msra.mxu0 0
        %6292 = vmatprep.subr.bf16.mxu0 0
        %6293 = vmatpush1.bf16.msra.mxu0 0
        %6294 = vmatprep.mubr.bf16.mxu0 0
        %6295 = vmatmul.mubr.bf16.gmra.mrb[0].mxu0 %v6220
        %v6296 = vpop.f32.mrb[0].mxu0
        %v6297 = vadd.f32 0.0, %v6296
        %v6298 = vpop.f32.mrb[0].mxu0
        %v6299 = vadd.f32 0.0, %v6298
        %v6300 = vpop.f32.mrb[0].mxu0
        %v6301 = vpop.f32.mrb[0].mxu0
        %6302 = vdwg.mxu0
        %v6307 = vrot.slane %v6256, 7
        %v6308 = vrot.slane %v6258, 7
        %v6309 = vrot.slane %v6297, 7
        %v6310 = vrot.slane %v6299, 7
        %v6315 = vadd.f32 %v5864, %v6307
        %v6316 = vadd.f32 %v5866, %v6308
        %v6317 = vadd.f32 %v5907, %v6309
        %v6318 = vadd.f32 %v5909, %v6310
        %v6319 = vxor.u32 %v6315, 2147483648
        %v6320 = vmul.f32 %v6319, 1.442695
        %v6321 = vpow.pop %v6320
        %v6322 = vadd.f32 %v6321, 1.0
        %v6323 = vrcp.pop %v6322
        %v6324 = vmul.f32 1.0, %v6323
        %v6325 = vxor.u32 %v6316, 2147483648
        %v6326 = vmul.f32 %v6325, 1.442695
        %v6327 = vpow.pop %v6326
        %v6328 = vadd.f32 %v6327, 1.0
        %v6329 = vrcp.pop %v6328
        %v6330 = vmul.f32 1.0, %v6329
        %v6331 = vtanh.pop %v6317
        %v6332 = vxor.u32 %v6318, 2147483648
        %v6333 = vmul.f32 %v6332, 1.442695
        %v6334 = vpow.pop %v6333
        %v6335 = vadd.f32 %v6334, 1.0
        %v6336 = vrcp.pop %v6335
        %v6337 = vmul.f32 1.0, %v6336
        %v6339 = vrot.slane %v6217, 7
        %v6341 = vmul.f32 %v6330, %v6339
        %v6342 = vmul.f32 %v6324, %v6331
        %v6343 = vadd.f32 %v6341, %v6342
        %v6344 = vtanh.pop %v6343
        %v6345 = vmul.f32 %v6337, %v6344
        %v6346 = vpack.c.bf16 %v6345, %v6345
        %v6348 = vshrl.u32 %v6346, 16
        %6351 = vmatprep.subr.bf16.mxu0 %v6047
        %6352 = vmatpush1.bf16.msra.mxu0 %v6046
        %6353 = vmatprep.subr.bf16.mxu0 %v6051
        %6354 = vmatpush1.bf16.msra.mxu0 %v6050
        %6355 = vmatprep.subr.bf16.mxu0 %v6055
        %6356 = vmatpush1.bf16.msra.mxu0 %v6054
        %6357 = vmatprep.subr.bf16.mxu0 %v6059
        %6358 = vmatpush1.bf16.msra.mxu0 %v6058
        %6359 = vmatprep.subr.bf16.mxu0 %v6063
        %6360 = vmatpush1.bf16.msra.mxu0 %v6062
        %6361 = vmatprep.subr.bf16.mxu0 %v6067
        %6362 = vmatpush1.bf16.msra.mxu0 %v6066
        %6363 = vmatprep.subr.bf16.mxu0 %v6071
        %6364 = vmatpush1.bf16.msra.mxu0 %v6070
        %6365 = vmatprep.subr.bf16.mxu0 %v6075
        %6366 = vmatpush1.bf16.msra.mxu0 %v6074
        %6367 = vmatprep.subr.bf16.mxu0 0
        %6368 = vmatpush1.bf16.msra.mxu0 0
        %6369 = vmatprep.subr.bf16.mxu0 0
        %6370 = vmatpush1.bf16.msra.mxu0 0
        %6371 = vmatprep.subr.bf16.mxu0 0
        %6372 = vmatpush1.bf16.msra.mxu0 0
        %6373 = vmatprep.subr.bf16.mxu0 0
        %6374 = vmatpush1.bf16.msra.mxu0 0
        %6375 = vmatprep.subr.bf16.mxu0 0
        %6376 = vmatpush1.bf16.msra.mxu0 0
        %6377 = vmatprep.subr.bf16.mxu0 0
        %6378 = vmatpush1.bf16.msra.mxu0 0
        %6379 = vmatprep.subr.bf16.mxu0 0
        %6380 = vmatpush1.bf16.msra.mxu0 0
        %6381 = vmatprep.subr.bf16.mxu0 0
        %6382 = vmatpush1.bf16.msra.mxu0 0
        %6383 = vmatprep.mubr.bf16.mxu0 0
        %6384 = vmatmul.mubr.bf16.gmra.mrb[0].mxu0 %v6348
        %v6385 = vpop.f32.mrb[0].mxu0
        %v6386 = vadd.f32 0.0, %v6385
        %v6387 = vpop.f32.mrb[0].mxu0
        %v6388 = vadd.f32 0.0, %v6387
        %v6389 = vpop.f32.mrb[0].mxu0
        %v6390 = vpop.f32.mrb[0].mxu0
        %6391 = vdwg.mxu0
        %6392 = vmatprep.subr.bf16.mxu0 %v6049
        %6393 = vmatpush1.bf16.msra.mxu0 %v6048
        %6394 = vmatprep.subr.bf16.mxu0 %v6053
        %6395 = vmatpush1.bf16.msra.mxu0 %v6052
        %6396 = vmatprep.subr.bf16.mxu0 %v6057
        %6397 = vmatpush1.bf16.msra.mxu0 %v6056
        %6398 = vmatprep.subr.bf16.mxu0 %v6061
        %6399 = vmatpush1.bf16.msra.mxu0 %v6060
        %6400 = vmatprep.subr.bf16.mxu0 %v6065
        %6401 = vmatpush1.bf16.msra.mxu0 %v6064
        %6402 = vmatprep.subr.bf16.mxu0 %v6069
        %6403 = vmatpush1.bf16.msra.mxu0 %v6068
        %6404 = vmatprep.subr.bf16.mxu0 %v6073
        %6405 = vmatpush1.bf16.msra.mxu0 %v6072
        %6406 = vmatprep.subr.bf16.mxu0 %v6077
        %6407 = vmatpush1.bf16.msra.mxu0 %v6076
        %6408 = vmatprep.subr.bf16.mxu0 0
        %6409 = vmatpush1.bf16.msra.mxu0 0
        %6410 = vmatprep.subr.bf16.mxu0 0
        %6411 = vmatpush1.bf16.msra.mxu0 0
        %6412 = vmatprep.subr.bf16.mxu0 0
        %6413 = vmatpush1.bf16.msra.mxu0 0
        %6414 = vmatprep.subr.bf16.mxu0 0
        %6415 = vmatpush1.bf16.msra.mxu0 0
        %6416 = vmatprep.subr.bf16.mxu0 0
        %6417 = vmatpush1.bf16.msra.mxu0 0
        %6418 = vmatprep.subr.bf16.mxu0 0
        %6419 = vmatpush1.bf16.msra.mxu0 0
        %6420 = vmatprep.subr.bf16.mxu0 0
        %6421 = vmatpush1.bf16.msra.mxu0 0
        %6422 = vmatprep.subr.bf16.mxu0 0
        %6423 = vmatpush1.bf16.msra.mxu0 0
        %6424 = vmatprep.mubr.bf16.mxu0 0
        %6425 = vmatmul.mubr.bf16.gmra.mrb[0].mxu0 %v6348
        %v6426 = vpop.f32.mrb[0].mxu0
        %v6427 = vadd.f32 0.0, %v6426
        %v6428 = vpop.f32.mrb[0].mxu0
        %v6429 = vadd.f32 0.0, %v6428
        %v6430 = vpop.f32.mrb[0].mxu0
        %v6431 = vpop.f32.mrb[0].mxu0
        %6432 = vdwg.mxu0
        %v6437 = vrot.slane %v6386, 6
        %v6438 = vrot.slane %v6388, 6
        %v6439 = vrot.slane %v6427, 6
        %v6440 = vrot.slane %v6429, 6
        %v6445 = vadd.f32 %v5864, %v6437
        %v6446 = vadd.f32 %v5866, %v6438
        %v6447 = vadd.f32 %v5907, %v6439
        %v6448 = vadd.f32 %v5909, %v6440
        %v6449 = vxor.u32 %v6445, 2147483648
        %v6450 = vmul.f32 %v6449, 1.442695
        %v6451 = vpow.pop %v6450
        %v6452 = vadd.f32 %v6451, 1.0
        %v6453 = vrcp.pop %v6452
        %v6454 = vmul.f32 1.0, %v6453
        %v6455 = vxor.u32 %v6446, 2147483648
        %v6456 = vmul.f32 %v6455, 1.442695
        %v6457 = vpow.pop %v6456
        %v6458 = vadd.f32 %v6457, 1.0
        %v6459 = vrcp.pop %v6458
        %v6460 = vmul.f32 1.0, %v6459
        %v6461 = vtanh.pop %v6447
        %v6462 = vxor.u32 %v6448, 2147483648
        %v6463 = vmul.f32 %v6462, 1.442695
        %v6464 = vpow.pop %v6463
        %v6465 = vadd.f32 %v6464, 1.0
        %v6466 = vrcp.pop %v6465
        %v6467 = vmul.f32 1.0, %v6466
        %v6469 = vrot.slane %v6343, 7
        %v6471 = vmul.f32 %v6460, %v6469
        %v6472 = vmul.f32 %v6454, %v6461
        %v6473 = vadd.f32 %v6471, %v6472
        %v6474 = vtanh.pop %v6473
        %v6475 = vmul.f32 %v6467, %v6474
        %v6476 = vpack.c.bf16 %v6475, %v6475
        %v6478 = vrot.slane %v6476, 1
        %6480 = vmatprep.subr.bf16.mxu0 %v6047
        %6481 = vmatpush1.bf16.msra.mxu0 %v6046
        %6482 = vmatprep.subr.bf16.mxu0 %v6051
        %6483 = vmatpush1.bf16.msra.mxu0 %v6050
        %6484 = vmatprep.subr.bf16.mxu0 %v6055
        %6485 = vmatpush1.bf16.msra.mxu0 %v6054
        %6486 = vmatprep.subr.bf16.mxu0 %v6059
        %6487 = vmatpush1.bf16.msra.mxu0 %v6058
        %6488 = vmatprep.subr.bf16.mxu0 %v6063
        %6489 = vmatpush1.bf16.msra.mxu0 %v6062
        %6490 = vmatprep.subr.bf16.mxu0 %v6067
        %6491 = vmatpush1.bf16.msra.mxu0 %v6066
        %6492 = vmatprep.subr.bf16.mxu0 %v6071
        %6493 = vmatpush1.bf16.msra.mxu0 %v6070
        %6494 = vmatprep.subr.bf16.mxu0 %v6075
        %6495 = vmatpush1.bf16.msra.mxu0 %v6074
        %6496 = vmatprep.subr.bf16.mxu0 0
        %6497 = vmatpush1.bf16.msra.mxu0 0
        %6498 = vmatprep.subr.bf16.mxu0 0
        %6499 = vmatpush1.bf16.msra.mxu0 0
        %6500 = vmatprep.subr.bf16.mxu0 0
        %6501 = vmatpush1.bf16.msra.mxu0 0
        %6502 = vmatprep.subr.bf16.mxu0 0
        %6503 = vmatpush1.bf16.msra.mxu0 0
        %6504 = vmatprep.subr.bf16.mxu0 0
        %6505 = vmatpush1.bf16.msra.mxu0 0
        %6506 = vmatprep.subr.bf16.mxu0 0
        %6507 = vmatpush1.bf16.msra.mxu0 0
        %6508 = vmatprep.subr.bf16.mxu0 0
        %6509 = vmatpush1.bf16.msra.mxu0 0
        %6510 = vmatprep.subr.bf16.mxu0 0
        %6511 = vmatpush1.bf16.msra.mxu0 0
        %6512 = vmatprep.mubr.bf16.mxu0 0
        %6513 = vmatmul.mubr.bf16.gmra.mrb[0].mxu0 %v6478
        %v6514 = vpop.f32.mrb[0].mxu0
        %v6515 = vadd.f32 0.0, %v6514
        %v6516 = vpop.f32.mrb[0].mxu0
        %v6517 = vadd.f32 0.0, %v6516
        %v6518 = vpop.f32.mrb[0].mxu0
        %v6519 = vpop.f32.mrb[0].mxu0
        %6520 = vdwg.mxu0
        %6521 = vmatprep.subr.bf16.mxu0 %v6049
        %6522 = vmatpush1.bf16.msra.mxu0 %v6048
        %6523 = vmatprep.subr.bf16.mxu0 %v6053
        %6524 = vmatpush1.bf16.msra.mxu0 %v6052
        %6525 = vmatprep.subr.bf16.mxu0 %v6057
        %6526 = vmatpush1.bf16.msra.mxu0 %v6056
        %6527 = vmatprep.subr.bf16.mxu0 %v6061
        %6528 = vmatpush1.bf16.msra.mxu0 %v6060
        %6529 = vmatprep.subr.bf16.mxu0 %v6065
        %6530 = vmatpush1.bf16.msra.mxu0 %v6064
        %6531 = vmatprep.subr.bf16.mxu0 %v6069
        %6532 = vmatpush1.bf16.msra.mxu0 %v6068
        %6533 = vmatprep.subr.bf16.mxu0 %v6073
        %6534 = vmatpush1.bf16.msra.mxu0 %v6072
        %6535 = vmatprep.subr.bf16.mxu0 %v6077
        %6536 = vmatpush1.bf16.msra.mxu0 %v6076
        %6537 = vmatprep.subr.bf16.mxu0 0
        %6538 = vmatpush1.bf16.msra.mxu0 0
        %6539 = vmatprep.subr.bf16.mxu0 0
        %6540 = vmatpush1.bf16.msra.mxu0 0
        %6541 = vmatprep.subr.bf16.mxu0 0
        %6542 = vmatpush1.bf16.msra.mxu0 0
        %6543 = vmatprep.subr.bf16.mxu0 0
        %6544 = vmatpush1.bf16.msra.mxu0 0
        %6545 = vmatprep.subr.bf16.mxu0 0
        %6546 = vmatpush1.bf16.msra.mxu0 0
        %6547 = vmatprep.subr.bf16.mxu0 0
        %6548 = vmatpush1.bf16.msra.mxu0 0
        %6549 = vmatprep.subr.bf16.mxu0 0
        %6550 = vmatpush1.bf16.msra.mxu0 0
        %6551 = vmatprep.subr.bf16.mxu0 0
        %6552 = vmatpush1.bf16.msra.mxu0 0
        %6553 = vmatprep.mubr.bf16.mxu0 0
        %6554 = vmatmul.mubr.bf16.gmra.mrb[0].mxu0 %v6478
        %v6555 = vpop.f32.mrb[0].mxu0
        %v6556 = vadd.f32 0.0, %v6555
        %v6557 = vpop.f32.mrb[0].mxu0
        %v6558 = vadd.f32 0.0, %v6557
        %v6559 = vpop.f32.mrb[0].mxu0
        %v6560 = vpop.f32.mrb[0].mxu0
        %6561 = vdwg.mxu0
        %v6566 = vrot.slane %v6515, 5
        %v6567 = vrot.slane %v6517, 5
        %v6568 = vrot.slane %v6556, 5
        %v6569 = vrot.slane %v6558, 5
        %v6574 = vadd.f32 %v5864, %v6566
        %v6575 = vadd.f32 %v5866, %v6567
        %v6576 = vadd.f32 %v5907, %v6568
        %v6577 = vadd.f32 %v5909, %v6569
        %v6578 = vxor.u32 %v6574, 2147483648
        %v6579 = vmul.f32 %v6578, 1.442695
        %v6580 = vpow.pop %v6579
        %v6581 = vadd.f32 %v6580, 1.0
        %v6582 = vrcp.pop %v6581
        %v6583 = vmul.f32 1.0, %v6582
        %v6584 = vxor.u32 %v6575, 2147483648
        %v6585 = vmul.f32 %v6584, 1.442695
        %v6586 = vpow.pop %v6585
        %v6587 = vadd.f32 %v6586, 1.0
        %v6588 = vrcp.pop %v6587
        %v6589 = vmul.f32 1.0, %v6588
        %v6590 = vtanh.pop %v6576
        %v6591 = vxor.u32 %v6577, 2147483648
        %v6592 = vmul.f32 %v6591, 1.442695
        %v6593 = vpow.pop %v6592
        %v6594 = vadd.f32 %v6593, 1.0
        %v6595 = vrcp.pop %v6594
        %v6596 = vmul.f32 1.0, %v6595
        %v6598 = vrot.slane %v6473, 7
        %v6600 = vmul.f32 %v6589, %v6598
        %v6601 = vmul.f32 %v6583, %v6590
        %v6602 = vadd.f32 %v6600, %v6601
        %v6603 = vtanh.pop %v6602
        %v6604 = vmul.f32 %v6596, %v6603
        %v6605 = vpack.c.bf16 %v6604, %v6604
        %v6607 = vshrl.u32 %v6605, 16
        %v6609 = vrot.slane %v6607, 1
        %6611 = vmatprep.subr.bf16.mxu0 %v6047
        %6612 = vmatpush1.bf16.msra.mxu0 %v6046
        %6613 = vmatprep.subr.bf16.mxu0 %v6051
        %6614 = vmatpush1.bf16.msra.mxu0 %v6050
        %6615 = vmatprep.subr.bf16.mxu0 %v6055
        %6616 = vmatpush1.bf16.msra.mxu0 %v6054
        %6617 = vmatprep.subr.bf16.mxu0 %v6059
        %6618 = vmatpush1.bf16.msra.mxu0 %v6058
        %6619 = vmatprep.subr.bf16.mxu0 %v6063
        %6620 = vmatpush1.bf16.msra.mxu0 %v6062
        %6621 = vmatprep.subr.bf16.mxu0 %v6067
        %6622 = vmatpush1.bf16.msra.mxu0 %v6066
        %6623 = vmatprep.subr.bf16.mxu0 %v6071
        %6624 = vmatpush1.bf16.msra.mxu0 %v6070
        %6625 = vmatprep.subr.bf16.mxu0 %v6075
        %6626 = vmatpush1.bf16.msra.mxu0 %v6074
        %6627 = vmatprep.subr.bf16.mxu0 0
        %6628 = vmatpush1.bf16.msra.mxu0 0
        %6629 = vmatprep.subr.bf16.mxu0 0
        %6630 = vmatpush1.bf16.msra.mxu0 0
        %6631 = vmatprep.subr.bf16.mxu0 0
        %6632 = vmatpush1.bf16.msra.mxu0 0
        %6633 = vmatprep.subr.bf16.mxu0 0
        %6634 = vmatpush1.bf16.msra.mxu0 0
        %6635 = vmatprep.subr.bf16.mxu0 0
        %6636 = vmatpush1.bf16.msra.mxu0 0
        %6637 = vmatprep.subr.bf16.mxu0 0
        %6638 = vmatpush1.bf16.msra.mxu0 0
        %6639 = vmatprep.subr.bf16.mxu0 0
        %6640 = vmatpush1.bf16.msra.mxu0 0
        %6641 = vmatprep.subr.bf16.mxu0 0
        %6642 = vmatpush1.bf16.msra.mxu0 0
        %6643 = vmatprep.mubr.bf16.mxu0 0
        %6644 = vmatmul.mubr.bf16.gmra.mrb[0].mxu0 %v6609
        %v6645 = vpop.f32.mrb[0].mxu0
        %v6646 = vadd.f32 0.0, %v6645
        %v6647 = vpop.f32.mrb[0].mxu0
        %v6648 = vadd.f32 0.0, %v6647
        %v6649 = vpop.f32.mrb[0].mxu0
        %v6650 = vpop.f32.mrb[0].mxu0
        %6651 = vdwg.mxu0
        %6652 = vmatprep.subr.bf16.mxu0 %v6049
        %6653 = vmatpush1.bf16.msra.mxu0 %v6048
        %6654 = vmatprep.subr.bf16.mxu0 %v6053
        %6655 = vmatpush1.bf16.msra.mxu0 %v6052
        %6656 = vmatprep.subr.bf16.mxu0 %v6057
        %6657 = vmatpush1.bf16.msra.mxu0 %v6056
        %6658 = vmatprep.subr.bf16.mxu0 %v6061
        %6659 = vmatpush1.bf16.msra.mxu0 %v6060
        %6660 = vmatprep.subr.bf16.mxu0 %v6065
        %6661 = vmatpush1.bf16.msra.mxu0 %v6064
        %6662 = vmatprep.subr.bf16.mxu0 %v6069
        %6663 = vmatpush1.bf16.msra.mxu0 %v6068
        %6664 = vmatprep.subr.bf16.mxu0 %v6073
        %6665 = vmatpush1.bf16.msra.mxu0 %v6072
        %6666 = vmatprep.subr.bf16.mxu0 %v6077
        %6667 = vmatpush1.bf16.msra.mxu0 %v6076
        %6668 = vmatprep.subr.bf16.mxu0 0
        %6669 = vmatpush1.bf16.msra.mxu0 0
        %6670 = vmatprep.subr.bf16.mxu0 0
        %6671 = vmatpush1.bf16.msra.mxu0 0
        %6672 = vmatprep.subr.bf16.mxu0 0
        %6673 = vmatpush1.bf16.msra.mxu0 0
        %6674 = vmatprep.subr.bf16.mxu0 0
        %6675 = vmatpush1.bf16.msra.mxu0 0
        %6676 = vmatprep.subr.bf16.mxu0 0
        %6677 = vmatpush1.bf16.msra.mxu0 0
        %6678 = vmatprep.subr.bf16.mxu0 0
        %6679 = vmatpush1.bf16.msra.mxu0 0
        %6680 = vmatprep.subr.bf16.mxu0 0
        %6681 = vmatpush1.bf16.msra.mxu0 0
        %6682 = vmatprep.subr.bf16.mxu0 0
        %6683 = vmatpush1.bf16.msra.mxu0 0
        %6684 = vmatprep.mubr.bf16.mxu0 0
        %6685 = vmatmul.mubr.bf16.gmra.mrb[0].mxu0 %v6609
        %v6686 = vpop.f32.mrb[0].mxu0
        %v6687 = vadd.f32 0.0, %v6686
        %v6688 = vpop.f32.mrb[0].mxu0
        %v6689 = vadd.f32 0.0, %v6688
        %v6690 = vpop.f32.mrb[0].mxu0
        %v6691 = vpop.f32.mrb[0].mxu0
        %6692 = vdwg.mxu0
        %v6697 = vrot.slane %v6646, 4
        %v6698 = vrot.slane %v6648, 4
        %v6699 = vrot.slane %v6687, 4
        %v6700 = vrot.slane %v6689, 4
        %v6705 = vadd.f32 %v5864, %v6697
        %v6706 = vadd.f32 %v5866, %v6698
        %v6707 = vadd.f32 %v5907, %v6699
        %v6708 = vadd.f32 %v5909, %v6700
        %v6709 = vxor.u32 %v6705, 2147483648
        %v6710 = vmul.f32 %v6709, 1.442695
        %v6711 = vpow.pop %v6710
        %v6712 = vadd.f32 %v6711, 1.0
        %v6713 = vrcp.pop %v6712
        %v6714 = vmul.f32 1.0, %v6713
        %v6715 = vxor.u32 %v6706, 2147483648
        %v6716 = vmul.f32 %v6715, 1.442695
        %v6717 = vpow.pop %v6716
        %v6718 = vadd.f32 %v6717, 1.0
        %v6719 = vrcp.pop %v6718
        %v6720 = vmul.f32 1.0, %v6719
        %v6721 = vtanh.pop %v6707
        %v6722 = vxor.u32 %v6708, 2147483648
        %v6723 = vmul.f32 %v6722, 1.442695
        %v6724 = vpow.pop %v6723
        %v6725 = vadd.f32 %v6724, 1.0
        %v6726 = vrcp.pop %v6725
        %v6727 = vmul.f32 1.0, %v6726
        %v6729 = vrot.slane %v6602, 7
        %v6731 = vmul.f32 %v6720, %v6729
        %v6732 = vmul.f32 %v6714, %v6721
        %v6733 = vadd.f32 %v6731, %v6732
        %v6734 = vtanh.pop %v6733
        %v6735 = vmul.f32 %v6727, %v6734
        %v6736 = vpack.c.bf16 %v6735, %v6735
        %v6738 = vrot.slane %v6736, 2
        %6740 = vmatprep.subr.bf16.mxu0 %v6047
        %6741 = vmatpush1.bf16.msra.mxu0 %v6046
        %6742 = vmatprep.subr.bf16.mxu0 %v6051
        %6743 = vmatpush1.bf16.msra.mxu0 %v6050
        %6744 = vmatprep.subr.bf16.mxu0 %v6055
        %6745 = vmatpush1.bf16.msra.mxu0 %v6054
        %6746 = vmatprep.subr.bf16.mxu0 %v6059
        %6747 = vmatpush1.bf16.msra.mxu0 %v6058
        %6748 = vmatprep.subr.bf16.mxu0 %v6063
        %6749 = vmatpush1.bf16.msra.mxu0 %v6062
        %6750 = vmatprep.subr.bf16.mxu0 %v6067
        %6751 = vmatpush1.bf16.msra.mxu0 %v6066
        %6752 = vmatprep.subr.bf16.mxu0 %v6071
        %6753 = vmatpush1.bf16.msra.mxu0 %v6070
        %6754 = vmatprep.subr.bf16.mxu0 %v6075
        %6755 = vmatpush1.bf16.msra.mxu0 %v6074
        %6756 = vmatprep.subr.bf16.mxu0 0
        %6757 = vmatpush1.bf16.msra.mxu0 0
        %6758 = vmatprep.subr.bf16.mxu0 0
        %6759 = vmatpush1.bf16.msra.mxu0 0
        %6760 = vmatprep.subr.bf16.mxu0 0
        %6761 = vmatpush1.bf16.msra.mxu0 0
        %6762 = vmatprep.subr.bf16.mxu0 0
        %6763 = vmatpush1.bf16.msra.mxu0 0
        %6764 = vmatprep.subr.bf16.mxu0 0
        %6765 = vmatpush1.bf16.msra.mxu0 0
        %6766 = vmatprep.subr.bf16.mxu0 0
        %6767 = vmatpush1.bf16.msra.mxu0 0
        %6768 = vmatprep.subr.bf16.mxu0 0
        %6769 = vmatpush1.bf16.msra.mxu0 0
        %6770 = vmatprep.subr.bf16.mxu0 0
        %6771 = vmatpush1.bf16.msra.mxu0 0
        %6772 = vmatprep.mubr.bf16.mxu0 0
        %6773 = vmatmul.mubr.bf16.gmra.mrb[0].mxu0 %v6738
        %v6774 = vpop.f32.mrb[0].mxu0
        %v6775 = vadd.f32 0.0, %v6774
        %v6776 = vpop.f32.mrb[0].mxu0
        %v6777 = vadd.f32 0.0, %v6776
        %v6778 = vpop.f32.mrb[0].mxu0
        %v6779 = vpop.f32.mrb[0].mxu0
        %6780 = vdwg.mxu0
        %6781 = vmatprep.subr.bf16.mxu0 %v6049
        %6782 = vmatpush1.bf16.msra.mxu0 %v6048
        %6783 = vmatprep.subr.bf16.mxu0 %v6053
        %6784 = vmatpush1.bf16.msra.mxu0 %v6052
        %6785 = vmatprep.subr.bf16.mxu0 %v6057
        %6786 = vmatpush1.bf16.msra.mxu0 %v6056
        %6787 = vmatprep.subr.bf16.mxu0 %v6061
        %6788 = vmatpush1.bf16.msra.mxu0 %v6060
        %6789 = vmatprep.subr.bf16.mxu0 %v6065
        %6790 = vmatpush1.bf16.msra.mxu0 %v6064
        %6791 = vmatprep.subr.bf16.mxu0 %v6069
        %6792 = vmatpush1.bf16.msra.mxu0 %v6068
        %6793 = vmatprep.subr.bf16.mxu0 %v6073
        %6794 = vmatpush1.bf16.msra.mxu0 %v6072
        %6795 = vmatprep.subr.bf16.mxu0 %v6077
        %6796 = vmatpush1.bf16.msra.mxu0 %v6076
        %6797 = vmatprep.subr.bf16.mxu0 0
        %6798 = vmatpush1.bf16.msra.mxu0 0
        %6799 = vmatprep.subr.bf16.mxu0 0
        %6800 = vmatpush1.bf16.msra.mxu0 0
        %6801 = vmatprep.subr.bf16.mxu0 0
        %6802 = vmatpush1.bf16.msra.mxu0 0
        %6803 = vmatprep.subr.bf16.mxu0 0
        %6804 = vmatpush1.bf16.msra.mxu0 0
        %6805 = vmatprep.subr.bf16.mxu0 0
        %6806 = vmatpush1.bf16.msra.mxu0 0
        %6807 = vmatprep.subr.bf16.mxu0 0
        %6808 = vmatpush1.bf16.msra.mxu0 0
        %6809 = vmatprep.subr.bf16.mxu0 0
        %6810 = vmatpush1.bf16.msra.mxu0 0
        %6811 = vmatprep.subr.bf16.mxu0 0
        %6812 = vmatpush1.bf16.msra.mxu0 0
        %6813 = vmatprep.mubr.bf16.mxu0 0
        %6814 = vmatmul.mubr.bf16.gmra.mrb[0].mxu0 %v6738
        %v6815 = vpop.f32.mrb[0].mxu0
        %v6816 = vadd.f32 0.0, %v6815
        %v6817 = vpop.f32.mrb[0].mxu0
        %v6818 = vadd.f32 0.0, %v6817
        %v6819 = vpop.f32.mrb[0].mxu0
        %v6820 = vpop.f32.mrb[0].mxu0
        %6821 = vdwg.mxu0
        %v6826 = vrot.slane %v6775, 3
        %v6827 = vrot.slane %v6777, 3
        %v6828 = vrot.slane %v6816, 3
        %v6829 = vrot.slane %v6818, 3
        %v6834 = vadd.f32 %v5864, %v6826
        %v6835 = vadd.f32 %v5866, %v6827
        %v6836 = vadd.f32 %v5907, %v6828
        %v6837 = vadd.f32 %v5909, %v6829
        %v6838 = vxor.u32 %v6834, 2147483648
        %v6839 = vmul.f32 %v6838, 1.442695
        %v6840 = vpow.pop %v6839
        %v6841 = vadd.f32 %v6840, 1.0
        %v6842 = vrcp.pop %v6841
        %v6843 = vmul.f32 1.0, %v6842
        %v6844 = vxor.u32 %v6835, 2147483648
        %v6845 = vmul.f32 %v6844, 1.442695
        %v6846 = vpow.pop %v6845
        %v6847 = vadd.f32 %v6846, 1.0
        %v6848 = vrcp.pop %v6847
        %v6849 = vmul.f32 1.0, %v6848
        %v6850 = vtanh.pop %v6836
        %v6851 = vxor.u32 %v6837, 2147483648
        %v6852 = vmul.f32 %v6851, 1.442695
        %v6853 = vpow.pop %v6852
        %v6854 = vadd.f32 %v6853, 1.0
        %v6855 = vrcp.pop %v6854
        %v6856 = vmul.f32 1.0, %v6855
        %v6858 = vrot.slane %v6733, 7
        %v6860 = vmul.f32 %v6849, %v6858
        %v6861 = vmul.f32 %v6843, %v6850
        %v6862 = vadd.f32 %v6860, %v6861
        %v6863 = vtanh.pop %v6862
        %v6864 = vmul.f32 %v6856, %v6863
        %v6865 = vpack.c.bf16 %v6864, %v6864
        %v6867 = vshrl.u32 %v6865, 16
        %v6869 = vrot.slane %v6867, 2
        %6871 = vmatprep.subr.bf16.mxu0 %v6047
        %6872 = vmatpush1.bf16.msra.mxu0 %v6046
        %6873 = vmatprep.subr.bf16.mxu0 %v6051
        %6874 = vmatpush1.bf16.msra.mxu0 %v6050
        %6875 = vmatprep.subr.bf16.mxu0 %v6055
        %6876 = vmatpush1.bf16.msra.mxu0 %v6054
        %6877 = vmatprep.subr.bf16.mxu0 %v6059
        %6878 = vmatpush1.bf16.msra.mxu0 %v6058
        %6879 = vmatprep.subr.bf16.mxu0 %v6063
        %6880 = vmatpush1.bf16.msra.mxu0 %v6062
        %6881 = vmatprep.subr.bf16.mxu0 %v6067
        %6882 = vmatpush1.bf16.msra.mxu0 %v6066
        %6883 = vmatprep.subr.bf16.mxu0 %v6071
        %6884 = vmatpush1.bf16.msra.mxu0 %v6070
        %6885 = vmatprep.subr.bf16.mxu0 %v6075
        %6886 = vmatpush1.bf16.msra.mxu0 %v6074
        %6887 = vmatprep.subr.bf16.mxu0 0
        %6888 = vmatpush1.bf16.msra.mxu0 0
        %6889 = vmatprep.subr.bf16.mxu0 0
        %6890 = vmatpush1.bf16.msra.mxu0 0
        %6891 = vmatprep.subr.bf16.mxu0 0
        %6892 = vmatpush1.bf16.msra.mxu0 0
        %6893 = vmatprep.subr.bf16.mxu0 0
        %6894 = vmatpush1.bf16.msra.mxu0 0
        %6895 = vmatprep.subr.bf16.mxu0 0
        %6896 = vmatpush1.bf16.msra.mxu0 0
        %6897 = vmatprep.subr.bf16.mxu0 0
        %6898 = vmatpush1.bf16.msra.mxu0 0
        %6899 = vmatprep.subr.bf16.mxu0 0
        %6900 = vmatpush1.bf16.msra.mxu0 0
        %6901 = vmatprep.subr.bf16.mxu0 0
        %6902 = vmatpush1.bf16.msra.mxu0 0
        %6903 = vmatprep.mubr.bf16.mxu0 0
        %6904 = vmatmul.mubr.bf16.gmra.mrb[0].mxu0 %v6869
        %v6905 = vpop.f32.mrb[0].mxu0
        %v6906 = vadd.f32 0.0, %v6905
        %v6907 = vpop.f32.mrb[0].mxu0
        %v6908 = vadd.f32 0.0, %v6907
        %v6909 = vpop.f32.mrb[0].mxu0
        %v6910 = vpop.f32.mrb[0].mxu0
        %6911 = vdwg.mxu0
        %6912 = vmatprep.subr.bf16.mxu0 %v6049
        %6913 = vmatpush1.bf16.msra.mxu0 %v6048
        %6914 = vmatprep.subr.bf16.mxu0 %v6053
        %6915 = vmatpush1.bf16.msra.mxu0 %v6052
        %6916 = vmatprep.subr.bf16.mxu0 %v6057
        %6917 = vmatpush1.bf16.msra.mxu0 %v6056
        %6918 = vmatprep.subr.bf16.mxu0 %v6061
        %6919 = vmatpush1.bf16.msra.mxu0 %v6060
        %6920 = vmatprep.subr.bf16.mxu0 %v6065
        %6921 = vmatpush1.bf16.msra.mxu0 %v6064
        %6922 = vmatprep.subr.bf16.mxu0 %v6069
        %6923 = vmatpush1.bf16.msra.mxu0 %v6068
        %6924 = vmatprep.subr.bf16.mxu0 %v6073
        %6925 = vmatpush1.bf16.msra.mxu0 %v6072
        %6926 = vmatprep.subr.bf16.mxu0 %v6077
        %6927 = vmatpush1.bf16.msra.mxu0 %v6076
        %6928 = vmatprep.subr.bf16.mxu0 0
        %6929 = vmatpush1.bf16.msra.mxu0 0
        %6930 = vmatprep.subr.bf16.mxu0 0
        %6931 = vmatpush1.bf16.msra.mxu0 0
        %6932 = vmatprep.subr.bf16.mxu0 0
        %6933 = vmatpush1.bf16.msra.mxu0 0
        %6934 = vmatprep.subr.bf16.mxu0 0
        %6935 = vmatpush1.bf16.msra.mxu0 0
        %6936 = vmatprep.subr.bf16.mxu0 0
        %6937 = vmatpush1.bf16.msra.mxu0 0
        %6938 = vmatprep.subr.bf16.mxu0 0
        %6939 = vmatpush1.bf16.msra.mxu0 0
        %6940 = vmatprep.subr.bf16.mxu0 0
        %6941 = vmatpush1.bf16.msra.mxu0 0
        %6942 = vmatprep.subr.bf16.mxu0 0
        %6943 = vmatpush1.bf16.msra.mxu0 0
        %6944 = vmatprep.mubr.bf16.mxu0 0
        %6945 = vmatmul.mubr.bf16.gmra.mrb[0].mxu0 %v6869
        %v6946 = vpop.f32.mrb[0].mxu0
        %v6947 = vadd.f32 0.0, %v6946
        %v6948 = vpop.f32.mrb[0].mxu0
        %v6949 = vadd.f32 0.0, %v6948
        %v6950 = vpop.f32.mrb[0].mxu0
        %v6951 = vpop.f32.mrb[0].mxu0
        %6952 = vdwg.mxu0
        %v6957 = vrot.slane %v6906, 2
        %v6958 = vrot.slane %v6908, 2
        %v6959 = vrot.slane %v6947, 2
        %v6960 = vrot.slane %v6949, 2
        %v6965 = vadd.f32 %v5864, %v6957
        %v6966 = vadd.f32 %v5866, %v6958
        %v6967 = vadd.f32 %v5907, %v6959
        %v6968 = vadd.f32 %v5909, %v6960
        %v6969 = vxor.u32 %v6965, 2147483648
        %v6970 = vmul.f32 %v6969, 1.442695
        %v6971 = vpow.pop %v6970
        %v6972 = vadd.f32 %v6971, 1.0
        %v6973 = vrcp.pop %v6972
        %v6974 = vmul.f32 1.0, %v6973
        %v6975 = vxor.u32 %v6966, 2147483648
        %v6976 = vmul.f32 %v6975, 1.442695
        %v6977 = vpow.pop %v6976
        %v6978 = vadd.f32 %v6977, 1.0
        %v6979 = vrcp.pop %v6978
        %v6980 = vmul.f32 1.0, %v6979
        %v6981 = vtanh.pop %v6967
        %v6982 = vxor.u32 %v6968, 2147483648
        %v6983 = vmul.f32 %v6982, 1.442695
        %v6984 = vpow.pop %v6983
        %v6985 = vadd.f32 %v6984, 1.0
        %v6986 = vrcp.pop %v6985
        %v6987 = vmul.f32 1.0, %v6986
        %v6989 = vrot.slane %v6862, 7
        %v6991 = vmul.f32 %v6980, %v6989
        %v6992 = vmul.f32 %v6974, %v6981
        %v6993 = vadd.f32 %v6991, %v6992
        %v6994 = vtanh.pop %v6993
        %v6995 = vmul.f32 %v6987, %v6994
        %v6996 = vpack.c.bf16 %v6995, %v6995
        %v6998 = vrot.slane %v6996, 3
        %7000 = vmatprep.subr.bf16.mxu0 %v6047
        %7001 = vmatpush1.bf16.msra.mxu0 %v6046
        %7002 = vmatprep.subr.bf16.mxu0 %v6051
        %7003 = vmatpush1.bf16.msra.mxu0 %v6050
        %7004 = vmatprep.subr.bf16.mxu0 %v6055
        %7005 = vmatpush1.bf16.msra.mxu0 %v6054
        %7006 = vmatprep.subr.bf16.mxu0 %v6059
        %7007 = vmatpush1.bf16.msra.mxu0 %v6058
        %7008 = vmatprep.subr.bf16.mxu0 %v6063
        %7009 = vmatpush1.bf16.msra.mxu0 %v6062
        %7010 = vmatprep.subr.bf16.mxu0 %v6067
        %7011 = vmatpush1.bf16.msra.mxu0 %v6066
        %7012 = vmatprep.subr.bf16.mxu0 %v6071
        %7013 = vmatpush1.bf16.msra.mxu0 %v6070
        %7014 = vmatprep.subr.bf16.mxu0 %v6075
        %7015 = vmatpush1.bf16.msra.mxu0 %v6074
        %7016 = vmatprep.subr.bf16.mxu0 0
        %7017 = vmatpush1.bf16.msra.mxu0 0
        %7018 = vmatprep.subr.bf16.mxu0 0
        %7019 = vmatpush1.bf16.msra.mxu0 0
        %7020 = vmatprep.subr.bf16.mxu0 0
        %7021 = vmatpush1.bf16.msra.mxu0 0
        %7022 = vmatprep.subr.bf16.mxu0 0
        %7023 = vmatpush1.bf16.msra.mxu0 0
        %7024 = vmatprep.subr.bf16.mxu0 0
        %7025 = vmatpush1.bf16.msra.mxu0 0
        %7026 = vmatprep.subr.bf16.mxu0 0
        %7027 = vmatpush1.bf16.msra.mxu0 0
        %7028 = vmatprep.subr.bf16.mxu0 0
        %7029 = vmatpush1.bf16.msra.mxu0 0
        %7030 = vmatprep.subr.bf16.mxu0 0
        %7031 = vmatpush1.bf16.msra.mxu0 0
        %7032 = vmatprep.mubr.bf16.mxu0 0
        %7033 = vmatmul.mubr.bf16.gmra.mrb[0].mxu0 %v6998
        %v7034 = vpop.f32.mrb[0].mxu0
        %v7035 = vadd.f32 0.0, %v7034
        %v7036 = vpop.f32.mrb[0].mxu0
        %v7037 = vadd.f32 0.0, %v7036
        %v7038 = vpop.f32.mrb[0].mxu0
        %v7039 = vpop.f32.mrb[0].mxu0
        %7040 = vdwg.mxu0
        %7041 = vmatprep.subr.bf16.mxu0 %v6049
        %7042 = vmatpush1.bf16.msra.mxu0 %v6048
        %7043 = vmatprep.subr.bf16.mxu0 %v6053
        %7044 = vmatpush1.bf16.msra.mxu0 %v6052
        %7045 = vmatprep.subr.bf16.mxu0 %v6057
        %7046 = vmatpush1.bf16.msra.mxu0 %v6056
        %7047 = vmatprep.subr.bf16.mxu0 %v6061
        %7048 = vmatpush1.bf16.msra.mxu0 %v6060
        %7049 = vmatprep.subr.bf16.mxu0 %v6065
        %7050 = vmatpush1.bf16.msra.mxu0 %v6064
        %7051 = vmatprep.subr.bf16.mxu0 %v6069
        %7052 = vmatpush1.bf16.msra.mxu0 %v6068
        %7053 = vmatprep.subr.bf16.mxu0 %v6073
        %7054 = vmatpush1.bf16.msra.mxu0 %v6072
        %7055 = vmatprep.subr.bf16.mxu0 %v6077
        %7056 = vmatpush1.bf16.msra.mxu0 %v6076
        %7057 = vmatprep.subr.bf16.mxu0 0
        %7058 = vmatpush1.bf16.msra.mxu0 0
        %7059 = vmatprep.subr.bf16.mxu0 0
        %7060 = vmatpush1.bf16.msra.mxu0 0
        %7061 = vmatprep.subr.bf16.mxu0 0
        %7062 = vmatpush1.bf16.msra.mxu0 0
        %7063 = vmatprep.subr.bf16.mxu0 0
        %7064 = vmatpush1.bf16.msra.mxu0 0
        %7065 = vmatprep.subr.bf16.mxu0 0
        %7066 = vmatpush1.bf16.msra.mxu0 0
        %7067 = vmatprep.subr.bf16.mxu0 0
        %7068 = vmatpush1.bf16.msra.mxu0 0
        %7069 = vmatprep.subr.bf16.mxu0 0
        %7070 = vmatpush1.bf16.msra.mxu0 0
        %7071 = vmatprep.subr.bf16.mxu0 0
        %7072 = vmatpush1.bf16.msra.mxu0 0
        %7073 = vmatprep.mubr.bf16.mxu0 0
        %7074 = vmatmul.mubr.bf16.gmra.mrb[0].mxu0 %v6998
        %v7075 = vpop.f32.mrb[0].mxu0
        %v7076 = vadd.f32 0.0, %v7075
        %v7077 = vpop.f32.mrb[0].mxu0
        %v7078 = vadd.f32 0.0, %v7077
        %v7079 = vpop.f32.mrb[0].mxu0
        %v7080 = vpop.f32.mrb[0].mxu0
        %7081 = vdwg.mxu0
        %v7086 = vrot.slane %v7035, 1
        %v7087 = vrot.slane %v7037, 1
        %v7088 = vrot.slane %v7076, 1
        %v7089 = vrot.slane %v7078, 1
        %v7094 = vadd.f32 %v5864, %v7086
        %v7095 = vadd.f32 %v5866, %v7087
        %v7096 = vadd.f32 %v5907, %v7088
        %v7097 = vadd.f32 %v5909, %v7089
        %v7098 = vxor.u32 %v7094, 2147483648
        %v7099 = vmul.f32 %v7098, 1.442695
        %v7100 = vpow.pop %v7099
        %v7101 = vadd.f32 %v7100, 1.0
        %v7102 = vrcp.pop %v7101
        %v7103 = vmul.f32 1.0, %v7102
        %v7104 = vxor.u32 %v7095, 2147483648
        %v7105 = vmul.f32 %v7104, 1.442695
        %v7106 = vpow.pop %v7105
        %v7107 = vadd.f32 %v7106, 1.0
        %v7108 = vrcp.pop %v7107
        %v7109 = vmul.f32 1.0, %v7108
        %v7110 = vtanh.pop %v7096
        %v7111 = vxor.u32 %v7097, 2147483648
        %v7112 = vmul.f32 %v7111, 1.442695
        %v7113 = vpow.pop %v7112
        %v7114 = vadd.f32 %v7113, 1.0
        %v7115 = vrcp.pop %v7114
        %v7116 = vmul.f32 1.0, %v7115
        %v7118 = vrot.slane %v6993, 7
        %v7120 = vmul.f32 %v7109, %v7118
        %v7121 = vmul.f32 %v7103, %v7110
        %v7122 = vadd.f32 %v7120, %v7121
        %v7123 = vtanh.pop %v7122
        %v7124 = vmul.f32 %v7116, %v7123
        %v7125 = vpack.c.bf16 %v7124, %v7124
        %v7127 = vshrl.u32 %v7125, 16
        %v7129 = vrot.slane %v7127, 3
        %7131 = vmatprep.subr.bf16.mxu0 %v6047
        %7132 = vmatpush1.bf16.msra.mxu0 %v6046
        %7133 = vmatprep.subr.bf16.mxu0 %v6051
        %7134 = vmatpush1.bf16.msra.mxu0 %v6050
        %7135 = vmatprep.subr.bf16.mxu0 %v6055
        %7136 = vmatpush1.bf16.msra.mxu0 %v6054
        %7137 = vmatprep.subr.bf16.mxu0 %v6059
        %7138 = vmatpush1.bf16.msra.mxu0 %v6058
        %7139 = vmatprep.subr.bf16.mxu0 %v6063
        %7140 = vmatpush1.bf16.msra.mxu0 %v6062
        %7141 = vmatprep.subr.bf16.mxu0 %v6067
        %7142 = vmatpush1.bf16.msra.mxu0 %v6066
        %7143 = vmatprep.subr.bf16.mxu0 %v6071
        %7144 = vmatpush1.bf16.msra.mxu0 %v6070
        %7145 = vmatprep.subr.bf16.mxu0 %v6075
        %7146 = vmatpush1.bf16.msra.mxu0 %v6074
        %7147 = vmatprep.subr.bf16.mxu0 0
        %7148 = vmatpush1.bf16.msra.mxu0 0
        %7149 = vmatprep.subr.bf16.mxu0 0
        %7150 = vmatpush1.bf16.msra.mxu0 0
        %7151 = vmatprep.subr.bf16.mxu0 0
        %7152 = vmatpush1.bf16.msra.mxu0 0
        %7153 = vmatprep.subr.bf16.mxu0 0
        %7154 = vmatpush1.bf16.msra.mxu0 0
        %7155 = vmatprep.subr.bf16.mxu0 0
        %7156 = vmatpush1.bf16.msra.mxu0 0
        %7157 = vmatprep.subr.bf16.mxu0 0
        %7158 = vmatpush1.bf16.msra.mxu0 0
        %7159 = vmatprep.subr.bf16.mxu0 0
        %7160 = vmatpush1.bf16.msra.mxu0 0
        %7161 = vmatprep.subr.bf16.mxu0 0
        %7162 = vmatpush1.bf16.msra.mxu0 0
        %7163 = vmatprep.mubr.bf16.mxu0 0
        %7164 = vmatmul.mubr.bf16.gmra.mrb[0].mxu0 %v7129
        %v7165 = vpop.f32.mrb[0].mxu0
        %v7166 = vadd.f32 0.0, %v7165
        %v7167 = vpop.f32.mrb[0].mxu0
        %v7168 = vadd.f32 0.0, %v7167
        %v7169 = vpop.f32.mrb[0].mxu0
        %v7170 = vpop.f32.mrb[0].mxu0
        %7171 = vdwg.mxu0
        %7172 = vmatprep.subr.bf16.mxu0 %v6049
        %7173 = vmatpush1.bf16.msra.mxu0 %v6048
        %7174 = vmatprep.subr.bf16.mxu0 %v6053
        %7175 = vmatpush1.bf16.msra.mxu0 %v6052
        %7176 = vmatprep.subr.bf16.mxu0 %v6057
        %7177 = vmatpush1.bf16.msra.mxu0 %v6056
        %7178 = vmatprep.subr.bf16.mxu0 %v6061
        %7179 = vmatpush1.bf16.msra.mxu0 %v6060
        %7180 = vmatprep.subr.bf16.mxu0 %v6065
        %7181 = vmatpush1.bf16.msra.mxu0 %v6064
        %7182 = vmatprep.subr.bf16.mxu0 %v6069
        %7183 = vmatpush1.bf16.msra.mxu0 %v6068
        %7184 = vmatprep.subr.bf16.mxu0 %v6073
        %7185 = vmatpush1.bf16.msra.mxu0 %v6072
        %7186 = vmatprep.subr.bf16.mxu0 %v6077
        %7187 = vmatpush1.bf16.msra.mxu0 %v6076
        %7188 = vmatprep.subr.bf16.mxu0 0
        %7189 = vmatpush1.bf16.msra.mxu0 0
        %7190 = vmatprep.subr.bf16.mxu0 0
        %7191 = vmatpush1.bf16.msra.mxu0 0
        %7192 = vmatprep.subr.bf16.mxu0 0
        %7193 = vmatpush1.bf16.msra.mxu0 0
        %7194 = vmatprep.subr.bf16.mxu0 0
        %7195 = vmatpush1.bf16.msra.mxu0 0
        %7196 = vmatprep.subr.bf16.mxu0 0
        %7197 = vmatpush1.bf16.msra.mxu0 0
        %7198 = vmatprep.subr.bf16.mxu0 0
        %7199 = vmatpush1.bf16.msra.mxu0 0
        %7200 = vmatprep.subr.bf16.mxu0 0
        %7201 = vmatpush1.bf16.msra.mxu0 0
        %7202 = vmatprep.subr.bf16.mxu0 0
        %7203 = vmatpush1.bf16.msra.mxu0 0
        %7204 = vmatprep.mubr.bf16.mxu0 0
        %7205 = vmatmul.mubr.bf16.gmra.mrb[0].mxu0 %v7129
        %v7206 = vpop.f32.mrb[0].mxu0
        %v7207 = vadd.f32 0.0, %v7206
        %v7208 = vpop.f32.mrb[0].mxu0
        %v7209 = vadd.f32 0.0, %v7208
        %v7210 = vpop.f32.mrb[0].mxu0
        %v7211 = vpop.f32.mrb[0].mxu0
        %7212 = vdwg.mxu0
        %v7213 = vadd.f32 %v5868, %v7166
        %v7214 = vadd.f32 %v5870, %v7168
        %v7215 = vadd.f32 %v5911, %v7207
        %v7216 = vadd.f32 %v5913, %v7209
        %v7217 = vxor.u32 %v7213, 2147483648
        %v7218 = vmul.f32 %v7217, 1.442695
        %v7219 = vpow.pop %v7218
        %v7220 = vadd.f32 %v7219, 1.0
        %v7221 = vrcp.pop %v7220
        %v7222 = vmul.f32 1.0, %v7221
        %v7223 = vxor.u32 %v7214, 2147483648
        %v7224 = vmul.f32 %v7223, 1.442695
        %v7225 = vpow.pop %v7224
        %v7226 = vadd.f32 %v7225, 1.0
        %v7227 = vrcp.pop %v7226
        %v7228 = vmul.f32 1.0, %v7227
        %v7229 = vtanh.pop %v7215
        %v7230 = vxor.u32 %v7216, 2147483648
        %v7231 = vmul.f32 %v7230, 1.442695
        %v7232 = vpow.pop %v7231
        %v7233 = vadd.f32 %v7232, 1.0
        %v7234 = vrcp.pop %v7233
        %v7235 = vmul.f32 1.0, %v7234
        %v7237 = vrot.slane %v7122, 7
        %v7239 = vmul.f32 %v7228, %v7237
        %v7240 = vmul.f32 %v7222, %v7229
        %v7241 = vadd.f32 %v7239, %v7240
        %v7242 = vtanh.pop %v7241
        %v7243 = vmul.f32 %v7235, %v7242
        %v7244 = vpack.c.bf16 %v7243, %v7243
        %7245 = vmatprep.subr.bf16.mxu0 %v6047
        %7246 = vmatpush1.bf16.msra.mxu0 %v6046
        %7247 = vmatprep.subr.bf16.mxu0 %v6051
        %7248 = vmatpush1.bf16.msra.mxu0 %v6050
        %7249 = vmatprep.subr.bf16.mxu0 %v6055
        %7250 = vmatpush1.bf16.msra.mxu0 %v6054
        %7251 = vmatprep.subr.bf16.mxu0 %v6059
        %7252 = vmatpush1.bf16.msra.mxu0 %v6058
        %7253 = vmatprep.subr.bf16.mxu0 %v6063
        %7254 = vmatpush1.bf16.msra.mxu0 %v6062
        %7255 = vmatprep.subr.bf16.mxu0 %v6067
        %7256 = vmatpush1.bf16.msra.mxu0 %v6066
        %7257 = vmatprep.subr.bf16.mxu0 %v6071
        %7258 = vmatpush1.bf16.msra.mxu0 %v6070
        %7259 = vmatprep.subr.bf16.mxu0 %v6075
        %7260 = vmatpush1.bf16.msra.mxu0 %v6074
        %7261 = vmatprep.subr.bf16.mxu0 0
        %7262 = vmatpush1.bf16.msra.mxu0 0
        %7263 = vmatprep.subr.bf16.mxu0 0
        %7264 = vmatpush1.bf16.msra.mxu0 0
        %7265 = vmatprep.subr.bf16.mxu0 0
        %7266 = vmatpush1.bf16.msra.mxu0 0
        %7267 = vmatprep.subr.bf16.mxu0 0
        %7268 = vmatpush1.bf16.msra.mxu0 0
        %7269 = vmatprep.subr.bf16.mxu0 0
        %7270 = vmatpush1.bf16.msra.mxu0 0
        %7271 = vmatprep.subr.bf16.mxu0 0
        %7272 = vmatpush1.bf16.msra.mxu0 0
        %7273 = vmatprep.subr.bf16.mxu0 0
        %7274 = vmatpush1.bf16.msra.mxu0 0
        %7275 = vmatprep.subr.bf16.mxu0 0
        %7276 = vmatpush1.bf16.msra.mxu0 0
        %7277 = vmatprep.mubr.bf16.mxu0 0
        %7278 = vmatmul.mubr.bf16.gmra.mrb[0].mxu0 %v7244
        %v7279 = vpop.f32.mrb[0].mxu0
        %v7280 = vadd.f32 0.0, %v7279
        %v7281 = vpop.f32.mrb[0].mxu0
        %v7282 = vadd.f32 0.0, %v7281
        %v7283 = vpop.f32.mrb[0].mxu0
        %v7284 = vpop.f32.mrb[0].mxu0
        %7285 = vdwg.mxu0
        %7286 = vmatprep.subr.bf16.mxu0 %v6049
        %7287 = vmatpush1.bf16.msra.mxu0 %v6048
        %7288 = vmatprep.subr.bf16.mxu0 %v6053
        %7289 = vmatpush1.bf16.msra.mxu0 %v6052
        %7290 = vmatprep.subr.bf16.mxu0 %v6057
        %7291 = vmatpush1.bf16.msra.mxu0 %v6056
        %7292 = vmatprep.subr.bf16.mxu0 %v6061
        %7293 = vmatpush1.bf16.msra.mxu0 %v6060
        %7294 = vmatprep.subr.bf16.mxu0 %v6065
        %7295 = vmatpush1.bf16.msra.mxu0 %v6064
        %7296 = vmatprep.subr.bf16.mxu0 %v6069
        %7297 = vmatpush1.bf16.msra.mxu0 %v6068
        %7298 = vmatprep.subr.bf16.mxu0 %v6073
        %7299 = vmatpush1.bf16.msra.mxu0 %v6072
        %7300 = vmatprep.subr.bf16.mxu0 %v6077
        %7301 = vmatpush1.bf16.msra.mxu0 %v6076
        %7302 = vmatprep.subr.bf16.mxu0 0
        %7303 = vmatpush1.bf16.msra.mxu0 0
        %7304 = vmatprep.subr.bf16.mxu0 0
        %7305 = vmatpush1.bf16.msra.mxu0 0
        %7306 = vmatprep.subr.bf16.mxu0 0
        %7307 = vmatpush1.bf16.msra.mxu0 0
        %7308 = vmatprep.subr.bf16.mxu0 0
        %7309 = vmatpush1.bf16.msra.mxu0 0
        %7310 = vmatprep.subr.bf16.mxu0 0
        %7311 = vmatpush1.bf16.msra.mxu0 0
        %7312 = vmatprep.subr.bf16.mxu0 0
        %7313 = vmatpush1.bf16.msra.mxu0 0
        %7314 = vmatprep.subr.bf16.mxu0 0
        %7315 = vmatpush1.bf16.msra.mxu0 0
        %7316 = vmatprep.subr.bf16.mxu0 0
        %7317 = vmatpush1.bf16.msra.mxu0 0
        %7318 = vmatprep.mubr.bf16.mxu0 0
        %7319 = vmatmul.mubr.bf16.gmra.mrb[0].mxu0 %v7244
        %v7320 = vpop.f32.mrb[0].mxu0
        %v7321 = vadd.f32 0.0, %v7320
        %v7322 = vpop.f32.mrb[0].mxu0
        %v7323 = vadd.f32 0.0, %v7322
        %v7324 = vpop.f32.mrb[0].mxu0
        %v7325 = vpop.f32.mrb[0].mxu0
        %7326 = vdwg.mxu0
        %v7331 = vrot.slane %v7280, 7
        %v7332 = vrot.slane %v7282, 7
        %v7333 = vrot.slane %v7321, 7
        %v7334 = vrot.slane %v7323, 7
        %v7339 = vadd.f32 %v5868, %v7331
        %v7340 = vadd.f32 %v5870, %v7332
        %v7341 = vadd.f32 %v5911, %v7333
        %v7342 = vadd.f32 %v5913, %v7334
        %v7343 = vxor.u32 %v7339, 2147483648
        %v7344 = vmul.f32 %v7343, 1.442695
        %v7345 = vpow.pop %v7344
        %v7346 = vadd.f32 %v7345, 1.0
        %v7347 = vrcp.pop %v7346
        %v7348 = vmul.f32 1.0, %v7347
        %v7349 = vxor.u32 %v7340, 2147483648
        %v7350 = vmul.f32 %v7349, 1.442695
        %v7351 = vpow.pop %v7350
        %v7352 = vadd.f32 %v7351, 1.0
        %v7353 = vrcp.pop %v7352
        %v7354 = vmul.f32 1.0, %v7353
        %v7355 = vtanh.pop %v7341
        %v7356 = vxor.u32 %v7342, 2147483648
        %v7357 = vmul.f32 %v7356, 1.442695
        %v7358 = vpow.pop %v7357
        %v7359 = vadd.f32 %v7358, 1.0
        %v7360 = vrcp.pop %v7359
        %v7361 = vmul.f32 1.0, %v7360
        %v7363 = vrot.slane %v7241, 7
        %v7365 = vmul.f32 %v7354, %v7363
        %v7366 = vmul.f32 %v7348, %v7355
        %v7367 = vadd.f32 %v7365, %v7366
        %v7368 = vtanh.pop %v7367
        %v7369 = vmul.f32 %v7361, %v7368
        %v7370 = vpack.c.bf16 %v7369, %v7369
        %v7372 = vshrl.u32 %v7370, 16
        %7375 = vmatprep.subr.bf16.mxu0 %v6047
        %7376 = vmatpush1.bf16.msra.mxu0 %v6046
        %7377 = vmatprep.subr.bf16.mxu0 %v6051
        %7378 = vmatpush1.bf16.msra.mxu0 %v6050
        %7379 = vmatprep.subr.bf16.mxu0 %v6055
        %7380 = vmatpush1.bf16.msra.mxu0 %v6054
        %7381 = vmatprep.subr.bf16.mxu0 %v6059
        %7382 = vmatpush1.bf16.msra.mxu0 %v6058
        %7383 = vmatprep.subr.bf16.mxu0 %v6063
        %7384 = vmatpush1.bf16.msra.mxu0 %v6062
        %7385 = vmatprep.subr.bf16.mxu0 %v6067
        %7386 = vmatpush1.bf16.msra.mxu0 %v6066
        %7387 = vmatprep.subr.bf16.mxu0 %v6071
        %7388 = vmatpush1.bf16.msra.mxu0 %v6070
        %7389 = vmatprep.subr.bf16.mxu0 %v6075
        %7390 = vmatpush1.bf16.msra.mxu0 %v6074
        %7391 = vmatprep.subr.bf16.mxu0 0
        %7392 = vmatpush1.bf16.msra.mxu0 0
        %7393 = vmatprep.subr.bf16.mxu0 0
        %7394 = vmatpush1.bf16.msra.mxu0 0
        %7395 = vmatprep.subr.bf16.mxu0 0
        %7396 = vmatpush1.bf16.msra.mxu0 0
        %7397 = vmatprep.subr.bf16.mxu0 0
        %7398 = vmatpush1.bf16.msra.mxu0 0
        %7399 = vmatprep.subr.bf16.mxu0 0
        %7400 = vmatpush1.bf16.msra.mxu0 0
        %7401 = vmatprep.subr.bf16.mxu0 0
        %7402 = vmatpush1.bf16.msra.mxu0 0
        %7403 = vmatprep.subr.bf16.mxu0 0
        %7404 = vmatpush1.bf16.msra.mxu0 0
        %7405 = vmatprep.subr.bf16.mxu0 0
        %7406 = vmatpush1.bf16.msra.mxu0 0
        %7407 = vmatprep.mubr.bf16.mxu0 0
        %7408 = vmatmul.mubr.bf16.gmra.mrb[0].mxu0 %v7372
        %v7409 = vpop.f32.mrb[0].mxu0
        %v7410 = vadd.f32 0.0, %v7409
        %v7411 = vpop.f32.mrb[0].mxu0
        %v7412 = vadd.f32 0.0, %v7411
        %v7413 = vpop.f32.mrb[0].mxu0
        %v7414 = vpop.f32.mrb[0].mxu0
        %7415 = vdwg.mxu0
        %7416 = vmatprep.subr.bf16.mxu0 %v6049
        %7417 = vmatpush1.bf16.msra.mxu0 %v6048
        %7418 = vmatprep.subr.bf16.mxu0 %v6053
        %7419 = vmatpush1.bf16.msra.mxu0 %v6052
        %7420 = vmatprep.subr.bf16.mxu0 %v6057
        %7421 = vmatpush1.bf16.msra.mxu0 %v6056
        %7422 = vmatprep.subr.bf16.mxu0 %v6061
        %7423 = vmatpush1.bf16.msra.mxu0 %v6060
        %7424 = vmatprep.subr.bf16.mxu0 %v6065
        %7425 = vmatpush1.bf16.msra.mxu0 %v6064
        %7426 = vmatprep.subr.bf16.mxu0 %v6069
        %7427 = vmatpush1.bf16.msra.mxu0 %v6068
        %7428 = vmatprep.subr.bf16.mxu0 %v6073
        %7429 = vmatpush1.bf16.msra.mxu0 %v6072
        %7430 = vmatprep.subr.bf16.mxu0 %v6077
        %7431 = vmatpush1.bf16.msra.mxu0 %v6076
        %7432 = vmatprep.subr.bf16.mxu0 0
        %7433 = vmatpush1.bf16.msra.mxu0 0
        %7434 = vmatprep.subr.bf16.mxu0 0
        %7435 = vmatpush1.bf16.msra.mxu0 0
        %7436 = vmatprep.subr.bf16.mxu0 0
        %7437 = vmatpush1.bf16.msra.mxu0 0
        %7438 = vmatprep.subr.bf16.mxu0 0
        %7439 = vmatpush1.bf16.msra.mxu0 0
        %7440 = vmatprep.subr.bf16.mxu0 0
        %7441 = vmatpush1.bf16.msra.mxu0 0
        %7442 = vmatprep.subr.bf16.mxu0 0
        %7443 = vmatpush1.bf16.msra.mxu0 0
        %7444 = vmatprep.subr.bf16.mxu0 0
        %7445 = vmatpush1.bf16.msra.mxu0 0
        %7446 = vmatprep.subr.bf16.mxu0 0
        %7447 = vmatpush1.bf16.msra.mxu0 0
        %7448 = vmatprep.mubr.bf16.mxu0 0
        %7449 = vmatmul.mubr.bf16.gmra.mrb[0].mxu0 %v7372
        %v7450 = vpop.f32.mrb[0].mxu0
        %v7451 = vadd.f32 0.0, %v7450
        %v7452 = vpop.f32.mrb[0].mxu0
        %v7453 = vadd.f32 0.0, %v7452
        %v7454 = vpop.f32.mrb[0].mxu0
        %v7455 = vpop.f32.mrb[0].mxu0
        %7456 = vdwg.mxu0
        %v7461 = vrot.slane %v7410, 6
        %v7462 = vrot.slane %v7412, 6
        %v7463 = vrot.slane %v7451, 6
        %v7464 = vrot.slane %v7453, 6
        %v7469 = vadd.f32 %v5868, %v7461
        %v7470 = vadd.f32 %v5870, %v7462
        %v7471 = vadd.f32 %v5911, %v7463
        %v7472 = vadd.f32 %v5913, %v7464
        %v7473 = vxor.u32 %v7469, 2147483648
        %v7474 = vmul.f32 %v7473, 1.442695
        %v7475 = vpow.pop %v7474
        %v7476 = vadd.f32 %v7475, 1.0
        %v7477 = vrcp.pop %v7476
        %v7478 = vmul.f32 1.0, %v7477
        %v7479 = vxor.u32 %v7470, 2147483648
        %v7480 = vmul.f32 %v7479, 1.442695
        %v7481 = vpow.pop %v7480
        %v7482 = vadd.f32 %v7481, 1.0
        %v7483 = vrcp.pop %v7482
        %v7484 = vmul.f32 1.0, %v7483
        %v7485 = vtanh.pop %v7471
        %v7486 = vxor.u32 %v7472, 2147483648
        %v7487 = vmul.f32 %v7486, 1.442695
        %v7488 = vpow.pop %v7487
        %v7489 = vadd.f32 %v7488, 1.0
        %v7490 = vrcp.pop %v7489
        %v7491 = vmul.f32 1.0, %v7490
        %v7493 = vrot.slane %v7367, 7
        %v7495 = vmul.f32 %v7484, %v7493
        %v7496 = vmul.f32 %v7478, %v7485
        %v7497 = vadd.f32 %v7495, %v7496
        %v7498 = vtanh.pop %v7497
        %v7499 = vmul.f32 %v7491, %v7498
        %v7500 = vpack.c.bf16 %v7499, %v7499
        %v7502 = vrot.slane %v7500, 1
        %7504 = vmatprep.subr.bf16.mxu0 %v6047
        %7505 = vmatpush1.bf16.msra.mxu0 %v6046
        %7506 = vmatprep.subr.bf16.mxu0 %v6051
        %7507 = vmatpush1.bf16.msra.mxu0 %v6050
        %7508 = vmatprep.subr.bf16.mxu0 %v6055
        %7509 = vmatpush1.bf16.msra.mxu0 %v6054
        %7510 = vmatprep.subr.bf16.mxu0 %v6059
        %7511 = vmatpush1.bf16.msra.mxu0 %v6058
        %7512 = vmatprep.subr.bf16.mxu0 %v6063
        %7513 = vmatpush1.bf16.msra.mxu0 %v6062
        %7514 = vmatprep.subr.bf16.mxu0 %v6067
        %7515 = vmatpush1.bf16.msra.mxu0 %v6066
        %7516 = vmatprep.subr.bf16.mxu0 %v6071
        %7517 = vmatpush1.bf16.msra.mxu0 %v6070
        %7518 = vmatprep.subr.bf16.mxu0 %v6075
        %7519 = vmatpush1.bf16.msra.mxu0 %v6074
        %7520 = vmatprep.subr.bf16.mxu0 0
        %7521 = vmatpush1.bf16.msra.mxu0 0
        %7522 = vmatprep.subr.bf16.mxu0 0
        %7523 = vmatpush1.bf16.msra.mxu0 0
        %7524 = vmatprep.subr.bf16.mxu0 0
        %7525 = vmatpush1.bf16.msra.mxu0 0
        %7526 = vmatprep.subr.bf16.mxu0 0
        %7527 = vmatpush1.bf16.msra.mxu0 0
        %7528 = vmatprep.subr.bf16.mxu0 0
        %7529 = vmatpush1.bf16.msra.mxu0 0
        %7530 = vmatprep.subr.bf16.mxu0 0
        %7531 = vmatpush1.bf16.msra.mxu0 0
        %7532 = vmatprep.subr.bf16.mxu0 0
        %7533 = vmatpush1.bf16.msra.mxu0 0
        %7534 = vmatprep.subr.bf16.mxu0 0
        %7535 = vmatpush1.bf16.msra.mxu0 0
        %7536 = vmatprep.mubr.bf16.mxu0 0
        %7537 = vmatmul.mubr.bf16.gmra.mrb[0].mxu0 %v7502
        %v7538 = vpop.f32.mrb[0].mxu0
        %v7539 = vadd.f32 0.0, %v7538
        %v7540 = vpop.f32.mrb[0].mxu0
        %v7541 = vadd.f32 0.0, %v7540
        %v7542 = vpop.f32.mrb[0].mxu0
        %v7543 = vpop.f32.mrb[0].mxu0
        %7544 = vdwg.mxu0
        %7545 = vmatprep.subr.bf16.mxu0 %v6049
        %7546 = vmatpush1.bf16.msra.mxu0 %v6048
        %7547 = vmatprep.subr.bf16.mxu0 %v6053
        %7548 = vmatpush1.bf16.msra.mxu0 %v6052
        %7549 = vmatprep.subr.bf16.mxu0 %v6057
        %7550 = vmatpush1.bf16.msra.mxu0 %v6056
        %7551 = vmatprep.subr.bf16.mxu0 %v6061
        %7552 = vmatpush1.bf16.msra.mxu0 %v6060
        %7553 = vmatprep.subr.bf16.mxu0 %v6065
        %7554 = vmatpush1.bf16.msra.mxu0 %v6064
        %7555 = vmatprep.subr.bf16.mxu0 %v6069
        %7556 = vmatpush1.bf16.msra.mxu0 %v6068
        %7557 = vmatprep.subr.bf16.mxu0 %v6073
        %7558 = vmatpush1.bf16.msra.mxu0 %v6072
        %7559 = vmatprep.subr.bf16.mxu0 %v6077
        %7560 = vmatpush1.bf16.msra.mxu0 %v6076
        %7561 = vmatprep.subr.bf16.mxu0 0
        %7562 = vmatpush1.bf16.msra.mxu0 0
        %7563 = vmatprep.subr.bf16.mxu0 0
        %7564 = vmatpush1.bf16.msra.mxu0 0
        %7565 = vmatprep.subr.bf16.mxu0 0
        %7566 = vmatpush1.bf16.msra.mxu0 0
        %7567 = vmatprep.subr.bf16.mxu0 0
        %7568 = vmatpush1.bf16.msra.mxu0 0
        %7569 = vmatprep.subr.bf16.mxu0 0
        %7570 = vmatpush1.bf16.msra.mxu0 0
        %7571 = vmatprep.subr.bf16.mxu0 0
        %7572 = vmatpush1.bf16.msra.mxu0 0
        %7573 = vmatprep.subr.bf16.mxu0 0
        %7574 = vmatpush1.bf16.msra.mxu0 0
        %7575 = vmatprep.subr.bf16.mxu0 0
        %7576 = vmatpush1.bf16.msra.mxu0 0
        %7577 = vmatprep.mubr.bf16.mxu0 0
        %7578 = vmatmul.mubr.bf16.gmra.mrb[0].mxu0 %v7502
        %v7579 = vpop.f32.mrb[0].mxu0
        %v7580 = vadd.f32 0.0, %v7579
        %v7581 = vpop.f32.mrb[0].mxu0
        %v7582 = vadd.f32 0.0, %v7581
        %v7583 = vpop.f32.mrb[0].mxu0
        %v7584 = vpop.f32.mrb[0].mxu0
        %7585 = vdwg.mxu0
        %v7590 = vrot.slane %v7539, 5
        %v7591 = vrot.slane %v7541, 5
        %v7592 = vrot.slane %v7580, 5
        %v7593 = vrot.slane %v7582, 5
        %v7598 = vadd.f32 %v5868, %v7590
        %v7599 = vadd.f32 %v5870, %v7591
        %v7600 = vadd.f32 %v5911, %v7592
        %v7601 = vadd.f32 %v5913, %v7593
        %v7602 = vxor.u32 %v7598, 2147483648
        %v7603 = vmul.f32 %v7602, 1.442695
        %v7604 = vpow.pop %v7603
        %v7605 = vadd.f32 %v7604, 1.0
        %v7606 = vrcp.pop %v7605
        %v7607 = vmul.f32 1.0, %v7606
        %v7608 = vxor.u32 %v7599, 2147483648
        %v7609 = vmul.f32 %v7608, 1.442695
        %v7610 = vpow.pop %v7609
        %v7611 = vadd.f32 %v7610, 1.0
        %v7612 = vrcp.pop %v7611
        %v7613 = vmul.f32 1.0, %v7612
        %v7614 = vtanh.pop %v7600
        %v7615 = vxor.u32 %v7601, 2147483648
        %v7616 = vmul.f32 %v7615, 1.442695
        %v7617 = vpow.pop %v7616
        %v7618 = vadd.f32 %v7617, 1.0
        %v7619 = vrcp.pop %v7618
        %v7620 = vmul.f32 1.0, %v7619
        %v7622 = vrot.slane %v7497, 7
        %v7624 = vmul.f32 %v7613, %v7622
        %v7625 = vmul.f32 %v7607, %v7614
        %v7626 = vadd.f32 %v7624, %v7625
        %v7627 = vtanh.pop %v7626
        %v7628 = vmul.f32 %v7620, %v7627
        %v7629 = vpack.c.bf16 %v7628, %v7628
        %v7631 = vshrl.u32 %v7629, 16
        %v7633 = vrot.slane %v7631, 1
        %7635 = vmatprep.subr.bf16.mxu0 %v6047
        %7636 = vmatpush1.bf16.msra.mxu0 %v6046
        %7637 = vmatprep.subr.bf16.mxu0 %v6051
        %7638 = vmatpush1.bf16.msra.mxu0 %v6050
        %7639 = vmatprep.subr.bf16.mxu0 %v6055
        %7640 = vmatpush1.bf16.msra.mxu0 %v6054
        %7641 = vmatprep.subr.bf16.mxu0 %v6059
        %7642 = vmatpush1.bf16.msra.mxu0 %v6058
        %7643 = vmatprep.subr.bf16.mxu0 %v6063
        %7644 = vmatpush1.bf16.msra.mxu0 %v6062
        %7645 = vmatprep.subr.bf16.mxu0 %v6067
        %7646 = vmatpush1.bf16.msra.mxu0 %v6066
        %7647 = vmatprep.subr.bf16.mxu0 %v6071
        %7648 = vmatpush1.bf16.msra.mxu0 %v6070
        %7649 = vmatprep.subr.bf16.mxu0 %v6075
        %7650 = vmatpush1.bf16.msra.mxu0 %v6074
        %7651 = vmatprep.subr.bf16.mxu0 0
        %7652 = vmatpush1.bf16.msra.mxu0 0
        %7653 = vmatprep.subr.bf16.mxu0 0
        %7654 = vmatpush1.bf16.msra.mxu0 0
        %7655 = vmatprep.subr.bf16.mxu0 0
        %7656 = vmatpush1.bf16.msra.mxu0 0
        %7657 = vmatprep.subr.bf16.mxu0 0
        %7658 = vmatpush1.bf16.msra.mxu0 0
        %7659 = vmatprep.subr.bf16.mxu0 0
        %7660 = vmatpush1.bf16.msra.mxu0 0
        %7661 = vmatprep.subr.bf16.mxu0 0
        %7662 = vmatpush1.bf16.msra.mxu0 0
        %7663 = vmatprep.subr.bf16.mxu0 0
        %7664 = vmatpush1.bf16.msra.mxu0 0
        %7665 = vmatprep.subr.bf16.mxu0 0
        %7666 = vmatpush1.bf16.msra.mxu0 0
        %7667 = vmatprep.mubr.bf16.mxu0 0
        %7668 = vmatmul.mubr.bf16.gmra.mrb[0].mxu0 %v7633
        %v7669 = vpop.f32.mrb[0].mxu0
        %v7670 = vadd.f32 0.0, %v7669
        %v7671 = vpop.f32.mrb[0].mxu0
        %v7672 = vadd.f32 0.0, %v7671
        %v7673 = vpop.f32.mrb[0].mxu0
        %v7674 = vpop.f32.mrb[0].mxu0
        %7675 = vdwg.mxu0
        %7676 = vmatprep.subr.bf16.mxu0 %v6049
        %7677 = vmatpush1.bf16.msra.mxu0 %v6048
        %7678 = vmatprep.subr.bf16.mxu0 %v6053
        %7679 = vmatpush1.bf16.msra.mxu0 %v6052
        %7680 = vmatprep.subr.bf16.mxu0 %v6057
        %7681 = vmatpush1.bf16.msra.mxu0 %v6056
        %7682 = vmatprep.subr.bf16.mxu0 %v6061
        %7683 = vmatpush1.bf16.msra.mxu0 %v6060
        %7684 = vmatprep.subr.bf16.mxu0 %v6065
        %7685 = vmatpush1.bf16.msra.mxu0 %v6064
        %7686 = vmatprep.subr.bf16.mxu0 %v6069
        %7687 = vmatpush1.bf16.msra.mxu0 %v6068
        %7688 = vmatprep.subr.bf16.mxu0 %v6073
        %7689 = vmatpush1.bf16.msra.mxu0 %v6072
        %7690 = vmatprep.subr.bf16.mxu0 %v6077
        %7691 = vmatpush1.bf16.msra.mxu0 %v6076
        %7692 = vmatprep.subr.bf16.mxu0 0
        %7693 = vmatpush1.bf16.msra.mxu0 0
        %7694 = vmatprep.subr.bf16.mxu0 0
        %7695 = vmatpush1.bf16.msra.mxu0 0
        %7696 = vmatprep.subr.bf16.mxu0 0
        %7697 = vmatpush1.bf16.msra.mxu0 0
        %7698 = vmatprep.subr.bf16.mxu0 0
        %7699 = vmatpush1.bf16.msra.mxu0 0
        %7700 = vmatprep.subr.bf16.mxu0 0
        %7701 = vmatpush1.bf16.msra.mxu0 0
        %7702 = vmatprep.subr.bf16.mxu0 0
        %7703 = vmatpush1.bf16.msra.mxu0 0
        %7704 = vmatprep.subr.bf16.mxu0 0
        %7705 = vmatpush1.bf16.msra.mxu0 0
        %7706 = vmatprep.subr.bf16.mxu0 0
        %7707 = vmatpush1.bf16.msra.mxu0 0
        %7708 = vmatprep.mubr.bf16.mxu0 0
        %7709 = vmatmul.mubr.bf16.gmra.mrb[0].mxu0 %v7633
        %v7710 = vpop.f32.mrb[0].mxu0
        %v7711 = vadd.f32 0.0, %v7710
        %v7712 = vpop.f32.mrb[0].mxu0
        %v7713 = vadd.f32 0.0, %v7712
        %v7714 = vpop.f32.mrb[0].mxu0
        %v7715 = vpop.f32.mrb[0].mxu0
        %7716 = vdwg.mxu0
        %v7721 = vrot.slane %v7670, 4
        %v7722 = vrot.slane %v7672, 4
        %v7723 = vrot.slane %v7711, 4
        %v7724 = vrot.slane %v7713, 4
        %v7729 = vadd.f32 %v5868, %v7721
        %v7730 = vadd.f32 %v5870, %v7722
        %v7731 = vadd.f32 %v5911, %v7723
        %v7732 = vadd.f32 %v5913, %v7724
        %v7733 = vxor.u32 %v7729, 2147483648
        %v7734 = vmul.f32 %v7733, 1.442695
        %v7735 = vpow.pop %v7734
        %v7736 = vadd.f32 %v7735, 1.0
        %v7737 = vrcp.pop %v7736
        %v7738 = vmul.f32 1.0, %v7737
        %v7739 = vxor.u32 %v7730, 2147483648
        %v7740 = vmul.f32 %v7739, 1.442695
        %v7741 = vpow.pop %v7740
        %v7742 = vadd.f32 %v7741, 1.0
        %v7743 = vrcp.pop %v7742
        %v7744 = vmul.f32 1.0, %v7743
        %v7745 = vtanh.pop %v7731
        %v7746 = vxor.u32 %v7732, 2147483648
        %v7747 = vmul.f32 %v7746, 1.442695
        %v7748 = vpow.pop %v7747
        %v7749 = vadd.f32 %v7748, 1.0
        %v7750 = vrcp.pop %v7749
        %v7751 = vmul.f32 1.0, %v7750
        %v7753 = vrot.slane %v7626, 7
        %v7755 = vmul.f32 %v7744, %v7753
        %v7756 = vmul.f32 %v7738, %v7745
        %v7757 = vadd.f32 %v7755, %v7756
        %v7758 = vtanh.pop %v7757
        %v7759 = vmul.f32 %v7751, %v7758
        %v7760 = vpack.c.bf16 %v7759, %v7759
        %v7762 = vrot.slane %v7760, 2
        %7764 = vmatprep.subr.bf16.mxu0 %v6047
        %7765 = vmatpush1.bf16.msra.mxu0 %v6046
        %7766 = vmatprep.subr.bf16.mxu0 %v6051
        %7767 = vmatpush1.bf16.msra.mxu0 %v6050
        %7768 = vmatprep.subr.bf16.mxu0 %v6055
        %7769 = vmatpush1.bf16.msra.mxu0 %v6054
        %7770 = vmatprep.subr.bf16.mxu0 %v6059
        %7771 = vmatpush1.bf16.msra.mxu0 %v6058
        %7772 = vmatprep.subr.bf16.mxu0 %v6063
        %7773 = vmatpush1.bf16.msra.mxu0 %v6062
        %7774 = vmatprep.subr.bf16.mxu0 %v6067
        %7775 = vmatpush1.bf16.msra.mxu0 %v6066
        %7776 = vmatprep.subr.bf16.mxu0 %v6071
        %7777 = vmatpush1.bf16.msra.mxu0 %v6070
        %7778 = vmatprep.subr.bf16.mxu0 %v6075
        %7779 = vmatpush1.bf16.msra.mxu0 %v6074
        %7780 = vmatprep.subr.bf16.mxu0 0
        %7781 = vmatpush1.bf16.msra.mxu0 0
        %7782 = vmatprep.subr.bf16.mxu0 0
        %7783 = vmatpush1.bf16.msra.mxu0 0
        %7784 = vmatprep.subr.bf16.mxu0 0
        %7785 = vmatpush1.bf16.msra.mxu0 0
        %7786 = vmatprep.subr.bf16.mxu0 0
        %7787 = vmatpush1.bf16.msra.mxu0 0
        %7788 = vmatprep.subr.bf16.mxu0 0
        %7789 = vmatpush1.bf16.msra.mxu0 0
        %7790 = vmatprep.subr.bf16.mxu0 0
        %7791 = vmatpush1.bf16.msra.mxu0 0
        %7792 = vmatprep.subr.bf16.mxu0 0
        %7793 = vmatpush1.bf16.msra.mxu0 0
        %7794 = vmatprep.subr.bf16.mxu0 0
        %7795 = vmatpush1.bf16.msra.mxu0 0
        %7796 = vmatprep.mubr.bf16.mxu0 0
        %7797 = vmatmul.mubr.bf16.gmra.mrb[0].mxu0 %v7762
        %v7798 = vpop.f32.mrb[0].mxu0
        %v7799 = vadd.f32 0.0, %v7798
        %v7800 = vpop.f32.mrb[0].mxu0
        %v7801 = vadd.f32 0.0, %v7800
        %v7802 = vpop.f32.mrb[0].mxu0
        %v7803 = vpop.f32.mrb[0].mxu0
        %7804 = vdwg.mxu0
        %7805 = vmatprep.subr.bf16.mxu0 %v6049
        %7806 = vmatpush1.bf16.msra.mxu0 %v6048
        %7807 = vmatprep.subr.bf16.mxu0 %v6053
        %7808 = vmatpush1.bf16.msra.mxu0 %v6052
        %7809 = vmatprep.subr.bf16.mxu0 %v6057
        %7810 = vmatpush1.bf16.msra.mxu0 %v6056
        %7811 = vmatprep.subr.bf16.mxu0 %v6061
        %7812 = vmatpush1.bf16.msra.mxu0 %v6060
        %7813 = vmatprep.subr.bf16.mxu0 %v6065
        %7814 = vmatpush1.bf16.msra.mxu0 %v6064
        %7815 = vmatprep.subr.bf16.mxu0 %v6069
        %7816 = vmatpush1.bf16.msra.mxu0 %v6068
        %7817 = vmatprep.subr.bf16.mxu0 %v6073
        %7818 = vmatpush1.bf16.msra.mxu0 %v6072
        %7819 = vmatprep.subr.bf16.mxu0 %v6077
        %7820 = vmatpush1.bf16.msra.mxu0 %v6076
        %7821 = vmatprep.subr.bf16.mxu0 0
        %7822 = vmatpush1.bf16.msra.mxu0 0
        %7823 = vmatprep.subr.bf16.mxu0 0
        %7824 = vmatpush1.bf16.msra.mxu0 0
        %7825 = vmatprep.subr.bf16.mxu0 0
        %7826 = vmatpush1.bf16.msra.mxu0 0
        %7827 = vmatprep.subr.bf16.mxu0 0
        %7828 = vmatpush1.bf16.msra.mxu0 0
        %7829 = vmatprep.subr.bf16.mxu0 0
        %7830 = vmatpush1.bf16.msra.mxu0 0
        %7831 = vmatprep.subr.bf16.mxu0 0
        %7832 = vmatpush1.bf16.msra.mxu0 0
        %7833 = vmatprep.subr.bf16.mxu0 0
        %7834 = vmatpush1.bf16.msra.mxu0 0
        %7835 = vmatprep.subr.bf16.mxu0 0
        %7836 = vmatpush1.bf16.msra.mxu0 0
        %7837 = vmatprep.mubr.bf16.mxu0 0
        %7838 = vmatmul.mubr.bf16.gmra.mrb[0].mxu0 %v7762
        %v7839 = vpop.f32.mrb[0].mxu0
        %v7840 = vadd.f32 0.0, %v7839
        %v7841 = vpop.f32.mrb[0].mxu0
        %v7842 = vadd.f32 0.0, %v7841
        %v7843 = vpop.f32.mrb[0].mxu0
        %v7844 = vpop.f32.mrb[0].mxu0
        %7845 = vdwg.mxu0
        %v7850 = vrot.slane %v7799, 3
        %v7851 = vrot.slane %v7801, 3
        %v7852 = vrot.slane %v7840, 3
        %v7853 = vrot.slane %v7842, 3
        %v7858 = vadd.f32 %v5868, %v7850
        %v7859 = vadd.f32 %v5870, %v7851
        %v7860 = vadd.f32 %v5911, %v7852
        %v7861 = vadd.f32 %v5913, %v7853
        %v7862 = vxor.u32 %v7858, 2147483648
        %v7863 = vmul.f32 %v7862, 1.442695
        %v7864 = vpow.pop %v7863
        %v7865 = vadd.f32 %v7864, 1.0
        %v7866 = vrcp.pop %v7865
        %v7867 = vmul.f32 1.0, %v7866
        %v7868 = vxor.u32 %v7859, 2147483648
        %v7869 = vmul.f32 %v7868, 1.442695
        %v7870 = vpow.pop %v7869
        %v7871 = vadd.f32 %v7870, 1.0
        %v7872 = vrcp.pop %v7871
        %v7873 = vmul.f32 1.0, %v7872
        %v7874 = vtanh.pop %v7860
        %v7875 = vxor.u32 %v7861, 2147483648
        %v7876 = vmul.f32 %v7875, 1.442695
        %v7877 = vpow.pop %v7876
        %v7878 = vadd.f32 %v7877, 1.0
        %v7879 = vrcp.pop %v7878
        %v7880 = vmul.f32 1.0, %v7879
        %v7882 = vrot.slane %v7757, 7
        %v7884 = vmul.f32 %v7873, %v7882
        %v7885 = vmul.f32 %v7867, %v7874
        %v7886 = vadd.f32 %v7884, %v7885
        %v7887 = vtanh.pop %v7886
        %v7888 = vmul.f32 %v7880, %v7887
        %v7889 = vpack.c.bf16 %v7888, %v7888
        %v7891 = vshrl.u32 %v7889, 16
        %v7893 = vrot.slane %v7891, 2
        %7895 = vmatprep.subr.bf16.mxu0 %v6047
        %7896 = vmatpush1.bf16.msra.mxu0 %v6046
        %7897 = vmatprep.subr.bf16.mxu0 %v6051
        %7898 = vmatpush1.bf16.msra.mxu0 %v6050
        %7899 = vmatprep.subr.bf16.mxu0 %v6055
        %7900 = vmatpush1.bf16.msra.mxu0 %v6054
        %7901 = vmatprep.subr.bf16.mxu0 %v6059
        %7902 = vmatpush1.bf16.msra.mxu0 %v6058
        %7903 = vmatprep.subr.bf16.mxu0 %v6063
        %7904 = vmatpush1.bf16.msra.mxu0 %v6062
        %7905 = vmatprep.subr.bf16.mxu0 %v6067
        %7906 = vmatpush1.bf16.msra.mxu0 %v6066
        %7907 = vmatprep.subr.bf16.mxu0 %v6071
        %7908 = vmatpush1.bf16.msra.mxu0 %v6070
        %7909 = vmatprep.subr.bf16.mxu0 %v6075
        %7910 = vmatpush1.bf16.msra.mxu0 %v6074
        %7911 = vmatprep.subr.bf16.mxu0 0
        %7912 = vmatpush1.bf16.msra.mxu0 0
        %7913 = vmatprep.subr.bf16.mxu0 0
        %7914 = vmatpush1.bf16.msra.mxu0 0
        %7915 = vmatprep.subr.bf16.mxu0 0
        %7916 = vmatpush1.bf16.msra.mxu0 0
        %7917 = vmatprep.subr.bf16.mxu0 0
        %7918 = vmatpush1.bf16.msra.mxu0 0
        %7919 = vmatprep.subr.bf16.mxu0 0
        %7920 = vmatpush1.bf16.msra.mxu0 0
        %7921 = vmatprep.subr.bf16.mxu0 0
        %7922 = vmatpush1.bf16.msra.mxu0 0
        %7923 = vmatprep.subr.bf16.mxu0 0
        %7924 = vmatpush1.bf16.msra.mxu0 0
        %7925 = vmatprep.subr.bf16.mxu0 0
        %7926 = vmatpush1.bf16.msra.mxu0 0
        %7927 = vmatprep.mubr.bf16.mxu0 0
        %7928 = vmatmul.mubr.bf16.gmra.mrb[0].mxu0 %v7893
        %v7929 = vpop.f32.mrb[0].mxu0
        %v7930 = vadd.f32 0.0, %v7929
        %v7931 = vpop.f32.mrb[0].mxu0
        %v7932 = vadd.f32 0.0, %v7931
        %v7933 = vpop.f32.mrb[0].mxu0
        %v7934 = vpop.f32.mrb[0].mxu0
        %7935 = vdwg.mxu0
        %7936 = vmatprep.subr.bf16.mxu0 %v6049
        %7937 = vmatpush1.bf16.msra.mxu0 %v6048
        %7938 = vmatprep.subr.bf16.mxu0 %v6053
        %7939 = vmatpush1.bf16.msra.mxu0 %v6052
        %7940 = vmatprep.subr.bf16.mxu0 %v6057
        %7941 = vmatpush1.bf16.msra.mxu0 %v6056
        %7942 = vmatprep.subr.bf16.mxu0 %v6061
        %7943 = vmatpush1.bf16.msra.mxu0 %v6060
        %7944 = vmatprep.subr.bf16.mxu0 %v6065
        %7945 = vmatpush1.bf16.msra.mxu0 %v6064
        %7946 = vmatprep.subr.bf16.mxu0 %v6069
        %7947 = vmatpush1.bf16.msra.mxu0 %v6068
        %7948 = vmatprep.subr.bf16.mxu0 %v6073
        %7949 = vmatpush1.bf16.msra.mxu0 %v6072
        %7950 = vmatprep.subr.bf16.mxu0 %v6077
        %7951 = vmatpush1.bf16.msra.mxu0 %v6076
        %7952 = vmatprep.subr.bf16.mxu0 0
        %7953 = vmatpush1.bf16.msra.mxu0 0
        %7954 = vmatprep.subr.bf16.mxu0 0
        %7955 = vmatpush1.bf16.msra.mxu0 0
        %7956 = vmatprep.subr.bf16.mxu0 0
        %7957 = vmatpush1.bf16.msra.mxu0 0
        %7958 = vmatprep.subr.bf16.mxu0 0
        %7959 = vmatpush1.bf16.msra.mxu0 0
        %7960 = vmatprep.subr.bf16.mxu0 0
        %7961 = vmatpush1.bf16.msra.mxu0 0
        %7962 = vmatprep.subr.bf16.mxu0 0
        %7963 = vmatpush1.bf16.msra.mxu0 0
        %7964 = vmatprep.subr.bf16.mxu0 0
        %7965 = vmatpush1.bf16.msra.mxu0 0
        %7966 = vmatprep.subr.bf16.mxu0 0
        %7967 = vmatpush1.bf16.msra.mxu0 0
        %7968 = vmatprep.mubr.bf16.mxu0 0
        %7969 = vmatmul.mubr.bf16.gmra.mrb[0].mxu0 %v7893
        %v7970 = vpop.f32.mrb[0].mxu0
        %v7971 = vadd.f32 0.0, %v7970
        %v7972 = vpop.f32.mrb[0].mxu0
        %v7973 = vadd.f32 0.0, %v7972
        %v7974 = vpop.f32.mrb[0].mxu0
        %v7975 = vpop.f32.mrb[0].mxu0
        %7976 = vdwg.mxu0
        %v7981 = vrot.slane %v7930, 2
        %v7982 = vrot.slane %v7932, 2
        %v7983 = vrot.slane %v7971, 2
        %v7984 = vrot.slane %v7973, 2
        %v7989 = vadd.f32 %v5868, %v7981
        %v7990 = vadd.f32 %v5870, %v7982
        %v7991 = vadd.f32 %v5911, %v7983
        %v7992 = vadd.f32 %v5913, %v7984
        %v7993 = vxor.u32 %v7989, 2147483648
        %v7994 = vmul.f32 %v7993, 1.442695
        %v7995 = vpow.pop %v7994
        %v7996 = vadd.f32 %v7995, 1.0
        %v7997 = vrcp.pop %v7996
        %v7998 = vmul.f32 1.0, %v7997
        %v7999 = vxor.u32 %v7990, 2147483648
        %v8000 = vmul.f32 %v7999, 1.442695
        %v8001 = vpow.pop %v8000
        %v8002 = vadd.f32 %v8001, 1.0
        %v8003 = vrcp.pop %v8002
        %v8004 = vmul.f32 1.0, %v8003
        %v8005 = vtanh.pop %v7991
        %v8006 = vxor.u32 %v7992, 2147483648
        %v8007 = vmul.f32 %v8006, 1.442695
        %v8008 = vpow.pop %v8007
        %v8009 = vadd.f32 %v8008, 1.0
        %v8010 = vrcp.pop %v8009
        %v8011 = vmul.f32 1.0, %v8010
        %v8013 = vrot.slane %v7886, 7
        %v8015 = vmul.f32 %v8004, %v8013
        %v8016 = vmul.f32 %v7998, %v8005
        %v8017 = vadd.f32 %v8015, %v8016
        %v8018 = vtanh.pop %v8017
        %v8019 = vmul.f32 %v8011, %v8018
        %v8020 = vpack.c.bf16 %v8019, %v8019
        %v8022 = vrot.slane %v8020, 3
        %8024 = vmatprep.subr.bf16.mxu0 %v6047
        %8025 = vmatpush1.bf16.msra.mxu0 %v6046
        %8026 = vmatprep.subr.bf16.mxu0 %v6051
        %8027 = vmatpush1.bf16.msra.mxu0 %v6050
        %8028 = vmatprep.subr.bf16.mxu0 %v6055
        %8029 = vmatpush1.bf16.msra.mxu0 %v6054
        %8030 = vmatprep.subr.bf16.mxu0 %v6059
        %8031 = vmatpush1.bf16.msra.mxu0 %v6058
        %8032 = vmatprep.subr.bf16.mxu0 %v6063
        %8033 = vmatpush1.bf16.msra.mxu0 %v6062
        %8034 = vmatprep.subr.bf16.mxu0 %v6067
        %8035 = vmatpush1.bf16.msra.mxu0 %v6066
        %8036 = vmatprep.subr.bf16.mxu0 %v6071
        %8037 = vmatpush1.bf16.msra.mxu0 %v6070
        %8038 = vmatprep.subr.bf16.mxu0 %v6075
        %8039 = vmatpush1.bf16.msra.mxu0 %v6074
        %8040 = vmatprep.subr.bf16.mxu0 0
        %8041 = vmatpush1.bf16.msra.mxu0 0
        %8042 = vmatprep.subr.bf16.mxu0 0
        %8043 = vmatpush1.bf16.msra.mxu0 0
        %8044 = vmatprep.subr.bf16.mxu0 0
        %8045 = vmatpush1.bf16.msra.mxu0 0
        %8046 = vmatprep.subr.bf16.mxu0 0
        %8047 = vmatpush1.bf16.msra.mxu0 0
        %8048 = vmatprep.subr.bf16.mxu0 0
        %8049 = vmatpush1.bf16.msra.mxu0 0
        %8050 = vmatprep.subr.bf16.mxu0 0
        %8051 = vmatpush1.bf16.msra.mxu0 0
        %8052 = vmatprep.subr.bf16.mxu0 0
        %8053 = vmatpush1.bf16.msra.mxu0 0
        %8054 = vmatprep.subr.bf16.mxu0 0
        %8055 = vmatpush1.bf16.msra.mxu0 0
        %8056 = vmatprep.mubr.bf16.mxu0 0
        %8057 = vmatmul.mubr.bf16.gmra.mrb[0].mxu0 %v8022
        %v8058 = vpop.f32.mrb[0].mxu0
        %v8059 = vadd.f32 0.0, %v8058
        %v8060 = vpop.f32.mrb[0].mxu0
        %v8061 = vadd.f32 0.0, %v8060
        %v8062 = vpop.f32.mrb[0].mxu0
        %v8063 = vpop.f32.mrb[0].mxu0
        %8064 = vdwg.mxu0
        %8065 = vmatprep.subr.bf16.mxu0 %v6049
        %8066 = vmatpush1.bf16.msra.mxu0 %v6048
        %8067 = vmatprep.subr.bf16.mxu0 %v6053
        %8068 = vmatpush1.bf16.msra.mxu0 %v6052
        %8069 = vmatprep.subr.bf16.mxu0 %v6057
        %8070 = vmatpush1.bf16.msra.mxu0 %v6056
        %8071 = vmatprep.subr.bf16.mxu0 %v6061
        %8072 = vmatpush1.bf16.msra.mxu0 %v6060
        %8073 = vmatprep.subr.bf16.mxu0 %v6065
        %8074 = vmatpush1.bf16.msra.mxu0 %v6064
        %8075 = vmatprep.subr.bf16.mxu0 %v6069
        %8076 = vmatpush1.bf16.msra.mxu0 %v6068
        %8077 = vmatprep.subr.bf16.mxu0 %v6073
        %8078 = vmatpush1.bf16.msra.mxu0 %v6072
        %8079 = vmatprep.subr.bf16.mxu0 %v6077
        %8080 = vmatpush1.bf16.msra.mxu0 %v6076
        %8081 = vmatprep.subr.bf16.mxu0 0
        %8082 = vmatpush1.bf16.msra.mxu0 0
        %8083 = vmatprep.subr.bf16.mxu0 0
        %8084 = vmatpush1.bf16.msra.mxu0 0
        %8085 = vmatprep.subr.bf16.mxu0 0
        %8086 = vmatpush1.bf16.msra.mxu0 0
        %8087 = vmatprep.subr.bf16.mxu0 0
        %8088 = vmatpush1.bf16.msra.mxu0 0
        %8089 = vmatprep.subr.bf16.mxu0 0
        %8090 = vmatpush1.bf16.msra.mxu0 0
        %8091 = vmatprep.subr.bf16.mxu0 0
        %8092 = vmatpush1.bf16.msra.mxu0 0
        %8093 = vmatprep.subr.bf16.mxu0 0
        %8094 = vmatpush1.bf16.msra.mxu0 0
        %8095 = vmatprep.subr.bf16.mxu0 0
        %8096 = vmatpush1.bf16.msra.mxu0 0
        %8097 = vmatprep.mubr.bf16.mxu0 0
        %8098 = vmatmul.mubr.bf16.gmra.mrb[0].mxu0 %v8022
        %v8099 = vpop.f32.mrb[0].mxu0
        %v8100 = vadd.f32 0.0, %v8099
        %v8101 = vpop.f32.mrb[0].mxu0
        %v8102 = vadd.f32 0.0, %v8101
        %v8103 = vpop.f32.mrb[0].mxu0
        %v8104 = vpop.f32.mrb[0].mxu0
        %8105 = vdwg.mxu0
        %v8110 = vrot.slane %v8059, 1
        %v8111 = vrot.slane %v8061, 1
        %v8112 = vrot.slane %v8100, 1
        %v8113 = vrot.slane %v8102, 1
        %v8118 = vadd.f32 %v5868, %v8110
        %v8119 = vadd.f32 %v5870, %v8111
        %v8120 = vadd.f32 %v5911, %v8112
        %v8121 = vadd.f32 %v5913, %v8113
        %v8122 = vxor.u32 %v8118, 2147483648
        %v8123 = vmul.f32 %v8122, 1.442695
        %v8124 = vpow.pop %v8123
        %v8125 = vadd.f32 %v8124, 1.0
        %v8126 = vrcp.pop %v8125
        %v8127 = vmul.f32 1.0, %v8126
        %v8128 = vxor.u32 %v8119, 2147483648
        %v8129 = vmul.f32 %v8128, 1.442695
        %v8130 = vpow.pop %v8129
        %v8131 = vadd.f32 %v8130, 1.0
        %v8132 = vrcp.pop %v8131
        %v8133 = vmul.f32 1.0, %v8132
        %v8134 = vtanh.pop %v8120
        %v8135 = vxor.u32 %v8121, 2147483648
        %v8136 = vmul.f32 %v8135, 1.442695
        %v8137 = vpow.pop %v8136
        %v8138 = vadd.f32 %v8137, 1.0
        %v8139 = vrcp.pop %v8138
        %v8140 = vmul.f32 1.0, %v8139
        %v8142 = vrot.slane %v8017, 7
        %v8144 = vmul.f32 %v8133, %v8142
        %v8145 = vmul.f32 %v8127, %v8134
        %v8146 = vadd.f32 %v8144, %v8145
        %v8147 = vtanh.pop %v8146
        %v8148 = vmul.f32 %v8140, %v8147
        %8149 = vst [vmem:[#allocation6 - $0x7] sm:$0x80] %v8148
        %8150 = vst [vmem:[#allocation7 - $0x7] sm:$0x80] %v8146
        %v8151 = vsel %vm3042, %v6219, %v6345
        %v8152 = vsel %vm3044, %v8151, %v6475
        %v8153 = vsel %vm3046, %v8152, %v6604
        %v8154 = vsel %vm3048, %v8153, %v6735
        %v8155 = vsel %vm3050, %v8154, %v6864
        %v8156 = vsel %vm3052, %v8155, %v6995
        %v8157 = vsel %vm3054, %v8156, %v7124
        %v8158 = vsel %vm3042, %v7243, %v7369
        %v8159 = vsel %vm3044, %v8158, %v7499
        %v8160 = vsel %vm3046, %v8159, %v7628
        %v8161 = vsel %vm3048, %v8160, %v7759
        %v8162 = vsel %vm3050, %v8161, %v7888
        %v8163 = vsel %vm3052, %v8162, %v8019
        %v8164 = vsel %vm3054, %v8163, %v8148
        %v8165 = vpack.c.bf16 %v8164, %v8157
        %v8167 = vunpack.c.l.b16 %v8165
        %v8168 = vunpack.c.h.b16 %v8165
        %v8169 = vpack.c.b16 %v8167, %v8167
        %v8170 = vpack.c.b16 %v8168, %v8168
        %8173 = vst [vmem:[%s485] sm:$0xf] %v8169
        %8174 = vst [vmem:[%s485 + $0x4] sm:$0xf] %v8170
        %s8175 = smul.u32 2, %s30
        %p8176 = scmp.lt.s32.totalorder %s29, 1
        %s8177 = scalar_select %p8176, %s29, 1
        %p8178 = scmp.lt.s32.totalorder %s8175, 1
        %s8179 = scalar_select %p8178, %s8175, 1
        %s8180 = smul.addr %s8177, 2
        %s8181 = sadd.s32 %s8179, %s8180
        %s8182 = smul.addr %s8181, 4
        %s8183 = scalar_lea.vmem %s10, %s8182
        // Predicated region
        $region89: #{lstm_lm_forward.2} parent=59 // pred_check
          %p8184 = pneg %p274
        $region90: #{lstm_lm_forward.2} parent=59 // pred_check_branch
          %8186 = sbr.rel (%p8184) target = $region92
        $region91: #{lstm_lm_forward.2} parent=59 // pred_region
          %s8187 = smul.u32 2, %s30
        $region92: #{lstm_lm_forward.2} parent=59 // pred_fallthru
          _
      $region60: #{lstm_lm_forward.2} parent=5 // pred_fallthru
        _
      %p8188 = scmp.le.s32.totalorder 2, %s20
      // Predicated region
      $region93: #{lstm_lm_forward.2} parent=5 // pred_check
        %p8189 = pneg %p8188
      $region94: #{lstm_lm_forward.2} parent=5 // pred_check_branch
        %8191 = sbr.rel (%p8189) target = $region96
      $region95: #{lstm_lm_forward.2} parent=5 // pred_region
        %s8192 = ssub.s32 %s20, 2
        // Predicated region
        $region97: #{lstm_lm_forward.2} parent=95 // pred_check
          %p8193 = pneg %p280
        $region98: #{lstm_lm_forward.2} parent=95 // pred_check_branch
          %8195 = sbr.rel (%p8193) target = $region100
        $region99: #{lstm_lm_forward.2} parent=95 // pred_region
          %s8196 = smul.u32 2, %s32
          %p8197 = scmp.lt.s32.totalorder %s31, 1
          %s8198 = scalar_select %p8197, %s31, 1
          %p8199 = scmp.lt.s32.totalorder %s8196, 1
          %s8200 = scalar_select %p8199, %s8196, 1
          %s8201 = smul.addr %s8198, 2
          %s8202 = sadd.s32 %s8200, %s8201
          %s8203 = smul.addr %s8202, 4
          %s8204 = scalar_lea.vmem %s10, %s8203
        $region100: #{lstm_lm_forward.2} parent=95 // pred_fallthru
          _
      $region96: #{lstm_lm_forward.2} parent=5 // pred_fallthru
        _
    $region6: #{lstm_lm_forward.2} parent=1 // loop_footer
      %s24 = sadd.s32 1, %s20
    $region7: #{lstm_lm_forward.2} parent=1 // loop_footer_branch
      %19 = sbr.rel target = $region3
    $region8: #{lstm_lm_forward.2} parent=1 // loop_exit
      _
    %8205 = vsyncpa [#allocation9], 1
    %s8206 = scalar_lea.sflag [#allocation9], 1
    %8207 = vsyncpa %s8206, 1
    %8208 = vsyncpa [#allocation11], 1
    %8209 = vsyncpa [#allocation14], 1
    %8210 = vsyncpa [#allocation17], 1

</llo_original>
